<compile_context>
chip_gen: v5e
topology: v5e:2x2
jax: 0.10.0
libtpu: 0.0.40
codegen_flags: <defaults>
</compile_context>

<pallas_src>
import functools

import numpy as np

import jax
import jax.numpy as jnp
from jax.experimental import pallas as pl
from jax.experimental.pallas import tpu as pltpu

EPS = 1e-5  # nn.BatchNorm2d default eps
_VMEM = pl.BlockSpec(memory_space=pltpu.MemorySpace.VMEM)


# --------------------- compile-time geometry (0/1 gather matrices) ---------------------

def _conv3x3_same_gather(h, w):
    """A[(i*w+j), t*S + (ii*w+jj)] = 1 for valid 3x3 'same' (pad=1) taps t=kh*3+kw."""
    s = h * w
    a = np.zeros((s, 9 * s), np.float32)
    for i in range(h):
        for j in range(w):
            for kh in range(3):
                for kw in range(3):
                    ii, jj = i + kh - 1, j + kw - 1
                    if 0 <= ii < h and 0 <= jj < w:
                        a[i * w + j, (kh * 3 + kw) * s + ii * w + jj] = 1.0
    return a


def _convT_gather(hi, wi, k, stride, pad):
    """Gather matrix for ConvTranspose2d: out(Y,X) += x(y,x) @ W[:,:,p,q], Y=stride*y-pad+p."""
    ho = (hi - 1) * stride - 2 * pad + k
    wo = (wi - 1) * stride - 2 * pad + k
    si = hi * wi
    g = np.zeros((ho * wo, k * k * si), np.float32)
    for yo in range(ho):
        for xo in range(wo):
            for yi in range(hi):
                for xi in range(wi):
                    p = yo + pad - stride * yi
                    q = xo + pad - stride * xi
                    if 0 <= p < k and 0 <= q < k:
                        g[yo * wo + xo, (p * k + q) * si + yi * wi + xi] = 1.0
    return g


@functools.lru_cache(maxsize=None)
def _gather_mats(batch):
    """Gather matrices expanded to the (spatial-major, batch-minor) row layout."""
    eye = np.eye(batch, dtype=np.float32)
    a2 = np.kron(_conv3x3_same_gather(4, 4), eye)        # (16B, 9*16B)   res2 3x3 convs
    g2 = np.kron(_convT_gather(4, 4, 4, 2, 1), eye)      # (64B, 16*16B)  conv2 transpose
    a3 = np.kron(_conv3x3_same_gather(8, 8), eye)        # (64B, 9*64B)   res3 3x3 convs
    return a2, g2, a3


# ------------------------------- in-kernel helpers -------------------------------

def _bn_train(y, gamma, beta):
    """BatchNorm2d forward with batch statistics (PyTorch training mode, biased var)."""
    mean = jnp.mean(y, axis=0, keepdims=True)
    var = jnp.mean(jnp.square(y - mean), axis=0, keepdims=True)
    return (y - mean) * jax.lax.rsqrt(var + EPS) * gamma + beta


def _stacked_conv(act, w_cat, vbuf_ref, taps, cout, gather=None):
    """conv as: per-tap matmuls (one fused matmul) -> stack in VMEM -> 0/1 gather matmul.

    act:   (R_in, Cin)            w_cat: (Cin, taps*Cout)   (lane block t = tap weight)
    vbuf:  (taps*R_in, Cout)      gather: (R_out, taps*R_in) or None (identity)
    """
    r_in = act.shape[0]
    u = jnp.dot(act, w_cat, preferred_element_type=jnp.float32)      # (R_in, taps*Cout)
    for t in range(taps):                                            # static unrolled stores
        vbuf_ref[t * r_in:(t + 1) * r_in, :] = u[:, t * cout:(t + 1) * cout]
    v = vbuf_ref[...]
    if gather is None:
        return v
    return jnp.dot(gather, v, preferred_element_type=jnp.float32)


def _res_block(act, w1, w2, gather, vec, vbuf_ref, cout):
    """ResidualBlockVAE forward. vec rows: [b1, g1, be1, b2, g2, be2]."""
    y = _stacked_conv(act, w1, vbuf_ref, 9, cout, gather) + vec[0:1, :]
    y = jnp.maximum(_bn_train(y, vec[1:2, :], vec[2:3, :]), 0.0)
    z = _stacked_conv(y, w2, vbuf_ref, 9, cout, gather) + vec[3:4, :]
    z = _bn_train(z, vec[4:5, :], vec[5:6, :]) + act
    return jnp.maximum(z, 0.0)


# ------------------------------- the fused kernel -------------------------------

def _decoder_kernel(x_ref,
                    r1w1_ref, r1w2_ref, r1v_ref,
                    c1w_ref, c1b_ref,
                    r2w1_ref, r2w2_ref, r2a_ref, r2v_ref,
                    c2w_ref, c2g_ref, c2b_ref,
                    r3w1_ref, r3w2_ref, r3a_ref, r3v_ref,
                    c3w_ref, c3b_ref,
                    out_ref,
                    vb_c1, vb_r2, vb_c2, vb_r3):
    # ---- res1 on a 1x1 grid: only the centre 3x3 tap touches data -> plain matmuls.
    x = x_ref[...]                                                    # (B, 64)
    r1v = r1v_ref[...]
    y = jnp.dot(x, r1w1_ref[...], preferred_element_type=jnp.float32) + r1v[0:1, :]
    y = jnp.maximum(_bn_train(y, r1v[1:2, :], r1v[2:3, :]), 0.0)
    z = jnp.dot(y, r1w2_ref[...], preferred_element_type=jnp.float32) + r1v[3:4, :]
    h = jnp.maximum(_bn_train(z, r1v[4:5, :], r1v[5:6, :]) + x, 0.0)  # (B, 64)

    # ---- conv1: ConvTranspose2d(64,64,4) on 1x1 input == 16 per-position matmuls,
    #      assembled into rows ordered (y, x, batch).
    a2 = _stacked_conv(h, c1w_ref[...], vb_c1, 16, 64, None)          # (16B, 64)
    a2 = jnp.maximum(a2 + c1b_ref[...], 0.0)

    # ---- res2 (4x4 grid, C=64).
    a2 = _res_block(a2, r2w1_ref[...], r2w2_ref[...], r2a_ref[...],
                    r2v_ref[...], vb_r2, 64)                          # (16B, 64)

    # ---- conv2: ConvTranspose2d(64,16,4,2,1) as dense per-tap matmuls + 0/1 gather
    #      (no zero-dilated buffer, no wasted MACs).
    a3 = _stacked_conv(a2, c2w_ref[...], vb_c2, 16, 16, c2g_ref[...])  # (64B, 16)
    a3 = jnp.maximum(a3 + c2b_ref[...], 0.0)

    # ---- res3 (8x8 grid, C=16).
    a3 = _res_block(a3, r3w1_ref[...], r3w2_ref[...], r3a_ref[...],
                    r3v_ref[...], vb_r3, 16)                          # (64B, 16)

    # ---- conv3: ConvTranspose2d(16,1,4,4,2); stride == K -> pure depth-to-space:
    #      one matmul producing the 4x4 output block per input pixel.
    blocks = jnp.dot(a3, c3w_ref[...], preferred_element_type=jnp.float32) + c3b_ref[...]
    out_ref[...] = jax.nn.sigmoid(blocks)                             # (64B, 16)


# ------------------------------- parameters -------------------------------

def init_params(key):
    """Random parameters in native PyTorch layouts."""
    keys = iter(jax.random.split(key, 64))

    def nrm(shape, scale=0.05):
        return (scale * jax.random.normal(next(keys), shape)).astype(jnp.float32)

    def resblock(c):
        return dict(
            conv1_w=nrm((c, c, 3, 3)), conv1_b=nrm((c,), 0.01),
            bn1_g=1.0 + nrm((c,), 0.1), bn1_b=nrm((c,), 0.1),
            conv2_w=nrm((c, c, 3, 3)), conv2_b=nrm((c,), 0.01),
            bn2_g=1.0 + nrm((c,), 0.1), bn2_b=nrm((c,), 0.1),
        )

    return dict(
        res1=resblock(64),
        conv1_w=nrm((64, 64, 4, 4)), conv1_b=nrm((64,), 0.01),   # ConvTranspose2d(64,64,4)
        res2=resblock(64),
        conv2_w=nrm((64, 16, 4, 4)), conv2_b=nrm((16,), 0.01),   # ConvTranspose2d(64,16,4,2,1)
        res3=resblock(16),
        conv3_w=nrm((16, 1, 4, 4)), conv3_b=nrm((1,), 0.01),     # ConvTranspose2d(16,1,4,4,2)
    )


def prepare_params(p):
    """Hoisted (one-time) weight-layout transforms: PyTorch layouts -> kernel layouts."""
    def conv3x3_cat(w):          # torch (Cout, Cin, 3, 3) -> (Cin, 9*Cout), tap-major lanes
        cout, cin = w.shape[0], w.shape[1]
        return jnp.transpose(w, (1, 2, 3, 0)).reshape(cin, 9 * cout)

    def convT_cat(w):            # torch (Cin, Cout, K, K) -> (Cin, K*K*Cout), tap-major lanes
        cin, cout, k, _ = w.shape
        return jnp.transpose(w, (0, 2, 3, 1)).reshape(cin, k * k * cout)

    def vec(blk):                # [conv_b, bn_gamma, bn_beta] x 2 -> (6, C)
        return jnp.stack([blk["conv1_b"], blk["bn1_g"], blk["bn1_b"],
                          blk["conv2_b"], blk["bn2_g"], blk["bn2_b"]], axis=0)

    r1, r2, r3 = p["res1"], p["res2"], p["res3"]
    return dict(
        # res1 runs on 1x1 spatial -> only the centre tap of each 3x3 kernel matters.
        r1_w1=jnp.transpose(r1["conv1_w"][:, :, 1, 1]),
        r1_w2=jnp.transpose(r1["conv2_w"][:, :, 1, 1]),
        r1_vec=vec(r1),
        c1_w=convT_cat(p["conv1_w"]), c1_b=p["conv1_b"][None, :],
        r2_w1=conv3x3_cat(r2["conv1_w"]), r2_w2=conv3x3_cat(r2["conv2_w"]), r2_vec=vec(r2),
        c2_w=convT_cat(p["conv2_w"]), c2_b=p["conv2_b"][None, :],
        r3_w1=conv3x3_cat(r3["conv1_w"]), r3_w2=conv3x3_cat(r3["conv2_w"]), r3_vec=vec(r3),
        c3_w=p["conv3_w"][:, 0, :, :].reshape(16, 16),
        c3_b=jnp.full((1, 16), p["conv3_b"][0], jnp.float32),
    )


# ------------------------------- forward pass -------------------------------

def res_conv_decoder(x_nchw, kp):
    b = x_nchw.shape[0]
    a2m, g2m, a3m = _gather_mats(b)                       # compile-time numpy constants
    x = x_nchw.reshape(b, 64).astype(jnp.float32)         # (B, 64, 1, 1) -> (B, 64)

    inputs = (x,
              kp["r1_w1"], kp["r1_w2"], kp["r1_vec"],
              kp["c1_w"], kp["c1_b"],
              kp["r2_w1"], kp["r2_w2"], jnp.asarray(a2m), kp["r2_vec"],
              kp["c2_w"], jnp.asarray(g2m), kp["c2_b"],
              kp["r3_w1"], kp["r3_w2"], jnp.asarray(a3m), kp["r3_vec"],
              kp["c3_w"], kp["c3_b"])

    blocks = pl.pallas_call(
        _decoder_kernel,
        out_shape=jax.ShapeDtypeStruct((64 * b, 16), jnp.float32),
        in_specs=[_VMEM] * len(inputs),
        out_specs=_VMEM,
        scratch_shapes=[
            pltpu.VMEM((16 * b, 64), jnp.float32),        # conv1 assembly
            pltpu.VMEM((9 * 16 * b, 64), jnp.float32),    # res2 tap stack
            pltpu.VMEM((16 * 16 * b, 16), jnp.float32),   # conv2 tap stack
            pltpu.VMEM((9 * 64 * b, 16), jnp.float32),    # res3 tap stack
        ],
    )(*inputs)

    # Depth-to-space assembly of the stride-4 transpose conv + crop of padding 2
    # (8 KB array; single tiny XLA fusion -- pure layout plumbing, no compute).
    img = blocks.reshape(8, 8, b, 4, 4)                   # (y, x, batch, p, q)
    img = img.transpose(2, 0, 3, 1, 4).reshape(b, 32, 32)[:, 2:30, 2:30]
    return img[:, None, :, :]                             # NCHW (B, 1, 28, 28)


if __name__ == "__main__":
    key = jax.random.PRNGKey(0)
    pkey, xkey = jax.random.split(key)
    params = prepare_params(init_params(pkey))            # one-time layout prep (hoisted)
    x = jax.random.normal(xkey, (2, 64, 1, 1), dtype=jnp.float32)   # NCHW latent
    fwd = jax.jit(res_conv_decoder)
    out = jax.block_until_ready(fwd(x, params))
    assert out.shape == (2, 1, 28, 28), out.shape
    assert bool(jnp.all(jnp.isfinite(out)))
    assert bool(jnp.all((out >= 0.0) & (out <= 1.0)))     # sigmoid output range
    print("KERNEL_OK")
</pallas_src>

<mosaic_0001>
module attributes {stable_mosaic.version = 11 : i64} {
  func.func @_decoder_kernel(%arg0: memref<2x64xf32, #tpu.memory_space<vmem>>, %arg1: memref<64x64xf32, #tpu.memory_space<vmem>>, %arg2: memref<64x64xf32, #tpu.memory_space<vmem>>, %arg3: memref<6x64xf32, #tpu.memory_space<vmem>>, %arg4: memref<64x1024xf32, #tpu.memory_space<vmem>>, %arg5: memref<1x64xf32, #tpu.memory_space<vmem>>, %arg6: memref<64x576xf32, #tpu.memory_space<vmem>>, %arg7: memref<64x576xf32, #tpu.memory_space<vmem>>, %arg8: memref<32x288xf32, #tpu.memory_space<vmem>>, %arg9: memref<6x64xf32, #tpu.memory_space<vmem>>, %arg10: memref<64x256xf32, #tpu.memory_space<vmem>>, %arg11: memref<128x512xf32, #tpu.memory_space<vmem>>, %arg12: memref<1x16xf32, #tpu.memory_space<vmem>>, %arg13: memref<16x144xf32, #tpu.memory_space<vmem>>, %arg14: memref<16x144xf32, #tpu.memory_space<vmem>>, %arg15: memref<128x1152xf32, #tpu.memory_space<vmem>>, %arg16: memref<6x16xf32, #tpu.memory_space<vmem>>, %arg17: memref<16x16xf32, #tpu.memory_space<vmem>>, %arg18: memref<1x16xf32, #tpu.memory_space<vmem>>, %arg19: memref<128x16xf32, #tpu.memory_space<vmem>>, %arg20: memref<32x64xf32, #tpu.memory_space<vmem>>, %arg21: memref<288x64xf32, #tpu.memory_space<vmem>>, %arg22: memref<512x16xf32, #tpu.memory_space<vmem>>, %arg23: memref<1152x16xf32, #tpu.memory_space<vmem>>) attributes {dimension_semantics = [], scalar_prefetch = 0 : i64, scratch_operands = 4 : i64, tpu.core_type = #tpu.core_type<tc>} {
    %c0 = arith.constant 0 : index
    %c0_0 = arith.constant 0 : index
    %0 = vector.load %arg0[%c0, %c0_0] : memref<2x64xf32, #tpu.memory_space<vmem>>, vector<2x64xf32>
    %c0_1 = arith.constant 0 : index
    %c0_2 = arith.constant 0 : index
    %1 = vector.load %arg3[%c0_1, %c0_2] : memref<6x64xf32, #tpu.memory_space<vmem>>, vector<6x64xf32>
    %c0_3 = arith.constant 0 : index
    %c0_4 = arith.constant 0 : index
    %2 = vector.load %arg1[%c0_3, %c0_4] : memref<64x64xf32, #tpu.memory_space<vmem>>, vector<64x64xf32>
    %cst = arith.constant dense<0.000000e+00> : vector<2x64xf32>
    %3 = tpu.matmul %0, %2, %cst {dimension_numbers = #tpu.dot_dimension_numbers<[1], [0], [0], [1], [0, 0, 1, 1], [], []>} : vector<2x64xf32>, vector<64x64xf32>, vector<2x64xf32> -> vector<2x64xf32>
    %4 = vector.extract_strided_slice %1 {offsets = [0, 0], sizes = [1, 64], strides = [1, 1]} : vector<6x64xf32> to vector<1x64xf32>
    %5 = vector.broadcast %4 : vector<1x64xf32> to vector<2x64xf32>
    %6 = arith.addf %3, %5 : vector<2x64xf32>
    %7 = vector.extract_strided_slice %1 {offsets = [1, 0], sizes = [1, 64], strides = [1, 1]} : vector<6x64xf32> to vector<1x64xf32>
    %8 = vector.extract_strided_slice %1 {offsets = [2, 0], sizes = [1, 64], strides = [1, 1]} : vector<6x64xf32> to vector<1x64xf32>
    %cst_5 = arith.constant dense<0.000000e+00> : vector<64xf32>
    %9 = vector.multi_reduction <add>, %6, %cst_5 [0] : vector<2x64xf32> to vector<64xf32>
    %10 = vector.shape_cast %9 : vector<64xf32> to vector<1x64xf32>
    %cst_6 = arith.constant 2.000000e+00 : f32
    %11 = vector.broadcast %cst_6 : f32 to vector<1x64xf32>
    %12 = arith.divf %10, %11 : vector<1x64xf32>
    %13 = vector.broadcast %12 : vector<1x64xf32> to vector<2x64xf32>
    %14 = arith.subf %6, %13 : vector<2x64xf32>
    %15 = arith.mulf %14, %14 : vector<2x64xf32>
    %cst_7 = arith.constant dense<0.000000e+00> : vector<64xf32>
    %16 = vector.multi_reduction <add>, %15, %cst_7 [0] : vector<2x64xf32> to vector<64xf32>
    %17 = vector.shape_cast %16 : vector<64xf32> to vector<1x64xf32>
    %cst_8 = arith.constant 2.000000e+00 : f32
    %18 = vector.broadcast %cst_8 : f32 to vector<1x64xf32>
    %19 = arith.divf %17, %18 : vector<1x64xf32>
    %20 = vector.broadcast %12 : vector<1x64xf32> to vector<2x64xf32>
    %21 = arith.subf %6, %20 : vector<2x64xf32>
    %cst_9 = arith.constant 9.99999974E-6 : f32
    %22 = vector.broadcast %cst_9 : f32 to vector<1x64xf32>
    %23 = arith.addf %19, %22 : vector<1x64xf32>
    %24 = math.rsqrt %23 : vector<1x64xf32>
    %25 = vector.broadcast %24 : vector<1x64xf32> to vector<2x64xf32>
    %26 = arith.mulf %21, %25 : vector<2x64xf32>
    %27 = vector.broadcast %7 : vector<1x64xf32> to vector<2x64xf32>
    %28 = arith.mulf %26, %27 : vector<2x64xf32>
    %29 = vector.broadcast %8 : vector<1x64xf32> to vector<2x64xf32>
    %30 = arith.addf %28, %29 : vector<2x64xf32>
    %cst_10 = arith.constant 0.000000e+00 : f32
    %31 = vector.broadcast %cst_10 : f32 to vector<2x64xf32>
    %32 = arith.maximumf %30, %31 : vector<2x64xf32>
    %c0_11 = arith.constant 0 : index
    %c0_12 = arith.constant 0 : index
    %33 = vector.load %arg2[%c0_11, %c0_12] : memref<64x64xf32, #tpu.memory_space<vmem>>, vector<64x64xf32>
    %cst_13 = arith.constant dense<0.000000e+00> : vector<2x64xf32>
    %34 = tpu.matmul %32, %33, %cst_13 {dimension_numbers = #tpu.dot_dimension_numbers<[1], [0], [0], [1], [0, 0, 1, 1], [], []>} : vector<2x64xf32>, vector<64x64xf32>, vector<2x64xf32> -> vector<2x64xf32>
    %35 = vector.extract_strided_slice %1 {offsets = [3, 0], sizes = [1, 64], strides = [1, 1]} : vector<6x64xf32> to vector<1x64xf32>
    %36 = vector.broadcast %35 : vector<1x64xf32> to vector<2x64xf32>
    %37 = arith.addf %34, %36 : vector<2x64xf32>
    %38 = vector.extract_strided_slice %1 {offsets = [4, 0], sizes = [1, 64], strides = [1, 1]} : vector<6x64xf32> to vector<1x64xf32>
    %39 = vector.extract_strided_slice %1 {offsets = [5, 0], sizes = [1, 64], strides = [1, 1]} : vector<6x64xf32> to vector<1x64xf32>
    %cst_14 = arith.constant dense<0.000000e+00> : vector<64xf32>
    %40 = vector.multi_reduction <add>, %37, %cst_14 [0] : vector<2x64xf32> to vector<64xf32>
    %41 = vector.shape_cast %40 : vector<64xf32> to vector<1x64xf32>
    %cst_15 = arith.constant 2.000000e+00 : f32
    %42 = vector.broadcast %cst_15 : f32 to vector<1x64xf32>
    %43 = arith.divf %41, %42 : vector<1x64xf32>
    %44 = vector.broadcast %43 : vector<1x64xf32> to vector<2x64xf32>
    %45 = arith.subf %37, %44 : vector<2x64xf32>
    %46 = arith.mulf %45, %45 : vector<2x64xf32>
    %cst_16 = arith.constant dense<0.000000e+00> : vector<64xf32>
    %47 = vector.multi_reduction <add>, %46, %cst_16 [0] : vector<2x64xf32> to vector<64xf32>
    %48 = vector.shape_cast %47 : vector<64xf32> to vector<1x64xf32>
    %cst_17 = arith.constant 2.000000e+00 : f32
    %49 = vector.broadcast %cst_17 : f32 to vector<1x64xf32>
    %50 = arith.divf %48, %49 : vector<1x64xf32>
    %51 = vector.broadcast %43 : vector<1x64xf32> to vector<2x64xf32>
    %52 = arith.subf %37, %51 : vector<2x64xf32>
    %cst_18 = arith.constant 9.99999974E-6 : f32
    %53 = vector.broadcast %cst_18 : f32 to vector<1x64xf32>
    %54 = arith.addf %50, %53 : vector<1x64xf32>
    %55 = math.rsqrt %54 : vector<1x64xf32>
    %56 = vector.broadcast %55 : vector<1x64xf32> to vector<2x64xf32>
    %57 = arith.mulf %52, %56 : vector<2x64xf32>
    %58 = vector.broadcast %38 : vector<1x64xf32> to vector<2x64xf32>
    %59 = arith.mulf %57, %58 : vector<2x64xf32>
    %60 = vector.broadcast %39 : vector<1x64xf32> to vector<2x64xf32>
    %61 = arith.addf %59, %60 : vector<2x64xf32>
    %62 = arith.addf %61, %0 : vector<2x64xf32>
    %cst_19 = arith.constant 0.000000e+00 : f32
    %63 = vector.broadcast %cst_19 : f32 to vector<2x64xf32>
    %64 = arith.maximumf %62, %63 : vector<2x64xf32>
    %c0_20 = arith.constant 0 : index
    %c0_21 = arith.constant 0 : index
    %65 = vector.load %arg4[%c0_20, %c0_21] : memref<64x1024xf32, #tpu.memory_space<vmem>>, vector<64x1024xf32>
    %cst_22 = arith.constant dense<0.000000e+00> : vector<2x1024xf32>
    %66 = tpu.matmul %64, %65, %cst_22 {dimension_numbers = #tpu.dot_dimension_numbers<[1], [0], [0], [1], [0, 0, 1, 1], [], []>} : vector<2x64xf32>, vector<64x1024xf32>, vector<2x1024xf32> -> vector<2x1024xf32>
    %67 = vector.extract_strided_slice %66 {offsets = [0, 0], sizes = [2, 64], strides = [1, 1]} : vector<2x1024xf32> to vector<2x64xf32>
    %c0_23 = arith.constant 0 : index
    %c0_24 = arith.constant 0 : index
    %68 = vector.load %arg20[%c0_23, %c0_24] : memref<32x64xf32, #tpu.memory_space<vmem>>, vector<2x64xf32>
    tpu.vector_store %arg20[%c0_23, %c0_24], %67 {strides = array<i32>} : memref<32x64xf32, #tpu.memory_space<vmem>>, vector<2x64xf32>,
    %69 = vector.extract_strided_slice %66 {offsets = [0, 64], sizes = [2, 64], strides = [1, 1]} : vector<2x1024xf32> to vector<2x64xf32>
    %c2 = arith.constant 2 : index
    %c0_25 = arith.constant 0 : index
    %70 = vector.load %arg20[%c2, %c0_25] : memref<32x64xf32, #tpu.memory_space<vmem>>, vector<2x64xf32>
    tpu.vector_store %arg20[%c2, %c0_25], %69 {strides = array<i32>} : memref<32x64xf32, #tpu.memory_space<vmem>>, vector<2x64xf32>,
    %71 = vector.extract_strided_slice %66 {offsets = [0, 128], sizes = [2, 64], strides = [1, 1]} : vector<2x1024xf32> to vector<2x64xf32>
    %c4 = arith.constant 4 : index
    %c0_26 = arith.constant 0 : index
    %72 = vector.load %arg20[%c4, %c0_26] : memref<32x64xf32, #tpu.memory_space<vmem>>, vector<2x64xf32>
    tpu.vector_store %arg20[%c4, %c0_26], %71 {strides = array<i32>} : memref<32x64xf32, #tpu.memory_space<vmem>>, vector<2x64xf32>,
    %73 = vector.extract_strided_slice %66 {offsets = [0, 192], sizes = [2, 64], strides = [1, 1]} : vector<2x1024xf32> to vector<2x64xf32>
    %c6 = arith.constant 6 : index
    %c0_27 = arith.constant 0 : index
    %74 = vector.load %arg20[%c6, %c0_27] : memref<32x64xf32, #tpu.memory_space<vmem>>, vector<2x64xf32>
    tpu.vector_store %arg20[%c6, %c0_27], %73 {strides = array<i32>} : memref<32x64xf32, #tpu.memory_space<vmem>>, vector<2x64xf32>,
    %75 = vector.extract_strided_slice %66 {offsets = [0, 256], sizes = [2, 64], strides = [1, 1]} : vector<2x1024xf32> to vector<2x64xf32>
    %c8 = arith.constant 8 : index
    %c0_28 = arith.constant 0 : index
    %76 = vector.load %arg20[%c8, %c0_28] : memref<32x64xf32, #tpu.memory_space<vmem>>, vector<2x64xf32>
    tpu.vector_store %arg20[%c8, %c0_28], %75 {strides = array<i32>} : memref<32x64xf32, #tpu.memory_space<vmem>>, vector<2x64xf32>,
    %77 = vector.extract_strided_slice %66 {offsets = [0, 320], sizes = [2, 64], strides = [1, 1]} : vector<2x1024xf32> to vector<2x64xf32>
    %c10 = arith.constant 10 : index
    %c0_29 = arith.constant 0 : index
    %78 = vector.load %arg20[%c10, %c0_29] : memref<32x64xf32, #tpu.memory_space<vmem>>, vector<2x64xf32>
    tpu.vector_store %arg20[%c10, %c0_29], %77 {strides = array<i32>} : memref<32x64xf32, #tpu.memory_space<vmem>>, vector<2x64xf32>,
    %79 = vector.extract_strided_slice %66 {offsets = [0, 384], sizes = [2, 64], strides = [1, 1]} : vector<2x1024xf32> to vector<2x64xf32>
    %c12 = arith.constant 12 : index
    %c0_30 = arith.constant 0 : index
    %80 = vector.load %arg20[%c12, %c0_30] : memref<32x64xf32, #tpu.memory_space<vmem>>, vector<2x64xf32>
    tpu.vector_store %arg20[%c12, %c0_30], %79 {strides = array<i32>} : memref<32x64xf32, #tpu.memory_space<vmem>>, vector<2x64xf32>,
    %81 = vector.extract_strided_slice %66 {offsets = [0, 448], sizes = [2, 64], strides = [1, 1]} : vector<2x1024xf32> to vector<2x64xf32>
    %c14 = arith.constant 14 : index
    %c0_31 = arith.constant 0 : index
    %82 = vector.load %arg20[%c14, %c0_31] : memref<32x64xf32, #tpu.memory_space<vmem>>, vector<2x64xf32>
    tpu.vector_store %arg20[%c14, %c0_31], %81 {strides = array<i32>} : memref<32x64xf32, #tpu.memory_space<vmem>>, vector<2x64xf32>,
    %83 = vector.extract_strided_slice %66 {offsets = [0, 512], sizes = [2, 64], strides = [1, 1]} : vector<2x1024xf32> to vector<2x64xf32>
    %c16 = arith.constant 16 : index
    %c0_32 = arith.constant 0 : index
    %84 = vector.load %arg20[%c16, %c0_32] : memref<32x64xf32, #tpu.memory_space<vmem>>, vector<2x64xf32>
    tpu.vector_store %arg20[%c16, %c0_32], %83 {strides = array<i32>} : memref<32x64xf32, #tpu.memory_space<vmem>>, vector<2x64xf32>,
    %85 = vector.extract_strided_slice %66 {offsets = [0, 576], sizes = [2, 64], strides = [1, 1]} : vector<2x1024xf32> to vector<2x64xf32>
    %c18 = arith.constant 18 : index
    %c0_33 = arith.constant 0 : index
    %86 = vector.load %arg20[%c18, %c0_33] : memref<32x64xf32, #tpu.memory_space<vmem>>, vector<2x64xf32>
    tpu.vector_store %arg20[%c18, %c0_33], %85 {strides = array<i32>} : memref<32x64xf32, #tpu.memory_space<vmem>>, vector<2x64xf32>,
    %87 = vector.extract_strided_slice %66 {offsets = [0, 640], sizes = [2, 64], strides = [1, 1]} : vector<2x1024xf32> to vector<2x64xf32>
    %c20 = arith.constant 20 : index
    %c0_34 = arith.constant 0 : index
    %88 = vector.load %arg20[%c20, %c0_34] : memref<32x64xf32, #tpu.memory_space<vmem>>, vector<2x64xf32>
    tpu.vector_store %arg20[%c20, %c0_34], %87 {strides = array<i32>} : memref<32x64xf32, #tpu.memory_space<vmem>>, vector<2x64xf32>,
    %89 = vector.extract_strided_slice %66 {offsets = [0, 704], sizes = [2, 64], strides = [1, 1]} : vector<2x1024xf32> to vector<2x64xf32>
    %c22 = arith.constant 22 : index
    %c0_35 = arith.constant 0 : index
    %90 = vector.load %arg20[%c22, %c0_35] : memref<32x64xf32, #tpu.memory_space<vmem>>, vector<2x64xf32>
    tpu.vector_store %arg20[%c22, %c0_35], %89 {strides = array<i32>} : memref<32x64xf32, #tpu.memory_space<vmem>>, vector<2x64xf32>,
    %91 = vector.extract_strided_slice %66 {offsets = [0, 768], sizes = [2, 64], strides = [1, 1]} : vector<2x1024xf32> to vector<2x64xf32>
    %c24 = arith.constant 24 : index
    %c0_36 = arith.constant 0 : index
    %92 = vector.load %arg20[%c24, %c0_36] : memref<32x64xf32, #tpu.memory_space<vmem>>, vector<2x64xf32>
    tpu.vector_store %arg20[%c24, %c0_36], %91 {strides = array<i32>} : memref<32x64xf32, #tpu.memory_space<vmem>>, vector<2x64xf32>,
    %93 = vector.extract_strided_slice %66 {offsets = [0, 832], sizes = [2, 64], strides = [1, 1]} : vector<2x1024xf32> to vector<2x64xf32>
    %c26 = arith.constant 26 : index
    %c0_37 = arith.constant 0 : index
    %94 = vector.load %arg20[%c26, %c0_37] : memref<32x64xf32, #tpu.memory_space<vmem>>, vector<2x64xf32>
    tpu.vector_store %arg20[%c26, %c0_37], %93 {strides = array<i32>} : memref<32x64xf32, #tpu.memory_space<vmem>>, vector<2x64xf32>,
    %95 = vector.extract_strided_slice %66 {offsets = [0, 896], sizes = [2, 64], strides = [1, 1]} : vector<2x1024xf32> to vector<2x64xf32>
    %c28 = arith.constant 28 : index
    %c0_38 = arith.constant 0 : index
    %96 = vector.load %arg20[%c28, %c0_38] : memref<32x64xf32, #tpu.memory_space<vmem>>, vector<2x64xf32>
    tpu.vector_store %arg20[%c28, %c0_38], %95 {strides = array<i32>} : memref<32x64xf32, #tpu.memory_space<vmem>>, vector<2x64xf32>,
    %97 = vector.extract_strided_slice %66 {offsets = [0, 960], sizes = [2, 64], strides = [1, 1]} : vector<2x1024xf32> to vector<2x64xf32>
    %c30 = arith.constant 30 : index
    %c0_39 = arith.constant 0 : index
    %98 = vector.load %arg20[%c30, %c0_39] : memref<32x64xf32, #tpu.memory_space<vmem>>, vector<2x64xf32>
    tpu.vector_store %arg20[%c30, %c0_39], %97 {strides = array<i32>} : memref<32x64xf32, #tpu.memory_space<vmem>>, vector<2x64xf32>,
    %c0_40 = arith.constant 0 : index
    %c0_41 = arith.constant 0 : index
    %99 = vector.load %arg20[%c0_40, %c0_41] : memref<32x64xf32, #tpu.memory_space<vmem>>, vector<32x64xf32>
    %c0_42 = arith.constant 0 : index
    %c0_43 = arith.constant 0 : index
    %100 = vector.load %arg5[%c0_42, %c0_43] : memref<1x64xf32, #tpu.memory_space<vmem>>, vector<1x64xf32>
    %101 = vector.broadcast %100 : vector<1x64xf32> to vector<32x64xf32>
    %102 = arith.addf %99, %101 : vector<32x64xf32>
    %cst_44 = arith.constant 0.000000e+00 : f32
    %103 = vector.broadcast %cst_44 : f32 to vector<32x64xf32>
    %104 = arith.maximumf %102, %103 : vector<32x64xf32>
    %c0_45 = arith.constant 0 : index
    %c0_46 = arith.constant 0 : index
    %105 = vector.load %arg6[%c0_45, %c0_46] : memref<64x576xf32, #tpu.memory_space<vmem>>, vector<64x576xf32>
    %c0_47 = arith.constant 0 : index
    %c0_48 = arith.constant 0 : index
    %106 = vector.load %arg7[%c0_47, %c0_48] : memref<64x576xf32, #tpu.memory_space<vmem>>, vector<64x576xf32>
    %c0_49 = arith.constant 0 : index
    %c0_50 = arith.constant 0 : index
    %107 = vector.load %arg8[%c0_49, %c0_50] : memref<32x288xf32, #tpu.memory_space<vmem>>, vector<32x288xf32>
    %c0_51 = arith.constant 0 : index
    %c0_52 = arith.constant 0 : index
    %108 = vector.load %arg9[%c0_51, %c0_52] : memref<6x64xf32, #tpu.memory_space<vmem>>, vector<6x64xf32>
    %cst_53 = arith.constant dense<0.000000e+00> : vector<32x576xf32>
    %109 = tpu.matmul %104, %105, %cst_53 {dimension_numbers = #tpu.dot_dimension_numbers<[1], [0], [0], [1], [0, 0, 1, 1], [], []>} : vector<32x64xf32>, vector<64x576xf32>, vector<32x576xf32> -> vector<32x576xf32>
    %110 = vector.extract_strided_slice %109 {offsets = [0, 0], sizes = [32, 64], strides = [1, 1]} : vector<32x576xf32> to vector<32x64xf32>
    %c0_54 = arith.constant 0 : index
    %c0_55 = arith.constant 0 : index
    %111 = vector.load %arg21[%c0_54, %c0_55] : memref<288x64xf32, #tpu.memory_space<vmem>>, vector<32x64xf32>
    tpu.vector_store %arg21[%c0_54, %c0_55], %110 {strides = array<i32>} : memref<288x64xf32, #tpu.memory_space<vmem>>, vector<32x64xf32>,
    %112 = vector.extract_strided_slice %109 {offsets = [0, 64], sizes = [32, 64], strides = [1, 1]} : vector<32x576xf32> to vector<32x64xf32>
    %c32 = arith.constant 32 : index
    %c0_56 = arith.constant 0 : index
    %113 = vector.load %arg21[%c32, %c0_56] : memref<288x64xf32, #tpu.memory_space<vmem>>, vector<32x64xf32>
    tpu.vector_store %arg21[%c32, %c0_56], %112 {strides = array<i32>} : memref<288x64xf32, #tpu.memory_space<vmem>>, vector<32x64xf32>,
    %114 = vector.extract_strided_slice %109 {offsets = [0, 128], sizes = [32, 64], strides = [1, 1]} : vector<32x576xf32> to vector<32x64xf32>
    %c64 = arith.constant 64 : index
    %c0_57 = arith.constant 0 : index
    %115 = vector.load %arg21[%c64, %c0_57] : memref<288x64xf32, #tpu.memory_space<vmem>>, vector<32x64xf32>
    tpu.vector_store %arg21[%c64, %c0_57], %114 {strides = array<i32>} : memref<288x64xf32, #tpu.memory_space<vmem>>, vector<32x64xf32>,
    %116 = vector.extract_strided_slice %109 {offsets = [0, 192], sizes = [32, 64], strides = [1, 1]} : vector<32x576xf32> to vector<32x64xf32>
    %c96 = arith.constant 96 : index
    %c0_58 = arith.constant 0 : index
    %117 = vector.load %arg21[%c96, %c0_58] : memref<288x64xf32, #tpu.memory_space<vmem>>, vector<32x64xf32>
    tpu.vector_store %arg21[%c96, %c0_58], %116 {strides = array<i32>} : memref<288x64xf32, #tpu.memory_space<vmem>>, vector<32x64xf32>,
    %118 = vector.extract_strided_slice %109 {offsets = [0, 256], sizes = [32, 64], strides = [1, 1]} : vector<32x576xf32> to vector<32x64xf32>
    %c128 = arith.constant 128 : index
    %c0_59 = arith.constant 0 : index
    %119 = vector.load %arg21[%c128, %c0_59] : memref<288x64xf32, #tpu.memory_space<vmem>>, vector<32x64xf32>
    tpu.vector_store %arg21[%c128, %c0_59], %118 {strides = array<i32>} : memref<288x64xf32, #tpu.memory_space<vmem>>, vector<32x64xf32>,
    %120 = vector.extract_strided_slice %109 {offsets = [0, 320], sizes = [32, 64], strides = [1, 1]} : vector<32x576xf32> to vector<32x64xf32>
    %c160 = arith.constant 160 : index
    %c0_60 = arith.constant 0 : index
    %121 = vector.load %arg21[%c160, %c0_60] : memref<288x64xf32, #tpu.memory_space<vmem>>, vector<32x64xf32>
    tpu.vector_store %arg21[%c160, %c0_60], %120 {strides = array<i32>} : memref<288x64xf32, #tpu.memory_space<vmem>>, vector<32x64xf32>,
    %122 = vector.extract_strided_slice %109 {offsets = [0, 384], sizes = [32, 64], strides = [1, 1]} : vector<32x576xf32> to vector<32x64xf32>
    %c192 = arith.constant 192 : index
    %c0_61 = arith.constant 0 : index
    %123 = vector.load %arg21[%c192, %c0_61] : memref<288x64xf32, #tpu.memory_space<vmem>>, vector<32x64xf32>
    tpu.vector_store %arg21[%c192, %c0_61], %122 {strides = array<i32>} : memref<288x64xf32, #tpu.memory_space<vmem>>, vector<32x64xf32>,
    %124 = vector.extract_strided_slice %109 {offsets = [0, 448], sizes = [32, 64], strides = [1, 1]} : vector<32x576xf32> to vector<32x64xf32>
    %c224 = arith.constant 224 : index
    %c0_62 = arith.constant 0 : index
    %125 = vector.load %arg21[%c224, %c0_62] : memref<288x64xf32, #tpu.memory_space<vmem>>, vector<32x64xf32>
    tpu.vector_store %arg21[%c224, %c0_62], %124 {strides = array<i32>} : memref<288x64xf32, #tpu.memory_space<vmem>>, vector<32x64xf32>,
    %126 = vector.extract_strided_slice %109 {offsets = [0, 512], sizes = [32, 64], strides = [1, 1]} : vector<32x576xf32> to vector<32x64xf32>
    %c256 = arith.constant 256 : index
    %c0_63 = arith.constant 0 : index
    %127 = vector.load %arg21[%c256, %c0_63] : memref<288x64xf32, #tpu.memory_space<vmem>>, vector<32x64xf32>
    tpu.vector_store %arg21[%c256, %c0_63], %126 {strides = array<i32>} : memref<288x64xf32, #tpu.memory_space<vmem>>, vector<32x64xf32>,
    %c0_64 = arith.constant 0 : index
    %c0_65 = arith.constant 0 : index
    %128 = vector.load %arg21[%c0_64, %c0_65] : memref<288x64xf32, #tpu.memory_space<vmem>>, vector<288x64xf32>
    %cst_66 = arith.constant dense<0.000000e+00> : vector<32x64xf32>
    %129 = tpu.matmul %107, %128, %cst_66 {dimension_numbers = #tpu.dot_dimension_numbers<[1], [0], [0], [1], [0, 0, 1, 1], [], []>} : vector<32x288xf32>, vector<288x64xf32>, vector<32x64xf32> -> vector<32x64xf32>
    %130 = vector.extract_strided_slice %108 {offsets = [0, 0], sizes = [1, 64], strides = [1, 1]} : vector<6x64xf32> to vector<1x64xf32>
    %131 = vector.broadcast %130 : vector<1x64xf32> to vector<32x64xf32>
    %132 = arith.addf %129, %131 : vector<32x64xf32>
    %133 = vector.extract_strided_slice %108 {offsets = [1, 0], sizes = [1, 64], strides = [1, 1]} : vector<6x64xf32> to vector<1x64xf32>
    %134 = vector.extract_strided_slice %108 {offsets = [2, 0], sizes = [1, 64], strides = [1, 1]} : vector<6x64xf32> to vector<1x64xf32>
    %cst_67 = arith.constant dense<0.000000e+00> : vector<64xf32>
    %135 = vector.multi_reduction <add>, %132, %cst_67 [0] : vector<32x64xf32> to vector<64xf32>
    %136 = vector.shape_cast %135 : vector<64xf32> to vector<1x64xf32>
    %cst_68 = arith.constant 3.200000e+01 : f32
    %137 = vector.broadcast %cst_68 : f32 to vector<1x64xf32>
    %138 = arith.divf %136, %137 : vector<1x64xf32>
    %139 = vector.broadcast %138 : vector<1x64xf32> to vector<32x64xf32>
    %140 = arith.subf %132, %139 : vector<32x64xf32>
    %141 = arith.mulf %140, %140 : vector<32x64xf32>
    %cst_69 = arith.constant dense<0.000000e+00> : vector<64xf32>
    %142 = vector.multi_reduction <add>, %141, %cst_69 [0] : vector<32x64xf32> to vector<64xf32>
    %143 = vector.shape_cast %142 : vector<64xf32> to vector<1x64xf32>
    %cst_70 = arith.constant 3.200000e+01 : f32
    %144 = vector.broadcast %cst_70 : f32 to vector<1x64xf32>
    %145 = arith.divf %143, %144 : vector<1x64xf32>
    %146 = vector.broadcast %138 : vector<1x64xf32> to vector<32x64xf32>
    %147 = arith.subf %132, %146 : vector<32x64xf32>
    %cst_71 = arith.constant 9.99999974E-6 : f32
    %148 = vector.broadcast %cst_71 : f32 to vector<1x64xf32>
    %149 = arith.addf %145, %148 : vector<1x64xf32>
    %150 = math.rsqrt %149 : vector<1x64xf32>
    %151 = vector.broadcast %150 : vector<1x64xf32> to vector<32x64xf32>
    %152 = arith.mulf %147, %151 : vector<32x64xf32>
    %153 = vector.broadcast %133 : vector<1x64xf32> to vector<32x64xf32>
    %154 = arith.mulf %152, %153 : vector<32x64xf32>
    %155 = vector.broadcast %134 : vector<1x64xf32> to vector<32x64xf32>
    %156 = arith.addf %154, %155 : vector<32x64xf32>
    %cst_72 = arith.constant 0.000000e+00 : f32
    %157 = vector.broadcast %cst_72 : f32 to vector<32x64xf32>
    %158 = arith.maximumf %156, %157 : vector<32x64xf32>
    %cst_73 = arith.constant dense<0.000000e+00> : vector<32x576xf32>
    %159 = tpu.matmul %158, %106, %cst_73 {dimension_numbers = #tpu.dot_dimension_numbers<[1], [0], [0], [1], [0, 0, 1, 1], [], []>} : vector<32x64xf32>, vector<64x576xf32>, vector<32x576xf32> -> vector<32x576xf32>
    %160 = vector.extract_strided_slice %159 {offsets = [0, 0], sizes = [32, 64], strides = [1, 1]} : vector<32x576xf32> to vector<32x64xf32>
    %c0_74 = arith.constant 0 : index
    %c0_75 = arith.constant 0 : index
    %161 = vector.load %arg21[%c0_74, %c0_75] : memref<288x64xf32, #tpu.memory_space<vmem>>, vector<32x64xf32>
    tpu.vector_store %arg21[%c0_74, %c0_75], %160 {strides = array<i32>} : memref<288x64xf32, #tpu.memory_space<vmem>>, vector<32x64xf32>,
    %162 = vector.extract_strided_slice %159 {offsets = [0, 64], sizes = [32, 64], strides = [1, 1]} : vector<32x576xf32> to vector<32x64xf32>
    %c32_76 = arith.constant 32 : index
    %c0_77 = arith.constant 0 : index
    %163 = vector.load %arg21[%c32_76, %c0_77] : memref<288x64xf32, #tpu.memory_space<vmem>>, vector<32x64xf32>
    tpu.vector_store %arg21[%c32_76, %c0_77], %162 {strides = array<i32>} : memref<288x64xf32, #tpu.memory_space<vmem>>, vector<32x64xf32>,
    %164 = vector.extract_strided_slice %159 {offsets = [0, 128], sizes = [32, 64], strides = [1, 1]} : vector<32x576xf32> to vector<32x64xf32>
    %c64_78 = arith.constant 64 : index
    %c0_79 = arith.constant 0 : index
    %165 = vector.load %arg21[%c64_78, %c0_79] : memref<288x64xf32, #tpu.memory_space<vmem>>, vector<32x64xf32>
    tpu.vector_store %arg21[%c64_78, %c0_79], %164 {strides = array<i32>} : memref<288x64xf32, #tpu.memory_space<vmem>>, vector<32x64xf32>,
    %166 = vector.extract_strided_slice %159 {offsets = [0, 192], sizes = [32, 64], strides = [1, 1]} : vector<32x576xf32> to vector<32x64xf32>
    %c96_80 = arith.constant 96 : index
    %c0_81 = arith.constant 0 : index
    %167 = vector.load %arg21[%c96_80, %c0_81] : memref<288x64xf32, #tpu.memory_space<vmem>>, vector<32x64xf32>
    tpu.vector_store %arg21[%c96_80, %c0_81], %166 {strides = array<i32>} : memref<288x64xf32, #tpu.memory_space<vmem>>, vector<32x64xf32>,
    %168 = vector.extract_strided_slice %159 {offsets = [0, 256], sizes = [32, 64], strides = [1, 1]} : vector<32x576xf32> to vector<32x64xf32>
    %c128_82 = arith.constant 128 : index
    %c0_83 = arith.constant 0 : index
    %169 = vector.load %arg21[%c128_82, %c0_83] : memref<288x64xf32, #tpu.memory_space<vmem>>, vector<32x64xf32>
    tpu.vector_store %arg21[%c128_82, %c0_83], %168 {strides = array<i32>} : memref<288x64xf32, #tpu.memory_space<vmem>>, vector<32x64xf32>,
    %170 = vector.extract_strided_slice %159 {offsets = [0, 320], sizes = [32, 64], strides = [1, 1]} : vector<32x576xf32> to vector<32x64xf32>
    %c160_84 = arith.constant 160 : index
    %c0_85 = arith.constant 0 : index
    %171 = vector.load %arg21[%c160_84, %c0_85] : memref<288x64xf32, #tpu.memory_space<vmem>>, vector<32x64xf32>
    tpu.vector_store %arg21[%c160_84, %c0_85], %170 {strides = array<i32>} : memref<288x64xf32, #tpu.memory_space<vmem>>, vector<32x64xf32>,
    %172 = vector.extract_strided_slice %159 {offsets = [0, 384], sizes = [32, 64], strides = [1, 1]} : vector<32x576xf32> to vector<32x64xf32>
    %c192_86 = arith.constant 192 : index
    %c0_87 = arith.constant 0 : index
    %173 = vector.load %arg21[%c192_86, %c0_87] : memref<288x64xf32, #tpu.memory_space<vmem>>, vector<32x64xf32>
    tpu.vector_store %arg21[%c192_86, %c0_87], %172 {strides = array<i32>} : memref<288x64xf32, #tpu.memory_space<vmem>>, vector<32x64xf32>,
    %174 = vector.extract_strided_slice %159 {offsets = [0, 448], sizes = [32, 64], strides = [1, 1]} : vector<32x576xf32> to vector<32x64xf32>
    %c224_88 = arith.constant 224 : index
    %c0_89 = arith.constant 0 : index
    %175 = vector.load %arg21[%c224_88, %c0_89] : memref<288x64xf32, #tpu.memory_space<vmem>>, vector<32x64xf32>
    tpu.vector_store %arg21[%c224_88, %c0_89], %174 {strides = array<i32>} : memref<288x64xf32, #tpu.memory_space<vmem>>, vector<32x64xf32>,
    %176 = vector.extract_strided_slice %159 {offsets = [0, 512], sizes = [32, 64], strides = [1, 1]} : vector<32x576xf32> to vector<32x64xf32>
    %c256_90 = arith.constant 256 : index
    %c0_91 = arith.constant 0 : index
    %177 = vector.load %arg21[%c256_90, %c0_91] : memref<288x64xf32, #tpu.memory_space<vmem>>, vector<32x64xf32>
    tpu.vector_store %arg21[%c256_90, %c0_91], %176 {strides = array<i32>} : memref<288x64xf32, #tpu.memory_space<vmem>>, vector<32x64xf32>,
    %c0_92 = arith.constant 0 : index
    %c0_93 = arith.constant 0 : index
    %178 = vector.load %arg21[%c0_92, %c0_93] : memref<288x64xf32, #tpu.memory_space<vmem>>, vector<288x64xf32>
    %cst_94 = arith.constant dense<0.000000e+00> : vector<32x64xf32>
    %179 = tpu.matmul %107, %178, %cst_94 {dimension_numbers = #tpu.dot_dimension_numbers<[1], [0], [0], [1], [0, 0, 1, 1], [], []>} : vector<32x288xf32>, vector<288x64xf32>, vector<32x64xf32> -> vector<32x64xf32>
    %180 = vector.extract_strided_slice %108 {offsets = [3, 0], sizes = [1, 64], strides = [1, 1]} : vector<6x64xf32> to vector<1x64xf32>
    %181 = vector.broadcast %180 : vector<1x64xf32> to vector<32x64xf32>
    %182 = arith.addf %179, %181 : vector<32x64xf32>
    %183 = vector.extract_strided_slice %108 {offsets = [4, 0], sizes = [1, 64], strides = [1, 1]} : vector<6x64xf32> to vector<1x64xf32>
    %184 = vector.extract_strided_slice %108 {offsets = [5, 0], sizes = [1, 64], strides = [1, 1]} : vector<6x64xf32> to vector<1x64xf32>
    %cst_95 = arith.constant dense<0.000000e+00> : vector<64xf32>
    %185 = vector.multi_reduction <add>, %182, %cst_95 [0] : vector<32x64xf32> to vector<64xf32>
    %186 = vector.shape_cast %185 : vector<64xf32> to vector<1x64xf32>
    %cst_96 = arith.constant 3.200000e+01 : f32
    %187 = vector.broadcast %cst_96 : f32 to vector<1x64xf32>
    %188 = arith.divf %186, %187 : vector<1x64xf32>
    %189 = vector.broadcast %188 : vector<1x64xf32> to vector<32x64xf32>
    %190 = arith.subf %182, %189 : vector<32x64xf32>
    %191 = arith.mulf %190, %190 : vector<32x64xf32>
    %cst_97 = arith.constant dense<0.000000e+00> : vector<64xf32>
    %192 = vector.multi_reduction <add>, %191, %cst_97 [0] : vector<32x64xf32> to vector<64xf32>
    %193 = vector.shape_cast %192 : vector<64xf32> to vector<1x64xf32>
    %cst_98 = arith.constant 3.200000e+01 : f32
    %194 = vector.broadcast %cst_98 : f32 to vector<1x64xf32>
    %195 = arith.divf %193, %194 : vector<1x64xf32>
    %196 = vector.broadcast %188 : vector<1x64xf32> to vector<32x64xf32>
    %197 = arith.subf %182, %196 : vector<32x64xf32>
    %cst_99 = arith.constant 9.99999974E-6 : f32
    %198 = vector.broadcast %cst_99 : f32 to vector<1x64xf32>
    %199 = arith.addf %195, %198 : vector<1x64xf32>
    %200 = math.rsqrt %199 : vector<1x64xf32>
    %201 = vector.broadcast %200 : vector<1x64xf32> to vector<32x64xf32>
    %202 = arith.mulf %197, %201 : vector<32x64xf32>
    %203 = vector.broadcast %183 : vector<1x64xf32> to vector<32x64xf32>
    %204 = arith.mulf %202, %203 : vector<32x64xf32>
    %205 = vector.broadcast %184 : vector<1x64xf32> to vector<32x64xf32>
    %206 = arith.addf %204, %205 : vector<32x64xf32>
    %207 = arith.addf %206, %104 : vector<32x64xf32>
    %cst_100 = arith.constant 0.000000e+00 : f32
    %208 = vector.broadcast %cst_100 : f32 to vector<32x64xf32>
    %209 = arith.maximumf %207, %208 : vector<32x64xf32>
    %c0_101 = arith.constant 0 : index
    %c0_102 = arith.constant 0 : index
    %210 = vector.load %arg10[%c0_101, %c0_102] : memref<64x256xf32, #tpu.memory_space<vmem>>, vector<64x256xf32>
    %c0_103 = arith.constant 0 : index
    %c0_104 = arith.constant 0 : index
    %211 = vector.load %arg11[%c0_103, %c0_104] : memref<128x512xf32, #tpu.memory_space<vmem>>, vector<128x512xf32>
    %cst_105 = arith.constant dense<0.000000e+00> : vector<32x256xf32>
    %212 = tpu.matmul %209, %210, %cst_105 {dimension_numbers = #tpu.dot_dimension_numbers<[1], [0], [0], [1], [0, 0, 1, 1], [], []>} : vector<32x64xf32>, vector<64x256xf32>, vector<32x256xf32> -> vector<32x256xf32>
    %213 = vector.extract_strided_slice %212 {offsets = [0, 0], sizes = [32, 16], strides = [1, 1]} : vector<32x256xf32> to vector<32x16xf32>
    %c0_106 = arith.constant 0 : index
    %c0_107 = arith.constant 0 : index
    %214 = vector.load %arg22[%c0_106, %c0_107] : memref<512x16xf32, #tpu.memory_space<vmem>>, vector<32x16xf32>
    tpu.vector_store %arg22[%c0_106, %c0_107], %213 {strides = array<i32>} : memref<512x16xf32, #tpu.memory_space<vmem>>, vector<32x16xf32>,
    %215 = vector.extract_strided_slice %212 {offsets = [0, 16], sizes = [32, 16], strides = [1, 1]} : vector<32x256xf32> to vector<32x16xf32>
    %c32_108 = arith.constant 32 : index
    %c0_109 = arith.constant 0 : index
    %216 = vector.load %arg22[%c32_108, %c0_109] : memref<512x16xf32, #tpu.memory_space<vmem>>, vector<32x16xf32>
    tpu.vector_store %arg22[%c32_108, %c0_109], %215 {strides = array<i32>} : memref<512x16xf32, #tpu.memory_space<vmem>>, vector<32x16xf32>,
    %217 = vector.extract_strided_slice %212 {offsets = [0, 32], sizes = [32, 16], strides = [1, 1]} : vector<32x256xf32> to vector<32x16xf32>
    %c64_110 = arith.constant 64 : index
    %c0_111 = arith.constant 0 : index
    %218 = vector.load %arg22[%c64_110, %c0_111] : memref<512x16xf32, #tpu.memory_space<vmem>>, vector<32x16xf32>
    tpu.vector_store %arg22[%c64_110, %c0_111], %217 {strides = array<i32>} : memref<512x16xf32, #tpu.memory_space<vmem>>, vector<32x16xf32>,
    %219 = vector.extract_strided_slice %212 {offsets = [0, 48], sizes = [32, 16], strides = [1, 1]} : vector<32x256xf32> to vector<32x16xf32>
    %c96_112 = arith.constant 96 : index
    %c0_113 = arith.constant 0 : index
    %220 = vector.load %arg22[%c96_112, %c0_113] : memref<512x16xf32, #tpu.memory_space<vmem>>, vector<32x16xf32>
    tpu.vector_store %arg22[%c96_112, %c0_113], %219 {strides = array<i32>} : memref<512x16xf32, #tpu.memory_space<vmem>>, vector<32x16xf32>,
    %221 = vector.extract_strided_slice %212 {offsets = [0, 64], sizes = [32, 16], strides = [1, 1]} : vector<32x256xf32> to vector<32x16xf32>
    %c128_114 = arith.constant 128 : index
    %c0_115 = arith.constant 0 : index
    %222 = vector.load %arg22[%c128_114, %c0_115] : memref<512x16xf32, #tpu.memory_space<vmem>>, vector<32x16xf32>
    tpu.vector_store %arg22[%c128_114, %c0_115], %221 {strides = array<i32>} : memref<512x16xf32, #tpu.memory_space<vmem>>, vector<32x16xf32>,
    %223 = vector.extract_strided_slice %212 {offsets = [0, 80], sizes = [32, 16], strides = [1, 1]} : vector<32x256xf32> to vector<32x16xf32>
    %c160_116 = arith.constant 160 : index
    %c0_117 = arith.constant 0 : index
    %224 = vector.load %arg22[%c160_116, %c0_117] : memref<512x16xf32, #tpu.memory_space<vmem>>, vector<32x16xf32>
    tpu.vector_store %arg22[%c160_116, %c0_117], %223 {strides = array<i32>} : memref<512x16xf32, #tpu.memory_space<vmem>>, vector<32x16xf32>,
    %225 = vector.extract_strided_slice %212 {offsets = [0, 96], sizes = [32, 16], strides = [1, 1]} : vector<32x256xf32> to vector<32x16xf32>
    %c192_118 = arith.constant 192 : index
    %c0_119 = arith.constant 0 : index
    %226 = vector.load %arg22[%c192_118, %c0_119] : memref<512x16xf32, #tpu.memory_space<vmem>>, vector<32x16xf32>
    tpu.vector_store %arg22[%c192_118, %c0_119], %225 {strides = array<i32>} : memref<512x16xf32, #tpu.memory_space<vmem>>, vector<32x16xf32>,
    %227 = vector.extract_strided_slice %212 {offsets = [0, 112], sizes = [32, 16], strides = [1, 1]} : vector<32x256xf32> to vector<32x16xf32>
    %c224_120 = arith.constant 224 : index
    %c0_121 = arith.constant 0 : index
    %228 = vector.load %arg22[%c224_120, %c0_121] : memref<512x16xf32, #tpu.memory_space<vmem>>, vector<32x16xf32>
    tpu.vector_store %arg22[%c224_120, %c0_121], %227 {strides = array<i32>} : memref<512x16xf32, #tpu.memory_space<vmem>>, vector<32x16xf32>,
    %229 = vector.extract_strided_slice %212 {offsets = [0, 128], sizes = [32, 16], strides = [1, 1]} : vector<32x256xf32> to vector<32x16xf32>
    %c256_122 = arith.constant 256 : index
    %c0_123 = arith.constant 0 : index
    %230 = vector.load %arg22[%c256_122, %c0_123] : memref<512x16xf32, #tpu.memory_space<vmem>>, vector<32x16xf32>
    tpu.vector_store %arg22[%c256_122, %c0_123], %229 {strides = array<i32>} : memref<512x16xf32, #tpu.memory_space<vmem>>, vector<32x16xf32>,
    %231 = vector.extract_strided_slice %212 {offsets = [0, 144], sizes = [32, 16], strides = [1, 1]} : vector<32x256xf32> to vector<32x16xf32>
    %c288 = arith.constant 288 : index
    %c0_124 = arith.constant 0 : index
    %232 = vector.load %arg22[%c288, %c0_124] : memref<512x16xf32, #tpu.memory_space<vmem>>, vector<32x16xf32>
    tpu.vector_store %arg22[%c288, %c0_124], %231 {strides = array<i32>} : memref<512x16xf32, #tpu.memory_space<vmem>>, vector<32x16xf32>,
    %233 = vector.extract_strided_slice %212 {offsets = [0, 160], sizes = [32, 16], strides = [1, 1]} : vector<32x256xf32> to vector<32x16xf32>
    %c320 = arith.constant 320 : index
    %c0_125 = arith.constant 0 : index
    %234 = vector.load %arg22[%c320, %c0_125] : memref<512x16xf32, #tpu.memory_space<vmem>>, vector<32x16xf32>
    tpu.vector_store %arg22[%c320, %c0_125], %233 {strides = array<i32>} : memref<512x16xf32, #tpu.memory_space<vmem>>, vector<32x16xf32>,
    %235 = vector.extract_strided_slice %212 {offsets = [0, 176], sizes = [32, 16], strides = [1, 1]} : vector<32x256xf32> to vector<32x16xf32>
    %c352 = arith.constant 352 : index
    %c0_126 = arith.constant 0 : index
    %236 = vector.load %arg22[%c352, %c0_126] : memref<512x16xf32, #tpu.memory_space<vmem>>, vector<32x16xf32>
    tpu.vector_store %arg22[%c352, %c0_126], %235 {strides = array<i32>} : memref<512x16xf32, #tpu.memory_space<vmem>>, vector<32x16xf32>,
    %237 = vector.extract_strided_slice %212 {offsets = [0, 192], sizes = [32, 16], strides = [1, 1]} : vector<32x256xf32> to vector<32x16xf32>
    %c384 = arith.constant 384 : index
    %c0_127 = arith.constant 0 : index
    %238 = vector.load %arg22[%c384, %c0_127] : memref<512x16xf32, #tpu.memory_space<vmem>>, vector<32x16xf32>
    tpu.vector_store %arg22[%c384, %c0_127], %237 {strides = array<i32>} : memref<512x16xf32, #tpu.memory_space<vmem>>, vector<32x16xf32>,
    %239 = vector.extract_strided_slice %212 {offsets = [0, 208], sizes = [32, 16], strides = [1, 1]} : vector<32x256xf32> to vector<32x16xf32>
    %c416 = arith.constant 416 : index
    %c0_128 = arith.constant 0 : index
    %240 = vector.load %arg22[%c416, %c0_128] : memref<512x16xf32, #tpu.memory_space<vmem>>, vector<32x16xf32>
    tpu.vector_store %arg22[%c416, %c0_128], %239 {strides = array<i32>} : memref<512x16xf32, #tpu.memory_space<vmem>>, vector<32x16xf32>,
    %241 = vector.extract_strided_slice %212 {offsets = [0, 224], sizes = [32, 16], strides = [1, 1]} : vector<32x256xf32> to vector<32x16xf32>
    %c448 = arith.constant 448 : index
    %c0_129 = arith.constant 0 : index
    %242 = vector.load %arg22[%c448, %c0_129] : memref<512x16xf32, #tpu.memory_space<vmem>>, vector<32x16xf32>
    tpu.vector_store %arg22[%c448, %c0_129], %241 {strides = array<i32>} : memref<512x16xf32, #tpu.memory_space<vmem>>, vector<32x16xf32>,
    %243 = vector.extract_strided_slice %212 {offsets = [0, 240], sizes = [32, 16], strides = [1, 1]} : vector<32x256xf32> to vector<32x16xf32>
    %c480 = arith.constant 480 : index
    %c0_130 = arith.constant 0 : index
    %244 = vector.load %arg22[%c480, %c0_130] : memref<512x16xf32, #tpu.memory_space<vmem>>, vector<32x16xf32>
    tpu.vector_store %arg22[%c480, %c0_130], %243 {strides = array<i32>} : memref<512x16xf32, #tpu.memory_space<vmem>>, vector<32x16xf32>,
    %c0_131 = arith.constant 0 : index
    %c0_132 = arith.constant 0 : index
    %245 = vector.load %arg22[%c0_131, %c0_132] : memref<512x16xf32, #tpu.memory_space<vmem>>, vector<512x16xf32>
    %cst_133 = arith.constant dense<0.000000e+00> : vector<128x16xf32>
    %246 = tpu.matmul %211, %245, %cst_133 {dimension_numbers = #tpu.dot_dimension_numbers<[1], [0], [0], [1], [0, 0, 1, 1], [], []>} : vector<128x512xf32>, vector<512x16xf32>, vector<128x16xf32> -> vector<128x16xf32>
    %c0_134 = arith.constant 0 : index
    %c0_135 = arith.constant 0 : index
    %247 = vector.load %arg12[%c0_134, %c0_135] : memref<1x16xf32, #tpu.memory_space<vmem>>, vector<1x16xf32>
    %248 = vector.broadcast %247 : vector<1x16xf32> to vector<128x16xf32>
    %249 = arith.addf %246, %248 : vector<128x16xf32>
    %cst_136 = arith.constant 0.000000e+00 : f32
    %250 = vector.broadcast %cst_136 : f32 to vector<128x16xf32>
    %251 = arith.maximumf %249, %250 : vector<128x16xf32>
    %c0_137 = arith.constant 0 : index
    %c0_138 = arith.constant 0 : index
    %252 = vector.load %arg13[%c0_137, %c0_138] : memref<16x144xf32, #tpu.memory_space<vmem>>, vector<16x144xf32>
    %c0_139 = arith.constant 0 : index
    %c0_140 = arith.constant 0 : index
    %253 = vector.load %arg14[%c0_139, %c0_140] : memref<16x144xf32, #tpu.memory_space<vmem>>, vector<16x144xf32>
    %c0_141 = arith.constant 0 : index
    %c0_142 = arith.constant 0 : index
    %254 = vector.load %arg15[%c0_141, %c0_142] : memref<128x1152xf32, #tpu.memory_space<vmem>>, vector<128x1152xf32>
    %c0_143 = arith.constant 0 : index
    %c0_144 = arith.constant 0 : index
    %255 = vector.load %arg16[%c0_143, %c0_144] : memref<6x16xf32, #tpu.memory_space<vmem>>, vector<6x16xf32>
    %cst_145 = arith.constant dense<0.000000e+00> : vector<128x144xf32>
    %256 = tpu.matmul %251, %252, %cst_145 {dimension_numbers = #tpu.dot_dimension_numbers<[1], [0], [0], [1], [0, 0, 1, 1], [], []>} : vector<128x16xf32>, vector<16x144xf32>, vector<128x144xf32> -> vector<128x144xf32>
    %257 = vector.extract_strided_slice %256 {offsets = [0, 0], sizes = [128, 16], strides = [1, 1]} : vector<128x144xf32> to vector<128x16xf32>
    %c0_146 = arith.constant 0 : index
    %c0_147 = arith.constant 0 : index
    %258 = vector.load %arg23[%c0_146, %c0_147] : memref<1152x16xf32, #tpu.memory_space<vmem>>, vector<128x16xf32>
    tpu.vector_store %arg23[%c0_146, %c0_147], %257 {strides = array<i32>} : memref<1152x16xf32, #tpu.memory_space<vmem>>, vector<128x16xf32>,
    %259 = vector.extract_strided_slice %256 {offsets = [0, 16], sizes = [128, 16], strides = [1, 1]} : vector<128x144xf32> to vector<128x16xf32>
    %c128_148 = arith.constant 128 : index
    %c0_149 = arith.constant 0 : index
    %260 = vector.load %arg23[%c128_148, %c0_149] : memref<1152x16xf32, #tpu.memory_space<vmem>>, vector<128x16xf32>
    tpu.vector_store %arg23[%c128_148, %c0_149], %259 {strides = array<i32>} : memref<1152x16xf32, #tpu.memory_space<vmem>>, vector<128x16xf32>,
    %261 = vector.extract_strided_slice %256 {offsets = [0, 32], sizes = [128, 16], strides = [1, 1]} : vector<128x144xf32> to vector<128x16xf32>
    %c256_150 = arith.constant 256 : index
    %c0_151 = arith.constant 0 : index
    %262 = vector.load %arg23[%c256_150, %c0_151] : memref<1152x16xf32, #tpu.memory_space<vmem>>, vector<128x16xf32>
    tpu.vector_store %arg23[%c256_150, %c0_151], %261 {strides = array<i32>} : memref<1152x16xf32, #tpu.memory_space<vmem>>, vector<128x16xf32>,
    %263 = vector.extract_strided_slice %256 {offsets = [0, 48], sizes = [128, 16], strides = [1, 1]} : vector<128x144xf32> to vector<128x16xf32>
    %c384_152 = arith.constant 384 : index
    %c0_153 = arith.constant 0 : index
    %264 = vector.load %arg23[%c384_152, %c0_153] : memref<1152x16xf32, #tpu.memory_space<vmem>>, vector<128x16xf32>
    tpu.vector_store %arg23[%c384_152, %c0_153], %263 {strides = array<i32>} : memref<1152x16xf32, #tpu.memory_space<vmem>>, vector<128x16xf32>,
    %265 = vector.extract_strided_slice %256 {offsets = [0, 64], sizes = [128, 16], strides = [1, 1]} : vector<128x144xf32> to vector<128x16xf32>
    %c512 = arith.constant 512 : index
    %c0_154 = arith.constant 0 : index
    %266 = vector.load %arg23[%c512, %c0_154] : memref<1152x16xf32, #tpu.memory_space<vmem>>, vector<128x16xf32>
    tpu.vector_store %arg23[%c512, %c0_154], %265 {strides = array<i32>} : memref<1152x16xf32, #tpu.memory_space<vmem>>, vector<128x16xf32>,
    %267 = vector.extract_strided_slice %256 {offsets = [0, 80], sizes = [128, 16], strides = [1, 1]} : vector<128x144xf32> to vector<128x16xf32>
    %c640 = arith.constant 640 : index
    %c0_155 = arith.constant 0 : index
    %268 = vector.load %arg23[%c640, %c0_155] : memref<1152x16xf32, #tpu.memory_space<vmem>>, vector<128x16xf32>
    tpu.vector_store %arg23[%c640, %c0_155], %267 {strides = array<i32>} : memref<1152x16xf32, #tpu.memory_space<vmem>>, vector<128x16xf32>,
    %269 = vector.extract_strided_slice %256 {offsets = [0, 96], sizes = [128, 16], strides = [1, 1]} : vector<128x144xf32> to vector<128x16xf32>
    %c768 = arith.constant 768 : index
    %c0_156 = arith.constant 0 : index
    %270 = vector.load %arg23[%c768, %c0_156] : memref<1152x16xf32, #tpu.memory_space<vmem>>, vector<128x16xf32>
    tpu.vector_store %arg23[%c768, %c0_156], %269 {strides = array<i32>} : memref<1152x16xf32, #tpu.memory_space<vmem>>, vector<128x16xf32>,
    %271 = vector.extract_strided_slice %256 {offsets = [0, 112], sizes = [128, 16], strides = [1, 1]} : vector<128x144xf32> to vector<128x16xf32>
    %c896 = arith.constant 896 : index
    %c0_157 = arith.constant 0 : index
    %272 = vector.load %arg23[%c896, %c0_157] : memref<1152x16xf32, #tpu.memory_space<vmem>>, vector<128x16xf32>
    tpu.vector_store %arg23[%c896, %c0_157], %271 {strides = array<i32>} : memref<1152x16xf32, #tpu.memory_space<vmem>>, vector<128x16xf32>,
    %273 = vector.extract_strided_slice %256 {offsets = [0, 128], sizes = [128, 16], strides = [1, 1]} : vector<128x144xf32> to vector<128x16xf32>
    %c1024 = arith.constant 1024 : index
    %c0_158 = arith.constant 0 : index
    %274 = vector.load %arg23[%c1024, %c0_158] : memref<1152x16xf32, #tpu.memory_space<vmem>>, vector<128x16xf32>
    tpu.vector_store %arg23[%c1024, %c0_158], %273 {strides = array<i32>} : memref<1152x16xf32, #tpu.memory_space<vmem>>, vector<128x16xf32>,
    %c0_159 = arith.constant 0 : index
    %c0_160 = arith.constant 0 : index
    %275 = vector.load %arg23[%c0_159, %c0_160] : memref<1152x16xf32, #tpu.memory_space<vmem>>, vector<1152x16xf32>
    %cst_161 = arith.constant dense<0.000000e+00> : vector<128x16xf32>
    %276 = tpu.matmul %254, %275, %cst_161 {dimension_numbers = #tpu.dot_dimension_numbers<[1], [0], [0], [1], [0, 0, 1, 1], [], []>} : vector<128x1152xf32>, vector<1152x16xf32>, vector<128x16xf32> -> vector<128x16xf32>
    %277 = vector.extract_strided_slice %255 {offsets = [0, 0], sizes = [1, 16], strides = [1, 1]} : vector<6x16xf32> to vector<1x16xf32>
    %278 = vector.broadcast %277 : vector<1x16xf32> to vector<128x16xf32>
    %279 = arith.addf %276, %278 : vector<128x16xf32>
    %280 = vector.extract_strided_slice %255 {offsets = [1, 0], sizes = [1, 16], strides = [1, 1]} : vector<6x16xf32> to vector<1x16xf32>
    %281 = vector.extract_strided_slice %255 {offsets = [2, 0], sizes = [1, 16], strides = [1, 1]} : vector<6x16xf32> to vector<1x16xf32>
    %cst_162 = arith.constant dense<0.000000e+00> : vector<16xf32>
    %282 = vector.multi_reduction <add>, %279, %cst_162 [0] : vector<128x16xf32> to vector<16xf32>
    %283 = vector.shape_cast %282 : vector<16xf32> to vector<1x16xf32>
    %cst_163 = arith.constant 1.280000e+02 : f32
    %284 = vector.broadcast %cst_163 : f32 to vector<1x16xf32>
    %285 = arith.divf %283, %284 : vector<1x16xf32>
    %286 = vector.broadcast %285 : vector<1x16xf32> to vector<128x16xf32>
    %287 = arith.subf %279, %286 : vector<128x16xf32>
    %288 = arith.mulf %287, %287 : vector<128x16xf32>
    %cst_164 = arith.constant dense<0.000000e+00> : vector<16xf32>
    %289 = vector.multi_reduction <add>, %288, %cst_164 [0] : vector<128x16xf32> to vector<16xf32>
    %290 = vector.shape_cast %289 : vector<16xf32> to vector<1x16xf32>
    %cst_165 = arith.constant 1.280000e+02 : f32
    %291 = vector.broadcast %cst_165 : f32 to vector<1x16xf32>
    %292 = arith.divf %290, %291 : vector<1x16xf32>
    %293 = vector.broadcast %285 : vector<1x16xf32> to vector<128x16xf32>
    %294 = arith.subf %279, %293 : vector<128x16xf32>
    %cst_166 = arith.constant 9.99999974E-6 : f32
    %295 = vector.broadcast %cst_166 : f32 to vector<1x16xf32>
    %296 = arith.addf %292, %295 : vector<1x16xf32>
    %297 = math.rsqrt %296 : vector<1x16xf32>
    %298 = vector.broadcast %297 : vector<1x16xf32> to vector<128x16xf32>
    %299 = arith.mulf %294, %298 : vector<128x16xf32>
    %300 = vector.broadcast %280 : vector<1x16xf32> to vector<128x16xf32>
    %301 = arith.mulf %299, %300 : vector<128x16xf32>
    %302 = vector.broadcast %281 : vector<1x16xf32> to vector<128x16xf32>
    %303 = arith.addf %301, %302 : vector<128x16xf32>
    %cst_167 = arith.constant 0.000000e+00 : f32
    %304 = vector.broadcast %cst_167 : f32 to vector<128x16xf32>
    %305 = arith.maximumf %303, %304 : vector<128x16xf32>
    %cst_168 = arith.constant dense<0.000000e+00> : vector<128x144xf32>
    %306 = tpu.matmul %305, %253, %cst_168 {dimension_numbers = #tpu.dot_dimension_numbers<[1], [0], [0], [1], [0, 0, 1, 1], [], []>} : vector<128x16xf32>, vector<16x144xf32>, vector<128x144xf32> -> vector<128x144xf32>
    %307 = vector.extract_strided_slice %306 {offsets = [0, 0], sizes = [128, 16], strides = [1, 1]} : vector<128x144xf32> to vector<128x16xf32>
    %c0_169 = arith.constant 0 : index
    %c0_170 = arith.constant 0 : index
    %308 = vector.load %arg23[%c0_169, %c0_170] : memref<1152x16xf32, #tpu.memory_space<vmem>>, vector<128x16xf32>
    tpu.vector_store %arg23[%c0_169, %c0_170], %307 {strides = array<i32>} : memref<1152x16xf32, #tpu.memory_space<vmem>>, vector<128x16xf32>,
    %309 = vector.extract_strided_slice %306 {offsets = [0, 16], sizes = [128, 16], strides = [1, 1]} : vector<128x144xf32> to vector<128x16xf32>
    %c128_171 = arith.constant 128 : index
    %c0_172 = arith.constant 0 : index
    %310 = vector.load %arg23[%c128_171, %c0_172] : memref<1152x16xf32, #tpu.memory_space<vmem>>, vector<128x16xf32>
    tpu.vector_store %arg23[%c128_171, %c0_172], %309 {strides = array<i32>} : memref<1152x16xf32, #tpu.memory_space<vmem>>, vector<128x16xf32>,
    %311 = vector.extract_strided_slice %306 {offsets = [0, 32], sizes = [128, 16], strides = [1, 1]} : vector<128x144xf32> to vector<128x16xf32>
    %c256_173 = arith.constant 256 : index
    %c0_174 = arith.constant 0 : index
    %312 = vector.load %arg23[%c256_173, %c0_174] : memref<1152x16xf32, #tpu.memory_space<vmem>>, vector<128x16xf32>
    tpu.vector_store %arg23[%c256_173, %c0_174], %311 {strides = array<i32>} : memref<1152x16xf32, #tpu.memory_space<vmem>>, vector<128x16xf32>,
    %313 = vector.extract_strided_slice %306 {offsets = [0, 48], sizes = [128, 16], strides = [1, 1]} : vector<128x144xf32> to vector<128x16xf32>
    %c384_175 = arith.constant 384 : index
    %c0_176 = arith.constant 0 : index
    %314 = vector.load %arg23[%c384_175, %c0_176] : memref<1152x16xf32, #tpu.memory_space<vmem>>, vector<128x16xf32>
    tpu.vector_store %arg23[%c384_175, %c0_176], %313 {strides = array<i32>} : memref<1152x16xf32, #tpu.memory_space<vmem>>, vector<128x16xf32>,
    %315 = vector.extract_strided_slice %306 {offsets = [0, 64], sizes = [128, 16], strides = [1, 1]} : vector<128x144xf32> to vector<128x16xf32>
    %c512_177 = arith.constant 512 : index
    %c0_178 = arith.constant 0 : index
    %316 = vector.load %arg23[%c512_177, %c0_178] : memref<1152x16xf32, #tpu.memory_space<vmem>>, vector<128x16xf32>
    tpu.vector_store %arg23[%c512_177, %c0_178], %315 {strides = array<i32>} : memref<1152x16xf32, #tpu.memory_space<vmem>>, vector<128x16xf32>,
    %317 = vector.extract_strided_slice %306 {offsets = [0, 80], sizes = [128, 16], strides = [1, 1]} : vector<128x144xf32> to vector<128x16xf32>
    %c640_179 = arith.constant 640 : index
    %c0_180 = arith.constant 0 : index
    %318 = vector.load %arg23[%c640_179, %c0_180] : memref<1152x16xf32, #tpu.memory_space<vmem>>, vector<128x16xf32>
    tpu.vector_store %arg23[%c640_179, %c0_180], %317 {strides = array<i32>} : memref<1152x16xf32, #tpu.memory_space<vmem>>, vector<128x16xf32>,
    %319 = vector.extract_strided_slice %306 {offsets = [0, 96], sizes = [128, 16], strides = [1, 1]} : vector<128x144xf32> to vector<128x16xf32>
    %c768_181 = arith.constant 768 : index
    %c0_182 = arith.constant 0 : index
    %320 = vector.load %arg23[%c768_181, %c0_182] : memref<1152x16xf32, #tpu.memory_space<vmem>>, vector<128x16xf32>
    tpu.vector_store %arg23[%c768_181, %c0_182], %319 {strides = array<i32>} : memref<1152x16xf32, #tpu.memory_space<vmem>>, vector<128x16xf32>,
    %321 = vector.extract_strided_slice %306 {offsets = [0, 112], sizes = [128, 16], strides = [1, 1]} : vector<128x144xf32> to vector<128x16xf32>
    %c896_183 = arith.constant 896 : index
    %c0_184 = arith.constant 0 : index
    %322 = vector.load %arg23[%c896_183, %c0_184] : memref<1152x16xf32, #tpu.memory_space<vmem>>, vector<128x16xf32>
    tpu.vector_store %arg23[%c896_183, %c0_184], %321 {strides = array<i32>} : memref<1152x16xf32, #tpu.memory_space<vmem>>, vector<128x16xf32>,
    %323 = vector.extract_strided_slice %306 {offsets = [0, 128], sizes = [128, 16], strides = [1, 1]} : vector<128x144xf32> to vector<128x16xf32>
    %c1024_185 = arith.constant 1024 : index
    %c0_186 = arith.constant 0 : index
    %324 = vector.load %arg23[%c1024_185, %c0_186] : memref<1152x16xf32, #tpu.memory_space<vmem>>, vector<128x16xf32>
    tpu.vector_store %arg23[%c1024_185, %c0_186], %323 {strides = array<i32>} : memref<1152x16xf32, #tpu.memory_space<vmem>>, vector<128x16xf32>,
    %c0_187 = arith.constant 0 : index
    %c0_188 = arith.constant 0 : index
    %325 = vector.load %arg23[%c0_187, %c0_188] : memref<1152x16xf32, #tpu.memory_space<vmem>>, vector<1152x16xf32>
    %cst_189 = arith.constant dense<0.000000e+00> : vector<128x16xf32>
    %326 = tpu.matmul %254, %325, %cst_189 {dimension_numbers = #tpu.dot_dimension_numbers<[1], [0], [0], [1], [0, 0, 1, 1], [], []>} : vector<128x1152xf32>, vector<1152x16xf32>, vector<128x16xf32> -> vector<128x16xf32>
    %327 = vector.extract_strided_slice %255 {offsets = [3, 0], sizes = [1, 16], strides = [1, 1]} : vector<6x16xf32> to vector<1x16xf32>
    %328 = vector.broadcast %327 : vector<1x16xf32> to vector<128x16xf32>
    %329 = arith.addf %326, %328 : vector<128x16xf32>
    %330 = vector.extract_strided_slice %255 {offsets = [4, 0], sizes = [1, 16], strides = [1, 1]} : vector<6x16xf32> to vector<1x16xf32>
    %331 = vector.extract_strided_slice %255 {offsets = [5, 0], sizes = [1, 16], strides = [1, 1]} : vector<6x16xf32> to vector<1x16xf32>
    %cst_190 = arith.constant dense<0.000000e+00> : vector<16xf32>
    %332 = vector.multi_reduction <add>, %329, %cst_190 [0] : vector<128x16xf32> to vector<16xf32>
    %333 = vector.shape_cast %332 : vector<16xf32> to vector<1x16xf32>
    %cst_191 = arith.constant 1.280000e+02 : f32
    %334 = vector.broadcast %cst_191 : f32 to vector<1x16xf32>
    %335 = arith.divf %333, %334 : vector<1x16xf32>
    %336 = vector.broadcast %335 : vector<1x16xf32> to vector<128x16xf32>
    %337 = arith.subf %329, %336 : vector<128x16xf32>
    %338 = arith.mulf %337, %337 : vector<128x16xf32>
    %cst_192 = arith.constant dense<0.000000e+00> : vector<16xf32>
    %339 = vector.multi_reduction <add>, %338, %cst_192 [0] : vector<128x16xf32> to vector<16xf32>
    %340 = vector.shape_cast %339 : vector<16xf32> to vector<1x16xf32>
    %cst_193 = arith.constant 1.280000e+02 : f32
    %341 = vector.broadcast %cst_193 : f32 to vector<1x16xf32>
    %342 = arith.divf %340, %341 : vector<1x16xf32>
    %343 = vector.broadcast %335 : vector<1x16xf32> to vector<128x16xf32>
    %344 = arith.subf %329, %343 : vector<128x16xf32>
    %cst_194 = arith.constant 9.99999974E-6 : f32
    %345 = vector.broadcast %cst_194 : f32 to vector<1x16xf32>
    %346 = arith.addf %342, %345 : vector<1x16xf32>
    %347 = math.rsqrt %346 : vector<1x16xf32>
    %348 = vector.broadcast %347 : vector<1x16xf32> to vector<128x16xf32>
    %349 = arith.mulf %344, %348 : vector<128x16xf32>
    %350 = vector.broadcast %330 : vector<1x16xf32> to vector<128x16xf32>
    %351 = arith.mulf %349, %350 : vector<128x16xf32>
    %352 = vector.broadcast %331 : vector<1x16xf32> to vector<128x16xf32>
    %353 = arith.addf %351, %352 : vector<128x16xf32>
    %354 = arith.addf %353, %251 : vector<128x16xf32>
    %cst_195 = arith.constant 0.000000e+00 : f32
    %355 = vector.broadcast %cst_195 : f32 to vector<128x16xf32>
    %356 = arith.maximumf %354, %355 : vector<128x16xf32>
    %c0_196 = arith.constant 0 : index
    %c0_197 = arith.constant 0 : index
    %357 = vector.load %arg17[%c0_196, %c0_197] : memref<16x16xf32, #tpu.memory_space<vmem>>, vector<16x16xf32>
    %cst_198 = arith.constant dense<0.000000e+00> : vector<128x16xf32>
    %358 = tpu.matmul %356, %357, %cst_198 {dimension_numbers = #tpu.dot_dimension_numbers<[1], [0], [0], [1], [0, 0, 1, 1], [], []>} : vector<128x16xf32>, vector<16x16xf32>, vector<128x16xf32> -> vector<128x16xf32>
    %c0_199 = arith.constant 0 : index
    %c0_200 = arith.constant 0 : index
    %359 = vector.load %arg18[%c0_199, %c0_200] : memref<1x16xf32, #tpu.memory_space<vmem>>, vector<1x16xf32>
    %360 = vector.broadcast %359 : vector<1x16xf32> to vector<128x16xf32>
    %361 = arith.addf %358, %360 : vector<128x16xf32>
    %362 = arith.negf %361 : vector<128x16xf32>
    %363 = math.exp %362 : vector<128x16xf32>
    %cst_201 = arith.constant 1.000000e+00 : f32
    %364 = vector.broadcast %cst_201 : f32 to vector<128x16xf32>
    %365 = arith.addf %364, %363 : vector<128x16xf32>
    %366 = arith.divf %364, %365 : vector<128x16xf32>
    %c0_202 = arith.constant 0 : index
    %c0_203 = arith.constant 0 : index
    %367 = vector.load %arg19[%c0_202, %c0_203] : memref<128x16xf32, #tpu.memory_space<vmem>>, vector<128x16xf32>
    tpu.vector_store %arg19[%c0_202, %c0_203], %366 {strides = array<i32>} : memref<128x16xf32, #tpu.memory_space<vmem>>, vector<128x16xf32>,
    return
  }
}

</mosaic_0001>

<llo_original>
// kernel: res_conv_decoder.1
$region0: #{res_conv_decoder.1}
  #allocation0 [shape = 'u32[]', space=smem, size = 0x4, offset = 0x4, fixed_abs, tag = 'smem constant byte address 0x4 - core index']
  #allocation1 [shape = 'u32[72,128]{1,0:T(1,128)}', space=vmem, size = 0x9000, scoped, tag = 'internal scratch']
  #allocation2 [shape = 'f32[32,64]{1,0:T(8,128)}', space=vmem, size = 0x4000, scoped, tag = 'scratch operand']
  #allocation3 [shape = 'f32[288,64]{1,0:T(8,128)}', space=vmem, size = 0x24000, scoped, tag = 'scratch operand']
  #allocation4 [shape = 'f32[512,16]{1,0:T(8,128)}', space=vmem, size = 0x40000, scoped, tag = 'scratch operand']
  #allocation5 [shape = 'f32[1152,16]{1,0:T(8,128)}', space=vmem, size = 0x90000, scoped, tag = 'scratch operand']
  %s0 = inlined_call_operand.hbm [shape: f32[2,64], index: 0, kind: input, shape index: {}]
  %s1 = inlined_call_operand.hbm [shape: f32[64,64], index: 1, kind: input, shape index: {}]
  %s2 = inlined_call_operand.hbm [shape: f32[64,64], index: 2, kind: input, shape index: {}]
  %s3 = inlined_call_operand.hbm [shape: f32[6,64], index: 3, kind: input, shape index: {}]
  %s4 = inlined_call_operand.hbm [shape: f32[64,1024], index: 4, kind: input, shape index: {}]
  %s5 = inlined_call_operand.vmem [shape: f32[1,64], index: 5, kind: input, shape index: {}]
  %s6 = inlined_call_operand.hbm [shape: f32[64,576], index: 6, kind: input, shape index: {}]
  %s7 = inlined_call_operand.hbm [shape: f32[64,576], index: 7, kind: input, shape index: {}]
  %s8 = inlined_call_operand.hbm [shape: f32[32,288], index: 8, kind: input, shape index: {}]
  %s9 = inlined_call_operand.vmem [shape: f32[6,64], index: 9, kind: input, shape index: {}]
  %s10 = inlined_call_operand.hbm [shape: f32[64,256], index: 10, kind: input, shape index: {}]
  %s11 = inlined_call_operand.hbm [shape: f32[128,512], index: 11, kind: input, shape index: {}]
  %s12 = inlined_call_operand.vmem [shape: f32[1,16], index: 12, kind: input, shape index: {}]
  %s13 = inlined_call_operand.hbm [shape: f32[16,144], index: 13, kind: input, shape index: {}]
  %s14 = inlined_call_operand.hbm [shape: f32[16,144], index: 14, kind: input, shape index: {}]
  %s15 = inlined_call_operand.hbm [shape: f32[128,1152], index: 15, kind: input, shape index: {}]
  %s16 = inlined_call_operand.hbm [shape: f32[6,16], index: 16, kind: input, shape index: {}]
  %s17 = inlined_call_operand.hbm [shape: f32[16,16], index: 17, kind: input, shape index: {}]
  %s18 = inlined_call_operand.hbm [shape: f32[1,16], index: 18, kind: input, shape index: {}]
  %s19 = inlined_call_operand.vmem [shape: f32[128,16], index: 19, kind: output, shape index: {}]
  %s20 = sld [smem:[#allocation0]]
  $region150: #{res_conv_decoder.1} parent=0
    _
  %s22 = ssub.s32 1, %s20
  %s23 = scalar_select 0, %s22, %s20
  $region1: #{res_conv_decoder.1} parent=0
    #allocation6 [shape = 'u8[1024]{0}', space=vmem, size = 0x400, scoped, tag = 'input window, operand 0, single buffered']
    #allocation7 [shape = 's32[1]{0}', space=sflag, size = 0x4, scoped, tag = 'scoped memory for res_conv_decoder.1']
    #allocation8 [shape = 'u8[32768]{0}', space=vmem, size = 0x8000, scoped, tag = 'input window, operand 1, single buffered']
    #allocation9 [shape = 's32[1]{0}', space=sflag, size = 0x4, scoped, tag = 'scoped memory for res_conv_decoder.1']
    #allocation10 [shape = 'u8[32768]{0}', space=vmem, size = 0x8000, scoped, tag = 'input window, operand 2, single buffered']
    #allocation11 [shape = 'u8[4096]{0}', space=vmem, size = 0x1000, scoped, tag = 'input window, operand 3, single buffered']
    #allocation12 [shape = 's32[1]{0}', space=sflag, size = 0x4, scoped, tag = 'scoped memory for res_conv_decoder.1']
    #allocation13 [shape = 'u8[262144]{0}', space=vmem, size = 0x40000, scoped, tag = 'input window, operand 4, single buffered']
    #allocation14 [shape = 'u8[163840]{0}', space=vmem, size = 0x28000, scoped, tag = 'input window, operand 6, single buffered']
    #allocation15 [shape = 's32[1]{0}', space=sflag, size = 0x4, scoped, tag = 'scoped memory for res_conv_decoder.1']
    #allocation16 [shape = 'u8[163840]{0}', space=vmem, size = 0x28000, scoped, tag = 'input window, operand 7, single buffered']
    #allocation17 [shape = 'u8[49152]{0}', space=vmem, size = 0xc000, scoped, tag = 'input window, operand 8, single buffered']
    #allocation18 [shape = 's32[1]{0}', space=sflag, size = 0x4, scoped, tag = 'scoped memory for res_conv_decoder.1']
    #allocation19 [shape = 'u8[65536]{0}', space=vmem, size = 0x10000, scoped, tag = 'input window, operand 10, single buffered']
    #allocation20 [shape = 'u8[262144]{0}', space=vmem, size = 0x40000, scoped, tag = 'input window, operand 11, single buffered']
    #allocation21 [shape = 's32[1]{0}', space=sflag, size = 0x4, scoped, tag = 'scoped memory for res_conv_decoder.1']
    #allocation22 [shape = 'u8[16384]{0}', space=vmem, size = 0x4000, scoped, tag = 'input window, operand 13, single buffered']
    #allocation23 [shape = 'u8[16384]{0}', space=vmem, size = 0x4000, scoped, tag = 'input window, operand 14, single buffered']
    #allocation24 [shape = 's32[1]{0}', space=sflag, size = 0x4, scoped, tag = 'scoped memory for res_conv_decoder.1']
    #allocation25 [shape = 'u8[589824]{0}', space=vmem, size = 0x90000, scoped, tag = 'input window, operand 15, single buffered']
    #allocation26 [shape = 'u8[4096]{0}', space=vmem, size = 0x1000, scoped, tag = 'input window, operand 16, single buffered']
    #allocation27 [shape = 's32[1]{0}', space=sflag, size = 0x4, scoped, tag = 'scoped memory for res_conv_decoder.1']
    #allocation28 [shape = 'u8[8192]{0}', space=vmem, size = 0x2000, scoped, tag = 'input window, operand 17, single buffered']
    #allocation29 [shape = 'u8[512]{0}', space=vmem, size = 0x400, scoped, tag = 'input window, operand 18, single buffered']
    #allocation30 [shape = 's32[1]{0}', space=sflag, size = 0x4, scoped, tag = 'scoped memory for res_conv_decoder.1']
    %24 = vsyncpa [#allocation7], 0
    %25 = vsyncpa [#allocation9], 0
    %26 = vsyncpa [#allocation12], 0
    %27 = vsyncpa [#allocation15], 0
    %28 = vsyncpa [#allocation18], 0
    %29 = vsyncpa [#allocation21], 0
    %30 = vsyncpa [#allocation24], 0
    %31 = vsyncpa [#allocation27], 0
    %32 = vsyncpa [#allocation30], 0
    // Predicated region
    $region2: #{res_conv_decoder.1} parent=1 // pred_check
      _
    $region3: #{res_conv_decoder.1} parent=1 // pred_check_branch
      %34 = sbr.rel (0) target = $region5
    $region4: #{res_conv_decoder.1} parent=1 // pred_region
      %36 = vsyncadd [#allocation7], 0
      %s38 = sshll.u32 %s0, 4
      %s39 = int_to_ptr.hbm [resolvable:$true] %s38
      %s40 = sshll.u32 [#allocation6], 4
      %s41 = int_to_ptr.vmem [resolvable:$true] %s40
      %43 = dma.hbm_to_vmem [thread:$0]  %s39, 32, %s41, [#allocation7]
    $region5: #{res_conv_decoder.1} parent=1 // pred_fallthru
      _
    // Predicated region
    $region6: #{res_conv_decoder.1} parent=1 // pred_check
      _
    $region7: #{res_conv_decoder.1} parent=1 // pred_check_branch
      %45 = sbr.rel (0) target = $region9
    $region8: #{res_conv_decoder.1} parent=1 // pred_region
      %47 = vsyncadd [#allocation9], 0
      %s48 = sshll.u32 %s1, 4
      %s49 = int_to_ptr.hbm [resolvable:$true] %s48
      %s50 = sshll.u32 [#allocation8], 4
      %s51 = int_to_ptr.vmem [resolvable:$true] %s50
      %56 = dma.hbm_to_vmem [thread:$0]  %s49, 1024, %s51, [#allocation9], 128, 128, 8
    $region9: #{res_conv_decoder.1} parent=1 // pred_fallthru
      _
    // Predicated region
    $region10: #{res_conv_decoder.1} parent=1 // pred_check
      _
    $region11: #{res_conv_decoder.1} parent=1 // pred_check_branch
      %58 = sbr.rel (0) target = $region13
    $region12: #{res_conv_decoder.1} parent=1 // pred_region
      %60 = vsyncadd [#allocation9], 0
      %s61 = sshll.u32 %s2, 4
      %s62 = int_to_ptr.hbm [resolvable:$true] %s61
      %s63 = sshll.u32 [#allocation10], 4
      %s64 = int_to_ptr.vmem [resolvable:$true] %s63
      %69 = dma.hbm_to_vmem [thread:$0]  %s62, 1024, %s64, [#allocation9], 128, 128, 8
    $region13: #{res_conv_decoder.1} parent=1 // pred_fallthru
      _
    // Predicated region
    $region14: #{res_conv_decoder.1} parent=1 // pred_check
      _
    $region15: #{res_conv_decoder.1} parent=1 // pred_check_branch
      %71 = sbr.rel (0) target = $region17
    $region16: #{res_conv_decoder.1} parent=1 // pred_region
      %73 = vsyncadd [#allocation12], 0
      %s75 = sshll.u32 %s3, 4
      %s76 = int_to_ptr.hbm [resolvable:$true] %s75
      %s77 = sshll.u32 [#allocation11], 4
      %s78 = int_to_ptr.vmem [resolvable:$true] %s77
      %80 = dma.hbm_to_vmem [thread:$0]  %s76, 128, %s78, [#allocation12]
    $region17: #{res_conv_decoder.1} parent=1 // pred_fallthru
      _
    // Predicated region
    $region18: #{res_conv_decoder.1} parent=1 // pred_check
      _
    $region19: #{res_conv_decoder.1} parent=1 // pred_check_branch
      %82 = sbr.rel (0) target = $region21
    $region20: #{res_conv_decoder.1} parent=1 // pred_region
      %84 = vsyncadd [#allocation12], 0
      %s85 = sshll.u32 %s4, 4
      %s86 = int_to_ptr.hbm [resolvable:$true] %s85
      %s87 = sshll.u32 [#allocation13], 4
      %s88 = int_to_ptr.vmem [resolvable:$true] %s87
      %93 = dma.hbm_to_vmem [thread:$0]  %s86, 8192, %s88, [#allocation12], 1024, 1024, 64
    $region21: #{res_conv_decoder.1} parent=1 // pred_fallthru
      _
    // Predicated region
    $region22: #{res_conv_decoder.1} parent=1 // pred_check
      _
    $region23: #{res_conv_decoder.1} parent=1 // pred_check_branch
      %95 = sbr.rel (0) target = $region25
    $region24: #{res_conv_decoder.1} parent=1 // pred_region
      _
    $region25: #{res_conv_decoder.1} parent=1 // pred_fallthru
      _
    // Predicated region
    $region26: #{res_conv_decoder.1} parent=1 // pred_check
      _
    $region27: #{res_conv_decoder.1} parent=1 // pred_check_branch
      %97 = sbr.rel (0) target = $region29
    $region28: #{res_conv_decoder.1} parent=1 // pred_region
      %99 = vsyncadd [#allocation15], 0
      %s100 = sshll.u32 %s6, 4
      %s101 = int_to_ptr.hbm [resolvable:$true] %s100
      %s102 = sshll.u32 [#allocation14], 4
      %s103 = int_to_ptr.vmem [resolvable:$true] %s102
      %108 = dma.hbm_to_vmem [thread:$0]  %s101, 5120, %s103, [#allocation15], 640, 640, 40
    $region29: #{res_conv_decoder.1} parent=1 // pred_fallthru
      _
    // Predicated region
    $region30: #{res_conv_decoder.1} parent=1 // pred_check
      _
    $region31: #{res_conv_decoder.1} parent=1 // pred_check_branch
      %110 = sbr.rel (0) target = $region33
    $region32: #{res_conv_decoder.1} parent=1 // pred_region
      %112 = vsyncadd [#allocation15], 0
      %s113 = sshll.u32 %s7, 4
      %s114 = int_to_ptr.hbm [resolvable:$true] %s113
      %s115 = sshll.u32 [#allocation16], 4
      %s116 = int_to_ptr.vmem [resolvable:$true] %s115
      %121 = dma.hbm_to_vmem [thread:$0]  %s114, 5120, %s116, [#allocation15], 640, 640, 40
    $region33: #{res_conv_decoder.1} parent=1 // pred_fallthru
      _
    // Predicated region
    $region34: #{res_conv_decoder.1} parent=1 // pred_check
      _
    $region35: #{res_conv_decoder.1} parent=1 // pred_check_branch
      %123 = sbr.rel (0) target = $region37
    $region36: #{res_conv_decoder.1} parent=1 // pred_region
      %125 = vsyncadd [#allocation18], 0
      %s126 = sshll.u32 %s8, 4
      %s127 = int_to_ptr.hbm [resolvable:$true] %s126
      %s128 = sshll.u32 [#allocation17], 4
      %s129 = int_to_ptr.vmem [resolvable:$true] %s128
      %134 = dma.hbm_to_vmem [thread:$0]  %s127, 1536, %s129, [#allocation18], 384, 384, 24
    $region37: #{res_conv_decoder.1} parent=1 // pred_fallthru
      _
    // Predicated region
    $region38: #{res_conv_decoder.1} parent=1 // pred_check
      _
    $region39: #{res_conv_decoder.1} parent=1 // pred_check_branch
      %136 = sbr.rel (0) target = $region41
    $region40: #{res_conv_decoder.1} parent=1 // pred_region
      _
    $region41: #{res_conv_decoder.1} parent=1 // pred_fallthru
      _
    // Predicated region
    $region42: #{res_conv_decoder.1} parent=1 // pred_check
      _
    $region43: #{res_conv_decoder.1} parent=1 // pred_check_branch
      %138 = sbr.rel (0) target = $region45
    $region44: #{res_conv_decoder.1} parent=1 // pred_region
      %140 = vsyncadd [#allocation18], 0
      %s141 = sshll.u32 %s10, 4
      %s142 = int_to_ptr.hbm [resolvable:$true] %s141
      %s143 = sshll.u32 [#allocation19], 4
      %s144 = int_to_ptr.vmem [resolvable:$true] %s143
      %149 = dma.hbm_to_vmem [thread:$0]  %s142, 2048, %s144, [#allocation18], 256, 256, 16
    $region45: #{res_conv_decoder.1} parent=1 // pred_fallthru
      _
    // Predicated region
    $region46: #{res_conv_decoder.1} parent=1 // pred_check
      _
    $region47: #{res_conv_decoder.1} parent=1 // pred_check_branch
      %151 = sbr.rel (0) target = $region49
    $region48: #{res_conv_decoder.1} parent=1 // pred_region
      %153 = vsyncadd [#allocation21], 0
      %s154 = sshll.u32 %s11, 4
      %s155 = int_to_ptr.hbm [resolvable:$true] %s154
      %s156 = sshll.u32 [#allocation20], 4
      %s157 = int_to_ptr.vmem [resolvable:$true] %s156
      %162 = dma.hbm_to_vmem [thread:$0]  %s155, 8192, %s157, [#allocation21], 512, 512, 32
    $region49: #{res_conv_decoder.1} parent=1 // pred_fallthru
      _
    // Predicated region
    $region50: #{res_conv_decoder.1} parent=1 // pred_check
      _
    $region51: #{res_conv_decoder.1} parent=1 // pred_check_branch
      %164 = sbr.rel (0) target = $region53
    $region52: #{res_conv_decoder.1} parent=1 // pred_region
      _
    $region53: #{res_conv_decoder.1} parent=1 // pred_fallthru
      _
    // Predicated region
    $region54: #{res_conv_decoder.1} parent=1 // pred_check
      _
    $region55: #{res_conv_decoder.1} parent=1 // pred_check_branch
      %166 = sbr.rel (0) target = $region57
    $region56: #{res_conv_decoder.1} parent=1 // pred_region
      %168 = vsyncadd [#allocation21], 0
      %s169 = sshll.u32 %s13, 4
      %s170 = int_to_ptr.hbm [resolvable:$true] %s169
      %s171 = sshll.u32 [#allocation22], 4
      %s172 = int_to_ptr.vmem [resolvable:$true] %s171
      %177 = dma.hbm_to_vmem [thread:$0]  %s170, 512, %s172, [#allocation21], 256, 256, 16
    $region57: #{res_conv_decoder.1} parent=1 // pred_fallthru
      _
    // Predicated region
    $region58: #{res_conv_decoder.1} parent=1 // pred_check
      _
    $region59: #{res_conv_decoder.1} parent=1 // pred_check_branch
      %179 = sbr.rel (0) target = $region61
    $region60: #{res_conv_decoder.1} parent=1 // pred_region
      %181 = vsyncadd [#allocation24], 0
      %s182 = sshll.u32 %s14, 4
      %s183 = int_to_ptr.hbm [resolvable:$true] %s182
      %s184 = sshll.u32 [#allocation23], 4
      %s185 = int_to_ptr.vmem [resolvable:$true] %s184
      %190 = dma.hbm_to_vmem [thread:$0]  %s183, 512, %s185, [#allocation24], 256, 256, 16
    $region61: #{res_conv_decoder.1} parent=1 // pred_fallthru
      _
    // Predicated region
    $region62: #{res_conv_decoder.1} parent=1 // pred_check
      _
    $region63: #{res_conv_decoder.1} parent=1 // pred_check_branch
      %192 = sbr.rel (0) target = $region65
    $region64: #{res_conv_decoder.1} parent=1 // pred_region
      %194 = vsyncadd [#allocation24], 0
      %s195 = sshll.u32 %s15, 4
      %s196 = int_to_ptr.hbm [resolvable:$true] %s195
      %s197 = sshll.u32 [#allocation25], 4
      %s198 = int_to_ptr.vmem [resolvable:$true] %s197
      %203 = dma.hbm_to_vmem [thread:$0]  %s196, 18432, %s198, [#allocation24], 1152, 1152, 72
    $region65: #{res_conv_decoder.1} parent=1 // pred_fallthru
      _
    // Predicated region
    $region66: #{res_conv_decoder.1} parent=1 // pred_check
      _
    $region67: #{res_conv_decoder.1} parent=1 // pred_check_branch
      %205 = sbr.rel (0) target = $region69
    $region68: #{res_conv_decoder.1} parent=1 // pred_region
      %207 = vsyncadd [#allocation27], 0
      %s209 = sshll.u32 %s16, 4
      %s210 = int_to_ptr.hbm [resolvable:$true] %s209
      %s211 = sshll.u32 [#allocation26], 4
      %s212 = int_to_ptr.vmem [resolvable:$true] %s211
      %214 = dma.hbm_to_vmem [thread:$0]  %s210, 128, %s212, [#allocation27]
    $region69: #{res_conv_decoder.1} parent=1 // pred_fallthru
      _
    // Predicated region
    $region70: #{res_conv_decoder.1} parent=1 // pred_check
      _
    $region71: #{res_conv_decoder.1} parent=1 // pred_check_branch
      %216 = sbr.rel (0) target = $region73
    $region72: #{res_conv_decoder.1} parent=1 // pred_region
      %218 = vsyncadd [#allocation27], 0
      %s219 = sshll.u32 %s17, 4
      %s220 = int_to_ptr.hbm [resolvable:$true] %s219
      %s221 = sshll.u32 [#allocation28], 4
      %s222 = int_to_ptr.vmem [resolvable:$true] %s221
      %227 = dma.hbm_to_vmem [thread:$0]  %s220, 256, %s222, [#allocation27], 128, 128, 8
    $region73: #{res_conv_decoder.1} parent=1 // pred_fallthru
      _
    // Predicated region
    $region74: #{res_conv_decoder.1} parent=1 // pred_check
      _
    $region75: #{res_conv_decoder.1} parent=1 // pred_check_branch
      %229 = sbr.rel (0) target = $region77
    $region76: #{res_conv_decoder.1} parent=1 // pred_region
      %231 = vsyncadd [#allocation30], 0
      %s233 = sshll.u32 %s18, 4
      %s234 = int_to_ptr.hbm [resolvable:$true] %s233
      %s235 = sshll.u32 [#allocation29], 4
      %s236 = int_to_ptr.vmem [resolvable:$true] %s235
      %238 = dma.hbm_to_vmem [thread:$0]  %s234, 16, %s236, [#allocation30]
    $region77: #{res_conv_decoder.1} parent=1 // pred_fallthru
      _
    // Predicated region
    $region78: #{res_conv_decoder.1} parent=1 // pred_check
      _
    $region79: #{res_conv_decoder.1} parent=1 // pred_check_branch
      %240 = sbr.rel (0) target = $region81
    $region80: #{res_conv_decoder.1} parent=1 // pred_region
      %242 = dma.done [#allocation7], 32
    $region81: #{res_conv_decoder.1} parent=1 // pred_fallthru
      _
    // Predicated region
    $region82: #{res_conv_decoder.1} parent=1 // pred_check
      _
    $region83: #{res_conv_decoder.1} parent=1 // pred_check_branch
      %244 = sbr.rel (0) target = $region85
    $region84: #{res_conv_decoder.1} parent=1 // pred_region
      %246 = dma.done [#allocation9], 1024
    $region85: #{res_conv_decoder.1} parent=1 // pred_fallthru
      _
    // Predicated region
    $region86: #{res_conv_decoder.1} parent=1 // pred_check
      _
    $region87: #{res_conv_decoder.1} parent=1 // pred_check_branch
      %248 = sbr.rel (0) target = $region89
    $region88: #{res_conv_decoder.1} parent=1 // pred_region
      %250 = dma.done [#allocation9], 1024
    $region89: #{res_conv_decoder.1} parent=1 // pred_fallthru
      _
    // Predicated region
    $region90: #{res_conv_decoder.1} parent=1 // pred_check
      _
    $region91: #{res_conv_decoder.1} parent=1 // pred_check_branch
      %252 = sbr.rel (0) target = $region93
    $region92: #{res_conv_decoder.1} parent=1 // pred_region
      %254 = dma.done [#allocation12], 128
    $region93: #{res_conv_decoder.1} parent=1 // pred_fallthru
      _
    // Predicated region
    $region94: #{res_conv_decoder.1} parent=1 // pred_check
      _
    $region95: #{res_conv_decoder.1} parent=1 // pred_check_branch
      %256 = sbr.rel (0) target = $region97
    $region96: #{res_conv_decoder.1} parent=1 // pred_region
      %258 = dma.done [#allocation12], 8192
    $region97: #{res_conv_decoder.1} parent=1 // pred_fallthru
      _
    // Predicated region
    $region98: #{res_conv_decoder.1} parent=1 // pred_check
      _
    $region99: #{res_conv_decoder.1} parent=1 // pred_check_branch
      %260 = sbr.rel (0) target = $region101
    $region100: #{res_conv_decoder.1} parent=1 // pred_region
      %262 = dma.done [#allocation15], 5120
    $region101: #{res_conv_decoder.1} parent=1 // pred_fallthru
      _
    // Predicated region
    $region102: #{res_conv_decoder.1} parent=1 // pred_check
      _
    $region103: #{res_conv_decoder.1} parent=1 // pred_check_branch
      %264 = sbr.rel (0) target = $region105
    $region104: #{res_conv_decoder.1} parent=1 // pred_region
      %266 = dma.done [#allocation15], 5120
    $region105: #{res_conv_decoder.1} parent=1 // pred_fallthru
      _
    // Predicated region
    $region106: #{res_conv_decoder.1} parent=1 // pred_check
      _
    $region107: #{res_conv_decoder.1} parent=1 // pred_check_branch
      %268 = sbr.rel (0) target = $region109
    $region108: #{res_conv_decoder.1} parent=1 // pred_region
      %270 = dma.done [#allocation18], 1536
    $region109: #{res_conv_decoder.1} parent=1 // pred_fallthru
      _
    // Predicated region
    $region110: #{res_conv_decoder.1} parent=1 // pred_check
      _
    $region111: #{res_conv_decoder.1} parent=1 // pred_check_branch
      %272 = sbr.rel (0) target = $region113
    $region112: #{res_conv_decoder.1} parent=1 // pred_region
      %274 = dma.done [#allocation18], 2048
    $region113: #{res_conv_decoder.1} parent=1 // pred_fallthru
      _
    // Predicated region
    $region114: #{res_conv_decoder.1} parent=1 // pred_check
      _
    $region115: #{res_conv_decoder.1} parent=1 // pred_check_branch
      %276 = sbr.rel (0) target = $region117
    $region116: #{res_conv_decoder.1} parent=1 // pred_region
      %278 = dma.done [#allocation21], 8192
    $region117: #{res_conv_decoder.1} parent=1 // pred_fallthru
      _
    // Predicated region
    $region118: #{res_conv_decoder.1} parent=1 // pred_check
      _
    $region119: #{res_conv_decoder.1} parent=1 // pred_check_branch
      %280 = sbr.rel (0) target = $region121
    $region120: #{res_conv_decoder.1} parent=1 // pred_region
      %282 = dma.done [#allocation21], 512
    $region121: #{res_conv_decoder.1} parent=1 // pred_fallthru
      _
    // Predicated region
    $region122: #{res_conv_decoder.1} parent=1 // pred_check
      _
    $region123: #{res_conv_decoder.1} parent=1 // pred_check_branch
      %284 = sbr.rel (0) target = $region125
    $region124: #{res_conv_decoder.1} parent=1 // pred_region
      %286 = dma.done [#allocation24], 512
    $region125: #{res_conv_decoder.1} parent=1 // pred_fallthru
      _
    // Predicated region
    $region126: #{res_conv_decoder.1} parent=1 // pred_check
      _
    $region127: #{res_conv_decoder.1} parent=1 // pred_check_branch
      %288 = sbr.rel (0) target = $region129
    $region128: #{res_conv_decoder.1} parent=1 // pred_region
      %290 = dma.done [#allocation24], 18432
    $region129: #{res_conv_decoder.1} parent=1 // pred_fallthru
      _
    // Predicated region
    $region130: #{res_conv_decoder.1} parent=1 // pred_check
      _
    $region131: #{res_conv_decoder.1} parent=1 // pred_check_branch
      %292 = sbr.rel (0) target = $region133
    $region132: #{res_conv_decoder.1} parent=1 // pred_region
      %294 = dma.done [#allocation27], 128
    $region133: #{res_conv_decoder.1} parent=1 // pred_fallthru
      _
    // Predicated region
    $region134: #{res_conv_decoder.1} parent=1 // pred_check
      _
    $region135: #{res_conv_decoder.1} parent=1 // pred_check_branch
      %296 = sbr.rel (0) target = $region137
    $region136: #{res_conv_decoder.1} parent=1 // pred_region
      %298 = dma.done [#allocation27], 256
    $region137: #{res_conv_decoder.1} parent=1 // pred_fallthru
      _
    // Predicated region
    $region138: #{res_conv_decoder.1} parent=1 // pred_check
      _
    $region139: #{res_conv_decoder.1} parent=1 // pred_check_branch
      %300 = sbr.rel (0) target = $region141
    $region140: #{res_conv_decoder.1} parent=1 // pred_region
      %302 = dma.done [#allocation30], 16
    $region141: #{res_conv_decoder.1} parent=1 // pred_fallthru
      _
    %v303 = vld [vmem:[#allocation6] sm:$0x3]
    %v304 = vld [vmem:[#allocation11] sm:$0x3f]
    %v305 = vld [vmem:[#allocation8] sm:$0xff]
    %v306 = vld [vmem:[#allocation8 + $0x8] sm:$0xff]
    %v307 = vld [vmem:[#allocation8 + $0x10] sm:$0xff]
    %v308 = vld [vmem:[#allocation8 + $0x18] sm:$0xff]
    %v309 = vld [vmem:[#allocation8 + $0x20] sm:$0xff]
    %v310 = vld [vmem:[#allocation8 + $0x28] sm:$0xff]
    %v311 = vld [vmem:[#allocation8 + $0x30] sm:$0xff]
    %v312 = vld [vmem:[#allocation8 + $0x38] sm:$0xff]
    %v313 = vperm.slane %v304, 0
    %vm314 = vcmask 523264
    %v316 = vsel %vm314, %v303, 0
    %318 = vmatpush.msra.mxu0 0.0
    %319 = vmatpush.msra.mxu0 0.0
    %320 = vmatpush.msra.mxu0 0.0
    %321 = vmatpush.msra.mxu0 0.0
    %322 = vmatpush.msra.mxu0 0.0
    %323 = vmatpush.msra.mxu0 0.0
    %324 = vmatpush.msra.mxu0 0.0
    %325 = vmatpush.msra.mxu0 0.0
    %326 = vmatpush.msra.mxu0 %v312
    %327 = vmatpush.msra.mxu0 %v311
    %328 = vmatpush.msra.mxu0 %v310
    %329 = vmatpush.msra.mxu0 %v309
    %330 = vmatpush.msra.mxu0 %v308
    %331 = vmatpush.msra.mxu0 %v307
    %332 = vmatpush.msra.mxu0 %v306
    %333 = vmatpush.msra.mxu0 %v305
    %334 = vmatmul.f32.gmra.mxu0 %v316
    %v335 = vpop.f32.mrf.mxu0
    %v336 = vadd.f32 %v313, %v335
    %337 = vdwg.mxu0
    %vm338 = vcmask 517120
    %v339 = vsel %vm338, %v336, 0.0
    %v340 = vrot.slane %v339, 4
    %v341 = vadd.f32 %v339, %v340
    %v342 = vrot.slane %v341, 2
    %v343 = vadd.f32 %v341, %v342
    %v344 = vrot.slane %v343, 1
    %v345 = vadd.f32 %v343, %v344
    %v346 = vrcp.pop 2.0
    %v347 = vmul.f32 2.0, %v346
    %v348 = vsub.f32 1.0, %v347
    %v349 = vmul.f32 %v346, %v348
    %v350 = vadd.f32 %v346, %v349
    %vm351 = vweird.f32 %v346
    %v352 = vsel %vm351, %v346, %v350
    %v353 = vmul.f32 %v345, %v352
    %v354 = vsub.f32 %v336, %v353
    %v355 = vmul.f32 %v354, %v354
    %v356 = vsel %vm338, %v355, 0.0
    %v357 = vrot.slane %v356, 4
    %v358 = vadd.f32 %v356, %v357
    %v359 = vrot.slane %v358, 2
    %v360 = vadd.f32 %v358, %v359
    %v361 = vrot.slane %v360, 1
    %v362 = vadd.f32 %v360, %v361
    %v363 = vmul.f32 %v362, %v352
    %v364 = vadd.f32 %v363, 1e-05
    %v365 = vrsqrt.pop %v364
    %v366 = vmul.f32 %v365, %v364
    %v367 = vmul.f32 %v366, %v365
    %v368 = vmul.f32 0.5, %v367
    %v369 = vsub.f32 1.5, %v368
    %v370 = vmul.f32 %v365, %v369
    %vm371 = vweird.f32 %v364
    %vm372 = vweird.f32 %v365
    %vm373 = vmor %vm371, %vm372
    %v374 = vsel %vm373, %v365, %v370
    %v375 = vmul.f32 %v354, %v374
    %v376 = vperm.slane %v304, 1
    %v377 = vmul.f32 %v375, %v376
    %v378 = vperm.slane %v304, 2
    %v379 = vadd.f32 %v377, %v378
    %v380 = vmax.f32 %v379, 0.0
    %v381 = vld [vmem:[#allocation10] sm:$0xff]
    %v382 = vld [vmem:[#allocation10 + $0x8] sm:$0xff]
    %v383 = vld [vmem:[#allocation10 + $0x10] sm:$0xff]
    %v384 = vld [vmem:[#allocation10 + $0x18] sm:$0xff]
    %v385 = vld [vmem:[#allocation10 + $0x20] sm:$0xff]
    %v386 = vld [vmem:[#allocation10 + $0x28] sm:$0xff]
    %v387 = vld [vmem:[#allocation10 + $0x30] sm:$0xff]
    %v388 = vld [vmem:[#allocation10 + $0x38] sm:$0xff]
    %v389 = vperm.slane %v304, 3
    %v391 = vsel %vm314, %v380, 0
    %393 = vmatpush.msra.mxu0 0.0
    %394 = vmatpush.msra.mxu0 0.0
    %395 = vmatpush.msra.mxu0 0.0
    %396 = vmatpush.msra.mxu0 0.0
    %397 = vmatpush.msra.mxu0 0.0
    %398 = vmatpush.msra.mxu0 0.0
    %399 = vmatpush.msra.mxu0 0.0
    %400 = vmatpush.msra.mxu0 0.0
    %401 = vmatpush.msra.mxu0 %v388
    %402 = vmatpush.msra.mxu0 %v387
    %403 = vmatpush.msra.mxu0 %v386
    %404 = vmatpush.msra.mxu0 %v385
    %405 = vmatpush.msra.mxu0 %v384
    %406 = vmatpush.msra.mxu0 %v383
    %407 = vmatpush.msra.mxu0 %v382
    %408 = vmatpush.msra.mxu0 %v381
    %409 = vmatmul.f32.gmra.mxu0 %v391
    %v410 = vpop.f32.mrf.mxu0
    %v411 = vadd.f32 %v389, %v410
    %412 = vdwg.mxu0
    %v413 = vsel %vm338, %v411, 0.0
    %v414 = vrot.slane %v413, 4
    %v415 = vadd.f32 %v413, %v414
    %v416 = vrot.slane %v415, 2
    %v417 = vadd.f32 %v415, %v416
    %v418 = vrot.slane %v417, 1
    %v419 = vadd.f32 %v417, %v418
    %v420 = vmul.f32 %v419, %v352
    %v421 = vsub.f32 %v411, %v420
    %v422 = vmul.f32 %v421, %v421
    %v423 = vsel %vm338, %v422, 0.0
    %v424 = vrot.slane %v423, 4
    %v425 = vadd.f32 %v423, %v424
    %v426 = vrot.slane %v425, 2
    %v427 = vadd.f32 %v425, %v426
    %v428 = vrot.slane %v427, 1
    %v429 = vadd.f32 %v427, %v428
    %v430 = vmul.f32 %v429, %v352
    %v431 = vadd.f32 %v430, 1e-05
    %v432 = vrsqrt.pop %v431
    %v433 = vmul.f32 %v432, %v431
    %v434 = vmul.f32 %v433, %v432
    %v435 = vmul.f32 0.5, %v434
    %v436 = vsub.f32 1.5, %v435
    %v437 = vmul.f32 %v432, %v436
    %vm438 = vweird.f32 %v431
    %vm439 = vweird.f32 %v432
    %vm440 = vmor %vm438, %vm439
    %v441 = vsel %vm440, %v432, %v437
    %v442 = vmul.f32 %v421, %v441
    %v443 = vperm.slane %v304, 4
    %v444 = vmul.f32 %v442, %v443
    %v445 = vperm.slane %v304, 5
    %v446 = vadd.f32 %v444, %v445
    %v447 = vadd.f32 %v446, %v303
    %v448 = vmax.f32 %v447, 0.0
    %v449 = vld [vmem:[#allocation13] sm:$0xff]
    %v450 = vld [vmem:[#allocation13 + $0x8] sm:$0xff]
    %v451 = vld [vmem:[#allocation13 + $0x10] sm:$0xff]
    %v452 = vld [vmem:[#allocation13 + $0x18] sm:$0xff]
    %v453 = vld [vmem:[#allocation13 + $0x20] sm:$0xff]
    %v454 = vld [vmem:[#allocation13 + $0x28] sm:$0xff]
    %v455 = vld [vmem:[#allocation13 + $0x30] sm:$0xff]
    %v456 = vld [vmem:[#allocation13 + $0x38] sm:$0xff]
    %v457 = vld [vmem:[#allocation13 + $0x40] sm:$0xff]
    %v458 = vld [vmem:[#allocation13 + $0x48] sm:$0xff]
    %v459 = vld [vmem:[#allocation13 + $0x50] sm:$0xff]
    %v460 = vld [vmem:[#allocation13 + $0x58] sm:$0xff]
    %v461 = vld [vmem:[#allocation13 + $0x60] sm:$0xff]
    %v462 = vld [vmem:[#allocation13 + $0x68] sm:$0xff]
    %v463 = vld [vmem:[#allocation13 + $0x70] sm:$0xff]
    %v464 = vld [vmem:[#allocation13 + $0x78] sm:$0xff]
    %v465 = vld [vmem:[#allocation13 + $0x80] sm:$0xff]
    %v466 = vld [vmem:[#allocation13 + $0x88] sm:$0xff]
    %v467 = vld [vmem:[#allocation13 + $0x90] sm:$0xff]
    %v468 = vld [vmem:[#allocation13 + $0x98] sm:$0xff]
    %v469 = vld [vmem:[#allocation13 + $0xa0] sm:$0xff]
    %v470 = vld [vmem:[#allocation13 + $0xa8] sm:$0xff]
    %v471 = vld [vmem:[#allocation13 + $0xb0] sm:$0xff]
    %v472 = vld [vmem:[#allocation13 + $0xb8] sm:$0xff]
    %v473 = vld [vmem:[#allocation13 + $0xc0] sm:$0xff]
    %v474 = vld [vmem:[#allocation13 + $0xc8] sm:$0xff]
    %v475 = vld [vmem:[#allocation13 + $0xd0] sm:$0xff]
    %v476 = vld [vmem:[#allocation13 + $0xd8] sm:$0xff]
    %v477 = vld [vmem:[#allocation13 + $0xe0] sm:$0xff]
    %v478 = vld [vmem:[#allocation13 + $0xe8] sm:$0xff]
    %v479 = vld [vmem:[#allocation13 + $0xf0] sm:$0xff]
    %v480 = vld [vmem:[#allocation13 + $0xf8] sm:$0xff]
    %v481 = vld [vmem:[#allocation13 + $0x100] sm:$0xff]
    %v482 = vld [vmem:[#allocation13 + $0x108] sm:$0xff]
    %v483 = vld [vmem:[#allocation13 + $0x110] sm:$0xff]
    %v484 = vld [vmem:[#allocation13 + $0x118] sm:$0xff]
    %v485 = vld [vmem:[#allocation13 + $0x120] sm:$0xff]
    %v486 = vld [vmem:[#allocation13 + $0x128] sm:$0xff]
    %v487 = vld [vmem:[#allocation13 + $0x130] sm:$0xff]
    %v488 = vld [vmem:[#allocation13 + $0x138] sm:$0xff]
    %v489 = vld [vmem:[#allocation13 + $0x140] sm:$0xff]
    %v490 = vld [vmem:[#allocation13 + $0x148] sm:$0xff]
    %v491 = vld [vmem:[#allocation13 + $0x150] sm:$0xff]
    %v492 = vld [vmem:[#allocation13 + $0x158] sm:$0xff]
    %v493 = vld [vmem:[#allocation13 + $0x160] sm:$0xff]
    %v494 = vld [vmem:[#allocation13 + $0x168] sm:$0xff]
    %v495 = vld [vmem:[#allocation13 + $0x170] sm:$0xff]
    %v496 = vld [vmem:[#allocation13 + $0x178] sm:$0xff]
    %v497 = vld [vmem:[#allocation13 + $0x180] sm:$0xff]
    %v498 = vld [vmem:[#allocation13 + $0x188] sm:$0xff]
    %v499 = vld [vmem:[#allocation13 + $0x190] sm:$0xff]
    %v500 = vld [vmem:[#allocation13 + $0x198] sm:$0xff]
    %v501 = vld [vmem:[#allocation13 + $0x1a0] sm:$0xff]
    %v502 = vld [vmem:[#allocation13 + $0x1a8] sm:$0xff]
    %v503 = vld [vmem:[#allocation13 + $0x1b0] sm:$0xff]
    %v504 = vld [vmem:[#allocation13 + $0x1b8] sm:$0xff]
    %v505 = vld [vmem:[#allocation13 + $0x1c0] sm:$0xff]
    %v506 = vld [vmem:[#allocation13 + $0x1c8] sm:$0xff]
    %v507 = vld [vmem:[#allocation13 + $0x1d0] sm:$0xff]
    %v508 = vld [vmem:[#allocation13 + $0x1d8] sm:$0xff]
    %v509 = vld [vmem:[#allocation13 + $0x1e0] sm:$0xff]
    %v510 = vld [vmem:[#allocation13 + $0x1e8] sm:$0xff]
    %v511 = vld [vmem:[#allocation13 + $0x1f0] sm:$0xff]
    %v512 = vld [vmem:[#allocation13 + $0x1f8] sm:$0xff]
    %v514 = vsel %vm314, %v448, 0
    %516 = vmatpush.msra.mxu0 0.0
    %517 = vmatpush.msra.mxu0 0.0
    %518 = vmatpush.msra.mxu0 0.0
    %519 = vmatpush.msra.mxu0 0.0
    %520 = vmatpush.msra.mxu0 0.0
    %521 = vmatpush.msra.mxu0 0.0
    %522 = vmatpush.msra.mxu0 0.0
    %523 = vmatpush.msra.mxu0 0.0
    %524 = vmatpush.msra.mxu0 %v505
    %525 = vmatpush.msra.mxu0 %v497
    %526 = vmatpush.msra.mxu0 %v489
    %527 = vmatpush.msra.mxu0 %v481
    %528 = vmatpush.msra.mxu0 %v473
    %529 = vmatpush.msra.mxu0 %v465
    %530 = vmatpush.msra.mxu0 %v457
    %531 = vmatpush.msra.mxu0 %v449
    %532 = vmatmul.f32.gmra.mxu0 %v514
    %v533 = vpop.f32.mrf.mxu0
    %v534 = vadd.f32 0.0, %v533
    %535 = vdwg.mxu0
    %536 = vmatpush.msra.mxu0 0.0
    %537 = vmatpush.msra.mxu0 0.0
    %538 = vmatpush.msra.mxu0 0.0
    %539 = vmatpush.msra.mxu0 0.0
    %540 = vmatpush.msra.mxu0 0.0
    %541 = vmatpush.msra.mxu0 0.0
    %542 = vmatpush.msra.mxu0 0.0
    %543 = vmatpush.msra.mxu0 0.0
    %544 = vmatpush.msra.mxu0 %v506
    %545 = vmatpush.msra.mxu0 %v498
    %546 = vmatpush.msra.mxu0 %v490
    %547 = vmatpush.msra.mxu0 %v482
    %548 = vmatpush.msra.mxu0 %v474
    %549 = vmatpush.msra.mxu0 %v466
    %550 = vmatpush.msra.mxu0 %v458
    %551 = vmatpush.msra.mxu0 %v450
    %552 = vmatmul.f32.gmra.mxu0 %v514
    %v553 = vpop.f32.mrf.mxu0
    %v554 = vadd.f32 0.0, %v553
    %555 = vdwg.mxu0
    %556 = vmatpush.msra.mxu0 0.0
    %557 = vmatpush.msra.mxu0 0.0
    %558 = vmatpush.msra.mxu0 0.0
    %559 = vmatpush.msra.mxu0 0.0
    %560 = vmatpush.msra.mxu0 0.0
    %561 = vmatpush.msra.mxu0 0.0
    %562 = vmatpush.msra.mxu0 0.0
    %563 = vmatpush.msra.mxu0 0.0
    %564 = vmatpush.msra.mxu0 %v507
    %565 = vmatpush.msra.mxu0 %v499
    %566 = vmatpush.msra.mxu0 %v491
    %567 = vmatpush.msra.mxu0 %v483
    %568 = vmatpush.msra.mxu0 %v475
    %569 = vmatpush.msra.mxu0 %v467
    %570 = vmatpush.msra.mxu0 %v459
    %571 = vmatpush.msra.mxu0 %v451
    %572 = vmatmul.f32.gmra.mxu0 %v514
    %v573 = vpop.f32.mrf.mxu0
    %v574 = vadd.f32 0.0, %v573
    %575 = vdwg.mxu0
    %576 = vmatpush.msra.mxu0 0.0
    %577 = vmatpush.msra.mxu0 0.0
    %578 = vmatpush.msra.mxu0 0.0
    %579 = vmatpush.msra.mxu0 0.0
    %580 = vmatpush.msra.mxu0 0.0
    %581 = vmatpush.msra.mxu0 0.0
    %582 = vmatpush.msra.mxu0 0.0
    %583 = vmatpush.msra.mxu0 0.0
    %584 = vmatpush.msra.mxu0 %v508
    %585 = vmatpush.msra.mxu0 %v500
    %586 = vmatpush.msra.mxu0 %v492
    %587 = vmatpush.msra.mxu0 %v484
    %588 = vmatpush.msra.mxu0 %v476
    %589 = vmatpush.msra.mxu0 %v468
    %590 = vmatpush.msra.mxu0 %v460
    %591 = vmatpush.msra.mxu0 %v452
    %592 = vmatmul.f32.gmra.mxu0 %v514
    %v593 = vpop.f32.mrf.mxu0
    %v594 = vadd.f32 0.0, %v593
    %595 = vdwg.mxu0
    %596 = vmatpush.msra.mxu0 0.0
    %597 = vmatpush.msra.mxu0 0.0
    %598 = vmatpush.msra.mxu0 0.0
    %599 = vmatpush.msra.mxu0 0.0
    %600 = vmatpush.msra.mxu0 0.0
    %601 = vmatpush.msra.mxu0 0.0
    %602 = vmatpush.msra.mxu0 0.0
    %603 = vmatpush.msra.mxu0 0.0
    %604 = vmatpush.msra.mxu0 %v509
    %605 = vmatpush.msra.mxu0 %v501
    %606 = vmatpush.msra.mxu0 %v493
    %607 = vmatpush.msra.mxu0 %v485
    %608 = vmatpush.msra.mxu0 %v477
    %609 = vmatpush.msra.mxu0 %v469
    %610 = vmatpush.msra.mxu0 %v461
    %611 = vmatpush.msra.mxu0 %v453
    %612 = vmatmul.f32.gmra.mxu0 %v514
    %v613 = vpop.f32.mrf.mxu0
    %v614 = vadd.f32 0.0, %v613
    %615 = vdwg.mxu0
    %616 = vmatpush.msra.mxu0 0.0
    %617 = vmatpush.msra.mxu0 0.0
    %618 = vmatpush.msra.mxu0 0.0
    %619 = vmatpush.msra.mxu0 0.0
    %620 = vmatpush.msra.mxu0 0.0
    %621 = vmatpush.msra.mxu0 0.0
    %622 = vmatpush.msra.mxu0 0.0
    %623 = vmatpush.msra.mxu0 0.0
    %624 = vmatpush.msra.mxu0 %v510
    %625 = vmatpush.msra.mxu0 %v502
    %626 = vmatpush.msra.mxu0 %v494
    %627 = vmatpush.msra.mxu0 %v486
    %628 = vmatpush.msra.mxu0 %v478
    %629 = vmatpush.msra.mxu0 %v470
    %630 = vmatpush.msra.mxu0 %v462
    %631 = vmatpush.msra.mxu0 %v454
    %632 = vmatmul.f32.gmra.mxu0 %v514
    %v633 = vpop.f32.mrf.mxu0
    %v634 = vadd.f32 0.0, %v633
    %635 = vdwg.mxu0
    %636 = vmatpush.msra.mxu0 0.0
    %637 = vmatpush.msra.mxu0 0.0
    %638 = vmatpush.msra.mxu0 0.0
    %639 = vmatpush.msra.mxu0 0.0
    %640 = vmatpush.msra.mxu0 0.0
    %641 = vmatpush.msra.mxu0 0.0
    %642 = vmatpush.msra.mxu0 0.0
    %643 = vmatpush.msra.mxu0 0.0
    %644 = vmatpush.msra.mxu0 %v511
    %645 = vmatpush.msra.mxu0 %v503
    %646 = vmatpush.msra.mxu0 %v495
    %647 = vmatpush.msra.mxu0 %v487
    %648 = vmatpush.msra.mxu0 %v479
    %649 = vmatpush.msra.mxu0 %v471
    %650 = vmatpush.msra.mxu0 %v463
    %651 = vmatpush.msra.mxu0 %v455
    %652 = vmatmul.f32.gmra.mxu0 %v514
    %v653 = vpop.f32.mrf.mxu0
    %v654 = vadd.f32 0.0, %v653
    %655 = vdwg.mxu0
    %656 = vmatpush.msra.mxu0 0.0
    %657 = vmatpush.msra.mxu0 0.0
    %658 = vmatpush.msra.mxu0 0.0
    %659 = vmatpush.msra.mxu0 0.0
    %660 = vmatpush.msra.mxu0 0.0
    %661 = vmatpush.msra.mxu0 0.0
    %662 = vmatpush.msra.mxu0 0.0
    %663 = vmatpush.msra.mxu0 0.0
    %664 = vmatpush.msra.mxu0 %v512
    %665 = vmatpush.msra.mxu0 %v504
    %666 = vmatpush.msra.mxu0 %v496
    %667 = vmatpush.msra.mxu0 %v488
    %668 = vmatpush.msra.mxu0 %v480
    %669 = vmatpush.msra.mxu0 %v472
    %670 = vmatpush.msra.mxu0 %v464
    %671 = vmatpush.msra.mxu0 %v456
    %672 = vmatmul.f32.gmra.mxu0 %v514
    %v673 = vpop.f32.mrf.mxu0
    %v674 = vadd.f32 0.0, %v673
    %675 = vdwg.mxu0
    %676 = vst.msk [vmem:[#allocation2] sm:$0x3] %vm338, %v534
    %678 = vrot.lane.b32.xlu0 %v534, 64
    %v679 = vpop.permute.xlu0 %678
    %681 = vst.msk [vmem:[#allocation2 + $0x2] sm:$0x3] %vm338, %v679
    %682 = vst.msk [vmem:[#allocation2 + $0x4] sm:$0x3] %vm338, %v554
    %684 = vrot.lane.b32.xlu0 %v554, 64
    %v685 = vpop.permute.xlu0 %684
    %687 = vst.msk [vmem:[#allocation2 + $0x6] sm:$0x3] %vm338, %v685
    %688 = vst.msk [vmem:[#allocation2 + $0x8] sm:$0x3] %vm338, %v574
    %690 = vrot.lane.b32.xlu0 %v574, 64
    %v691 = vpop.permute.xlu0 %690
    %693 = vst.msk [vmem:[#allocation2 + $0xa] sm:$0x3] %vm338, %v691
    %694 = vst.msk [vmem:[#allocation2 + $0xc] sm:$0x3] %vm338, %v594
    %696 = vrot.lane.b32.xlu0 %v594, 64
    %v697 = vpop.permute.xlu0 %696
    %699 = vst.msk [vmem:[#allocation2 + $0xe] sm:$0x3] %vm338, %v697
    %700 = vst.msk [vmem:[#allocation2 + $0x10] sm:$0x3] %vm338, %v614
    %702 = vrot.lane.b32.xlu0 %v614, 64
    %v703 = vpop.permute.xlu0 %702
    %705 = vst.msk [vmem:[#allocation2 + $0x12] sm:$0x3] %vm338, %v703
    %706 = vst.msk [vmem:[#allocation2 + $0x14] sm:$0x3] %vm338, %v634
    %708 = vrot.lane.b32.xlu0 %v634, 64
    %v709 = vpop.permute.xlu0 %708
    %711 = vst.msk [vmem:[#allocation2 + $0x16] sm:$0x3] %vm338, %v709
    %712 = vst.msk [vmem:[#allocation2 + $0x18] sm:$0x3] %vm338, %v654
    %714 = vrot.lane.b32.xlu0 %v654, 64
    %v715 = vpop.permute.xlu0 %714
    %717 = vst.msk [vmem:[#allocation2 + $0x1a] sm:$0x3] %vm338, %v715
    %718 = vst.msk [vmem:[#allocation2 + $0x1c] sm:$0x3] %vm338, %v674
    %720 = vrot.lane.b32.xlu0 %v674, 64
    %v721 = vpop.permute.xlu0 %720
    %723 = vst.msk [vmem:[#allocation2 + $0x1e] sm:$0x3] %vm338, %v721
    %v724 = vld [vmem:[#allocation2] sm:$0xff]
    %v725 = vld [vmem:[#allocation2 + $0x8] sm:$0xff]
    %v726 = vld [vmem:[#allocation2 + $0x10] sm:$0xff]
    %v727 = vld [vmem:[#allocation2 + $0x18] sm:$0xff]
    %v728 = vld [vmem:[%s5] sm:$0x1]
    %v730 = vperm.slane %v728, 0
    %v732 = vadd.f32 %v724, %v730
    %v733 = vadd.f32 %v725, %v730
    %v734 = vadd.f32 %v726, %v730
    %v735 = vadd.f32 %v727, %v730
    %v736 = vmax.f32 %v732, 0.0
    %v737 = vmax.f32 %v733, 0.0
    %v738 = vmax.f32 %v734, 0.0
    %v739 = vmax.f32 %v735, 0.0
    %v740 = vld [vmem:[#allocation14] sm:$0xff]
    %v741 = vld [vmem:[#allocation14 + $0x8] sm:$0xff]
    %v742 = vld [vmem:[#allocation14 + $0x10] sm:$0xff]
    %v743 = vld [vmem:[#allocation14 + $0x18] sm:$0xff]
    %v744 = vld [vmem:[#allocation14 + $0x20] sm:$0xff]
    %v745 = vld [vmem:[#allocation14 + $0x28] sm:$0xff]
    %v746 = vld [vmem:[#allocation14 + $0x30] sm:$0xff]
    %v747 = vld [vmem:[#allocation14 + $0x38] sm:$0xff]
    %v748 = vld [vmem:[#allocation14 + $0x40] sm:$0xff]
    %v749 = vld [vmem:[#allocation14 + $0x48] sm:$0xff]
    %v750 = vld [vmem:[#allocation14 + $0x50] sm:$0xff]
    %v751 = vld [vmem:[#allocation14 + $0x58] sm:$0xff]
    %v752 = vld [vmem:[#allocation14 + $0x60] sm:$0xff]
    %v753 = vld [vmem:[#allocation14 + $0x68] sm:$0xff]
    %v754 = vld [vmem:[#allocation14 + $0x70] sm:$0xff]
    %v755 = vld [vmem:[#allocation14 + $0x78] sm:$0xff]
    %v756 = vld [vmem:[#allocation14 + $0x80] sm:$0xff]
    %v757 = vld [vmem:[#allocation14 + $0x88] sm:$0xff]
    %v758 = vld [vmem:[#allocation14 + $0x90] sm:$0xff]
    %v759 = vld [vmem:[#allocation14 + $0x98] sm:$0xff]
    %v760 = vld [vmem:[#allocation14 + $0xa0] sm:$0xff]
    %v761 = vld [vmem:[#allocation14 + $0xa8] sm:$0xff]
    %v762 = vld [vmem:[#allocation14 + $0xb0] sm:$0xff]
    %v763 = vld [vmem:[#allocation14 + $0xb8] sm:$0xff]
    %v764 = vld [vmem:[#allocation14 + $0xc0] sm:$0xff]
    %v765 = vld [vmem:[#allocation14 + $0xc8] sm:$0xff]
    %v766 = vld [vmem:[#allocation14 + $0xd0] sm:$0xff]
    %v767 = vld [vmem:[#allocation14 + $0xd8] sm:$0xff]
    %v768 = vld [vmem:[#allocation14 + $0xe0] sm:$0xff]
    %v769 = vld [vmem:[#allocation14 + $0xe8] sm:$0xff]
    %v770 = vld [vmem:[#allocation14 + $0xf0] sm:$0xff]
    %v771 = vld [vmem:[#allocation14 + $0xf8] sm:$0xff]
    %v772 = vld [vmem:[#allocation14 + $0x100] sm:$0xff]
    %v773 = vld [vmem:[#allocation14 + $0x108] sm:$0xff]
    %v774 = vld [vmem:[#allocation14 + $0x110] sm:$0xff]
    %v775 = vld [vmem:[#allocation14 + $0x118] sm:$0xff]
    %v776 = vld [vmem:[#allocation14 + $0x120] sm:$0xff]
    %v777 = vld [vmem:[#allocation14 + $0x128] sm:$0xff]
    %v778 = vld [vmem:[#allocation14 + $0x130] sm:$0xff]
    %v779 = vld [vmem:[#allocation14 + $0x138] sm:$0xff]
    %v780 = vld [vmem:[#allocation16] sm:$0xff]
    %v781 = vld [vmem:[#allocation16 + $0x8] sm:$0xff]
    %v782 = vld [vmem:[#allocation16 + $0x10] sm:$0xff]
    %v783 = vld [vmem:[#allocation16 + $0x18] sm:$0xff]
    %v784 = vld [vmem:[#allocation16 + $0x20] sm:$0xff]
    %v785 = vld [vmem:[#allocation16 + $0x28] sm:$0xff]
    %v786 = vld [vmem:[#allocation16 + $0x30] sm:$0xff]
    %v787 = vld [vmem:[#allocation16 + $0x38] sm:$0xff]
    %v788 = vld [vmem:[#allocation16 + $0x40] sm:$0xff]
    %v789 = vld [vmem:[#allocation16 + $0x48] sm:$0xff]
    %v790 = vld [vmem:[#allocation16 + $0x50] sm:$0xff]
    %v791 = vld [vmem:[#allocation16 + $0x58] sm:$0xff]
    %v792 = vld [vmem:[#allocation16 + $0x60] sm:$0xff]
    %v793 = vld [vmem:[#allocation16 + $0x68] sm:$0xff]
    %v794 = vld [vmem:[#allocation16 + $0x70] sm:$0xff]
    %v795 = vld [vmem:[#allocation16 + $0x78] sm:$0xff]
    %v796 = vld [vmem:[#allocation16 + $0x80] sm:$0xff]
    %v797 = vld [vmem:[#allocation16 + $0x88] sm:$0xff]
    %v798 = vld [vmem:[#allocation16 + $0x90] sm:$0xff]
    %v799 = vld [vmem:[#allocation16 + $0x98] sm:$0xff]
    %v800 = vld [vmem:[#allocation16 + $0xa0] sm:$0xff]
    %v801 = vld [vmem:[#allocation16 + $0xa8] sm:$0xff]
    %v802 = vld [vmem:[#allocation16 + $0xb0] sm:$0xff]
    %v803 = vld [vmem:[#allocation16 + $0xb8] sm:$0xff]
    %v804 = vld [vmem:[#allocation16 + $0xc0] sm:$0xff]
    %v805 = vld [vmem:[#allocation16 + $0xc8] sm:$0xff]
    %v806 = vld [vmem:[#allocation16 + $0xd0] sm:$0xff]
    %v807 = vld [vmem:[#allocation16 + $0xd8] sm:$0xff]
    %v808 = vld [vmem:[#allocation16 + $0xe0] sm:$0xff]
    %v809 = vld [vmem:[#allocation16 + $0xe8] sm:$0xff]
    %v810 = vld [vmem:[#allocation16 + $0xf0] sm:$0xff]
    %v811 = vld [vmem:[#allocation16 + $0xf8] sm:$0xff]
    %v812 = vld [vmem:[#allocation16 + $0x100] sm:$0xff]
    %v813 = vld [vmem:[#allocation16 + $0x108] sm:$0xff]
    %v814 = vld [vmem:[#allocation16 + $0x110] sm:$0xff]
    %v815 = vld [vmem:[#allocation16 + $0x118] sm:$0xff]
    %v816 = vld [vmem:[#allocation16 + $0x120] sm:$0xff]
    %v817 = vld [vmem:[#allocation16 + $0x128] sm:$0xff]
    %v818 = vld [vmem:[#allocation16 + $0x130] sm:$0xff]
    %v819 = vld [vmem:[#allocation16 + $0x138] sm:$0xff]
    %v820 = vld [vmem:[#allocation17] sm:$0xff]
    %v821 = vld [vmem:[#allocation17 + $0x8] sm:$0xff]
    %v822 = vld [vmem:[#allocation17 + $0x10] sm:$0xff]
    %v823 = vld [vmem:[#allocation17 + $0x18] sm:$0xff]
    %v824 = vld [vmem:[#allocation17 + $0x20] sm:$0xff]
    %v825 = vld [vmem:[#allocation17 + $0x28] sm:$0xff]
    %v826 = vld [vmem:[#allocation17 + $0x30] sm:$0xff]
    %v827 = vld [vmem:[#allocation17 + $0x38] sm:$0xff]
    %v828 = vld [vmem:[#allocation17 + $0x40] sm:$0xff]
    %v829 = vld [vmem:[#allocation17 + $0x48] sm:$0xff]
    %v830 = vld [vmem:[#allocation17 + $0x50] sm:$0xff]
    %v831 = vld [vmem:[#allocation17 + $0x58] sm:$0xff]
    %v832 = vld [vmem:[%s9] sm:$0x3f]
    %v834 = vsel %vm314, %v736, 0
    %v837 = vsel %vm314, %v737, 0
    %v840 = vsel %vm314, %v738, 0
    %v843 = vsel %vm314, %v739, 0
    %845 = vmatpush.msra.mxu0 0.0
    %846 = vmatpush.msra.mxu0 0.0
    %847 = vmatpush.msra.mxu0 0.0
    %848 = vmatpush.msra.mxu0 0.0
    %849 = vmatpush.msra.mxu0 0.0
    %850 = vmatpush.msra.mxu0 0.0
    %851 = vmatpush.msra.mxu0 0.0
    %852 = vmatpush.msra.mxu0 0.0
    %853 = vmatpush.msra.mxu0 %v775
    %854 = vmatpush.msra.mxu0 %v770
    %855 = vmatpush.msra.mxu0 %v765
    %856 = vmatpush.msra.mxu0 %v760
    %857 = vmatpush.msra.mxu0 %v755
    %858 = vmatpush.msra.mxu0 %v750
    %859 = vmatpush.msra.mxu0 %v745
    %860 = vmatpush.msra.mxu0 %v740
    %861 = vmatmul.f32.gmra.mxu0 %v834
    %v862 = vpop.f32.mrf.mxu0
    %v863 = vadd.f32 0.0, %v862
    %864 = vmatmul.f32.gmra.mxu0 %v837
    %v865 = vpop.f32.mrf.mxu0
    %v866 = vadd.f32 0.0, %v865
    %867 = vmatmul.f32.gmra.mxu0 %v840
    %v868 = vpop.f32.mrf.mxu0
    %v869 = vadd.f32 0.0, %v868
    %870 = vmatmul.f32.gmra.mxu0 %v843
    %v871 = vpop.f32.mrf.mxu0
    %v872 = vadd.f32 0.0, %v871
    %873 = vdwg.mxu0
    %874 = vmatpush.msra.mxu0 0.0
    %875 = vmatpush.msra.mxu0 0.0
    %876 = vmatpush.msra.mxu0 0.0
    %877 = vmatpush.msra.mxu0 0.0
    %878 = vmatpush.msra.mxu0 0.0
    %879 = vmatpush.msra.mxu0 0.0
    %880 = vmatpush.msra.mxu0 0.0
    %881 = vmatpush.msra.mxu0 0.0
    %882 = vmatpush.msra.mxu0 %v776
    %883 = vmatpush.msra.mxu0 %v771
    %884 = vmatpush.msra.mxu0 %v766
    %885 = vmatpush.msra.mxu0 %v761
    %886 = vmatpush.msra.mxu0 %v756
    %887 = vmatpush.msra.mxu0 %v751
    %888 = vmatpush.msra.mxu0 %v746
    %889 = vmatpush.msra.mxu0 %v741
    %890 = vmatmul.f32.gmra.mxu0 %v834
    %v891 = vpop.f32.mrf.mxu0
    %v892 = vadd.f32 0.0, %v891
    %893 = vmatmul.f32.gmra.mxu0 %v837
    %v894 = vpop.f32.mrf.mxu0
    %v895 = vadd.f32 0.0, %v894
    %896 = vmatmul.f32.gmra.mxu0 %v840
    %v897 = vpop.f32.mrf.mxu0
    %v898 = vadd.f32 0.0, %v897
    %899 = vmatmul.f32.gmra.mxu0 %v843
    %v900 = vpop.f32.mrf.mxu0
    %v901 = vadd.f32 0.0, %v900
    %902 = vdwg.mxu0
    %903 = vmatpush.msra.mxu0 0.0
    %904 = vmatpush.msra.mxu0 0.0
    %905 = vmatpush.msra.mxu0 0.0
    %906 = vmatpush.msra.mxu0 0.0
    %907 = vmatpush.msra.mxu0 0.0
    %908 = vmatpush.msra.mxu0 0.0
    %909 = vmatpush.msra.mxu0 0.0
    %910 = vmatpush.msra.mxu0 0.0
    %911 = vmatpush.msra.mxu0 %v777
    %912 = vmatpush.msra.mxu0 %v772
    %913 = vmatpush.msra.mxu0 %v767
    %914 = vmatpush.msra.mxu0 %v762
    %915 = vmatpush.msra.mxu0 %v757
    %916 = vmatpush.msra.mxu0 %v752
    %917 = vmatpush.msra.mxu0 %v747
    %918 = vmatpush.msra.mxu0 %v742
    %919 = vmatmul.f32.gmra.mxu0 %v834
    %v920 = vpop.f32.mrf.mxu0
    %v921 = vadd.f32 0.0, %v920
    %922 = vmatmul.f32.gmra.mxu0 %v837
    %v923 = vpop.f32.mrf.mxu0
    %v924 = vadd.f32 0.0, %v923
    %925 = vmatmul.f32.gmra.mxu0 %v840
    %v926 = vpop.f32.mrf.mxu0
    %v927 = vadd.f32 0.0, %v926
    %928 = vmatmul.f32.gmra.mxu0 %v843
    %v929 = vpop.f32.mrf.mxu0
    %v930 = vadd.f32 0.0, %v929
    %931 = vdwg.mxu0
    %932 = vmatpush.msra.mxu0 0.0
    %933 = vmatpush.msra.mxu0 0.0
    %934 = vmatpush.msra.mxu0 0.0
    %935 = vmatpush.msra.mxu0 0.0
    %936 = vmatpush.msra.mxu0 0.0
    %937 = vmatpush.msra.mxu0 0.0
    %938 = vmatpush.msra.mxu0 0.0
    %939 = vmatpush.msra.mxu0 0.0
    %940 = vmatpush.msra.mxu0 %v778
    %941 = vmatpush.msra.mxu0 %v773
    %942 = vmatpush.msra.mxu0 %v768
    %943 = vmatpush.msra.mxu0 %v763
    %944 = vmatpush.msra.mxu0 %v758
    %945 = vmatpush.msra.mxu0 %v753
    %946 = vmatpush.msra.mxu0 %v748
    %947 = vmatpush.msra.mxu0 %v743
    %948 = vmatmul.f32.gmra.mxu0 %v834
    %v949 = vpop.f32.mrf.mxu0
    %v950 = vadd.f32 0.0, %v949
    %951 = vmatmul.f32.gmra.mxu0 %v837
    %v952 = vpop.f32.mrf.mxu0
    %v953 = vadd.f32 0.0, %v952
    %954 = vmatmul.f32.gmra.mxu0 %v840
    %v955 = vpop.f32.mrf.mxu0
    %v956 = vadd.f32 0.0, %v955
    %957 = vmatmul.f32.gmra.mxu0 %v843
    %v958 = vpop.f32.mrf.mxu0
    %v959 = vadd.f32 0.0, %v958
    %960 = vdwg.mxu0
    %961 = vmatpush.msra.mxu0 0.0
    %962 = vmatpush.msra.mxu0 0.0
    %963 = vmatpush.msra.mxu0 0.0
    %964 = vmatpush.msra.mxu0 0.0
    %965 = vmatpush.msra.mxu0 0.0
    %966 = vmatpush.msra.mxu0 0.0
    %967 = vmatpush.msra.mxu0 0.0
    %968 = vmatpush.msra.mxu0 0.0
    %969 = vmatpush.msra.mxu0 %v779
    %970 = vmatpush.msra.mxu0 %v774
    %971 = vmatpush.msra.mxu0 %v769
    %972 = vmatpush.msra.mxu0 %v764
    %973 = vmatpush.msra.mxu0 %v759
    %974 = vmatpush.msra.mxu0 %v754
    %975 = vmatpush.msra.mxu0 %v749
    %976 = vmatpush.msra.mxu0 %v744
    %977 = vmatmul.f32.gmra.mxu0 %v834
    %v978 = vpop.f32.mrf.mxu0
    %v979 = vadd.f32 0.0, %v978
    %980 = vmatmul.f32.gmra.mxu0 %v837
    %v981 = vpop.f32.mrf.mxu0
    %v982 = vadd.f32 0.0, %v981
    %983 = vmatmul.f32.gmra.mxu0 %v840
    %v984 = vpop.f32.mrf.mxu0
    %v985 = vadd.f32 0.0, %v984
    %986 = vmatmul.f32.gmra.mxu0 %v843
    %v987 = vpop.f32.mrf.mxu0
    %v988 = vadd.f32 0.0, %v987
    %989 = vdwg.mxu0
    %990 = vst.msk [vmem:[#allocation3] sm:$0xff] %vm314, %v863
    %991 = vst.msk [vmem:[#allocation3 + $0x8] sm:$0xff] %vm314, %v866
    %992 = vst.msk [vmem:[#allocation3 + $0x10] sm:$0xff] %vm314, %v869
    %993 = vst.msk [vmem:[#allocation3 + $0x18] sm:$0xff] %vm314, %v872
    %998 = vrot.lane.b32.xlu0 %v863, 64
    %v999 = vpop.permute.xlu0 %998
    %1000 = vrot.lane.b32.xlu0 %v866, 64
    %v1001 = vpop.permute.xlu0 %1000
    %1002 = vrot.lane.b32.xlu0 %v869, 64
    %v1003 = vpop.permute.xlu0 %1002
    %1004 = vrot.lane.b32.xlu0 %v872, 64
    %v1005 = vpop.permute.xlu0 %1004
    %1010 = vst.msk [vmem:[#allocation3 + $0x20] sm:$0xff] %vm314, %v999
    %1011 = vst.msk [vmem:[#allocation3 + $0x28] sm:$0xff] %vm314, %v1001
    %1012 = vst.msk [vmem:[#allocation3 + $0x30] sm:$0xff] %vm314, %v1003
    %1013 = vst.msk [vmem:[#allocation3 + $0x38] sm:$0xff] %vm314, %v1005
    %1014 = vst.msk [vmem:[#allocation3 + $0x40] sm:$0xff] %vm314, %v892
    %1015 = vst.msk [vmem:[#allocation3 + $0x48] sm:$0xff] %vm314, %v895
    %1016 = vst.msk [vmem:[#allocation3 + $0x50] sm:$0xff] %vm314, %v898
    %1017 = vst.msk [vmem:[#allocation3 + $0x58] sm:$0xff] %vm314, %v901
    %1022 = vrot.lane.b32.xlu0 %v892, 64
    %v1023 = vpop.permute.xlu0 %1022
    %1024 = vrot.lane.b32.xlu0 %v895, 64
    %v1025 = vpop.permute.xlu0 %1024
    %1026 = vrot.lane.b32.xlu0 %v898, 64
    %v1027 = vpop.permute.xlu0 %1026
    %1028 = vrot.lane.b32.xlu0 %v901, 64
    %v1029 = vpop.permute.xlu0 %1028
    %1034 = vst.msk [vmem:[#allocation3 + $0x60] sm:$0xff] %vm314, %v1023
    %1035 = vst.msk [vmem:[#allocation3 + $0x68] sm:$0xff] %vm314, %v1025
    %1036 = vst.msk [vmem:[#allocation3 + $0x70] sm:$0xff] %vm314, %v1027
    %1037 = vst.msk [vmem:[#allocation3 + $0x78] sm:$0xff] %vm314, %v1029
    %1038 = vst.msk [vmem:[#allocation3 + $0x80] sm:$0xff] %vm314, %v921
    %1039 = vst.msk [vmem:[#allocation3 + $0x88] sm:$0xff] %vm314, %v924
    %1040 = vst.msk [vmem:[#allocation3 + $0x90] sm:$0xff] %vm314, %v927
    %1041 = vst.msk [vmem:[#allocation3 + $0x98] sm:$0xff] %vm314, %v930
    %1046 = vrot.lane.b32.xlu0 %v921, 64
    %v1047 = vpop.permute.xlu0 %1046
    %1048 = vrot.lane.b32.xlu0 %v924, 64
    %v1049 = vpop.permute.xlu0 %1048
    %1050 = vrot.lane.b32.xlu0 %v927, 64
    %v1051 = vpop.permute.xlu0 %1050
    %1052 = vrot.lane.b32.xlu0 %v930, 64
    %v1053 = vpop.permute.xlu0 %1052
    %1058 = vst.msk [vmem:[#allocation3 + $0xa0] sm:$0xff] %vm314, %v1047
    %1059 = vst.msk [vmem:[#allocation3 + $0xa8] sm:$0xff] %vm314, %v1049
    %1060 = vst.msk [vmem:[#allocation3 + $0xb0] sm:$0xff] %vm314, %v1051
    %1061 = vst.msk [vmem:[#allocation3 + $0xb8] sm:$0xff] %vm314, %v1053
    %1062 = vst.msk [vmem:[#allocation3 + $0xc0] sm:$0xff] %vm314, %v950
    %1063 = vst.msk [vmem:[#allocation3 + $0xc8] sm:$0xff] %vm314, %v953
    %1064 = vst.msk [vmem:[#allocation3 + $0xd0] sm:$0xff] %vm314, %v956
    %1065 = vst.msk [vmem:[#allocation3 + $0xd8] sm:$0xff] %vm314, %v959
    %1070 = vrot.lane.b32.xlu0 %v950, 64
    %v1071 = vpop.permute.xlu0 %1070
    %1072 = vrot.lane.b32.xlu0 %v953, 64
    %v1073 = vpop.permute.xlu0 %1072
    %1074 = vrot.lane.b32.xlu0 %v956, 64
    %v1075 = vpop.permute.xlu0 %1074
    %1076 = vrot.lane.b32.xlu0 %v959, 64
    %v1077 = vpop.permute.xlu0 %1076
    %1082 = vst.msk [vmem:[#allocation3 + $0xe0] sm:$0xff] %vm314, %v1071
    %1083 = vst.msk [vmem:[#allocation3 + $0xe8] sm:$0xff] %vm314, %v1073
    %1084 = vst.msk [vmem:[#allocation3 + $0xf0] sm:$0xff] %vm314, %v1075
    %1085 = vst.msk [vmem:[#allocation3 + $0xf8] sm:$0xff] %vm314, %v1077
    %1086 = vst.msk [vmem:[#allocation3 + $0x100] sm:$0xff] %vm314, %v979
    %1087 = vst.msk [vmem:[#allocation3 + $0x108] sm:$0xff] %vm314, %v982
    %1088 = vst.msk [vmem:[#allocation3 + $0x110] sm:$0xff] %vm314, %v985
    %1089 = vst.msk [vmem:[#allocation3 + $0x118] sm:$0xff] %vm314, %v988
    %v1090 = vld [vmem:[#allocation3] sm:$0xff]
    %v1091 = vld [vmem:[#allocation3 + $0x8] sm:$0xff]
    %v1092 = vld [vmem:[#allocation3 + $0x10] sm:$0xff]
    %v1093 = vld [vmem:[#allocation3 + $0x18] sm:$0xff]
    %v1094 = vld [vmem:[#allocation3 + $0x20] sm:$0xff]
    %v1095 = vld [vmem:[#allocation3 + $0x28] sm:$0xff]
    %v1096 = vld [vmem:[#allocation3 + $0x30] sm:$0xff]
    %v1097 = vld [vmem:[#allocation3 + $0x38] sm:$0xff]
    %v1098 = vld [vmem:[#allocation3 + $0x40] sm:$0xff]
    %v1099 = vld [vmem:[#allocation3 + $0x48] sm:$0xff]
    %v1100 = vld [vmem:[#allocation3 + $0x50] sm:$0xff]
    %v1101 = vld [vmem:[#allocation3 + $0x58] sm:$0xff]
    %v1102 = vld [vmem:[#allocation3 + $0x60] sm:$0xff]
    %v1103 = vld [vmem:[#allocation3 + $0x68] sm:$0xff]
    %v1104 = vld [vmem:[#allocation3 + $0x70] sm:$0xff]
    %v1105 = vld [vmem:[#allocation3 + $0x78] sm:$0xff]
    %v1106 = vld [vmem:[#allocation3 + $0x80] sm:$0xff]
    %v1107 = vld [vmem:[#allocation3 + $0x88] sm:$0xff]
    %v1108 = vld [vmem:[#allocation3 + $0x90] sm:$0xff]
    %v1109 = vld [vmem:[#allocation3 + $0x98] sm:$0xff]
    %v1110 = vld [vmem:[#allocation3 + $0xa0] sm:$0xff]
    %v1111 = vld [vmem:[#allocation3 + $0xa8] sm:$0xff]
    %v1112 = vld [vmem:[#allocation3 + $0xb0] sm:$0xff]
    %v1113 = vld [vmem:[#allocation3 + $0xb8] sm:$0xff]
    %v1114 = vld [vmem:[#allocation3 + $0xc0] sm:$0xff]
    %v1115 = vld [vmem:[#allocation3 + $0xc8] sm:$0xff]
    %v1116 = vld [vmem:[#allocation3 + $0xd0] sm:$0xff]
    %v1117 = vld [vmem:[#allocation3 + $0xd8] sm:$0xff]
    %v1118 = vld [vmem:[#allocation3 + $0xe0] sm:$0xff]
    %v1119 = vld [vmem:[#allocation3 + $0xe8] sm:$0xff]
    %v1120 = vld [vmem:[#allocation3 + $0xf0] sm:$0xff]
    %v1121 = vld [vmem:[#allocation3 + $0xf8] sm:$0xff]
    %v1122 = vld [vmem:[#allocation3 + $0x100] sm:$0xff]
    %v1123 = vld [vmem:[#allocation3 + $0x108] sm:$0xff]
    %v1124 = vld [vmem:[#allocation3 + $0x110] sm:$0xff]
    %v1125 = vld [vmem:[#allocation3 + $0x118] sm:$0xff]
    %v1126 = vperm.slane %v832, 0
    %vm1127 = vcmask 261120
    %v1129 = vsel %vm1127, %v822, 0
    %v1132 = vsel %vm1127, %v825, 0
    %v1135 = vsel %vm1127, %v828, 0
    %v1138 = vsel %vm1127, %v831, 0
    %1140 = vmatpush.msra.mxu0 %v1105
    %1141 = vmatpush.msra.mxu0 %v1104
    %1142 = vmatpush.msra.mxu0 %v1103
    %1143 = vmatpush.msra.mxu0 %v1102
    %1144 = vmatpush.msra.mxu0 %v1101
    %1145 = vmatpush.msra.mxu0 %v1100
    %1146 = vmatpush.msra.mxu0 %v1099
    %1147 = vmatpush.msra.mxu0 %v1098
    %1148 = vmatpush.msra.mxu0 %v1097
    %1149 = vmatpush.msra.mxu0 %v1096
    %1150 = vmatpush.msra.mxu0 %v1095
    %1151 = vmatpush.msra.mxu0 %v1094
    %1152 = vmatpush.msra.mxu0 %v1093
    %1153 = vmatpush.msra.mxu0 %v1092
    %1154 = vmatpush.msra.mxu0 %v1091
    %1155 = vmatpush.msra.mxu0 %v1090
    %1156 = vmatmul.f32.gmra.mxu0 %v820
    %v1157 = vpop.f32.mrf.mxu0
    %v1158 = vadd.f32 %v1126, %v1157
    %1159 = vmatmul.f32.gmra.mxu0 %v823
    %v1160 = vpop.f32.mrf.mxu0
    %v1161 = vadd.f32 %v1126, %v1160
    %1162 = vmatmul.f32.gmra.mxu0 %v826
    %v1163 = vpop.f32.mrf.mxu0
    %v1164 = vadd.f32 %v1126, %v1163
    %1165 = vmatmul.f32.gmra.mxu0 %v829
    %v1166 = vpop.f32.mrf.mxu0
    %v1167 = vadd.f32 %v1126, %v1166
    %1168 = vdwg.mxu0
    %1169 = vmatpush.msra.mxu0 %v1121
    %1170 = vmatpush.msra.mxu0 %v1120
    %1171 = vmatpush.msra.mxu0 %v1119
    %1172 = vmatpush.msra.mxu0 %v1118
    %1173 = vmatpush.msra.mxu0 %v1117
    %1174 = vmatpush.msra.mxu0 %v1116
    %1175 = vmatpush.msra.mxu0 %v1115
    %1176 = vmatpush.msra.mxu0 %v1114
    %1177 = vmatpush.msra.mxu0 %v1113
    %1178 = vmatpush.msra.mxu0 %v1112
    %1179 = vmatpush.msra.mxu0 %v1111
    %1180 = vmatpush.msra.mxu0 %v1110
    %1181 = vmatpush.msra.mxu0 %v1109
    %1182 = vmatpush.msra.mxu0 %v1108
    %1183 = vmatpush.msra.mxu0 %v1107
    %1184 = vmatpush.msra.mxu0 %v1106
    %1185 = vmatmul.f32.gmra.mxu0 %v821
    %v1186 = vpop.f32.mrf.mxu0
    %v1187 = vadd.f32 %v1158, %v1186
    %1188 = vmatmul.f32.gmra.mxu0 %v824
    %v1189 = vpop.f32.mrf.mxu0
    %v1190 = vadd.f32 %v1161, %v1189
    %1191 = vmatmul.f32.gmra.mxu0 %v827
    %v1192 = vpop.f32.mrf.mxu0
    %v1193 = vadd.f32 %v1164, %v1192
    %1194 = vmatmul.f32.gmra.mxu0 %v830
    %v1195 = vpop.f32.mrf.mxu0
    %v1196 = vadd.f32 %v1167, %v1195
    %1197 = vdwg.mxu0
    %1198 = vmatpush.msra.mxu0 0.0
    %1199 = vmatpush.msra.mxu0 0.0
    %1200 = vmatpush.msra.mxu0 0.0
    %1201 = vmatpush.msra.mxu0 0.0
    %1202 = vmatpush.msra.mxu0 0.0
    %1203 = vmatpush.msra.mxu0 0.0
    %1204 = vmatpush.msra.mxu0 0.0
    %1205 = vmatpush.msra.mxu0 0.0
    %1206 = vmatpush.msra.mxu0 0.0
    %1207 = vmatpush.msra.mxu0 0.0
    %1208 = vmatpush.msra.mxu0 0.0
    %1209 = vmatpush.msra.mxu0 0.0
    %1210 = vmatpush.msra.mxu0 %v1125
    %1211 = vmatpush.msra.mxu0 %v1124
    %1212 = vmatpush.msra.mxu0 %v1123
    %1213 = vmatpush.msra.mxu0 %v1122
    %1214 = vmatmul.f32.gmra.mxu0 %v1129
    %v1215 = vpop.f32.mrf.mxu0
    %v1216 = vadd.f32 %v1187, %v1215
    %1217 = vmatmul.f32.gmra.mxu0 %v1132
    %v1218 = vpop.f32.mrf.mxu0
    %v1219 = vadd.f32 %v1190, %v1218
    %1220 = vmatmul.f32.gmra.mxu0 %v1135
    %v1221 = vpop.f32.mrf.mxu0
    %v1222 = vadd.f32 %v1193, %v1221
    %1223 = vmatmul.f32.gmra.mxu0 %v1138
    %v1224 = vpop.f32.mrf.mxu0
    %v1225 = vadd.f32 %v1196, %v1224
    %1226 = vdwg.mxu0
    %v1227 = vsel %vm314, %v1216, 0.0
    %v1228 = vsel %vm314, %v1219, 0.0
    %v1229 = vadd.f32 %v1227, %v1228
    %v1230 = vsel %vm314, %v1222, 0.0
    %v1231 = vadd.f32 %v1229, %v1230
    %v1232 = vsel %vm314, %v1225, 0.0
    %v1233 = vadd.f32 %v1231, %v1232
    %v1234 = vrot.slane %v1233, 4
    %v1235 = vadd.f32 %v1233, %v1234
    %v1236 = vrot.slane %v1235, 2
    %v1237 = vadd.f32 %v1235, %v1236
    %v1238 = vrot.slane %v1237, 1
    %v1239 = vadd.f32 %v1237, %v1238
    %v1240 = vrcp.pop 32.0
    %v1241 = vmul.f32 32.0, %v1240
    %v1242 = vsub.f32 1.0, %v1241
    %v1243 = vmul.f32 %v1240, %v1242
    %v1244 = vadd.f32 %v1240, %v1243
    %vm1245 = vweird.f32 %v1240
    %v1246 = vsel %vm1245, %v1240, %v1244
    %v1247 = vmul.f32 %v1239, %v1246
    %v1248 = vsub.f32 %v1216, %v1247
    %v1249 = vsub.f32 %v1219, %v1247
    %v1250 = vsub.f32 %v1222, %v1247
    %v1251 = vsub.f32 %v1225, %v1247
    %v1252 = vmul.f32 %v1248, %v1248
    %v1253 = vmul.f32 %v1249, %v1249
    %v1254 = vmul.f32 %v1250, %v1250
    %v1255 = vmul.f32 %v1251, %v1251
    %v1256 = vsel %vm314, %v1252, 0.0
    %v1257 = vsel %vm314, %v1253, 0.0
    %v1258 = vadd.f32 %v1256, %v1257
    %v1259 = vsel %vm314, %v1254, 0.0
    %v1260 = vadd.f32 %v1258, %v1259
    %v1261 = vsel %vm314, %v1255, 0.0
    %v1262 = vadd.f32 %v1260, %v1261
    %v1263 = vrot.slane %v1262, 4
    %v1264 = vadd.f32 %v1262, %v1263
    %v1265 = vrot.slane %v1264, 2
    %v1266 = vadd.f32 %v1264, %v1265
    %v1267 = vrot.slane %v1266, 1
    %v1268 = vadd.f32 %v1266, %v1267
    %v1269 = vmul.f32 %v1268, %v1246
    %v1270 = vadd.f32 %v1269, 1e-05
    %v1271 = vrsqrt.pop %v1270
    %v1272 = vmul.f32 %v1271, %v1270
    %v1273 = vmul.f32 %v1272, %v1271
    %v1274 = vmul.f32 0.5, %v1273
    %v1275 = vsub.f32 1.5, %v1274
    %v1276 = vmul.f32 %v1271, %v1275
    %vm1277 = vweird.f32 %v1270
    %vm1278 = vweird.f32 %v1271
    %vm1279 = vmor %vm1277, %vm1278
    %v1280 = vsel %vm1279, %v1271, %v1276
    %v1281 = vmul.f32 %v1248, %v1280
    %v1282 = vmul.f32 %v1249, %v1280
    %v1283 = vmul.f32 %v1250, %v1280
    %v1284 = vmul.f32 %v1251, %v1280
    %v1285 = vperm.slane %v832, 1
    %v1286 = vmul.f32 %v1281, %v1285
    %v1287 = vmul.f32 %v1282, %v1285
    %v1288 = vmul.f32 %v1283, %v1285
    %v1289 = vmul.f32 %v1284, %v1285
    %v1290 = vperm.slane %v832, 2
    %v1291 = vadd.f32 %v1286, %v1290
    %v1292 = vadd.f32 %v1287, %v1290
    %v1293 = vadd.f32 %v1288, %v1290
    %v1294 = vadd.f32 %v1289, %v1290
    %v1295 = vmax.f32 %v1291, 0.0
    %v1296 = vmax.f32 %v1292, 0.0
    %v1297 = vmax.f32 %v1293, 0.0
    %v1298 = vmax.f32 %v1294, 0.0
    %v1300 = vsel %vm314, %v1295, 0
    %v1303 = vsel %vm314, %v1296, 0
    %v1306 = vsel %vm314, %v1297, 0
    %v1309 = vsel %vm314, %v1298, 0
    %1311 = vmatpush.msra.mxu0 0.0
    %1312 = vmatpush.msra.mxu0 0.0
    %1313 = vmatpush.msra.mxu0 0.0
    %1314 = vmatpush.msra.mxu0 0.0
    %1315 = vmatpush.msra.mxu0 0.0
    %1316 = vmatpush.msra.mxu0 0.0
    %1317 = vmatpush.msra.mxu0 0.0
    %1318 = vmatpush.msra.mxu0 0.0
    %1319 = vmatpush.msra.mxu0 %v815
    %1320 = vmatpush.msra.mxu0 %v810
    %1321 = vmatpush.msra.mxu0 %v805
    %1322 = vmatpush.msra.mxu0 %v800
    %1323 = vmatpush.msra.mxu0 %v795
    %1324 = vmatpush.msra.mxu0 %v790
    %1325 = vmatpush.msra.mxu0 %v785
    %1326 = vmatpush.msra.mxu0 %v780
    %1327 = vmatmul.f32.gmra.mxu0 %v1300
    %v1328 = vpop.f32.mrf.mxu0
    %v1329 = vadd.f32 0.0, %v1328
    %1330 = vmatmul.f32.gmra.mxu0 %v1303
    %v1331 = vpop.f32.mrf.mxu0
    %v1332 = vadd.f32 0.0, %v1331
    %1333 = vmatmul.f32.gmra.mxu0 %v1306
    %v1334 = vpop.f32.mrf.mxu0
    %v1335 = vadd.f32 0.0, %v1334
    %1336 = vmatmul.f32.gmra.mxu0 %v1309
    %v1337 = vpop.f32.mrf.mxu0
    %v1338 = vadd.f32 0.0, %v1337
    %1339 = vdwg.mxu0
    %1340 = vmatpush.msra.mxu0 0.0
    %1341 = vmatpush.msra.mxu0 0.0
    %1342 = vmatpush.msra.mxu0 0.0
    %1343 = vmatpush.msra.mxu0 0.0
    %1344 = vmatpush.msra.mxu0 0.0
    %1345 = vmatpush.msra.mxu0 0.0
    %1346 = vmatpush.msra.mxu0 0.0
    %1347 = vmatpush.msra.mxu0 0.0
    %1348 = vmatpush.msra.mxu0 %v816
    %1349 = vmatpush.msra.mxu0 %v811
    %1350 = vmatpush.msra.mxu0 %v806
    %1351 = vmatpush.msra.mxu0 %v801
    %1352 = vmatpush.msra.mxu0 %v796
    %1353 = vmatpush.msra.mxu0 %v791
    %1354 = vmatpush.msra.mxu0 %v786
    %1355 = vmatpush.msra.mxu0 %v781
    %1356 = vmatmul.f32.gmra.mxu0 %v1300
    %v1357 = vpop.f32.mrf.mxu0
    %v1358 = vadd.f32 0.0, %v1357
    %1359 = vmatmul.f32.gmra.mxu0 %v1303
    %v1360 = vpop.f32.mrf.mxu0
    %v1361 = vadd.f32 0.0, %v1360
    %1362 = vmatmul.f32.gmra.mxu0 %v1306
    %v1363 = vpop.f32.mrf.mxu0
    %v1364 = vadd.f32 0.0, %v1363
    %1365 = vmatmul.f32.gmra.mxu0 %v1309
    %v1366 = vpop.f32.mrf.mxu0
    %v1367 = vadd.f32 0.0, %v1366
    %1368 = vdwg.mxu0
    %1369 = vmatpush.msra.mxu0 0.0
    %1370 = vmatpush.msra.mxu0 0.0
    %1371 = vmatpush.msra.mxu0 0.0
    %1372 = vmatpush.msra.mxu0 0.0
    %1373 = vmatpush.msra.mxu0 0.0
    %1374 = vmatpush.msra.mxu0 0.0
    %1375 = vmatpush.msra.mxu0 0.0
    %1376 = vmatpush.msra.mxu0 0.0
    %1377 = vmatpush.msra.mxu0 %v817
    %1378 = vmatpush.msra.mxu0 %v812
    %1379 = vmatpush.msra.mxu0 %v807
    %1380 = vmatpush.msra.mxu0 %v802
    %1381 = vmatpush.msra.mxu0 %v797
    %1382 = vmatpush.msra.mxu0 %v792
    %1383 = vmatpush.msra.mxu0 %v787
    %1384 = vmatpush.msra.mxu0 %v782
    %1385 = vmatmul.f32.gmra.mxu0 %v1300
    %v1386 = vpop.f32.mrf.mxu0
    %v1387 = vadd.f32 0.0, %v1386
    %1388 = vmatmul.f32.gmra.mxu0 %v1303
    %v1389 = vpop.f32.mrf.mxu0
    %v1390 = vadd.f32 0.0, %v1389
    %1391 = vmatmul.f32.gmra.mxu0 %v1306
    %v1392 = vpop.f32.mrf.mxu0
    %v1393 = vadd.f32 0.0, %v1392
    %1394 = vmatmul.f32.gmra.mxu0 %v1309
    %v1395 = vpop.f32.mrf.mxu0
    %v1396 = vadd.f32 0.0, %v1395
    %1397 = vdwg.mxu0
    %1398 = vmatpush.msra.mxu0 0.0
    %1399 = vmatpush.msra.mxu0 0.0
    %1400 = vmatpush.msra.mxu0 0.0
    %1401 = vmatpush.msra.mxu0 0.0
    %1402 = vmatpush.msra.mxu0 0.0
    %1403 = vmatpush.msra.mxu0 0.0
    %1404 = vmatpush.msra.mxu0 0.0
    %1405 = vmatpush.msra.mxu0 0.0
    %1406 = vmatpush.msra.mxu0 %v818
    %1407 = vmatpush.msra.mxu0 %v813
    %1408 = vmatpush.msra.mxu0 %v808
    %1409 = vmatpush.msra.mxu0 %v803
    %1410 = vmatpush.msra.mxu0 %v798
    %1411 = vmatpush.msra.mxu0 %v793
    %1412 = vmatpush.msra.mxu0 %v788
    %1413 = vmatpush.msra.mxu0 %v783
    %1414 = vmatmul.f32.gmra.mxu0 %v1300
    %v1415 = vpop.f32.mrf.mxu0
    %v1416 = vadd.f32 0.0, %v1415
    %1417 = vmatmul.f32.gmra.mxu0 %v1303
    %v1418 = vpop.f32.mrf.mxu0
    %v1419 = vadd.f32 0.0, %v1418
    %1420 = vmatmul.f32.gmra.mxu0 %v1306
    %v1421 = vpop.f32.mrf.mxu0
    %v1422 = vadd.f32 0.0, %v1421
    %1423 = vmatmul.f32.gmra.mxu0 %v1309
    %v1424 = vpop.f32.mrf.mxu0
    %v1425 = vadd.f32 0.0, %v1424
    %1426 = vdwg.mxu0
    %1427 = vmatpush.msra.mxu0 0.0
    %1428 = vmatpush.msra.mxu0 0.0
    %1429 = vmatpush.msra.mxu0 0.0
    %1430 = vmatpush.msra.mxu0 0.0
    %1431 = vmatpush.msra.mxu0 0.0
    %1432 = vmatpush.msra.mxu0 0.0
    %1433 = vmatpush.msra.mxu0 0.0
    %1434 = vmatpush.msra.mxu0 0.0
    %1435 = vmatpush.msra.mxu0 %v819
    %1436 = vmatpush.msra.mxu0 %v814
    %1437 = vmatpush.msra.mxu0 %v809
    %1438 = vmatpush.msra.mxu0 %v804
    %1439 = vmatpush.msra.mxu0 %v799
    %1440 = vmatpush.msra.mxu0 %v794
    %1441 = vmatpush.msra.mxu0 %v789
    %1442 = vmatpush.msra.mxu0 %v784
    %1443 = vmatmul.f32.gmra.mxu0 %v1300
    %v1444 = vpop.f32.mrf.mxu0
    %v1445 = vadd.f32 0.0, %v1444
    %1446 = vmatmul.f32.gmra.mxu0 %v1303
    %v1447 = vpop.f32.mrf.mxu0
    %v1448 = vadd.f32 0.0, %v1447
    %1449 = vmatmul.f32.gmra.mxu0 %v1306
    %v1450 = vpop.f32.mrf.mxu0
    %v1451 = vadd.f32 0.0, %v1450
    %1452 = vmatmul.f32.gmra.mxu0 %v1309
    %v1453 = vpop.f32.mrf.mxu0
    %v1454 = vadd.f32 0.0, %v1453
    %1455 = vdwg.mxu0
    %1456 = vst.msk [vmem:[#allocation3] sm:$0xff] %vm314, %v1329
    %1457 = vst.msk [vmem:[#allocation3 + $0x8] sm:$0xff] %vm314, %v1332
    %1458 = vst.msk [vmem:[#allocation3 + $0x10] sm:$0xff] %vm314, %v1335
    %1459 = vst.msk [vmem:[#allocation3 + $0x18] sm:$0xff] %vm314, %v1338
    %1464 = vrot.lane.b32.xlu0 %v1329, 64
    %v1465 = vpop.permute.xlu0 %1464
    %1466 = vrot.lane.b32.xlu0 %v1332, 64
    %v1467 = vpop.permute.xlu0 %1466
    %1468 = vrot.lane.b32.xlu0 %v1335, 64
    %v1469 = vpop.permute.xlu0 %1468
    %1470 = vrot.lane.b32.xlu0 %v1338, 64
    %v1471 = vpop.permute.xlu0 %1470
    %1476 = vst.msk [vmem:[#allocation3 + $0x20] sm:$0xff] %vm314, %v1465
    %1477 = vst.msk [vmem:[#allocation3 + $0x28] sm:$0xff] %vm314, %v1467
    %1478 = vst.msk [vmem:[#allocation3 + $0x30] sm:$0xff] %vm314, %v1469
    %1479 = vst.msk [vmem:[#allocation3 + $0x38] sm:$0xff] %vm314, %v1471
    %1480 = vst.msk [vmem:[#allocation3 + $0x40] sm:$0xff] %vm314, %v1358
    %1481 = vst.msk [vmem:[#allocation3 + $0x48] sm:$0xff] %vm314, %v1361
    %1482 = vst.msk [vmem:[#allocation3 + $0x50] sm:$0xff] %vm314, %v1364
    %1483 = vst.msk [vmem:[#allocation3 + $0x58] sm:$0xff] %vm314, %v1367
    %1488 = vrot.lane.b32.xlu0 %v1358, 64
    %v1489 = vpop.permute.xlu0 %1488
    %1490 = vrot.lane.b32.xlu0 %v1361, 64
    %v1491 = vpop.permute.xlu0 %1490
    %1492 = vrot.lane.b32.xlu0 %v1364, 64
    %v1493 = vpop.permute.xlu0 %1492
    %1494 = vrot.lane.b32.xlu0 %v1367, 64
    %v1495 = vpop.permute.xlu0 %1494
    %1500 = vst.msk [vmem:[#allocation3 + $0x60] sm:$0xff] %vm314, %v1489
    %1501 = vst.msk [vmem:[#allocation3 + $0x68] sm:$0xff] %vm314, %v1491
    %1502 = vst.msk [vmem:[#allocation3 + $0x70] sm:$0xff] %vm314, %v1493
    %1503 = vst.msk [vmem:[#allocation3 + $0x78] sm:$0xff] %vm314, %v1495
    %1504 = vst.msk [vmem:[#allocation3 + $0x80] sm:$0xff] %vm314, %v1387
    %1505 = vst.msk [vmem:[#allocation3 + $0x88] sm:$0xff] %vm314, %v1390
    %1506 = vst.msk [vmem:[#allocation3 + $0x90] sm:$0xff] %vm314, %v1393
    %1507 = vst.msk [vmem:[#allocation3 + $0x98] sm:$0xff] %vm314, %v1396
    %1512 = vrot.lane.b32.xlu0 %v1387, 64
    %v1513 = vpop.permute.xlu0 %1512
    %1514 = vrot.lane.b32.xlu0 %v1390, 64
    %v1515 = vpop.permute.xlu0 %1514
    %1516 = vrot.lane.b32.xlu0 %v1393, 64
    %v1517 = vpop.permute.xlu0 %1516
    %1518 = vrot.lane.b32.xlu0 %v1396, 64
    %v1519 = vpop.permute.xlu0 %1518
    %1524 = vst.msk [vmem:[#allocation3 + $0xa0] sm:$0xff] %vm314, %v1513
    %1525 = vst.msk [vmem:[#allocation3 + $0xa8] sm:$0xff] %vm314, %v1515
    %1526 = vst.msk [vmem:[#allocation3 + $0xb0] sm:$0xff] %vm314, %v1517
    %1527 = vst.msk [vmem:[#allocation3 + $0xb8] sm:$0xff] %vm314, %v1519
    %1528 = vst.msk [vmem:[#allocation3 + $0xc0] sm:$0xff] %vm314, %v1416
    %1529 = vst.msk [vmem:[#allocation3 + $0xc8] sm:$0xff] %vm314, %v1419
    %1530 = vst.msk [vmem:[#allocation3 + $0xd0] sm:$0xff] %vm314, %v1422
    %1531 = vst.msk [vmem:[#allocation3 + $0xd8] sm:$0xff] %vm314, %v1425
    %1536 = vrot.lane.b32.xlu0 %v1416, 64
    %v1537 = vpop.permute.xlu0 %1536
    %1538 = vrot.lane.b32.xlu0 %v1419, 64
    %v1539 = vpop.permute.xlu0 %1538
    %1540 = vrot.lane.b32.xlu0 %v1422, 64
    %v1541 = vpop.permute.xlu0 %1540
    %1542 = vrot.lane.b32.xlu0 %v1425, 64
    %v1543 = vpop.permute.xlu0 %1542
    %1548 = vst.msk [vmem:[#allocation3 + $0xe0] sm:$0xff] %vm314, %v1537
    %1549 = vst.msk [vmem:[#allocation3 + $0xe8] sm:$0xff] %vm314, %v1539
    %1550 = vst.msk [vmem:[#allocation3 + $0xf0] sm:$0xff] %vm314, %v1541
    %1551 = vst.msk [vmem:[#allocation3 + $0xf8] sm:$0xff] %vm314, %v1543
    %1552 = vst.msk [vmem:[#allocation3 + $0x100] sm:$0xff] %vm314, %v1445
    %1553 = vst.msk [vmem:[#allocation3 + $0x108] sm:$0xff] %vm314, %v1448
    %1554 = vst.msk [vmem:[#allocation3 + $0x110] sm:$0xff] %vm314, %v1451
    %1555 = vst.msk [vmem:[#allocation3 + $0x118] sm:$0xff] %vm314, %v1454
    %v1556 = vld [vmem:[#allocation3] sm:$0xff]
    %v1557 = vld [vmem:[#allocation3 + $0x8] sm:$0xff]
    %v1558 = vld [vmem:[#allocation3 + $0x10] sm:$0xff]
    %v1559 = vld [vmem:[#allocation3 + $0x18] sm:$0xff]
    %v1560 = vld [vmem:[#allocation3 + $0x20] sm:$0xff]
    %v1561 = vld [vmem:[#allocation3 + $0x28] sm:$0xff]
    %v1562 = vld [vmem:[#allocation3 + $0x30] sm:$0xff]
    %v1563 = vld [vmem:[#allocation3 + $0x38] sm:$0xff]
    %v1564 = vld [vmem:[#allocation3 + $0x40] sm:$0xff]
    %v1565 = vld [vmem:[#allocation3 + $0x48] sm:$0xff]
    %v1566 = vld [vmem:[#allocation3 + $0x50] sm:$0xff]
    %v1567 = vld [vmem:[#allocation3 + $0x58] sm:$0xff]
    %v1568 = vld [vmem:[#allocation3 + $0x60] sm:$0xff]
    %v1569 = vld [vmem:[#allocation3 + $0x68] sm:$0xff]
    %v1570 = vld [vmem:[#allocation3 + $0x70] sm:$0xff]
    %v1571 = vld [vmem:[#allocation3 + $0x78] sm:$0xff]
    %v1572 = vld [vmem:[#allocation3 + $0x80] sm:$0xff]
    %v1573 = vld [vmem:[#allocation3 + $0x88] sm:$0xff]
    %v1574 = vld [vmem:[#allocation3 + $0x90] sm:$0xff]
    %v1575 = vld [vmem:[#allocation3 + $0x98] sm:$0xff]
    %v1576 = vld [vmem:[#allocation3 + $0xa0] sm:$0xff]
    %v1577 = vld [vmem:[#allocation3 + $0xa8] sm:$0xff]
    %v1578 = vld [vmem:[#allocation3 + $0xb0] sm:$0xff]
    %v1579 = vld [vmem:[#allocation3 + $0xb8] sm:$0xff]
    %v1580 = vld [vmem:[#allocation3 + $0xc0] sm:$0xff]
    %v1581 = vld [vmem:[#allocation3 + $0xc8] sm:$0xff]
    %v1582 = vld [vmem:[#allocation3 + $0xd0] sm:$0xff]
    %v1583 = vld [vmem:[#allocation3 + $0xd8] sm:$0xff]
    %v1584 = vld [vmem:[#allocation3 + $0xe0] sm:$0xff]
    %v1585 = vld [vmem:[#allocation3 + $0xe8] sm:$0xff]
    %v1586 = vld [vmem:[#allocation3 + $0xf0] sm:$0xff]
    %v1587 = vld [vmem:[#allocation3 + $0xf8] sm:$0xff]
    %v1588 = vld [vmem:[#allocation3 + $0x100] sm:$0xff]
    %v1589 = vld [vmem:[#allocation3 + $0x108] sm:$0xff]
    %v1590 = vld [vmem:[#allocation3 + $0x110] sm:$0xff]
    %v1591 = vld [vmem:[#allocation3 + $0x118] sm:$0xff]
    %v1592 = vperm.slane %v832, 3
    %1593 = vmatpush.msra.mxu0 %v1571
    %1594 = vmatpush.msra.mxu0 %v1570
    %1595 = vmatpush.msra.mxu0 %v1569
    %1596 = vmatpush.msra.mxu0 %v1568
    %1597 = vmatpush.msra.mxu0 %v1567
    %1598 = vmatpush.msra.mxu0 %v1566
    %1599 = vmatpush.msra.mxu0 %v1565
    %1600 = vmatpush.msra.mxu0 %v1564
    %1601 = vmatpush.msra.mxu0 %v1563
    %1602 = vmatpush.msra.mxu0 %v1562
    %1603 = vmatpush.msra.mxu0 %v1561
    %1604 = vmatpush.msra.mxu0 %v1560
    %1605 = vmatpush.msra.mxu0 %v1559
    %1606 = vmatpush.msra.mxu0 %v1558
    %1607 = vmatpush.msra.mxu0 %v1557
    %1608 = vmatpush.msra.mxu0 %v1556
    %1609 = vmatmul.f32.gmra.mxu0 %v820
    %v1610 = vpop.f32.mrf.mxu0
    %v1611 = vadd.f32 %v1592, %v1610
    %1612 = vmatmul.f32.gmra.mxu0 %v823
    %v1613 = vpop.f32.mrf.mxu0
    %v1614 = vadd.f32 %v1592, %v1613
    %1615 = vmatmul.f32.gmra.mxu0 %v826
    %v1616 = vpop.f32.mrf.mxu0
    %v1617 = vadd.f32 %v1592, %v1616
    %1618 = vmatmul.f32.gmra.mxu0 %v829
    %v1619 = vpop.f32.mrf.mxu0
    %v1620 = vadd.f32 %v1592, %v1619
    %1621 = vdwg.mxu0
    %1622 = vmatpush.msra.mxu0 %v1587
    %1623 = vmatpush.msra.mxu0 %v1586
    %1624 = vmatpush.msra.mxu0 %v1585
    %1625 = vmatpush.msra.mxu0 %v1584
    %1626 = vmatpush.msra.mxu0 %v1583
    %1627 = vmatpush.msra.mxu0 %v1582
    %1628 = vmatpush.msra.mxu0 %v1581
    %1629 = vmatpush.msra.mxu0 %v1580
    %1630 = vmatpush.msra.mxu0 %v1579
    %1631 = vmatpush.msra.mxu0 %v1578
    %1632 = vmatpush.msra.mxu0 %v1577
    %1633 = vmatpush.msra.mxu0 %v1576
    %1634 = vmatpush.msra.mxu0 %v1575
    %1635 = vmatpush.msra.mxu0 %v1574
    %1636 = vmatpush.msra.mxu0 %v1573
    %1637 = vmatpush.msra.mxu0 %v1572
    %1638 = vmatmul.f32.gmra.mxu0 %v821
    %v1639 = vpop.f32.mrf.mxu0
    %v1640 = vadd.f32 %v1611, %v1639
    %1641 = vmatmul.f32.gmra.mxu0 %v824
    %v1642 = vpop.f32.mrf.mxu0
    %v1643 = vadd.f32 %v1614, %v1642
    %1644 = vmatmul.f32.gmra.mxu0 %v827
    %v1645 = vpop.f32.mrf.mxu0
    %v1646 = vadd.f32 %v1617, %v1645
    %1647 = vmatmul.f32.gmra.mxu0 %v830
    %v1648 = vpop.f32.mrf.mxu0
    %v1649 = vadd.f32 %v1620, %v1648
    %1650 = vdwg.mxu0
    %1651 = vmatpush.msra.mxu0 0.0
    %1652 = vmatpush.msra.mxu0 0.0
    %1653 = vmatpush.msra.mxu0 0.0
    %1654 = vmatpush.msra.mxu0 0.0
    %1655 = vmatpush.msra.mxu0 0.0
    %1656 = vmatpush.msra.mxu0 0.0
    %1657 = vmatpush.msra.mxu0 0.0
    %1658 = vmatpush.msra.mxu0 0.0
    %1659 = vmatpush.msra.mxu0 0.0
    %1660 = vmatpush.msra.mxu0 0.0
    %1661 = vmatpush.msra.mxu0 0.0
    %1662 = vmatpush.msra.mxu0 0.0
    %1663 = vmatpush.msra.mxu0 %v1591
    %1664 = vmatpush.msra.mxu0 %v1590
    %1665 = vmatpush.msra.mxu0 %v1589
    %1666 = vmatpush.msra.mxu0 %v1588
    %1667 = vmatmul.f32.gmra.mxu0 %v1129
    %v1668 = vpop.f32.mrf.mxu0
    %v1669 = vadd.f32 %v1640, %v1668
    %1670 = vmatmul.f32.gmra.mxu0 %v1132
    %v1671 = vpop.f32.mrf.mxu0
    %v1672 = vadd.f32 %v1643, %v1671
    %1673 = vmatmul.f32.gmra.mxu0 %v1135
    %v1674 = vpop.f32.mrf.mxu0
    %v1675 = vadd.f32 %v1646, %v1674
    %1676 = vmatmul.f32.gmra.mxu0 %v1138
    %v1677 = vpop.f32.mrf.mxu0
    %v1678 = vadd.f32 %v1649, %v1677
    %1679 = vdwg.mxu0
    %v1680 = vsel %vm314, %v1669, 0.0
    %v1681 = vsel %vm314, %v1672, 0.0
    %v1682 = vadd.f32 %v1680, %v1681
    %v1683 = vsel %vm314, %v1675, 0.0
    %v1684 = vadd.f32 %v1682, %v1683
    %v1685 = vsel %vm314, %v1678, 0.0
    %v1686 = vadd.f32 %v1684, %v1685
    %v1687 = vrot.slane %v1686, 4
    %v1688 = vadd.f32 %v1686, %v1687
    %v1689 = vrot.slane %v1688, 2
    %v1690 = vadd.f32 %v1688, %v1689
    %v1691 = vrot.slane %v1690, 1
    %v1692 = vadd.f32 %v1690, %v1691
    %v1693 = vmul.f32 %v1692, %v1246
    %v1694 = vsub.f32 %v1669, %v1693
    %v1695 = vsub.f32 %v1672, %v1693
    %v1696 = vsub.f32 %v1675, %v1693
    %v1697 = vsub.f32 %v1678, %v1693
    %v1698 = vmul.f32 %v1694, %v1694
    %v1699 = vmul.f32 %v1695, %v1695
    %v1700 = vmul.f32 %v1696, %v1696
    %v1701 = vmul.f32 %v1697, %v1697
    %v1702 = vsel %vm314, %v1698, 0.0
    %v1703 = vsel %vm314, %v1699, 0.0
    %v1704 = vadd.f32 %v1702, %v1703
    %v1705 = vsel %vm314, %v1700, 0.0
    %v1706 = vadd.f32 %v1704, %v1705
    %v1707 = vsel %vm314, %v1701, 0.0
    %v1708 = vadd.f32 %v1706, %v1707
    %v1709 = vrot.slane %v1708, 4
    %v1710 = vadd.f32 %v1708, %v1709
    %v1711 = vrot.slane %v1710, 2
    %v1712 = vadd.f32 %v1710, %v1711
    %v1713 = vrot.slane %v1712, 1
    %v1714 = vadd.f32 %v1712, %v1713
    %v1715 = vmul.f32 %v1714, %v1246
    %v1716 = vadd.f32 %v1715, 1e-05
    %v1717 = vrsqrt.pop %v1716
    %v1718 = vmul.f32 %v1717, %v1716
    %v1719 = vmul.f32 %v1718, %v1717
    %v1720 = vmul.f32 0.5, %v1719
    %v1721 = vsub.f32 1.5, %v1720
    %v1722 = vmul.f32 %v1717, %v1721
    %vm1723 = vweird.f32 %v1716
    %vm1724 = vweird.f32 %v1717
    %vm1725 = vmor %vm1723, %vm1724
    %v1726 = vsel %vm1725, %v1717, %v1722
    %v1727 = vmul.f32 %v1694, %v1726
    %v1728 = vmul.f32 %v1695, %v1726
    %v1729 = vmul.f32 %v1696, %v1726
    %v1730 = vmul.f32 %v1697, %v1726
    %v1731 = vperm.slane %v832, 4
    %v1732 = vmul.f32 %v1727, %v1731
    %v1733 = vmul.f32 %v1728, %v1731
    %v1734 = vmul.f32 %v1729, %v1731
    %v1735 = vmul.f32 %v1730, %v1731
    %v1736 = vperm.slane %v832, 5
    %v1737 = vadd.f32 %v1732, %v1736
    %v1738 = vadd.f32 %v1733, %v1736
    %v1739 = vadd.f32 %v1734, %v1736
    %v1740 = vadd.f32 %v1735, %v1736
    %v1741 = vadd.f32 %v1737, %v736
    %v1742 = vadd.f32 %v1738, %v737
    %v1743 = vadd.f32 %v1739, %v738
    %v1744 = vadd.f32 %v1740, %v739
    %v1745 = vmax.f32 %v1741, 0.0
    %v1746 = vmax.f32 %v1742, 0.0
    %v1747 = vmax.f32 %v1743, 0.0
    %v1748 = vmax.f32 %v1744, 0.0
    %v1749 = vld [vmem:[#allocation19] sm:$0xff]
    %v1750 = vld [vmem:[#allocation19 + $0x8] sm:$0xff]
    %v1751 = vld [vmem:[#allocation19 + $0x10] sm:$0xff]
    %v1752 = vld [vmem:[#allocation19 + $0x18] sm:$0xff]
    %v1753 = vld [vmem:[#allocation19 + $0x20] sm:$0xff]
    %v1754 = vld [vmem:[#allocation19 + $0x28] sm:$0xff]
    %v1755 = vld [vmem:[#allocation19 + $0x30] sm:$0xff]
    %v1756 = vld [vmem:[#allocation19 + $0x38] sm:$0xff]
    %v1757 = vld [vmem:[#allocation19 + $0x40] sm:$0xff]
    %v1758 = vld [vmem:[#allocation19 + $0x48] sm:$0xff]
    %v1759 = vld [vmem:[#allocation19 + $0x50] sm:$0xff]
    %v1760 = vld [vmem:[#allocation19 + $0x58] sm:$0xff]
    %v1761 = vld [vmem:[#allocation19 + $0x60] sm:$0xff]
    %v1762 = vld [vmem:[#allocation19 + $0x68] sm:$0xff]
    %v1763 = vld [vmem:[#allocation19 + $0x70] sm:$0xff]
    %v1764 = vld [vmem:[#allocation19 + $0x78] sm:$0xff]
    %v1765 = vld [vmem:[#allocation20] sm:$0xff]
    %v1766 = vld [vmem:[#allocation20 + $0x8] sm:$0xff]
    %v1767 = vld [vmem:[#allocation20 + $0x10] sm:$0xff]
    %v1768 = vld [vmem:[#allocation20 + $0x18] sm:$0xff]
    %v1769 = vld [vmem:[#allocation20 + $0x20] sm:$0xff]
    %v1770 = vld [vmem:[#allocation20 + $0x28] sm:$0xff]
    %v1771 = vld [vmem:[#allocation20 + $0x30] sm:$0xff]
    %v1772 = vld [vmem:[#allocation20 + $0x38] sm:$0xff]
    %v1773 = vld [vmem:[#allocation20 + $0x40] sm:$0xff]
    %v1774 = vld [vmem:[#allocation20 + $0x48] sm:$0xff]
    %v1775 = vld [vmem:[#allocation20 + $0x50] sm:$0xff]
    %v1776 = vld [vmem:[#allocation20 + $0x58] sm:$0xff]
    %v1777 = vld [vmem:[#allocation20 + $0x60] sm:$0xff]
    %v1778 = vld [vmem:[#allocation20 + $0x68] sm:$0xff]
    %v1779 = vld [vmem:[#allocation20 + $0x70] sm:$0xff]
    %v1780 = vld [vmem:[#allocation20 + $0x78] sm:$0xff]
    %v1781 = vld [vmem:[#allocation20 + $0x80] sm:$0xff]
    %v1782 = vld [vmem:[#allocation20 + $0x88] sm:$0xff]
    %v1783 = vld [vmem:[#allocation20 + $0x90] sm:$0xff]
    %v1784 = vld [vmem:[#allocation20 + $0x98] sm:$0xff]
    %v1785 = vld [vmem:[#allocation20 + $0xa0] sm:$0xff]
    %v1786 = vld [vmem:[#allocation20 + $0xa8] sm:$0xff]
    %v1787 = vld [vmem:[#allocation20 + $0xb0] sm:$0xff]
    %v1788 = vld [vmem:[#allocation20 + $0xb8] sm:$0xff]
    %v1789 = vld [vmem:[#allocation20 + $0xc0] sm:$0xff]
    %v1790 = vld [vmem:[#allocation20 + $0xc8] sm:$0xff]
    %v1791 = vld [vmem:[#allocation20 + $0xd0] sm:$0xff]
    %v1792 = vld [vmem:[#allocation20 + $0xd8] sm:$0xff]
    %v1793 = vld [vmem:[#allocation20 + $0xe0] sm:$0xff]
    %v1794 = vld [vmem:[#allocation20 + $0xe8] sm:$0xff]
    %v1795 = vld [vmem:[#allocation20 + $0xf0] sm:$0xff]
    %v1796 = vld [vmem:[#allocation20 + $0xf8] sm:$0xff]
    %v1797 = vld [vmem:[#allocation20 + $0x100] sm:$0xff]
    %v1798 = vld [vmem:[#allocation20 + $0x108] sm:$0xff]
    %v1799 = vld [vmem:[#allocation20 + $0x110] sm:$0xff]
    %v1800 = vld [vmem:[#allocation20 + $0x118] sm:$0xff]
    %v1801 = vld [vmem:[#allocation20 + $0x120] sm:$0xff]
    %v1802 = vld [vmem:[#allocation20 + $0x128] sm:$0xff]
    %v1803 = vld [vmem:[#allocation20 + $0x130] sm:$0xff]
    %v1804 = vld [vmem:[#allocation20 + $0x138] sm:$0xff]
    %v1805 = vld [vmem:[#allocation20 + $0x140] sm:$0xff]
    %v1806 = vld [vmem:[#allocation20 + $0x148] sm:$0xff]
    %v1807 = vld [vmem:[#allocation20 + $0x150] sm:$0xff]
    %v1808 = vld [vmem:[#allocation20 + $0x158] sm:$0xff]
    %v1809 = vld [vmem:[#allocation20 + $0x160] sm:$0xff]
    %v1810 = vld [vmem:[#allocation20 + $0x168] sm:$0xff]
    %v1811 = vld [vmem:[#allocation20 + $0x170] sm:$0xff]
    %v1812 = vld [vmem:[#allocation20 + $0x178] sm:$0xff]
    %v1813 = vld [vmem:[#allocation20 + $0x180] sm:$0xff]
    %v1814 = vld [vmem:[#allocation20 + $0x188] sm:$0xff]
    %v1815 = vld [vmem:[#allocation20 + $0x190] sm:$0xff]
    %v1816 = vld [vmem:[#allocation20 + $0x198] sm:$0xff]
    %v1817 = vld [vmem:[#allocation20 + $0x1a0] sm:$0xff]
    %v1818 = vld [vmem:[#allocation20 + $0x1a8] sm:$0xff]
    %v1819 = vld [vmem:[#allocation20 + $0x1b0] sm:$0xff]
    %v1820 = vld [vmem:[#allocation20 + $0x1b8] sm:$0xff]
    %v1821 = vld [vmem:[#allocation20 + $0x1c0] sm:$0xff]
    %v1822 = vld [vmem:[#allocation20 + $0x1c8] sm:$0xff]
    %v1823 = vld [vmem:[#allocation20 + $0x1d0] sm:$0xff]
    %v1824 = vld [vmem:[#allocation20 + $0x1d8] sm:$0xff]
    %v1825 = vld [vmem:[#allocation20 + $0x1e0] sm:$0xff]
    %v1826 = vld [vmem:[#allocation20 + $0x1e8] sm:$0xff]
    %v1827 = vld [vmem:[#allocation20 + $0x1f0] sm:$0xff]
    %v1828 = vld [vmem:[#allocation20 + $0x1f8] sm:$0xff]
    %v1830 = vsel %vm314, %v1745, 0
    %v1833 = vsel %vm314, %v1746, 0
    %v1836 = vsel %vm314, %v1747, 0
    %v1839 = vsel %vm314, %v1748, 0
    %1841 = vmatpush.msra.mxu0 0.0
    %1842 = vmatpush.msra.mxu0 0.0
    %1843 = vmatpush.msra.mxu0 0.0
    %1844 = vmatpush.msra.mxu0 0.0
    %1845 = vmatpush.msra.mxu0 0.0
    %1846 = vmatpush.msra.mxu0 0.0
    %1847 = vmatpush.msra.mxu0 0.0
    %1848 = vmatpush.msra.mxu0 0.0
    %1849 = vmatpush.msra.mxu0 %v1763
    %1850 = vmatpush.msra.mxu0 %v1761
    %1851 = vmatpush.msra.mxu0 %v1759
    %1852 = vmatpush.msra.mxu0 %v1757
    %1853 = vmatpush.msra.mxu0 %v1755
    %1854 = vmatpush.msra.mxu0 %v1753
    %1855 = vmatpush.msra.mxu0 %v1751
    %1856 = vmatpush.msra.mxu0 %v1749
    %1857 = vmatmul.f32.gmra.mxu0 %v1830
    %v1858 = vpop.f32.mrf.mxu0
    %v1859 = vadd.f32 0.0, %v1858
    %1860 = vmatmul.f32.gmra.mxu0 %v1833
    %v1861 = vpop.f32.mrf.mxu0
    %v1862 = vadd.f32 0.0, %v1861
    %1863 = vmatmul.f32.gmra.mxu0 %v1836
    %v1864 = vpop.f32.mrf.mxu0
    %v1865 = vadd.f32 0.0, %v1864
    %1866 = vmatmul.f32.gmra.mxu0 %v1839
    %v1867 = vpop.f32.mrf.mxu0
    %v1868 = vadd.f32 0.0, %v1867
    %1869 = vdwg.mxu0
    %1870 = vmatpush.msra.mxu0 0.0
    %1871 = vmatpush.msra.mxu0 0.0
    %1872 = vmatpush.msra.mxu0 0.0
    %1873 = vmatpush.msra.mxu0 0.0
    %1874 = vmatpush.msra.mxu0 0.0
    %1875 = vmatpush.msra.mxu0 0.0
    %1876 = vmatpush.msra.mxu0 0.0
    %1877 = vmatpush.msra.mxu0 0.0
    %1878 = vmatpush.msra.mxu0 %v1764
    %1879 = vmatpush.msra.mxu0 %v1762
    %1880 = vmatpush.msra.mxu0 %v1760
    %1881 = vmatpush.msra.mxu0 %v1758
    %1882 = vmatpush.msra.mxu0 %v1756
    %1883 = vmatpush.msra.mxu0 %v1754
    %1884 = vmatpush.msra.mxu0 %v1752
    %1885 = vmatpush.msra.mxu0 %v1750
    %1886 = vmatmul.f32.gmra.mxu0 %v1830
    %v1887 = vpop.f32.mrf.mxu0
    %v1888 = vadd.f32 0.0, %v1887
    %1889 = vmatmul.f32.gmra.mxu0 %v1833
    %v1890 = vpop.f32.mrf.mxu0
    %v1891 = vadd.f32 0.0, %v1890
    %1892 = vmatmul.f32.gmra.mxu0 %v1836
    %v1893 = vpop.f32.mrf.mxu0
    %v1894 = vadd.f32 0.0, %v1893
    %1895 = vmatmul.f32.gmra.mxu0 %v1839
    %v1896 = vpop.f32.mrf.mxu0
    %v1897 = vadd.f32 0.0, %v1896
    %1898 = vdwg.mxu0
    %vm1899 = vcmask 130048
    %1900 = vst.msk [vmem:[#allocation4] sm:$0xff] %vm1899, %v1859
    %1901 = vst.msk [vmem:[#allocation4 + $0x8] sm:$0xff] %vm1899, %v1862
    %1902 = vst.msk [vmem:[#allocation4 + $0x10] sm:$0xff] %vm1899, %v1865
    %1903 = vst.msk [vmem:[#allocation4 + $0x18] sm:$0xff] %vm1899, %v1868
    %1908 = vrot.lane.b32.xlu0 %v1859, 112
    %v1909 = vpop.permute.xlu0 %1908
    %1910 = vrot.lane.b32.xlu0 %v1862, 112
    %v1911 = vpop.permute.xlu0 %1910
    %1912 = vrot.lane.b32.xlu0 %v1865, 112
    %v1913 = vpop.permute.xlu0 %1912
    %1914 = vrot.lane.b32.xlu0 %v1868, 112
    %v1915 = vpop.permute.xlu0 %1914
    %1920 = vst.msk [vmem:[#allocation4 + $0x20] sm:$0xff] %vm1899, %v1909
    %1921 = vst.msk [vmem:[#allocation4 + $0x28] sm:$0xff] %vm1899, %v1911
    %1922 = vst.msk [vmem:[#allocation4 + $0x30] sm:$0xff] %vm1899, %v1913
    %1923 = vst.msk [vmem:[#allocation4 + $0x38] sm:$0xff] %vm1899, %v1915
    %1924 = vrot.lane.b32.xlu0 %v1859, 96
    %v1925 = vpop.permute.xlu0 %1924
    %1926 = vrot.lane.b32.xlu0 %v1862, 96
    %v1927 = vpop.permute.xlu0 %1926
    %1928 = vrot.lane.b32.xlu0 %v1865, 96
    %v1929 = vpop.permute.xlu0 %1928
    %1930 = vrot.lane.b32.xlu0 %v1868, 96
    %v1931 = vpop.permute.xlu0 %1930
    %1936 = vst.msk [vmem:[#allocation4 + $0x40] sm:$0xff] %vm1899, %v1925
    %1937 = vst.msk [vmem:[#allocation4 + $0x48] sm:$0xff] %vm1899, %v1927
    %1938 = vst.msk [vmem:[#allocation4 + $0x50] sm:$0xff] %vm1899, %v1929
    %1939 = vst.msk [vmem:[#allocation4 + $0x58] sm:$0xff] %vm1899, %v1931
    %1940 = vrot.lane.b32.xlu0 %v1859, 80
    %v1941 = vpop.permute.xlu0 %1940
    %1942 = vrot.lane.b32.xlu0 %v1862, 80
    %v1943 = vpop.permute.xlu0 %1942
    %1944 = vrot.lane.b32.xlu0 %v1865, 80
    %v1945 = vpop.permute.xlu0 %1944
    %1946 = vrot.lane.b32.xlu0 %v1868, 80
    %v1947 = vpop.permute.xlu0 %1946
    %1952 = vst.msk [vmem:[#allocation4 + $0x60] sm:$0xff] %vm1899, %v1941
    %1953 = vst.msk [vmem:[#allocation4 + $0x68] sm:$0xff] %vm1899, %v1943
    %1954 = vst.msk [vmem:[#allocation4 + $0x70] sm:$0xff] %vm1899, %v1945
    %1955 = vst.msk [vmem:[#allocation4 + $0x78] sm:$0xff] %vm1899, %v1947
    %1956 = vrot.lane.b32.xlu0 %v1859, 64
    %v1957 = vpop.permute.xlu0 %1956
    %1958 = vrot.lane.b32.xlu0 %v1862, 64
    %v1959 = vpop.permute.xlu0 %1958
    %1960 = vrot.lane.b32.xlu0 %v1865, 64
    %v1961 = vpop.permute.xlu0 %1960
    %1962 = vrot.lane.b32.xlu0 %v1868, 64
    %v1963 = vpop.permute.xlu0 %1962
    %1968 = vst.msk [vmem:[#allocation4 + $0x80] sm:$0xff] %vm1899, %v1957
    %1969 = vst.msk [vmem:[#allocation4 + $0x88] sm:$0xff] %vm1899, %v1959
    %1970 = vst.msk [vmem:[#allocation4 + $0x90] sm:$0xff] %vm1899, %v1961
    %1971 = vst.msk [vmem:[#allocation4 + $0x98] sm:$0xff] %vm1899, %v1963
    %1972 = vrot.lane.b32.xlu0 %v1859, 48
    %v1973 = vpop.permute.xlu0 %1972
    %1974 = vrot.lane.b32.xlu0 %v1862, 48
    %v1975 = vpop.permute.xlu0 %1974
    %1976 = vrot.lane.b32.xlu0 %v1865, 48
    %v1977 = vpop.permute.xlu0 %1976
    %1978 = vrot.lane.b32.xlu0 %v1868, 48
    %v1979 = vpop.permute.xlu0 %1978
    %1984 = vst.msk [vmem:[#allocation4 + $0xa0] sm:$0xff] %vm1899, %v1973
    %1985 = vst.msk [vmem:[#allocation4 + $0xa8] sm:$0xff] %vm1899, %v1975
    %1986 = vst.msk [vmem:[#allocation4 + $0xb0] sm:$0xff] %vm1899, %v1977
    %1987 = vst.msk [vmem:[#allocation4 + $0xb8] sm:$0xff] %vm1899, %v1979
    %1988 = vrot.lane.b32.xlu0 %v1859, 32
    %v1989 = vpop.permute.xlu0 %1988
    %1990 = vrot.lane.b32.xlu0 %v1862, 32
    %v1991 = vpop.permute.xlu0 %1990
    %1992 = vrot.lane.b32.xlu0 %v1865, 32
    %v1993 = vpop.permute.xlu0 %1992
    %1994 = vrot.lane.b32.xlu0 %v1868, 32
    %v1995 = vpop.permute.xlu0 %1994
    %2000 = vst.msk [vmem:[#allocation4 + $0xc0] sm:$0xff] %vm1899, %v1989
    %2001 = vst.msk [vmem:[#allocation4 + $0xc8] sm:$0xff] %vm1899, %v1991
    %2002 = vst.msk [vmem:[#allocation4 + $0xd0] sm:$0xff] %vm1899, %v1993
    %2003 = vst.msk [vmem:[#allocation4 + $0xd8] sm:$0xff] %vm1899, %v1995
    %2004 = vrot.lane.b32.xlu0 %v1859, 16
    %v2005 = vpop.permute.xlu0 %2004
    %2006 = vrot.lane.b32.xlu0 %v1862, 16
    %v2007 = vpop.permute.xlu0 %2006
    %2008 = vrot.lane.b32.xlu0 %v1865, 16
    %v2009 = vpop.permute.xlu0 %2008
    %2010 = vrot.lane.b32.xlu0 %v1868, 16
    %v2011 = vpop.permute.xlu0 %2010
    %2016 = vst.msk [vmem:[#allocation4 + $0xe0] sm:$0xff] %vm1899, %v2005
    %2017 = vst.msk [vmem:[#allocation4 + $0xe8] sm:$0xff] %vm1899, %v2007
    %2018 = vst.msk [vmem:[#allocation4 + $0xf0] sm:$0xff] %vm1899, %v2009
    %2019 = vst.msk [vmem:[#allocation4 + $0xf8] sm:$0xff] %vm1899, %v2011
    %2020 = vst.msk [vmem:[#allocation4 + $0x100] sm:$0xff] %vm1899, %v1888
    %2021 = vst.msk [vmem:[#allocation4 + $0x108] sm:$0xff] %vm1899, %v1891
    %2022 = vst.msk [vmem:[#allocation4 + $0x110] sm:$0xff] %vm1899, %v1894
    %2023 = vst.msk [vmem:[#allocation4 + $0x118] sm:$0xff] %vm1899, %v1897
    %2028 = vrot.lane.b32.xlu0 %v1888, 112
    %v2029 = vpop.permute.xlu0 %2028
    %2030 = vrot.lane.b32.xlu0 %v1891, 112
    %v2031 = vpop.permute.xlu0 %2030
    %2032 = vrot.lane.b32.xlu0 %v1894, 112
    %v2033 = vpop.permute.xlu0 %2032
    %2034 = vrot.lane.b32.xlu0 %v1897, 112
    %v2035 = vpop.permute.xlu0 %2034
    %2040 = vst.msk [vmem:[#allocation4 + $0x120] sm:$0xff] %vm1899, %v2029
    %2041 = vst.msk [vmem:[#allocation4 + $0x128] sm:$0xff] %vm1899, %v2031
    %2042 = vst.msk [vmem:[#allocation4 + $0x130] sm:$0xff] %vm1899, %v2033
    %2043 = vst.msk [vmem:[#allocation4 + $0x138] sm:$0xff] %vm1899, %v2035
    %2044 = vrot.lane.b32.xlu0 %v1888, 96
    %v2045 = vpop.permute.xlu0 %2044
    %2046 = vrot.lane.b32.xlu0 %v1891, 96
    %v2047 = vpop.permute.xlu0 %2046
    %2048 = vrot.lane.b32.xlu0 %v1894, 96
    %v2049 = vpop.permute.xlu0 %2048
    %2050 = vrot.lane.b32.xlu0 %v1897, 96
    %v2051 = vpop.permute.xlu0 %2050
    %2056 = vst.msk [vmem:[#allocation4 + $0x140] sm:$0xff] %vm1899, %v2045
    %2057 = vst.msk [vmem:[#allocation4 + $0x148] sm:$0xff] %vm1899, %v2047
    %2058 = vst.msk [vmem:[#allocation4 + $0x150] sm:$0xff] %vm1899, %v2049
    %2059 = vst.msk [vmem:[#allocation4 + $0x158] sm:$0xff] %vm1899, %v2051
    %2060 = vrot.lane.b32.xlu0 %v1888, 80
    %v2061 = vpop.permute.xlu0 %2060
    %2062 = vrot.lane.b32.xlu0 %v1891, 80
    %v2063 = vpop.permute.xlu0 %2062
    %2064 = vrot.lane.b32.xlu0 %v1894, 80
    %v2065 = vpop.permute.xlu0 %2064
    %2066 = vrot.lane.b32.xlu0 %v1897, 80
    %v2067 = vpop.permute.xlu0 %2066
    %2072 = vst.msk [vmem:[#allocation4 + $0x160] sm:$0xff] %vm1899, %v2061
    %2073 = vst.msk [vmem:[#allocation4 + $0x168] sm:$0xff] %vm1899, %v2063
    %2074 = vst.msk [vmem:[#allocation4 + $0x170] sm:$0xff] %vm1899, %v2065
    %2075 = vst.msk [vmem:[#allocation4 + $0x178] sm:$0xff] %vm1899, %v2067
    %2076 = vrot.lane.b32.xlu0 %v1888, 64
    %v2077 = vpop.permute.xlu0 %2076
    %2078 = vrot.lane.b32.xlu0 %v1891, 64
    %v2079 = vpop.permute.xlu0 %2078
    %2080 = vrot.lane.b32.xlu0 %v1894, 64
    %v2081 = vpop.permute.xlu0 %2080
    %2082 = vrot.lane.b32.xlu0 %v1897, 64
    %v2083 = vpop.permute.xlu0 %2082
    %2088 = vst.msk [vmem:[#allocation4 + $0x180] sm:$0xff] %vm1899, %v2077
    %2089 = vst.msk [vmem:[#allocation4 + $0x188] sm:$0xff] %vm1899, %v2079
    %2090 = vst.msk [vmem:[#allocation4 + $0x190] sm:$0xff] %vm1899, %v2081
    %2091 = vst.msk [vmem:[#allocation4 + $0x198] sm:$0xff] %vm1899, %v2083
    %2092 = vrot.lane.b32.xlu0 %v1888, 48
    %v2093 = vpop.permute.xlu0 %2092
    %2094 = vrot.lane.b32.xlu0 %v1891, 48
    %v2095 = vpop.permute.xlu0 %2094
    %2096 = vrot.lane.b32.xlu0 %v1894, 48
    %v2097 = vpop.permute.xlu0 %2096
    %2098 = vrot.lane.b32.xlu0 %v1897, 48
    %v2099 = vpop.permute.xlu0 %2098
    %2104 = vst.msk [vmem:[#allocation4 + $0x1a0] sm:$0xff] %vm1899, %v2093
    %2105 = vst.msk [vmem:[#allocation4 + $0x1a8] sm:$0xff] %vm1899, %v2095
    %2106 = vst.msk [vmem:[#allocation4 + $0x1b0] sm:$0xff] %vm1899, %v2097
    %2107 = vst.msk [vmem:[#allocation4 + $0x1b8] sm:$0xff] %vm1899, %v2099
    %2108 = vrot.lane.b32.xlu0 %v1888, 32
    %v2109 = vpop.permute.xlu0 %2108
    %2110 = vrot.lane.b32.xlu0 %v1891, 32
    %v2111 = vpop.permute.xlu0 %2110
    %2112 = vrot.lane.b32.xlu0 %v1894, 32
    %v2113 = vpop.permute.xlu0 %2112
    %2114 = vrot.lane.b32.xlu0 %v1897, 32
    %v2115 = vpop.permute.xlu0 %2114
    %2120 = vst.msk [vmem:[#allocation4 + $0x1c0] sm:$0xff] %vm1899, %v2109
    %2121 = vst.msk [vmem:[#allocation4 + $0x1c8] sm:$0xff] %vm1899, %v2111
    %2122 = vst.msk [vmem:[#allocation4 + $0x1d0] sm:$0xff] %vm1899, %v2113
    %2123 = vst.msk [vmem:[#allocation4 + $0x1d8] sm:$0xff] %vm1899, %v2115
    %2124 = vrot.lane.b32.xlu0 %v1888, 16
    %v2125 = vpop.permute.xlu0 %2124
    %2126 = vrot.lane.b32.xlu0 %v1891, 16
    %v2127 = vpop.permute.xlu0 %2126
    %2128 = vrot.lane.b32.xlu0 %v1894, 16
    %v2129 = vpop.permute.xlu0 %2128
    %2130 = vrot.lane.b32.xlu0 %v1897, 16
    %v2131 = vpop.permute.xlu0 %2130
    %2136 = vst.msk [vmem:[#allocation4 + $0x1e0] sm:$0xff] %vm1899, %v2125
    %2137 = vst.msk [vmem:[#allocation4 + $0x1e8] sm:$0xff] %vm1899, %v2127
    %2138 = vst.msk [vmem:[#allocation4 + $0x1f0] sm:$0xff] %vm1899, %v2129
    %2139 = vst.msk [vmem:[#allocation4 + $0x1f8] sm:$0xff] %vm1899, %v2131
    %v2140 = vld [vmem:[#allocation4] sm:$0xff]
    %v2141 = vld [vmem:[#allocation4 + $0x8] sm:$0xff]
    %v2142 = vld [vmem:[#allocation4 + $0x10] sm:$0xff]
    %v2143 = vld [vmem:[#allocation4 + $0x18] sm:$0xff]
    %v2144 = vld [vmem:[#allocation4 + $0x20] sm:$0xff]
    %v2145 = vld [vmem:[#allocation4 + $0x28] sm:$0xff]
    %v2146 = vld [vmem:[#allocation4 + $0x30] sm:$0xff]
    %v2147 = vld [vmem:[#allocation4 + $0x38] sm:$0xff]
    %v2148 = vld [vmem:[#allocation4 + $0x40] sm:$0xff]
    %v2149 = vld [vmem:[#allocation4 + $0x48] sm:$0xff]
    %v2150 = vld [vmem:[#allocation4 + $0x50] sm:$0xff]
    %v2151 = vld [vmem:[#allocation4 + $0x58] sm:$0xff]
    %v2152 = vld [vmem:[#allocation4 + $0x60] sm:$0xff]
    %v2153 = vld [vmem:[#allocation4 + $0x68] sm:$0xff]
    %v2154 = vld [vmem:[#allocation4 + $0x70] sm:$0xff]
    %v2155 = vld [vmem:[#allocation4 + $0x78] sm:$0xff]
    %v2156 = vld [vmem:[#allocation4 + $0x80] sm:$0xff]
    %v2157 = vld [vmem:[#allocation4 + $0x88] sm:$0xff]
    %v2158 = vld [vmem:[#allocation4 + $0x90] sm:$0xff]
    %v2159 = vld [vmem:[#allocation4 + $0x98] sm:$0xff]
    %v2160 = vld [vmem:[#allocation4 + $0xa0] sm:$0xff]
    %v2161 = vld [vmem:[#allocation4 + $0xa8] sm:$0xff]
    %v2162 = vld [vmem:[#allocation4 + $0xb0] sm:$0xff]
    %v2163 = vld [vmem:[#allocation4 + $0xb8] sm:$0xff]
    %v2164 = vld [vmem:[#allocation4 + $0xc0] sm:$0xff]
    %v2165 = vld [vmem:[#allocation4 + $0xc8] sm:$0xff]
    %v2166 = vld [vmem:[#allocation4 + $0xd0] sm:$0xff]
    %v2167 = vld [vmem:[#allocation4 + $0xd8] sm:$0xff]
    %v2168 = vld [vmem:[#allocation4 + $0xe0] sm:$0xff]
    %v2169 = vld [vmem:[#allocation4 + $0xe8] sm:$0xff]
    %v2170 = vld [vmem:[#allocation4 + $0xf0] sm:$0xff]
    %v2171 = vld [vmem:[#allocation4 + $0xf8] sm:$0xff]
    %v2172 = vld [vmem:[#allocation4 + $0x100] sm:$0xff]
    %v2173 = vld [vmem:[#allocation4 + $0x108] sm:$0xff]
    %v2174 = vld [vmem:[#allocation4 + $0x110] sm:$0xff]
    %v2175 = vld [vmem:[#allocation4 + $0x118] sm:$0xff]
    %v2176 = vld [vmem:[#allocation4 + $0x120] sm:$0xff]
    %v2177 = vld [vmem:[#allocation4 + $0x128] sm:$0xff]
    %v2178 = vld [vmem:[#allocation4 + $0x130] sm:$0xff]
    %v2179 = vld [vmem:[#allocation4 + $0x138] sm:$0xff]
    %v2180 = vld [vmem:[#allocation4 + $0x140] sm:$0xff]
    %v2181 = vld [vmem:[#allocation4 + $0x148] sm:$0xff]
    %v2182 = vld [vmem:[#allocation4 + $0x150] sm:$0xff]
    %v2183 = vld [vmem:[#allocation4 + $0x158] sm:$0xff]
    %v2184 = vld [vmem:[#allocation4 + $0x160] sm:$0xff]
    %v2185 = vld [vmem:[#allocation4 + $0x168] sm:$0xff]
    %v2186 = vld [vmem:[#allocation4 + $0x170] sm:$0xff]
    %v2187 = vld [vmem:[#allocation4 + $0x178] sm:$0xff]
    %v2188 = vld [vmem:[#allocation4 + $0x180] sm:$0xff]
    %v2189 = vld [vmem:[#allocation4 + $0x188] sm:$0xff]
    %v2190 = vld [vmem:[#allocation4 + $0x190] sm:$0xff]
    %v2191 = vld [vmem:[#allocation4 + $0x198] sm:$0xff]
    %v2192 = vld [vmem:[#allocation4 + $0x1a0] sm:$0xff]
    %v2193 = vld [vmem:[#allocation4 + $0x1a8] sm:$0xff]
    %v2194 = vld [vmem:[#allocation4 + $0x1b0] sm:$0xff]
    %v2195 = vld [vmem:[#allocation4 + $0x1b8] sm:$0xff]
    %v2196 = vld [vmem:[#allocation4 + $0x1c0] sm:$0xff]
    %v2197 = vld [vmem:[#allocation4 + $0x1c8] sm:$0xff]
    %v2198 = vld [vmem:[#allocation4 + $0x1d0] sm:$0xff]
    %v2199 = vld [vmem:[#allocation4 + $0x1d8] sm:$0xff]
    %v2200 = vld [vmem:[#allocation4 + $0x1e0] sm:$0xff]
    %v2201 = vld [vmem:[#allocation4 + $0x1e8] sm:$0xff]
    %v2202 = vld [vmem:[#allocation4 + $0x1f0] sm:$0xff]
    %v2203 = vld [vmem:[#allocation4 + $0x1f8] sm:$0xff]
    %v2204 = vld [vmem:[%s12] sm:$0x1]
    %v2206 = vperm.slane %v2204, 0
    %2208 = vmatpush.msra.mxu0 %v2155
    %2209 = vmatpush.msra.mxu0 %v2154
    %2210 = vmatpush.msra.mxu0 %v2153
    %2211 = vmatpush.msra.mxu0 %v2152
    %2212 = vmatpush.msra.mxu0 %v2151
    %2213 = vmatpush.msra.mxu0 %v2150
    %2214 = vmatpush.msra.mxu0 %v2149
    %2215 = vmatpush.msra.mxu0 %v2148
    %2216 = vmatpush.msra.mxu0 %v2147
    %2217 = vmatpush.msra.mxu0 %v2146
    %2218 = vmatpush.msra.mxu0 %v2145
    %2219 = vmatpush.msra.mxu0 %v2144
    %2220 = vmatpush.msra.mxu0 %v2143
    %2221 = vmatpush.msra.mxu0 %v2142
    %2222 = vmatpush.msra.mxu0 %v2141
    %2223 = vmatpush.msra.mxu0 %v2140
    %2224 = vmatmul.f32.gmra.mxu0 %v1765
    %v2225 = vpop.f32.mrf.mxu0
    %v2226 = vadd.f32 %v2206, %v2225
    %2227 = vmatmul.f32.gmra.mxu0 %v1769
    %v2228 = vpop.f32.mrf.mxu0
    %v2229 = vadd.f32 %v2206, %v2228
    %2230 = vmatmul.f32.gmra.mxu0 %v1773
    %v2231 = vpop.f32.mrf.mxu0
    %v2232 = vadd.f32 %v2206, %v2231
    %2233 = vmatmul.f32.gmra.mxu0 %v1777
    %v2234 = vpop.f32.mrf.mxu0
    %v2235 = vadd.f32 %v2206, %v2234
    %2236 = vmatmul.f32.gmra.mxu0 %v1781
    %v2237 = vpop.f32.mrf.mxu0
    %v2238 = vadd.f32 %v2206, %v2237
    %2239 = vmatmul.f32.gmra.mxu0 %v1785
    %v2240 = vpop.f32.mrf.mxu0
    %v2241 = vadd.f32 %v2206, %v2240
    %2242 = vmatmul.f32.gmra.mxu0 %v1789
    %v2243 = vpop.f32.mrf.mxu0
    %v2244 = vadd.f32 %v2206, %v2243
    %2245 = vmatmul.f32.gmra.mxu0 %v1793
    %v2246 = vpop.f32.mrf.mxu0
    %v2247 = vadd.f32 %v2206, %v2246
    %2248 = vmatmul.f32.gmra.mxu0 %v1797
    %v2249 = vpop.f32.mrf.mxu0
    %v2250 = vadd.f32 %v2206, %v2249
    %2251 = vmatmul.f32.gmra.mxu0 %v1801
    %v2252 = vpop.f32.mrf.mxu0
    %v2253 = vadd.f32 %v2206, %v2252
    %2254 = vmatmul.f32.gmra.mxu0 %v1805
    %v2255 = vpop.f32.mrf.mxu0
    %v2256 = vadd.f32 %v2206, %v2255
    %2257 = vmatmul.f32.gmra.mxu0 %v1809
    %v2258 = vpop.f32.mrf.mxu0
    %v2259 = vadd.f32 %v2206, %v2258
    %2260 = vmatmul.f32.gmra.mxu0 %v1813
    %v2261 = vpop.f32.mrf.mxu0
    %v2262 = vadd.f32 %v2206, %v2261
    %2263 = vmatmul.f32.gmra.mxu0 %v1817
    %v2264 = vpop.f32.mrf.mxu0
    %v2265 = vadd.f32 %v2206, %v2264
    %2266 = vmatmul.f32.gmra.mxu0 %v1821
    %v2267 = vpop.f32.mrf.mxu0
    %v2268 = vadd.f32 %v2206, %v2267
    %2269 = vmatmul.f32.gmra.mxu0 %v1825
    %v2270 = vpop.f32.mrf.mxu0
    %v2271 = vadd.f32 %v2206, %v2270
    %2272 = vdwg.mxu0
    %2273 = vmatpush.msra.mxu0 %v2171
    %2274 = vmatpush.msra.mxu0 %v2170
    %2275 = vmatpush.msra.mxu0 %v2169
    %2276 = vmatpush.msra.mxu0 %v2168
    %2277 = vmatpush.msra.mxu0 %v2167
    %2278 = vmatpush.msra.mxu0 %v2166
    %2279 = vmatpush.msra.mxu0 %v2165
    %2280 = vmatpush.msra.mxu0 %v2164
    %2281 = vmatpush.msra.mxu0 %v2163
    %2282 = vmatpush.msra.mxu0 %v2162
    %2283 = vmatpush.msra.mxu0 %v2161
    %2284 = vmatpush.msra.mxu0 %v2160
    %2285 = vmatpush.msra.mxu0 %v2159
    %2286 = vmatpush.msra.mxu0 %v2158
    %2287 = vmatpush.msra.mxu0 %v2157
    %2288 = vmatpush.msra.mxu0 %v2156
    %2289 = vmatmul.f32.gmra.mxu0 %v1766
    %v2290 = vpop.f32.mrf.mxu0
    %v2291 = vadd.f32 %v2226, %v2290
    %2292 = vmatmul.f32.gmra.mxu0 %v1770
    %v2293 = vpop.f32.mrf.mxu0
    %v2294 = vadd.f32 %v2229, %v2293
    %2295 = vmatmul.f32.gmra.mxu0 %v1774
    %v2296 = vpop.f32.mrf.mxu0
    %v2297 = vadd.f32 %v2232, %v2296
    %2298 = vmatmul.f32.gmra.mxu0 %v1778
    %v2299 = vpop.f32.mrf.mxu0
    %v2300 = vadd.f32 %v2235, %v2299
    %2301 = vmatmul.f32.gmra.mxu0 %v1782
    %v2302 = vpop.f32.mrf.mxu0
    %v2303 = vadd.f32 %v2238, %v2302
    %2304 = vmatmul.f32.gmra.mxu0 %v1786
    %v2305 = vpop.f32.mrf.mxu0
    %v2306 = vadd.f32 %v2241, %v2305
    %2307 = vmatmul.f32.gmra.mxu0 %v1790
    %v2308 = vpop.f32.mrf.mxu0
    %v2309 = vadd.f32 %v2244, %v2308
    %2310 = vmatmul.f32.gmra.mxu0 %v1794
    %v2311 = vpop.f32.mrf.mxu0
    %v2312 = vadd.f32 %v2247, %v2311
    %2313 = vmatmul.f32.gmra.mxu0 %v1798
    %v2314 = vpop.f32.mrf.mxu0
    %v2315 = vadd.f32 %v2250, %v2314
    %2316 = vmatmul.f32.gmra.mxu0 %v1802
    %v2317 = vpop.f32.mrf.mxu0
    %v2318 = vadd.f32 %v2253, %v2317
    %2319 = vmatmul.f32.gmra.mxu0 %v1806
    %v2320 = vpop.f32.mrf.mxu0
    %v2321 = vadd.f32 %v2256, %v2320
    %2322 = vmatmul.f32.gmra.mxu0 %v1810
    %v2323 = vpop.f32.mrf.mxu0
    %v2324 = vadd.f32 %v2259, %v2323
    %2325 = vmatmul.f32.gmra.mxu0 %v1814
    %v2326 = vpop.f32.mrf.mxu0
    %v2327 = vadd.f32 %v2262, %v2326
    %2328 = vmatmul.f32.gmra.mxu0 %v1818
    %v2329 = vpop.f32.mrf.mxu0
    %v2330 = vadd.f32 %v2265, %v2329
    %2331 = vmatmul.f32.gmra.mxu0 %v1822
    %v2332 = vpop.f32.mrf.mxu0
    %v2333 = vadd.f32 %v2268, %v2332
    %2334 = vmatmul.f32.gmra.mxu0 %v1826
    %v2335 = vpop.f32.mrf.mxu0
    %v2336 = vadd.f32 %v2271, %v2335
    %2337 = vdwg.mxu0
    %2338 = vmatpush.msra.mxu0 %v2187
    %2339 = vmatpush.msra.mxu0 %v2186
    %2340 = vmatpush.msra.mxu0 %v2185
    %2341 = vmatpush.msra.mxu0 %v2184
    %2342 = vmatpush.msra.mxu0 %v2183
    %2343 = vmatpush.msra.mxu0 %v2182
    %2344 = vmatpush.msra.mxu0 %v2181
    %2345 = vmatpush.msra.mxu0 %v2180
    %2346 = vmatpush.msra.mxu0 %v2179
    %2347 = vmatpush.msra.mxu0 %v2178
    %2348 = vmatpush.msra.mxu0 %v2177
    %2349 = vmatpush.msra.mxu0 %v2176
    %2350 = vmatpush.msra.mxu0 %v2175
    %2351 = vmatpush.msra.mxu0 %v2174
    %2352 = vmatpush.msra.mxu0 %v2173
    %2353 = vmatpush.msra.mxu0 %v2172
    %2354 = vmatmul.f32.gmra.mxu0 %v1767
    %v2355 = vpop.f32.mrf.mxu0
    %v2356 = vadd.f32 %v2291, %v2355
    %2357 = vmatmul.f32.gmra.mxu0 %v1771
    %v2358 = vpop.f32.mrf.mxu0
    %v2359 = vadd.f32 %v2294, %v2358
    %2360 = vmatmul.f32.gmra.mxu0 %v1775
    %v2361 = vpop.f32.mrf.mxu0
    %v2362 = vadd.f32 %v2297, %v2361
    %2363 = vmatmul.f32.gmra.mxu0 %v1779
    %v2364 = vpop.f32.mrf.mxu0
    %v2365 = vadd.f32 %v2300, %v2364
    %2366 = vmatmul.f32.gmra.mxu0 %v1783
    %v2367 = vpop.f32.mrf.mxu0
    %v2368 = vadd.f32 %v2303, %v2367
    %2369 = vmatmul.f32.gmra.mxu0 %v1787
    %v2370 = vpop.f32.mrf.mxu0
    %v2371 = vadd.f32 %v2306, %v2370
    %2372 = vmatmul.f32.gmra.mxu0 %v1791
    %v2373 = vpop.f32.mrf.mxu0
    %v2374 = vadd.f32 %v2309, %v2373
    %2375 = vmatmul.f32.gmra.mxu0 %v1795
    %v2376 = vpop.f32.mrf.mxu0
    %v2377 = vadd.f32 %v2312, %v2376
    %2378 = vmatmul.f32.gmra.mxu0 %v1799
    %v2379 = vpop.f32.mrf.mxu0
    %v2380 = vadd.f32 %v2315, %v2379
    %2381 = vmatmul.f32.gmra.mxu0 %v1803
    %v2382 = vpop.f32.mrf.mxu0
    %v2383 = vadd.f32 %v2318, %v2382
    %2384 = vmatmul.f32.gmra.mxu0 %v1807
    %v2385 = vpop.f32.mrf.mxu0
    %v2386 = vadd.f32 %v2321, %v2385
    %2387 = vmatmul.f32.gmra.mxu0 %v1811
    %v2388 = vpop.f32.mrf.mxu0
    %v2389 = vadd.f32 %v2324, %v2388
    %2390 = vmatmul.f32.gmra.mxu0 %v1815
    %v2391 = vpop.f32.mrf.mxu0
    %v2392 = vadd.f32 %v2327, %v2391
    %2393 = vmatmul.f32.gmra.mxu0 %v1819
    %v2394 = vpop.f32.mrf.mxu0
    %v2395 = vadd.f32 %v2330, %v2394
    %2396 = vmatmul.f32.gmra.mxu0 %v1823
    %v2397 = vpop.f32.mrf.mxu0
    %v2398 = vadd.f32 %v2333, %v2397
    %2399 = vmatmul.f32.gmra.mxu0 %v1827
    %v2400 = vpop.f32.mrf.mxu0
    %v2401 = vadd.f32 %v2336, %v2400
    %2402 = vdwg.mxu0
    %2403 = vmatpush.msra.mxu0 %v2203
    %2404 = vmatpush.msra.mxu0 %v2202
    %2405 = vmatpush.msra.mxu0 %v2201
    %2406 = vmatpush.msra.mxu0 %v2200
    %2407 = vmatpush.msra.mxu0 %v2199
    %2408 = vmatpush.msra.mxu0 %v2198
    %2409 = vmatpush.msra.mxu0 %v2197
    %2410 = vmatpush.msra.mxu0 %v2196
    %2411 = vmatpush.msra.mxu0 %v2195
    %2412 = vmatpush.msra.mxu0 %v2194
    %2413 = vmatpush.msra.mxu0 %v2193
    %2414 = vmatpush.msra.mxu0 %v2192
    %2415 = vmatpush.msra.mxu0 %v2191
    %2416 = vmatpush.msra.mxu0 %v2190
    %2417 = vmatpush.msra.mxu0 %v2189
    %2418 = vmatpush.msra.mxu0 %v2188
    %2419 = vmatmul.f32.gmra.mxu0 %v1768
    %v2420 = vpop.f32.mrf.mxu0
    %v2421 = vadd.f32 %v2356, %v2420
    %2422 = vmatmul.f32.gmra.mxu0 %v1772
    %v2423 = vpop.f32.mrf.mxu0
    %v2424 = vadd.f32 %v2359, %v2423
    %2425 = vmatmul.f32.gmra.mxu0 %v1776
    %v2426 = vpop.f32.mrf.mxu0
    %v2427 = vadd.f32 %v2362, %v2426
    %2428 = vmatmul.f32.gmra.mxu0 %v1780
    %v2429 = vpop.f32.mrf.mxu0
    %v2430 = vadd.f32 %v2365, %v2429
    %2431 = vmatmul.f32.gmra.mxu0 %v1784
    %v2432 = vpop.f32.mrf.mxu0
    %v2433 = vadd.f32 %v2368, %v2432
    %2434 = vmatmul.f32.gmra.mxu0 %v1788
    %v2435 = vpop.f32.mrf.mxu0
    %v2436 = vadd.f32 %v2371, %v2435
    %2437 = vmatmul.f32.gmra.mxu0 %v1792
    %v2438 = vpop.f32.mrf.mxu0
    %v2439 = vadd.f32 %v2374, %v2438
    %2440 = vmatmul.f32.gmra.mxu0 %v1796
    %v2441 = vpop.f32.mrf.mxu0
    %v2442 = vadd.f32 %v2377, %v2441
    %2443 = vmatmul.f32.gmra.mxu0 %v1800
    %v2444 = vpop.f32.mrf.mxu0
    %v2445 = vadd.f32 %v2380, %v2444
    %2446 = vmatmul.f32.gmra.mxu0 %v1804
    %v2447 = vpop.f32.mrf.mxu0
    %v2448 = vadd.f32 %v2383, %v2447
    %2449 = vmatmul.f32.gmra.mxu0 %v1808
    %v2450 = vpop.f32.mrf.mxu0
    %v2451 = vadd.f32 %v2386, %v2450
    %2452 = vmatmul.f32.gmra.mxu0 %v1812
    %v2453 = vpop.f32.mrf.mxu0
    %v2454 = vadd.f32 %v2389, %v2453
    %2455 = vmatmul.f32.gmra.mxu0 %v1816
    %v2456 = vpop.f32.mrf.mxu0
    %v2457 = vadd.f32 %v2392, %v2456
    %2458 = vmatmul.f32.gmra.mxu0 %v1820
    %v2459 = vpop.f32.mrf.mxu0
    %v2460 = vadd.f32 %v2395, %v2459
    %2461 = vmatmul.f32.gmra.mxu0 %v1824
    %v2462 = vpop.f32.mrf.mxu0
    %v2463 = vadd.f32 %v2398, %v2462
    %2464 = vmatmul.f32.gmra.mxu0 %v1828
    %v2465 = vpop.f32.mrf.mxu0
    %v2466 = vadd.f32 %v2401, %v2465
    %2467 = vdwg.mxu0
    %v2468 = vmax.f32 %v2421, 0.0
    %v2469 = vmax.f32 %v2424, 0.0
    %v2470 = vmax.f32 %v2427, 0.0
    %v2471 = vmax.f32 %v2430, 0.0
    %v2472 = vmax.f32 %v2433, 0.0
    %v2473 = vmax.f32 %v2436, 0.0
    %v2474 = vmax.f32 %v2439, 0.0
    %v2475 = vmax.f32 %v2442, 0.0
    %v2476 = vmax.f32 %v2445, 0.0
    %v2477 = vmax.f32 %v2448, 0.0
    %v2478 = vmax.f32 %v2451, 0.0
    %v2479 = vmax.f32 %v2454, 0.0
    %v2480 = vmax.f32 %v2457, 0.0
    %v2481 = vmax.f32 %v2460, 0.0
    %v2482 = vmax.f32 %v2463, 0.0
    %v2483 = vmax.f32 %v2466, 0.0
    %v2484 = vld [vmem:[#allocation22] sm:$0xff]
    %v2485 = vld [vmem:[#allocation22 + $0x8] sm:$0xff]
    %v2486 = vld [vmem:[#allocation22 + $0x10] sm:$0xff]
    %v2487 = vld [vmem:[#allocation22 + $0x18] sm:$0xff]
    %v2488 = vld [vmem:[#allocation23] sm:$0xff]
    %v2489 = vld [vmem:[#allocation23 + $0x8] sm:$0xff]
    %v2490 = vld [vmem:[#allocation23 + $0x10] sm:$0xff]
    %v2491 = vld [vmem:[#allocation23 + $0x18] sm:$0xff]
    %v2492 = vld [vmem:[#allocation25] sm:$0xff]
    %v2493 = vld [vmem:[#allocation25 + $0x8] sm:$0xff]
    %v2494 = vld [vmem:[#allocation25 + $0x10] sm:$0xff]
    %v2495 = vld [vmem:[#allocation25 + $0x18] sm:$0xff]
    %v2496 = vld [vmem:[#allocation25 + $0x20] sm:$0xff]
    %v2497 = vld [vmem:[#allocation25 + $0x28] sm:$0xff]
    %v2498 = vld [vmem:[#allocation25 + $0x30] sm:$0xff]
    %v2499 = vld [vmem:[#allocation25 + $0x38] sm:$0xff]
    %v2500 = vld [vmem:[#allocation25 + $0x40] sm:$0xff]
    %v2501 = vld [vmem:[#allocation25 + $0x48] sm:$0xff]
    %v2502 = vld [vmem:[#allocation25 + $0x50] sm:$0xff]
    %v2503 = vld [vmem:[#allocation25 + $0x58] sm:$0xff]
    %v2504 = vld [vmem:[#allocation25 + $0x60] sm:$0xff]
    %v2505 = vld [vmem:[#allocation25 + $0x68] sm:$0xff]
    %v2506 = vld [vmem:[#allocation25 + $0x70] sm:$0xff]
    %v2507 = vld [vmem:[#allocation25 + $0x78] sm:$0xff]
    %v2508 = vld [vmem:[#allocation25 + $0x80] sm:$0xff]
    %v2509 = vld [vmem:[#allocation25 + $0x88] sm:$0xff]
    %v2510 = vld [vmem:[#allocation25 + $0x90] sm:$0xff]
    %v2511 = vld [vmem:[#allocation25 + $0x98] sm:$0xff]
    %v2512 = vld [vmem:[#allocation25 + $0xa0] sm:$0xff]
    %v2513 = vld [vmem:[#allocation25 + $0xa8] sm:$0xff]
    %v2514 = vld [vmem:[#allocation25 + $0xb0] sm:$0xff]
    %v2515 = vld [vmem:[#allocation25 + $0xb8] sm:$0xff]
    %v2516 = vld [vmem:[#allocation25 + $0xc0] sm:$0xff]
    %v2517 = vld [vmem:[#allocation25 + $0xc8] sm:$0xff]
    %v2518 = vld [vmem:[#allocation25 + $0xd0] sm:$0xff]
    %v2519 = vld [vmem:[#allocation25 + $0xd8] sm:$0xff]
    %v2520 = vld [vmem:[#allocation25 + $0xe0] sm:$0xff]
    %v2521 = vld [vmem:[#allocation25 + $0xe8] sm:$0xff]
    %v2522 = vld [vmem:[#allocation25 + $0xf0] sm:$0xff]
    %v2523 = vld [vmem:[#allocation25 + $0xf8] sm:$0xff]
    %v2524 = vld [vmem:[#allocation25 + $0x100] sm:$0xff]
    %v2525 = vld [vmem:[#allocation25 + $0x108] sm:$0xff]
    %v2526 = vld [vmem:[#allocation25 + $0x110] sm:$0xff]
    %v2527 = vld [vmem:[#allocation25 + $0x118] sm:$0xff]
    %v2528 = vld [vmem:[#allocation25 + $0x120] sm:$0xff]
    %v2529 = vld [vmem:[#allocation25 + $0x128] sm:$0xff]
    %v2530 = vld [vmem:[#allocation25 + $0x130] sm:$0xff]
    %v2531 = vld [vmem:[#allocation25 + $0x138] sm:$0xff]
    %v2532 = vld [vmem:[#allocation25 + $0x140] sm:$0xff]
    %v2533 = vld [vmem:[#allocation25 + $0x148] sm:$0xff]
    %v2534 = vld [vmem:[#allocation25 + $0x150] sm:$0xff]
    %v2535 = vld [vmem:[#allocation25 + $0x158] sm:$0xff]
    %v2536 = vld [vmem:[#allocation25 + $0x160] sm:$0xff]
    %v2537 = vld [vmem:[#allocation25 + $0x168] sm:$0xff]
    %v2538 = vld [vmem:[#allocation25 + $0x170] sm:$0xff]
    %v2539 = vld [vmem:[#allocation25 + $0x178] sm:$0xff]
    %v2540 = vld [vmem:[#allocation25 + $0x180] sm:$0xff]
    %v2541 = vld [vmem:[#allocation25 + $0x188] sm:$0xff]
    %v2542 = vld [vmem:[#allocation25 + $0x190] sm:$0xff]
    %v2543 = vld [vmem:[#allocation25 + $0x198] sm:$0xff]
    %v2544 = vld [vmem:[#allocation25 + $0x1a0] sm:$0xff]
    %v2545 = vld [vmem:[#allocation25 + $0x1a8] sm:$0xff]
    %v2546 = vld [vmem:[#allocation25 + $0x1b0] sm:$0xff]
    %v2547 = vld [vmem:[#allocation25 + $0x1b8] sm:$0xff]
    %v2548 = vld [vmem:[#allocation25 + $0x1c0] sm:$0xff]
    %v2549 = vld [vmem:[#allocation25 + $0x1c8] sm:$0xff]
    %v2550 = vld [vmem:[#allocation25 + $0x1d0] sm:$0xff]
    %v2551 = vld [vmem:[#allocation25 + $0x1d8] sm:$0xff]
    %v2552 = vld [vmem:[#allocation25 + $0x1e0] sm:$0xff]
    %v2553 = vld [vmem:[#allocation25 + $0x1e8] sm:$0xff]
    %v2554 = vld [vmem:[#allocation25 + $0x1f0] sm:$0xff]
    %v2555 = vld [vmem:[#allocation25 + $0x1f8] sm:$0xff]
    %v2556 = vld [vmem:[#allocation25 + $0x200] sm:$0xff]
    %v2557 = vld [vmem:[#allocation25 + $0x208] sm:$0xff]
    %v2558 = vld [vmem:[#allocation25 + $0x210] sm:$0xff]
    %v2559 = vld [vmem:[#allocation25 + $0x218] sm:$0xff]
    %v2560 = vld [vmem:[#allocation25 + $0x220] sm:$0xff]
    %v2561 = vld [vmem:[#allocation25 + $0x228] sm:$0xff]
    %v2562 = vld [vmem:[#allocation25 + $0x230] sm:$0xff]
    %v2563 = vld [vmem:[#allocation25 + $0x238] sm:$0xff]
    %v2564 = vld [vmem:[#allocation25 + $0x240] sm:$0xff]
    %v2565 = vld [vmem:[#allocation25 + $0x248] sm:$0xff]
    %v2566 = vld [vmem:[#allocation25 + $0x250] sm:$0xff]
    %v2567 = vld [vmem:[#allocation25 + $0x258] sm:$0xff]
    %v2568 = vld [vmem:[#allocation25 + $0x260] sm:$0xff]
    %v2569 = vld [vmem:[#allocation25 + $0x268] sm:$0xff]
    %v2570 = vld [vmem:[#allocation25 + $0x270] sm:$0xff]
    %v2571 = vld [vmem:[#allocation25 + $0x278] sm:$0xff]
    %v2572 = vld [vmem:[#allocation25 + $0x280] sm:$0xff]
    %v2573 = vld [vmem:[#allocation25 + $0x288] sm:$0xff]
    %v2574 = vld [vmem:[#allocation25 + $0x290] sm:$0xff]
    %v2575 = vld [vmem:[#allocation25 + $0x298] sm:$0xff]
    %v2576 = vld [vmem:[#allocation25 + $0x2a0] sm:$0xff]
    %v2577 = vld [vmem:[#allocation25 + $0x2a8] sm:$0xff]
    %v2578 = vld [vmem:[#allocation25 + $0x2b0] sm:$0xff]
    %v2579 = vld [vmem:[#allocation25 + $0x2b8] sm:$0xff]
    %v2580 = vld [vmem:[#allocation25 + $0x2c0] sm:$0xff]
    %v2581 = vld [vmem:[#allocation25 + $0x2c8] sm:$0xff]
    %v2582 = vld [vmem:[#allocation25 + $0x2d0] sm:$0xff]
    %v2583 = vld [vmem:[#allocation25 + $0x2d8] sm:$0xff]
    %v2584 = vld [vmem:[#allocation25 + $0x2e0] sm:$0xff]
    %v2585 = vld [vmem:[#allocation25 + $0x2e8] sm:$0xff]
    %v2586 = vld [vmem:[#allocation25 + $0x2f0] sm:$0xff]
    %v2587 = vld [vmem:[#allocation25 + $0x2f8] sm:$0xff]
    %v2588 = vld [vmem:[#allocation25 + $0x300] sm:$0xff]
    %v2589 = vld [vmem:[#allocation25 + $0x308] sm:$0xff]
    %v2590 = vld [vmem:[#allocation25 + $0x310] sm:$0xff]
    %v2591 = vld [vmem:[#allocation25 + $0x318] sm:$0xff]
    %v2592 = vld [vmem:[#allocation25 + $0x320] sm:$0xff]
    %v2593 = vld [vmem:[#allocation25 + $0x328] sm:$0xff]
    %v2594 = vld [vmem:[#allocation25 + $0x330] sm:$0xff]
    %v2595 = vld [vmem:[#allocation25 + $0x338] sm:$0xff]
    %v2596 = vld [vmem:[#allocation25 + $0x340] sm:$0xff]
    %v2597 = vld [vmem:[#allocation25 + $0x348] sm:$0xff]
    %v2598 = vld [vmem:[#allocation25 + $0x350] sm:$0xff]
    %v2599 = vld [vmem:[#allocation25 + $0x358] sm:$0xff]
    %v2600 = vld [vmem:[#allocation25 + $0x360] sm:$0xff]
    %v2601 = vld [vmem:[#allocation25 + $0x368] sm:$0xff]
    %v2602 = vld [vmem:[#allocation25 + $0x370] sm:$0xff]
    %v2603 = vld [vmem:[#allocation25 + $0x378] sm:$0xff]
    %v2604 = vld [vmem:[#allocation25 + $0x380] sm:$0xff]
    %v2605 = vld [vmem:[#allocation25 + $0x388] sm:$0xff]
    %v2606 = vld [vmem:[#allocation25 + $0x390] sm:$0xff]
    %v2607 = vld [vmem:[#allocation25 + $0x398] sm:$0xff]
    %v2608 = vld [vmem:[#allocation25 + $0x3a0] sm:$0xff]
    %v2609 = vld [vmem:[#allocation25 + $0x3a8] sm:$0xff]
    %v2610 = vld [vmem:[#allocation25 + $0x3b0] sm:$0xff]
    %v2611 = vld [vmem:[#allocation25 + $0x3b8] sm:$0xff]
    %v2612 = vld [vmem:[#allocation25 + $0x3c0] sm:$0xff]
    %v2613 = vld [vmem:[#allocation25 + $0x3c8] sm:$0xff]
    %v2614 = vld [vmem:[#allocation25 + $0x3d0] sm:$0xff]
    %v2615 = vld [vmem:[#allocation25 + $0x3d8] sm:$0xff]
    %v2616 = vld [vmem:[#allocation25 + $0x3e0] sm:$0xff]
    %v2617 = vld [vmem:[#allocation25 + $0x3e8] sm:$0xff]
    %v2618 = vld [vmem:[#allocation25 + $0x3f0] sm:$0xff]
    %v2619 = vld [vmem:[#allocation25 + $0x3f8] sm:$0xff]
    %v2620 = vld [vmem:[#allocation25 + $0x400] sm:$0xff]
    %v2621 = vld [vmem:[#allocation25 + $0x408] sm:$0xff]
    %v2622 = vld [vmem:[#allocation25 + $0x410] sm:$0xff]
    %v2623 = vld [vmem:[#allocation25 + $0x418] sm:$0xff]
    %v2624 = vld [vmem:[#allocation25 + $0x420] sm:$0xff]
    %v2625 = vld [vmem:[#allocation25 + $0x428] sm:$0xff]
    %v2626 = vld [vmem:[#allocation25 + $0x430] sm:$0xff]
    %v2627 = vld [vmem:[#allocation25 + $0x438] sm:$0xff]
    %v2628 = vld [vmem:[#allocation25 + $0x440] sm:$0xff]
    %v2629 = vld [vmem:[#allocation25 + $0x448] sm:$0xff]
    %v2630 = vld [vmem:[#allocation25 + $0x450] sm:$0xff]
    %v2631 = vld [vmem:[#allocation25 + $0x458] sm:$0xff]
    %v2632 = vld [vmem:[#allocation25 + $0x460] sm:$0xff]
    %v2633 = vld [vmem:[#allocation25 + $0x468] sm:$0xff]
    %v2634 = vld [vmem:[#allocation25 + $0x470] sm:$0xff]
    %v2635 = vld [vmem:[#allocation25 + $0x478] sm:$0xff]
    %v2636 = vld [vmem:[#allocation26] sm:$0x3f]
    %v2638 = vsel %vm1899, %v2468, 0
    %v2641 = vsel %vm1899, %v2469, 0
    %v2644 = vsel %vm1899, %v2470, 0
    %v2647 = vsel %vm1899, %v2471, 0
    %v2650 = vsel %vm1899, %v2472, 0
    %v2653 = vsel %vm1899, %v2473, 0
    %v2656 = vsel %vm1899, %v2474, 0
    %v2659 = vsel %vm1899, %v2475, 0
    %v2662 = vsel %vm1899, %v2476, 0
    %v2665 = vsel %vm1899, %v2477, 0
    %v2668 = vsel %vm1899, %v2478, 0
    %v2671 = vsel %vm1899, %v2479, 0
    %v2674 = vsel %vm1899, %v2480, 0
    %v2677 = vsel %vm1899, %v2481, 0
    %v2680 = vsel %vm1899, %v2482, 0
    %v2683 = vsel %vm1899, %v2483, 0
    %2685 = vmatpush.msra.mxu0 0.0
    %2686 = vmatpush.msra.mxu0 0.0
    %2687 = vmatpush.msra.mxu0 0.0
    %2688 = vmatpush.msra.mxu0 0.0
    %2689 = vmatpush.msra.mxu0 0.0
    %2690 = vmatpush.msra.mxu0 0.0
    %2691 = vmatpush.msra.mxu0 0.0
    %2692 = vmatpush.msra.mxu0 0.0
    %2693 = vmatpush.msra.mxu0 0.0
    %2694 = vmatpush.msra.mxu0 0.0
    %2695 = vmatpush.msra.mxu0 0.0
    %2696 = vmatpush.msra.mxu0 0.0
    %2697 = vmatpush.msra.mxu0 0.0
    %2698 = vmatpush.msra.mxu0 0.0
    %2699 = vmatpush.msra.mxu0 %v2486
    %2700 = vmatpush.msra.mxu0 %v2484
    %2701 = vmatmul.f32.gmra.mxu0 %v2638
    %v2702 = vpop.f32.mrf.mxu0
    %v2703 = vadd.f32 0.0, %v2702
    %2704 = vmatmul.f32.gmra.mxu0 %v2641
    %v2705 = vpop.f32.mrf.mxu0
    %v2706 = vadd.f32 0.0, %v2705
    %2707 = vmatmul.f32.gmra.mxu0 %v2644
    %v2708 = vpop.f32.mrf.mxu0
    %v2709 = vadd.f32 0.0, %v2708
    %2710 = vmatmul.f32.gmra.mxu0 %v2647
    %v2711 = vpop.f32.mrf.mxu0
    %v2712 = vadd.f32 0.0, %v2711
    %2713 = vmatmul.f32.gmra.mxu0 %v2650
    %v2714 = vpop.f32.mrf.mxu0
    %v2715 = vadd.f32 0.0, %v2714
    %2716 = vmatmul.f32.gmra.mxu0 %v2653
    %v2717 = vpop.f32.mrf.mxu0
    %v2718 = vadd.f32 0.0, %v2717
    %2719 = vmatmul.f32.gmra.mxu0 %v2656
    %v2720 = vpop.f32.mrf.mxu0
    %v2721 = vadd.f32 0.0, %v2720
    %2722 = vmatmul.f32.gmra.mxu0 %v2659
    %v2723 = vpop.f32.mrf.mxu0
    %v2724 = vadd.f32 0.0, %v2723
    %2725 = vmatmul.f32.gmra.mxu0 %v2662
    %v2726 = vpop.f32.mrf.mxu0
    %v2727 = vadd.f32 0.0, %v2726
    %2728 = vmatmul.f32.gmra.mxu0 %v2665
    %v2729 = vpop.f32.mrf.mxu0
    %v2730 = vadd.f32 0.0, %v2729
    %2731 = vmatmul.f32.gmra.mxu0 %v2668
    %v2732 = vpop.f32.mrf.mxu0
    %v2733 = vadd.f32 0.0, %v2732
    %2734 = vmatmul.f32.gmra.mxu0 %v2671
    %v2735 = vpop.f32.mrf.mxu0
    %v2736 = vadd.f32 0.0, %v2735
    %2737 = vmatmul.f32.gmra.mxu0 %v2674
    %v2738 = vpop.f32.mrf.mxu0
    %v2739 = vadd.f32 0.0, %v2738
    %2740 = vmatmul.f32.gmra.mxu0 %v2677
    %v2741 = vpop.f32.mrf.mxu0
    %v2742 = vadd.f32 0.0, %v2741
    %2743 = vmatmul.f32.gmra.mxu0 %v2680
    %v2744 = vpop.f32.mrf.mxu0
    %v2745 = vadd.f32 0.0, %v2744
    %2746 = vmatmul.f32.gmra.mxu0 %v2683
    %v2747 = vpop.f32.mrf.mxu0
    %v2748 = vadd.f32 0.0, %v2747
    %2749 = vdwg.mxu0
    %2750 = vmatpush.msra.mxu0 0.0
    %2751 = vmatpush.msra.mxu0 0.0
    %2752 = vmatpush.msra.mxu0 0.0
    %2753 = vmatpush.msra.mxu0 0.0
    %2754 = vmatpush.msra.mxu0 0.0
    %2755 = vmatpush.msra.mxu0 0.0
    %2756 = vmatpush.msra.mxu0 0.0
    %2757 = vmatpush.msra.mxu0 0.0
    %2758 = vmatpush.msra.mxu0 0.0
    %2759 = vmatpush.msra.mxu0 0.0
    %2760 = vmatpush.msra.mxu0 0.0
    %2761 = vmatpush.msra.mxu0 0.0
    %2762 = vmatpush.msra.mxu0 0.0
    %2763 = vmatpush.msra.mxu0 0.0
    %2764 = vmatpush.msra.mxu0 %v2487
    %2765 = vmatpush.msra.mxu0 %v2485
    %2766 = vmatmul.f32.gmra.mxu0 %v2638
    %v2767 = vpop.f32.mrf.mxu0
    %v2768 = vadd.f32 0.0, %v2767
    %2769 = vmatmul.f32.gmra.mxu0 %v2641
    %v2770 = vpop.f32.mrf.mxu0
    %v2771 = vadd.f32 0.0, %v2770
    %2772 = vmatmul.f32.gmra.mxu0 %v2644
    %v2773 = vpop.f32.mrf.mxu0
    %v2774 = vadd.f32 0.0, %v2773
    %2775 = vmatmul.f32.gmra.mxu0 %v2647
    %v2776 = vpop.f32.mrf.mxu0
    %v2777 = vadd.f32 0.0, %v2776
    %2778 = vmatmul.f32.gmra.mxu0 %v2650
    %v2779 = vpop.f32.mrf.mxu0
    %v2780 = vadd.f32 0.0, %v2779
    %2781 = vmatmul.f32.gmra.mxu0 %v2653
    %v2782 = vpop.f32.mrf.mxu0
    %v2783 = vadd.f32 0.0, %v2782
    %2784 = vmatmul.f32.gmra.mxu0 %v2656
    %v2785 = vpop.f32.mrf.mxu0
    %v2786 = vadd.f32 0.0, %v2785
    %2787 = vmatmul.f32.gmra.mxu0 %v2659
    %v2788 = vpop.f32.mrf.mxu0
    %v2789 = vadd.f32 0.0, %v2788
    %2790 = vmatmul.f32.gmra.mxu0 %v2662
    %v2791 = vpop.f32.mrf.mxu0
    %v2792 = vadd.f32 0.0, %v2791
    %2793 = vmatmul.f32.gmra.mxu0 %v2665
    %v2794 = vpop.f32.mrf.mxu0
    %v2795 = vadd.f32 0.0, %v2794
    %2796 = vmatmul.f32.gmra.mxu0 %v2668
    %v2797 = vpop.f32.mrf.mxu0
    %v2798 = vadd.f32 0.0, %v2797
    %2799 = vmatmul.f32.gmra.mxu0 %v2671
    %v2800 = vpop.f32.mrf.mxu0
    %v2801 = vadd.f32 0.0, %v2800
    %2802 = vmatmul.f32.gmra.mxu0 %v2674
    %v2803 = vpop.f32.mrf.mxu0
    %v2804 = vadd.f32 0.0, %v2803
    %2805 = vmatmul.f32.gmra.mxu0 %v2677
    %v2806 = vpop.f32.mrf.mxu0
    %v2807 = vadd.f32 0.0, %v2806
    %2808 = vmatmul.f32.gmra.mxu0 %v2680
    %v2809 = vpop.f32.mrf.mxu0
    %v2810 = vadd.f32 0.0, %v2809
    %2811 = vmatmul.f32.gmra.mxu0 %v2683
    %v2812 = vpop.f32.mrf.mxu0
    %v2813 = vadd.f32 0.0, %v2812
    %2814 = vdwg.mxu0
    %2815 = vst.msk [vmem:[#allocation5] sm:$0xff] %vm1899, %v2703
    %2816 = vst.msk [vmem:[#allocation5 + $0x8] sm:$0xff] %vm1899, %v2706
    %2817 = vst.msk [vmem:[#allocation5 + $0x10] sm:$0xff] %vm1899, %v2709
    %2818 = vst.msk [vmem:[#allocation5 + $0x18] sm:$0xff] %vm1899, %v2712
    %2819 = vst.msk [vmem:[#allocation5 + $0x20] sm:$0xff] %vm1899, %v2715
    %2820 = vst.msk [vmem:[#allocation5 + $0x28] sm:$0xff] %vm1899, %v2718
    %2821 = vst.msk [vmem:[#allocation5 + $0x30] sm:$0xff] %vm1899, %v2721
    %2822 = vst.msk [vmem:[#allocation5 + $0x38] sm:$0xff] %vm1899, %v2724
    %2823 = vst.msk [vmem:[#allocation5 + $0x40] sm:$0xff] %vm1899, %v2727
    %2824 = vst.msk [vmem:[#allocation5 + $0x48] sm:$0xff] %vm1899, %v2730
    %2825 = vst.msk [vmem:[#allocation5 + $0x50] sm:$0xff] %vm1899, %v2733
    %2826 = vst.msk [vmem:[#allocation5 + $0x58] sm:$0xff] %vm1899, %v2736
    %2827 = vst.msk [vmem:[#allocation5 + $0x60] sm:$0xff] %vm1899, %v2739
    %2828 = vst.msk [vmem:[#allocation5 + $0x68] sm:$0xff] %vm1899, %v2742
    %2829 = vst.msk [vmem:[#allocation5 + $0x70] sm:$0xff] %vm1899, %v2745
    %2830 = vst.msk [vmem:[#allocation5 + $0x78] sm:$0xff] %vm1899, %v2748
    %2847 = vrot.lane.b32.xlu0 %v2703, 112
    %v2848 = vpop.permute.xlu0 %2847
    %2849 = vrot.lane.b32.xlu0 %v2706, 112
    %v2850 = vpop.permute.xlu0 %2849
    %2851 = vrot.lane.b32.xlu0 %v2709, 112
    %v2852 = vpop.permute.xlu0 %2851
    %2853 = vrot.lane.b32.xlu0 %v2712, 112
    %v2854 = vpop.permute.xlu0 %2853
    %2855 = vrot.lane.b32.xlu0 %v2715, 112
    %v2856 = vpop.permute.xlu0 %2855
    %2857 = vrot.lane.b32.xlu0 %v2718, 112
    %v2858 = vpop.permute.xlu0 %2857
    %2859 = vrot.lane.b32.xlu0 %v2721, 112
    %v2860 = vpop.permute.xlu0 %2859
    %2861 = vrot.lane.b32.xlu0 %v2724, 112
    %v2862 = vpop.permute.xlu0 %2861
    %2863 = vrot.lane.b32.xlu0 %v2727, 112
    %v2864 = vpop.permute.xlu0 %2863
    %2865 = vrot.lane.b32.xlu0 %v2730, 112
    %v2866 = vpop.permute.xlu0 %2865
    %2867 = vrot.lane.b32.xlu0 %v2733, 112
    %v2868 = vpop.permute.xlu0 %2867
    %2869 = vrot.lane.b32.xlu0 %v2736, 112
    %v2870 = vpop.permute.xlu0 %2869
    %2871 = vrot.lane.b32.xlu0 %v2739, 112
    %v2872 = vpop.permute.xlu0 %2871
    %2873 = vrot.lane.b32.xlu0 %v2742, 112
    %v2874 = vpop.permute.xlu0 %2873
    %2875 = vrot.lane.b32.xlu0 %v2745, 112
    %v2876 = vpop.permute.xlu0 %2875
    %2877 = vrot.lane.b32.xlu0 %v2748, 112
    %v2878 = vpop.permute.xlu0 %2877
    %2895 = vst.msk [vmem:[#allocation5 + $0x80] sm:$0xff] %vm1899, %v2848
    %2896 = vst.msk [vmem:[#allocation5 + $0x88] sm:$0xff] %vm1899, %v2850
    %2897 = vst.msk [vmem:[#allocation5 + $0x90] sm:$0xff] %vm1899, %v2852
    %2898 = vst.msk [vmem:[#allocation5 + $0x98] sm:$0xff] %vm1899, %v2854
    %2899 = vst.msk [vmem:[#allocation5 + $0xa0] sm:$0xff] %vm1899, %v2856
    %2900 = vst.msk [vmem:[#allocation5 + $0xa8] sm:$0xff] %vm1899, %v2858
    %2901 = vst.msk [vmem:[#allocation5 + $0xb0] sm:$0xff] %vm1899, %v2860
    %2902 = vst.msk [vmem:[#allocation5 + $0xb8] sm:$0xff] %vm1899, %v2862
    %2903 = vst.msk [vmem:[#allocation5 + $0xc0] sm:$0xff] %vm1899, %v2864
    %2904 = vst.msk [vmem:[#allocation5 + $0xc8] sm:$0xff] %vm1899, %v2866
    %2905 = vst.msk [vmem:[#allocation5 + $0xd0] sm:$0xff] %vm1899, %v2868
    %2906 = vst.msk [vmem:[#allocation5 + $0xd8] sm:$0xff] %vm1899, %v2870
    %2907 = vst.msk [vmem:[#allocation5 + $0xe0] sm:$0xff] %vm1899, %v2872
    %2908 = vst.msk [vmem:[#allocation5 + $0xe8] sm:$0xff] %vm1899, %v2874
    %2909 = vst.msk [vmem:[#allocation5 + $0xf0] sm:$0xff] %vm1899, %v2876
    %2910 = vst.msk [vmem:[#allocation5 + $0xf8] sm:$0xff] %vm1899, %v2878
    %2911 = vrot.lane.b32.xlu0 %v2703, 96
    %v2912 = vpop.permute.xlu0 %2911
    %2913 = vrot.lane.b32.xlu0 %v2706, 96
    %v2914 = vpop.permute.xlu0 %2913
    %2915 = vrot.lane.b32.xlu0 %v2709, 96
    %v2916 = vpop.permute.xlu0 %2915
    %2917 = vrot.lane.b32.xlu0 %v2712, 96
    %v2918 = vpop.permute.xlu0 %2917
    %2919 = vrot.lane.b32.xlu0 %v2715, 96
    %v2920 = vpop.permute.xlu0 %2919
    %2921 = vrot.lane.b32.xlu0 %v2718, 96
    %v2922 = vpop.permute.xlu0 %2921
    %2923 = vrot.lane.b32.xlu0 %v2721, 96
    %v2924 = vpop.permute.xlu0 %2923
    %2925 = vrot.lane.b32.xlu0 %v2724, 96
    %v2926 = vpop.permute.xlu0 %2925
    %2927 = vrot.lane.b32.xlu0 %v2727, 96
    %v2928 = vpop.permute.xlu0 %2927
    %2929 = vrot.lane.b32.xlu0 %v2730, 96
    %v2930 = vpop.permute.xlu0 %2929
    %2931 = vrot.lane.b32.xlu0 %v2733, 96
    %v2932 = vpop.permute.xlu0 %2931
    %2933 = vrot.lane.b32.xlu0 %v2736, 96
    %v2934 = vpop.permute.xlu0 %2933
    %2935 = vrot.lane.b32.xlu0 %v2739, 96
    %v2936 = vpop.permute.xlu0 %2935
    %2937 = vrot.lane.b32.xlu0 %v2742, 96
    %v2938 = vpop.permute.xlu0 %2937
    %2939 = vrot.lane.b32.xlu0 %v2745, 96
    %v2940 = vpop.permute.xlu0 %2939
    %2941 = vrot.lane.b32.xlu0 %v2748, 96
    %v2942 = vpop.permute.xlu0 %2941
    %2959 = vst.msk [vmem:[#allocation5 + $0x100] sm:$0xff] %vm1899, %v2912
    %2960 = vst.msk [vmem:[#allocation5 + $0x108] sm:$0xff] %vm1899, %v2914
    %2961 = vst.msk [vmem:[#allocation5 + $0x110] sm:$0xff] %vm1899, %v2916
    %2962 = vst.msk [vmem:[#allocation5 + $0x118] sm:$0xff] %vm1899, %v2918
    %2963 = vst.msk [vmem:[#allocation5 + $0x120] sm:$0xff] %vm1899, %v2920
    %2964 = vst.msk [vmem:[#allocation5 + $0x128] sm:$0xff] %vm1899, %v2922
    %2965 = vst.msk [vmem:[#allocation5 + $0x130] sm:$0xff] %vm1899, %v2924
    %2966 = vst.msk [vmem:[#allocation5 + $0x138] sm:$0xff] %vm1899, %v2926
    %2967 = vst.msk [vmem:[#allocation5 + $0x140] sm:$0xff] %vm1899, %v2928
    %2968 = vst.msk [vmem:[#allocation5 + $0x148] sm:$0xff] %vm1899, %v2930
    %2969 = vst.msk [vmem:[#allocation5 + $0x150] sm:$0xff] %vm1899, %v2932
    %2970 = vst.msk [vmem:[#allocation5 + $0x158] sm:$0xff] %vm1899, %v2934
    %2971 = vst.msk [vmem:[#allocation5 + $0x160] sm:$0xff] %vm1899, %v2936
    %2972 = vst.msk [vmem:[#allocation5 + $0x168] sm:$0xff] %vm1899, %v2938
    %2973 = vst.msk [vmem:[#allocation5 + $0x170] sm:$0xff] %vm1899, %v2940
    %2974 = vst.msk [vmem:[#allocation5 + $0x178] sm:$0xff] %vm1899, %v2942
    %2975 = vrot.lane.b32.xlu0 %v2703, 80
    %v2976 = vpop.permute.xlu0 %2975
    %2977 = vrot.lane.b32.xlu0 %v2706, 80
    %v2978 = vpop.permute.xlu0 %2977
    %2979 = vrot.lane.b32.xlu0 %v2709, 80
    %v2980 = vpop.permute.xlu0 %2979
    %2981 = vrot.lane.b32.xlu0 %v2712, 80
    %v2982 = vpop.permute.xlu0 %2981
    %2983 = vrot.lane.b32.xlu0 %v2715, 80
    %v2984 = vpop.permute.xlu0 %2983
    %2985 = vrot.lane.b32.xlu0 %v2718, 80
    %v2986 = vpop.permute.xlu0 %2985
    %2987 = vrot.lane.b32.xlu0 %v2721, 80
    %v2988 = vpop.permute.xlu0 %2987
    %2989 = vrot.lane.b32.xlu0 %v2724, 80
    %v2990 = vpop.permute.xlu0 %2989
    %2991 = vrot.lane.b32.xlu0 %v2727, 80
    %v2992 = vpop.permute.xlu0 %2991
    %2993 = vrot.lane.b32.xlu0 %v2730, 80
    %v2994 = vpop.permute.xlu0 %2993
    %2995 = vrot.lane.b32.xlu0 %v2733, 80
    %v2996 = vpop.permute.xlu0 %2995
    %2997 = vrot.lane.b32.xlu0 %v2736, 80
    %v2998 = vpop.permute.xlu0 %2997
    %2999 = vrot.lane.b32.xlu0 %v2739, 80
    %v3000 = vpop.permute.xlu0 %2999
    %3001 = vrot.lane.b32.xlu0 %v2742, 80
    %v3002 = vpop.permute.xlu0 %3001
    %3003 = vrot.lane.b32.xlu0 %v2745, 80
    %v3004 = vpop.permute.xlu0 %3003
    %3005 = vrot.lane.b32.xlu0 %v2748, 80
    %v3006 = vpop.permute.xlu0 %3005
    %3023 = vst.msk [vmem:[#allocation5 + $0x180] sm:$0xff] %vm1899, %v2976
    %3024 = vst.msk [vmem:[#allocation5 + $0x188] sm:$0xff] %vm1899, %v2978
    %3025 = vst.msk [vmem:[#allocation5 + $0x190] sm:$0xff] %vm1899, %v2980
    %3026 = vst.msk [vmem:[#allocation5 + $0x198] sm:$0xff] %vm1899, %v2982
    %3027 = vst.msk [vmem:[#allocation5 + $0x1a0] sm:$0xff] %vm1899, %v2984
    %3028 = vst.msk [vmem:[#allocation5 + $0x1a8] sm:$0xff] %vm1899, %v2986
    %3029 = vst.msk [vmem:[#allocation5 + $0x1b0] sm:$0xff] %vm1899, %v2988
    %3030 = vst.msk [vmem:[#allocation5 + $0x1b8] sm:$0xff] %vm1899, %v2990
    %3031 = vst.msk [vmem:[#allocation5 + $0x1c0] sm:$0xff] %vm1899, %v2992
    %3032 = vst.msk [vmem:[#allocation5 + $0x1c8] sm:$0xff] %vm1899, %v2994
    %3033 = vst.msk [vmem:[#allocation5 + $0x1d0] sm:$0xff] %vm1899, %v2996
    %3034 = vst.msk [vmem:[#allocation5 + $0x1d8] sm:$0xff] %vm1899, %v2998
    %3035 = vst.msk [vmem:[#allocation5 + $0x1e0] sm:$0xff] %vm1899, %v3000
    %3036 = vst.msk [vmem:[#allocation5 + $0x1e8] sm:$0xff] %vm1899, %v3002
    %3037 = vst.msk [vmem:[#allocation5 + $0x1f0] sm:$0xff] %vm1899, %v3004
    %3038 = vst.msk [vmem:[#allocation5 + $0x1f8] sm:$0xff] %vm1899, %v3006
    %3039 = vrot.lane.b32.xlu0 %v2703, 64
    %v3040 = vpop.permute.xlu0 %3039
    %3041 = vrot.lane.b32.xlu0 %v2706, 64
    %v3042 = vpop.permute.xlu0 %3041
    %3043 = vrot.lane.b32.xlu0 %v2709, 64
    %v3044 = vpop.permute.xlu0 %3043
    %3045 = vrot.lane.b32.xlu0 %v2712, 64
    %v3046 = vpop.permute.xlu0 %3045
    %3047 = vrot.lane.b32.xlu0 %v2715, 64
    %v3048 = vpop.permute.xlu0 %3047
    %3049 = vrot.lane.b32.xlu0 %v2718, 64
    %v3050 = vpop.permute.xlu0 %3049
    %3051 = vrot.lane.b32.xlu0 %v2721, 64
    %v3052 = vpop.permute.xlu0 %3051
    %3053 = vrot.lane.b32.xlu0 %v2724, 64
    %v3054 = vpop.permute.xlu0 %3053
    %3055 = vrot.lane.b32.xlu0 %v2727, 64
    %v3056 = vpop.permute.xlu0 %3055
    %3057 = vrot.lane.b32.xlu0 %v2730, 64
    %v3058 = vpop.permute.xlu0 %3057
    %3059 = vrot.lane.b32.xlu0 %v2733, 64
    %v3060 = vpop.permute.xlu0 %3059
    %3061 = vrot.lane.b32.xlu0 %v2736, 64
    %v3062 = vpop.permute.xlu0 %3061
    %3063 = vrot.lane.b32.xlu0 %v2739, 64
    %v3064 = vpop.permute.xlu0 %3063
    %3065 = vrot.lane.b32.xlu0 %v2742, 64
    %v3066 = vpop.permute.xlu0 %3065
    %3067 = vrot.lane.b32.xlu0 %v2745, 64
    %v3068 = vpop.permute.xlu0 %3067
    %3069 = vrot.lane.b32.xlu0 %v2748, 64
    %v3070 = vpop.permute.xlu0 %3069
    %3087 = vst.msk [vmem:[#allocation5 + $0x200] sm:$0xff] %vm1899, %v3040
    %3088 = vst.msk [vmem:[#allocation5 + $0x208] sm:$0xff] %vm1899, %v3042
    %3089 = vst.msk [vmem:[#allocation5 + $0x210] sm:$0xff] %vm1899, %v3044
    %3090 = vst.msk [vmem:[#allocation5 + $0x218] sm:$0xff] %vm1899, %v3046
    %3091 = vst.msk [vmem:[#allocation5 + $0x220] sm:$0xff] %vm1899, %v3048
    %3092 = vst.msk [vmem:[#allocation5 + $0x228] sm:$0xff] %vm1899, %v3050
    %3093 = vst.msk [vmem:[#allocation5 + $0x230] sm:$0xff] %vm1899, %v3052
    %3094 = vst.msk [vmem:[#allocation5 + $0x238] sm:$0xff] %vm1899, %v3054
    %3095 = vst.msk [vmem:[#allocation5 + $0x240] sm:$0xff] %vm1899, %v3056
    %3096 = vst.msk [vmem:[#allocation5 + $0x248] sm:$0xff] %vm1899, %v3058
    %3097 = vst.msk [vmem:[#allocation5 + $0x250] sm:$0xff] %vm1899, %v3060
    %3098 = vst.msk [vmem:[#allocation5 + $0x258] sm:$0xff] %vm1899, %v3062
    %3099 = vst.msk [vmem:[#allocation5 + $0x260] sm:$0xff] %vm1899, %v3064
    %3100 = vst.msk [vmem:[#allocation5 + $0x268] sm:$0xff] %vm1899, %v3066
    %3101 = vst.msk [vmem:[#allocation5 + $0x270] sm:$0xff] %vm1899, %v3068
    %3102 = vst.msk [vmem:[#allocation5 + $0x278] sm:$0xff] %vm1899, %v3070
    %3103 = vrot.lane.b32.xlu0 %v2703, 48
    %v3104 = vpop.permute.xlu0 %3103
    %3105 = vrot.lane.b32.xlu0 %v2706, 48
    %v3106 = vpop.permute.xlu0 %3105
    %3107 = vrot.lane.b32.xlu0 %v2709, 48
    %v3108 = vpop.permute.xlu0 %3107
    %3109 = vrot.lane.b32.xlu0 %v2712, 48
    %v3110 = vpop.permute.xlu0 %3109
    %3111 = vrot.lane.b32.xlu0 %v2715, 48
    %v3112 = vpop.permute.xlu0 %3111
    %3113 = vrot.lane.b32.xlu0 %v2718, 48
    %v3114 = vpop.permute.xlu0 %3113
    %3115 = vrot.lane.b32.xlu0 %v2721, 48
    %v3116 = vpop.permute.xlu0 %3115
    %3117 = vrot.lane.b32.xlu0 %v2724, 48
    %v3118 = vpop.permute.xlu0 %3117
    %3119 = vrot.lane.b32.xlu0 %v2727, 48
    %v3120 = vpop.permute.xlu0 %3119
    %3121 = vrot.lane.b32.xlu0 %v2730, 48
    %v3122 = vpop.permute.xlu0 %3121
    %3123 = vrot.lane.b32.xlu0 %v2733, 48
    %v3124 = vpop.permute.xlu0 %3123
    %3125 = vrot.lane.b32.xlu0 %v2736, 48
    %v3126 = vpop.permute.xlu0 %3125
    %3127 = vrot.lane.b32.xlu0 %v2739, 48
    %v3128 = vpop.permute.xlu0 %3127
    %3129 = vrot.lane.b32.xlu0 %v2742, 48
    %v3130 = vpop.permute.xlu0 %3129
    %3131 = vrot.lane.b32.xlu0 %v2745, 48
    %v3132 = vpop.permute.xlu0 %3131
    %3133 = vrot.lane.b32.xlu0 %v2748, 48
    %v3134 = vpop.permute.xlu0 %3133
    %3151 = vst.msk [vmem:[#allocation5 + $0x280] sm:$0xff] %vm1899, %v3104
    %3152 = vst.msk [vmem:[#allocation5 + $0x288] sm:$0xff] %vm1899, %v3106
    %3153 = vst.msk [vmem:[#allocation5 + $0x290] sm:$0xff] %vm1899, %v3108
    %3154 = vst.msk [vmem:[#allocation5 + $0x298] sm:$0xff] %vm1899, %v3110
    %3155 = vst.msk [vmem:[#allocation5 + $0x2a0] sm:$0xff] %vm1899, %v3112
    %3156 = vst.msk [vmem:[#allocation5 + $0x2a8] sm:$0xff] %vm1899, %v3114
    %3157 = vst.msk [vmem:[#allocation5 + $0x2b0] sm:$0xff] %vm1899, %v3116
    %3158 = vst.msk [vmem:[#allocation5 + $0x2b8] sm:$0xff] %vm1899, %v3118
    %3159 = vst.msk [vmem:[#allocation5 + $0x2c0] sm:$0xff] %vm1899, %v3120
    %3160 = vst.msk [vmem:[#allocation5 + $0x2c8] sm:$0xff] %vm1899, %v3122
    %3161 = vst.msk [vmem:[#allocation5 + $0x2d0] sm:$0xff] %vm1899, %v3124
    %3162 = vst.msk [vmem:[#allocation5 + $0x2d8] sm:$0xff] %vm1899, %v3126
    %3163 = vst.msk [vmem:[#allocation5 + $0x2e0] sm:$0xff] %vm1899, %v3128
    %3164 = vst.msk [vmem:[#allocation5 + $0x2e8] sm:$0xff] %vm1899, %v3130
    %3165 = vst.msk [vmem:[#allocation5 + $0x2f0] sm:$0xff] %vm1899, %v3132
    %3166 = vst.msk [vmem:[#allocation5 + $0x2f8] sm:$0xff] %vm1899, %v3134
    %3167 = vrot.lane.b32.xlu0 %v2703, 32
    %v3168 = vpop.permute.xlu0 %3167
    %3169 = vrot.lane.b32.xlu0 %v2706, 32
    %v3170 = vpop.permute.xlu0 %3169
    %3171 = vrot.lane.b32.xlu0 %v2709, 32
    %v3172 = vpop.permute.xlu0 %3171
    %3173 = vrot.lane.b32.xlu0 %v2712, 32
    %v3174 = vpop.permute.xlu0 %3173
    %3175 = vrot.lane.b32.xlu0 %v2715, 32
    %v3176 = vpop.permute.xlu0 %3175
    %3177 = vrot.lane.b32.xlu0 %v2718, 32
    %v3178 = vpop.permute.xlu0 %3177
    %3179 = vrot.lane.b32.xlu0 %v2721, 32
    %v3180 = vpop.permute.xlu0 %3179
    %3181 = vrot.lane.b32.xlu0 %v2724, 32
    %v3182 = vpop.permute.xlu0 %3181
    %3183 = vrot.lane.b32.xlu0 %v2727, 32
    %v3184 = vpop.permute.xlu0 %3183
    %3185 = vrot.lane.b32.xlu0 %v2730, 32
    %v3186 = vpop.permute.xlu0 %3185
    %3187 = vrot.lane.b32.xlu0 %v2733, 32
    %v3188 = vpop.permute.xlu0 %3187
    %3189 = vrot.lane.b32.xlu0 %v2736, 32
    %v3190 = vpop.permute.xlu0 %3189
    %3191 = vrot.lane.b32.xlu0 %v2739, 32
    %v3192 = vpop.permute.xlu0 %3191
    %3193 = vrot.lane.b32.xlu0 %v2742, 32
    %v3194 = vpop.permute.xlu0 %3193
    %3195 = vrot.lane.b32.xlu0 %v2745, 32
    %v3196 = vpop.permute.xlu0 %3195
    %3197 = vrot.lane.b32.xlu0 %v2748, 32
    %v3198 = vpop.permute.xlu0 %3197
    %3215 = vst.msk [vmem:[#allocation5 + $0x300] sm:$0xff] %vm1899, %v3168
    %3216 = vst.msk [vmem:[#allocation5 + $0x308] sm:$0xff] %vm1899, %v3170
    %3217 = vst.msk [vmem:[#allocation5 + $0x310] sm:$0xff] %vm1899, %v3172
    %3218 = vst.msk [vmem:[#allocation5 + $0x318] sm:$0xff] %vm1899, %v3174
    %3219 = vst.msk [vmem:[#allocation5 + $0x320] sm:$0xff] %vm1899, %v3176
    %3220 = vst.msk [vmem:[#allocation5 + $0x328] sm:$0xff] %vm1899, %v3178
    %3221 = vst.msk [vmem:[#allocation5 + $0x330] sm:$0xff] %vm1899, %v3180
    %3222 = vst.msk [vmem:[#allocation5 + $0x338] sm:$0xff] %vm1899, %v3182
    %3223 = vst.msk [vmem:[#allocation5 + $0x340] sm:$0xff] %vm1899, %v3184
    %3224 = vst.msk [vmem:[#allocation5 + $0x348] sm:$0xff] %vm1899, %v3186
    %3225 = vst.msk [vmem:[#allocation5 + $0x350] sm:$0xff] %vm1899, %v3188
    %3226 = vst.msk [vmem:[#allocation5 + $0x358] sm:$0xff] %vm1899, %v3190
    %3227 = vst.msk [vmem:[#allocation5 + $0x360] sm:$0xff] %vm1899, %v3192
    %3228 = vst.msk [vmem:[#allocation5 + $0x368] sm:$0xff] %vm1899, %v3194
    %3229 = vst.msk [vmem:[#allocation5 + $0x370] sm:$0xff] %vm1899, %v3196
    %3230 = vst.msk [vmem:[#allocation5 + $0x378] sm:$0xff] %vm1899, %v3198
    %3231 = vrot.lane.b32.xlu0 %v2703, 16
    %v3232 = vpop.permute.xlu0 %3231
    %3233 = vrot.lane.b32.xlu0 %v2706, 16
    %v3234 = vpop.permute.xlu0 %3233
    %3235 = vrot.lane.b32.xlu0 %v2709, 16
    %v3236 = vpop.permute.xlu0 %3235
    %3237 = vrot.lane.b32.xlu0 %v2712, 16
    %v3238 = vpop.permute.xlu0 %3237
    %3239 = vrot.lane.b32.xlu0 %v2715, 16
    %v3240 = vpop.permute.xlu0 %3239
    %3241 = vrot.lane.b32.xlu0 %v2718, 16
    %v3242 = vpop.permute.xlu0 %3241
    %3243 = vrot.lane.b32.xlu0 %v2721, 16
    %v3244 = vpop.permute.xlu0 %3243
    %3245 = vrot.lane.b32.xlu0 %v2724, 16
    %v3246 = vpop.permute.xlu0 %3245
    %3247 = vrot.lane.b32.xlu0 %v2727, 16
    %v3248 = vpop.permute.xlu0 %3247
    %3249 = vrot.lane.b32.xlu0 %v2730, 16
    %v3250 = vpop.permute.xlu0 %3249
    %3251 = vrot.lane.b32.xlu0 %v2733, 16
    %v3252 = vpop.permute.xlu0 %3251
    %3253 = vrot.lane.b32.xlu0 %v2736, 16
    %v3254 = vpop.permute.xlu0 %3253
    %3255 = vrot.lane.b32.xlu0 %v2739, 16
    %v3256 = vpop.permute.xlu0 %3255
    %3257 = vrot.lane.b32.xlu0 %v2742, 16
    %v3258 = vpop.permute.xlu0 %3257
    %3259 = vrot.lane.b32.xlu0 %v2745, 16
    %v3260 = vpop.permute.xlu0 %3259
    %3261 = vrot.lane.b32.xlu0 %v2748, 16
    %v3262 = vpop.permute.xlu0 %3261
    %3279 = vst.msk [vmem:[#allocation5 + $0x380] sm:$0xff] %vm1899, %v3232
    %3280 = vst.msk [vmem:[#allocation5 + $0x388] sm:$0xff] %vm1899, %v3234
    %3281 = vst.msk [vmem:[#allocation5 + $0x390] sm:$0xff] %vm1899, %v3236
    %3282 = vst.msk [vmem:[#allocation5 + $0x398] sm:$0xff] %vm1899, %v3238
    %3283 = vst.msk [vmem:[#allocation5 + $0x3a0] sm:$0xff] %vm1899, %v3240
    %3284 = vst.msk [vmem:[#allocation5 + $0x3a8] sm:$0xff] %vm1899, %v3242
    %3285 = vst.msk [vmem:[#allocation5 + $0x3b0] sm:$0xff] %vm1899, %v3244
    %3286 = vst.msk [vmem:[#allocation5 + $0x3b8] sm:$0xff] %vm1899, %v3246
    %3287 = vst.msk [vmem:[#allocation5 + $0x3c0] sm:$0xff] %vm1899, %v3248
    %3288 = vst.msk [vmem:[#allocation5 + $0x3c8] sm:$0xff] %vm1899, %v3250
    %3289 = vst.msk [vmem:[#allocation5 + $0x3d0] sm:$0xff] %vm1899, %v3252
    %3290 = vst.msk [vmem:[#allocation5 + $0x3d8] sm:$0xff] %vm1899, %v3254
    %3291 = vst.msk [vmem:[#allocation5 + $0x3e0] sm:$0xff] %vm1899, %v3256
    %3292 = vst.msk [vmem:[#allocation5 + $0x3e8] sm:$0xff] %vm1899, %v3258
    %3293 = vst.msk [vmem:[#allocation5 + $0x3f0] sm:$0xff] %vm1899, %v3260
    %3294 = vst.msk [vmem:[#allocation5 + $0x3f8] sm:$0xff] %vm1899, %v3262
    %3295 = vst.msk [vmem:[#allocation5 + $0x400] sm:$0xff] %vm1899, %v2768
    %3296 = vst.msk [vmem:[#allocation5 + $0x408] sm:$0xff] %vm1899, %v2771
    %3297 = vst.msk [vmem:[#allocation5 + $0x410] sm:$0xff] %vm1899, %v2774
    %3298 = vst.msk [vmem:[#allocation5 + $0x418] sm:$0xff] %vm1899, %v2777
    %3299 = vst.msk [vmem:[#allocation5 + $0x420] sm:$0xff] %vm1899, %v2780
    %3300 = vst.msk [vmem:[#allocation5 + $0x428] sm:$0xff] %vm1899, %v2783
    %3301 = vst.msk [vmem:[#allocation5 + $0x430] sm:$0xff] %vm1899, %v2786
    %3302 = vst.msk [vmem:[#allocation5 + $0x438] sm:$0xff] %vm1899, %v2789
    %3303 = vst.msk [vmem:[#allocation5 + $0x440] sm:$0xff] %vm1899, %v2792
    %3304 = vst.msk [vmem:[#allocation5 + $0x448] sm:$0xff] %vm1899, %v2795
    %3305 = vst.msk [vmem:[#allocation5 + $0x450] sm:$0xff] %vm1899, %v2798
    %3306 = vst.msk [vmem:[#allocation5 + $0x458] sm:$0xff] %vm1899, %v2801
    %3307 = vst.msk [vmem:[#allocation5 + $0x460] sm:$0xff] %vm1899, %v2804
    %3308 = vst.msk [vmem:[#allocation5 + $0x468] sm:$0xff] %vm1899, %v2807
    %3309 = vst.msk [vmem:[#allocation5 + $0x470] sm:$0xff] %vm1899, %v2810
    %3310 = vst.msk [vmem:[#allocation5 + $0x478] sm:$0xff] %vm1899, %v2813
    %v3311 = vld [vmem:[#allocation5] sm:$0xff]
    %v3312 = vld [vmem:[#allocation5 + $0x8] sm:$0xff]
    %v3313 = vld [vmem:[#allocation5 + $0x10] sm:$0xff]
    %v3314 = vld [vmem:[#allocation5 + $0x18] sm:$0xff]
    %v3315 = vld [vmem:[#allocation5 + $0x20] sm:$0xff]
    %v3316 = vld [vmem:[#allocation5 + $0x28] sm:$0xff]
    %v3317 = vld [vmem:[#allocation5 + $0x30] sm:$0xff]
    %v3318 = vld [vmem:[#allocation5 + $0x38] sm:$0xff]
    %v3319 = vld [vmem:[#allocation5 + $0x40] sm:$0xff]
    %v3320 = vld [vmem:[#allocation5 + $0x48] sm:$0xff]
    %v3321 = vld [vmem:[#allocation5 + $0x50] sm:$0xff]
    %v3322 = vld [vmem:[#allocation5 + $0x58] sm:$0xff]
    %v3323 = vld [vmem:[#allocation5 + $0x60] sm:$0xff]
    %v3324 = vld [vmem:[#allocation5 + $0x68] sm:$0xff]
    %v3325 = vld [vmem:[#allocation5 + $0x70] sm:$0xff]
    %v3326 = vld [vmem:[#allocation5 + $0x78] sm:$0xff]
    %v3327 = vld [vmem:[#allocation5 + $0x80] sm:$0xff]
    %v3328 = vld [vmem:[#allocation5 + $0x88] sm:$0xff]
    %v3329 = vld [vmem:[#allocation5 + $0x90] sm:$0xff]
    %v3330 = vld [vmem:[#allocation5 + $0x98] sm:$0xff]
    %v3331 = vld [vmem:[#allocation5 + $0xa0] sm:$0xff]
    %v3332 = vld [vmem:[#allocation5 + $0xa8] sm:$0xff]
    %v3333 = vld [vmem:[#allocation5 + $0xb0] sm:$0xff]
    %v3334 = vld [vmem:[#allocation5 + $0xb8] sm:$0xff]
    %v3335 = vld [vmem:[#allocation5 + $0xc0] sm:$0xff]
    %v3336 = vld [vmem:[#allocation5 + $0xc8] sm:$0xff]
    %v3337 = vld [vmem:[#allocation5 + $0xd0] sm:$0xff]
    %v3338 = vld [vmem:[#allocation5 + $0xd8] sm:$0xff]
    %v3339 = vld [vmem:[#allocation5 + $0xe0] sm:$0xff]
    %v3340 = vld [vmem:[#allocation5 + $0xe8] sm:$0xff]
    %v3341 = vld [vmem:[#allocation5 + $0xf0] sm:$0xff]
    %v3342 = vld [vmem:[#allocation5 + $0xf8] sm:$0xff]
    %v3343 = vld [vmem:[#allocation5 + $0x100] sm:$0xff]
    %v3344 = vld [vmem:[#allocation5 + $0x108] sm:$0xff]
    %v3345 = vld [vmem:[#allocation5 + $0x110] sm:$0xff]
    %v3346 = vld [vmem:[#allocation5 + $0x118] sm:$0xff]
    %v3347 = vld [vmem:[#allocation5 + $0x120] sm:$0xff]
    %v3348 = vld [vmem:[#allocation5 + $0x128] sm:$0xff]
    %v3349 = vld [vmem:[#allocation5 + $0x130] sm:$0xff]
    %v3350 = vld [vmem:[#allocation5 + $0x138] sm:$0xff]
    %v3351 = vld [vmem:[#allocation5 + $0x140] sm:$0xff]
    %v3352 = vld [vmem:[#allocation5 + $0x148] sm:$0xff]
    %v3353 = vld [vmem:[#allocation5 + $0x150] sm:$0xff]
    %v3354 = vld [vmem:[#allocation5 + $0x158] sm:$0xff]
    %v3355 = vld [vmem:[#allocation5 + $0x160] sm:$0xff]
    %v3356 = vld [vmem:[#allocation5 + $0x168] sm:$0xff]
    %v3357 = vld [vmem:[#allocation5 + $0x170] sm:$0xff]
    %v3358 = vld [vmem:[#allocation5 + $0x178] sm:$0xff]
    %v3359 = vld [vmem:[#allocation5 + $0x180] sm:$0xff]
    %v3360 = vld [vmem:[#allocation5 + $0x188] sm:$0xff]
    %v3361 = vld [vmem:[#allocation5 + $0x190] sm:$0xff]
    %v3362 = vld [vmem:[#allocation5 + $0x198] sm:$0xff]
    %v3363 = vld [vmem:[#allocation5 + $0x1a0] sm:$0xff]
    %v3364 = vld [vmem:[#allocation5 + $0x1a8] sm:$0xff]
    %v3365 = vld [vmem:[#allocation5 + $0x1b0] sm:$0xff]
    %v3366 = vld [vmem:[#allocation5 + $0x1b8] sm:$0xff]
    %v3367 = vld [vmem:[#allocation5 + $0x1c0] sm:$0xff]
    %v3368 = vld [vmem:[#allocation5 + $0x1c8] sm:$0xff]
    %v3369 = vld [vmem:[#allocation5 + $0x1d0] sm:$0xff]
    %v3370 = vld [vmem:[#allocation5 + $0x1d8] sm:$0xff]
    %v3371 = vld [vmem:[#allocation5 + $0x1e0] sm:$0xff]
    %v3372 = vld [vmem:[#allocation5 + $0x1e8] sm:$0xff]
    %v3373 = vld [vmem:[#allocation5 + $0x1f0] sm:$0xff]
    %v3374 = vld [vmem:[#allocation5 + $0x1f8] sm:$0xff]
    %v3375 = vld [vmem:[#allocation5 + $0x200] sm:$0xff]
    %v3376 = vld [vmem:[#allocation5 + $0x208] sm:$0xff]
    %v3377 = vld [vmem:[#allocation5 + $0x210] sm:$0xff]
    %v3378 = vld [vmem:[#allocation5 + $0x218] sm:$0xff]
    %v3379 = vld [vmem:[#allocation5 + $0x220] sm:$0xff]
    %v3380 = vld [vmem:[#allocation5 + $0x228] sm:$0xff]
    %v3381 = vld [vmem:[#allocation5 + $0x230] sm:$0xff]
    %v3382 = vld [vmem:[#allocation5 + $0x238] sm:$0xff]
    %v3383 = vld [vmem:[#allocation5 + $0x240] sm:$0xff]
    %v3384 = vld [vmem:[#allocation5 + $0x248] sm:$0xff]
    %v3385 = vld [vmem:[#allocation5 + $0x250] sm:$0xff]
    %v3386 = vld [vmem:[#allocation5 + $0x258] sm:$0xff]
    %v3387 = vld [vmem:[#allocation5 + $0x260] sm:$0xff]
    %v3388 = vld [vmem:[#allocation5 + $0x268] sm:$0xff]
    %v3389 = vld [vmem:[#allocation5 + $0x270] sm:$0xff]
    %v3390 = vld [vmem:[#allocation5 + $0x278] sm:$0xff]
    %v3391 = vld [vmem:[#allocation5 + $0x280] sm:$0xff]
    %v3392 = vld [vmem:[#allocation5 + $0x288] sm:$0xff]
    %v3393 = vld [vmem:[#allocation5 + $0x290] sm:$0xff]
    %v3394 = vld [vmem:[#allocation5 + $0x298] sm:$0xff]
    %v3395 = vld [vmem:[#allocation5 + $0x2a0] sm:$0xff]
    %v3396 = vld [vmem:[#allocation5 + $0x2a8] sm:$0xff]
    %v3397 = vld [vmem:[#allocation5 + $0x2b0] sm:$0xff]
    %v3398 = vld [vmem:[#allocation5 + $0x2b8] sm:$0xff]
    %v3399 = vld [vmem:[#allocation5 + $0x2c0] sm:$0xff]
    %v3400 = vld [vmem:[#allocation5 + $0x2c8] sm:$0xff]
    %v3401 = vld [vmem:[#allocation5 + $0x2d0] sm:$0xff]
    %v3402 = vld [vmem:[#allocation5 + $0x2d8] sm:$0xff]
    %v3403 = vld [vmem:[#allocation5 + $0x2e0] sm:$0xff]
    %v3404 = vld [vmem:[#allocation5 + $0x2e8] sm:$0xff]
    %v3405 = vld [vmem:[#allocation5 + $0x2f0] sm:$0xff]
    %v3406 = vld [vmem:[#allocation5 + $0x2f8] sm:$0xff]
    %v3407 = vld [vmem:[#allocation5 + $0x300] sm:$0xff]
    %v3408 = vld [vmem:[#allocation5 + $0x308] sm:$0xff]
    %v3409 = vld [vmem:[#allocation5 + $0x310] sm:$0xff]
    %v3410 = vld [vmem:[#allocation5 + $0x318] sm:$0xff]
    %v3411 = vld [vmem:[#allocation5 + $0x320] sm:$0xff]
    %v3412 = vld [vmem:[#allocation5 + $0x328] sm:$0xff]
    %v3413 = vld [vmem:[#allocation5 + $0x330] sm:$0xff]
    %v3414 = vld [vmem:[#allocation5 + $0x338] sm:$0xff]
    %v3415 = vld [vmem:[#allocation5 + $0x340] sm:$0xff]
    %v3416 = vld [vmem:[#allocation5 + $0x348] sm:$0xff]
    %v3417 = vld [vmem:[#allocation5 + $0x350] sm:$0xff]
    %v3418 = vld [vmem:[#allocation5 + $0x358] sm:$0xff]
    %v3419 = vld [vmem:[#allocation5 + $0x360] sm:$0xff]
    %v3420 = vld [vmem:[#allocation5 + $0x368] sm:$0xff]
    %v3421 = vld [vmem:[#allocation5 + $0x370] sm:$0xff]
    %v3422 = vld [vmem:[#allocation5 + $0x378] sm:$0xff]
    %v3423 = vld [vmem:[#allocation5 + $0x380] sm:$0xff]
    %v3424 = vld [vmem:[#allocation5 + $0x388] sm:$0xff]
    %v3425 = vld [vmem:[#allocation5 + $0x390] sm:$0xff]
    %v3426 = vld [vmem:[#allocation5 + $0x398] sm:$0xff]
    %v3427 = vld [vmem:[#allocation5 + $0x3a0] sm:$0xff]
    %v3428 = vld [vmem:[#allocation5 + $0x3a8] sm:$0xff]
    %v3429 = vld [vmem:[#allocation5 + $0x3b0] sm:$0xff]
    %v3430 = vld [vmem:[#allocation5 + $0x3b8] sm:$0xff]
    %v3431 = vld [vmem:[#allocation5 + $0x3c0] sm:$0xff]
    %v3432 = vld [vmem:[#allocation5 + $0x3c8] sm:$0xff]
    %v3433 = vld [vmem:[#allocation5 + $0x3d0] sm:$0xff]
    %v3434 = vld [vmem:[#allocation5 + $0x3d8] sm:$0xff]
    %v3435 = vld [vmem:[#allocation5 + $0x3e0] sm:$0xff]
    %v3436 = vld [vmem:[#allocation5 + $0x3e8] sm:$0xff]
    %v3437 = vld [vmem:[#allocation5 + $0x3f0] sm:$0xff]
    %v3438 = vld [vmem:[#allocation5 + $0x3f8] sm:$0xff]
    %v3439 = vld [vmem:[#allocation5 + $0x400] sm:$0xff]
    %v3440 = vld [vmem:[#allocation5 + $0x408] sm:$0xff]
    %v3441 = vld [vmem:[#allocation5 + $0x410] sm:$0xff]
    %v3442 = vld [vmem:[#allocation5 + $0x418] sm:$0xff]
    %v3443 = vld [vmem:[#allocation5 + $0x420] sm:$0xff]
    %v3444 = vld [vmem:[#allocation5 + $0x428] sm:$0xff]
    %v3445 = vld [vmem:[#allocation5 + $0x430] sm:$0xff]
    %v3446 = vld [vmem:[#allocation5 + $0x438] sm:$0xff]
    %v3447 = vld [vmem:[#allocation5 + $0x440] sm:$0xff]
    %v3448 = vld [vmem:[#allocation5 + $0x448] sm:$0xff]
    %v3449 = vld [vmem:[#allocation5 + $0x450] sm:$0xff]
    %v3450 = vld [vmem:[#allocation5 + $0x458] sm:$0xff]
    %v3451 = vld [vmem:[#allocation5 + $0x460] sm:$0xff]
    %v3452 = vld [vmem:[#allocation5 + $0x468] sm:$0xff]
    %v3453 = vld [vmem:[#allocation5 + $0x470] sm:$0xff]
    %v3454 = vld [vmem:[#allocation5 + $0x478] sm:$0xff]
    %v3455 = vperm.slane %v2636, 0
    %3456 = vmatpush.msra.mxu0 %v3326
    %3457 = vmatpush.msra.mxu0 %v3325
    %3458 = vmatpush.msra.mxu0 %v3324
    %3459 = vmatpush.msra.mxu0 %v3323
    %3460 = vmatpush.msra.mxu0 %v3322
    %3461 = vmatpush.msra.mxu0 %v3321
    %3462 = vmatpush.msra.mxu0 %v3320
    %3463 = vmatpush.msra.mxu0 %v3319
    %3464 = vmatpush.msra.mxu0 %v3318
    %3465 = vmatpush.msra.mxu0 %v3317
    %3466 = vmatpush.msra.mxu0 %v3316
    %3467 = vmatpush.msra.mxu0 %v3315
    %3468 = vmatpush.msra.mxu0 %v3314
    %3469 = vmatpush.msra.mxu0 %v3313
    %3470 = vmatpush.msra.mxu0 %v3312
    %3471 = vmatpush.msra.mxu0 %v3311
    %3472 = vmatmul.f32.gmra.mxu0 %v2492
    %v3473 = vpop.f32.mrf.mxu0
    %v3474 = vadd.f32 %v3455, %v3473
    %3475 = vmatmul.f32.gmra.mxu0 %v2501
    %v3476 = vpop.f32.mrf.mxu0
    %v3477 = vadd.f32 %v3455, %v3476
    %3478 = vmatmul.f32.gmra.mxu0 %v2510
    %v3479 = vpop.f32.mrf.mxu0
    %v3480 = vadd.f32 %v3455, %v3479
    %3481 = vmatmul.f32.gmra.mxu0 %v2519
    %v3482 = vpop.f32.mrf.mxu0
    %v3483 = vadd.f32 %v3455, %v3482
    %3484 = vmatmul.f32.gmra.mxu0 %v2528
    %v3485 = vpop.f32.mrf.mxu0
    %v3486 = vadd.f32 %v3455, %v3485
    %3487 = vmatmul.f32.gmra.mxu0 %v2537
    %v3488 = vpop.f32.mrf.mxu0
    %v3489 = vadd.f32 %v3455, %v3488
    %3490 = vmatmul.f32.gmra.mxu0 %v2546
    %v3491 = vpop.f32.mrf.mxu0
    %v3492 = vadd.f32 %v3455, %v3491
    %3493 = vmatmul.f32.gmra.mxu0 %v2555
    %v3494 = vpop.f32.mrf.mxu0
    %v3495 = vadd.f32 %v3455, %v3494
    %3496 = vmatmul.f32.gmra.mxu0 %v2564
    %v3497 = vpop.f32.mrf.mxu0
    %v3498 = vadd.f32 %v3455, %v3497
    %3499 = vmatmul.f32.gmra.mxu0 %v2573
    %v3500 = vpop.f32.mrf.mxu0
    %v3501 = vadd.f32 %v3455, %v3500
    %3502 = vmatmul.f32.gmra.mxu0 %v2582
    %v3503 = vpop.f32.mrf.mxu0
    %v3504 = vadd.f32 %v3455, %v3503
    %3505 = vmatmul.f32.gmra.mxu0 %v2591
    %v3506 = vpop.f32.mrf.mxu0
    %v3507 = vadd.f32 %v3455, %v3506
    %3508 = vmatmul.f32.gmra.mxu0 %v2600
    %v3509 = vpop.f32.mrf.mxu0
    %v3510 = vadd.f32 %v3455, %v3509
    %3511 = vmatmul.f32.gmra.mxu0 %v2609
    %v3512 = vpop.f32.mrf.mxu0
    %v3513 = vadd.f32 %v3455, %v3512
    %3514 = vmatmul.f32.gmra.mxu0 %v2618
    %v3515 = vpop.f32.mrf.mxu0
    %v3516 = vadd.f32 %v3455, %v3515
    %3517 = vmatmul.f32.gmra.mxu0 %v2627
    %v3518 = vpop.f32.mrf.mxu0
    %v3519 = vadd.f32 %v3455, %v3518
    %3520 = vdwg.mxu0
    %3521 = vmatpush.msra.mxu0 %v3342
    %3522 = vmatpush.msra.mxu0 %v3341
    %3523 = vmatpush.msra.mxu0 %v3340
    %3524 = vmatpush.msra.mxu0 %v3339
    %3525 = vmatpush.msra.mxu0 %v3338
    %3526 = vmatpush.msra.mxu0 %v3337
    %3527 = vmatpush.msra.mxu0 %v3336
    %3528 = vmatpush.msra.mxu0 %v3335
    %3529 = vmatpush.msra.mxu0 %v3334
    %3530 = vmatpush.msra.mxu0 %v3333
    %3531 = vmatpush.msra.mxu0 %v3332
    %3532 = vmatpush.msra.mxu0 %v3331
    %3533 = vmatpush.msra.mxu0 %v3330
    %3534 = vmatpush.msra.mxu0 %v3329
    %3535 = vmatpush.msra.mxu0 %v3328
    %3536 = vmatpush.msra.mxu0 %v3327
    %3537 = vmatmul.f32.gmra.mxu0 %v2493
    %v3538 = vpop.f32.mrf.mxu0
    %v3539 = vadd.f32 %v3474, %v3538
    %3540 = vmatmul.f32.gmra.mxu0 %v2502
    %v3541 = vpop.f32.mrf.mxu0
    %v3542 = vadd.f32 %v3477, %v3541
    %3543 = vmatmul.f32.gmra.mxu0 %v2511
    %v3544 = vpop.f32.mrf.mxu0
    %v3545 = vadd.f32 %v3480, %v3544
    %3546 = vmatmul.f32.gmra.mxu0 %v2520
    %v3547 = vpop.f32.mrf.mxu0
    %v3548 = vadd.f32 %v3483, %v3547
    %3549 = vmatmul.f32.gmra.mxu0 %v2529
    %v3550 = vpop.f32.mrf.mxu0
    %v3551 = vadd.f32 %v3486, %v3550
    %3552 = vmatmul.f32.gmra.mxu0 %v2538
    %v3553 = vpop.f32.mrf.mxu0
    %v3554 = vadd.f32 %v3489, %v3553
    %3555 = vmatmul.f32.gmra.mxu0 %v2547
    %v3556 = vpop.f32.mrf.mxu0
    %v3557 = vadd.f32 %v3492, %v3556
    %3558 = vmatmul.f32.gmra.mxu0 %v2556
    %v3559 = vpop.f32.mrf.mxu0
    %v3560 = vadd.f32 %v3495, %v3559
    %3561 = vmatmul.f32.gmra.mxu0 %v2565
    %v3562 = vpop.f32.mrf.mxu0
    %v3563 = vadd.f32 %v3498, %v3562
    %3564 = vmatmul.f32.gmra.mxu0 %v2574
    %v3565 = vpop.f32.mrf.mxu0
    %v3566 = vadd.f32 %v3501, %v3565
    %3567 = vmatmul.f32.gmra.mxu0 %v2583
    %v3568 = vpop.f32.mrf.mxu0
    %v3569 = vadd.f32 %v3504, %v3568
    %3570 = vmatmul.f32.gmra.mxu0 %v2592
    %v3571 = vpop.f32.mrf.mxu0
    %v3572 = vadd.f32 %v3507, %v3571
    %3573 = vmatmul.f32.gmra.mxu0 %v2601
    %v3574 = vpop.f32.mrf.mxu0
    %v3575 = vadd.f32 %v3510, %v3574
    %3576 = vmatmul.f32.gmra.mxu0 %v2610
    %v3577 = vpop.f32.mrf.mxu0
    %v3578 = vadd.f32 %v3513, %v3577
    %3579 = vmatmul.f32.gmra.mxu0 %v2619
    %v3580 = vpop.f32.mrf.mxu0
    %v3581 = vadd.f32 %v3516, %v3580
    %3582 = vmatmul.f32.gmra.mxu0 %v2628
    %v3583 = vpop.f32.mrf.mxu0
    %v3584 = vadd.f32 %v3519, %v3583
    %3585 = vdwg.mxu0
    %3586 = vmatpush.msra.mxu0 %v3358
    %3587 = vmatpush.msra.mxu0 %v3357
    %3588 = vmatpush.msra.mxu0 %v3356
    %3589 = vmatpush.msra.mxu0 %v3355
    %3590 = vmatpush.msra.mxu0 %v3354
    %3591 = vmatpush.msra.mxu0 %v3353
    %3592 = vmatpush.msra.mxu0 %v3352
    %3593 = vmatpush.msra.mxu0 %v3351
    %3594 = vmatpush.msra.mxu0 %v3350
    %3595 = vmatpush.msra.mxu0 %v3349
    %3596 = vmatpush.msra.mxu0 %v3348
    %3597 = vmatpush.msra.mxu0 %v3347
    %3598 = vmatpush.msra.mxu0 %v3346
    %3599 = vmatpush.msra.mxu0 %v3345
    %3600 = vmatpush.msra.mxu0 %v3344
    %3601 = vmatpush.msra.mxu0 %v3343
    %3602 = vmatmul.f32.gmra.mxu0 %v2494
    %v3603 = vpop.f32.mrf.mxu0
    %v3604 = vadd.f32 %v3539, %v3603
    %3605 = vmatmul.f32.gmra.mxu0 %v2503
    %v3606 = vpop.f32.mrf.mxu0
    %v3607 = vadd.f32 %v3542, %v3606
    %3608 = vmatmul.f32.gmra.mxu0 %v2512
    %v3609 = vpop.f32.mrf.mxu0
    %v3610 = vadd.f32 %v3545, %v3609
    %3611 = vmatmul.f32.gmra.mxu0 %v2521
    %v3612 = vpop.f32.mrf.mxu0
    %v3613 = vadd.f32 %v3548, %v3612
    %3614 = vmatmul.f32.gmra.mxu0 %v2530
    %v3615 = vpop.f32.mrf.mxu0
    %v3616 = vadd.f32 %v3551, %v3615
    %3617 = vmatmul.f32.gmra.mxu0 %v2539
    %v3618 = vpop.f32.mrf.mxu0
    %v3619 = vadd.f32 %v3554, %v3618
    %3620 = vmatmul.f32.gmra.mxu0 %v2548
    %v3621 = vpop.f32.mrf.mxu0
    %v3622 = vadd.f32 %v3557, %v3621
    %3623 = vmatmul.f32.gmra.mxu0 %v2557
    %v3624 = vpop.f32.mrf.mxu0
    %v3625 = vadd.f32 %v3560, %v3624
    %3626 = vmatmul.f32.gmra.mxu0 %v2566
    %v3627 = vpop.f32.mrf.mxu0
    %v3628 = vadd.f32 %v3563, %v3627
    %3629 = vmatmul.f32.gmra.mxu0 %v2575
    %v3630 = vpop.f32.mrf.mxu0
    %v3631 = vadd.f32 %v3566, %v3630
    %3632 = vmatmul.f32.gmra.mxu0 %v2584
    %v3633 = vpop.f32.mrf.mxu0
    %v3634 = vadd.f32 %v3569, %v3633
    %3635 = vmatmul.f32.gmra.mxu0 %v2593
    %v3636 = vpop.f32.mrf.mxu0
    %v3637 = vadd.f32 %v3572, %v3636
    %3638 = vmatmul.f32.gmra.mxu0 %v2602
    %v3639 = vpop.f32.mrf.mxu0
    %v3640 = vadd.f32 %v3575, %v3639
    %3641 = vmatmul.f32.gmra.mxu0 %v2611
    %v3642 = vpop.f32.mrf.mxu0
    %v3643 = vadd.f32 %v3578, %v3642
    %3644 = vmatmul.f32.gmra.mxu0 %v2620
    %v3645 = vpop.f32.mrf.mxu0
    %v3646 = vadd.f32 %v3581, %v3645
    %3647 = vmatmul.f32.gmra.mxu0 %v2629
    %v3648 = vpop.f32.mrf.mxu0
    %v3649 = vadd.f32 %v3584, %v3648
    %3650 = vdwg.mxu0
    %3651 = vmatpush.msra.mxu0 %v3374
    %3652 = vmatpush.msra.mxu0 %v3373
    %3653 = vmatpush.msra.mxu0 %v3372
    %3654 = vmatpush.msra.mxu0 %v3371
    %3655 = vmatpush.msra.mxu0 %v3370
    %3656 = vmatpush.msra.mxu0 %v3369
    %3657 = vmatpush.msra.mxu0 %v3368
    %3658 = vmatpush.msra.mxu0 %v3367
    %3659 = vmatpush.msra.mxu0 %v3366
    %3660 = vmatpush.msra.mxu0 %v3365
    %3661 = vmatpush.msra.mxu0 %v3364
    %3662 = vmatpush.msra.mxu0 %v3363
    %3663 = vmatpush.msra.mxu0 %v3362
    %3664 = vmatpush.msra.mxu0 %v3361
    %3665 = vmatpush.msra.mxu0 %v3360
    %3666 = vmatpush.msra.mxu0 %v3359
    %3667 = vmatmul.f32.gmra.mxu0 %v2495
    %v3668 = vpop.f32.mrf.mxu0
    %v3669 = vadd.f32 %v3604, %v3668
    %3670 = vmatmul.f32.gmra.mxu0 %v2504
    %v3671 = vpop.f32.mrf.mxu0
    %v3672 = vadd.f32 %v3607, %v3671
    %3673 = vmatmul.f32.gmra.mxu0 %v2513
    %v3674 = vpop.f32.mrf.mxu0
    %v3675 = vadd.f32 %v3610, %v3674
    %3676 = vmatmul.f32.gmra.mxu0 %v2522
    %v3677 = vpop.f32.mrf.mxu0
    %v3678 = vadd.f32 %v3613, %v3677
    %3679 = vmatmul.f32.gmra.mxu0 %v2531
    %v3680 = vpop.f32.mrf.mxu0
    %v3681 = vadd.f32 %v3616, %v3680
    %3682 = vmatmul.f32.gmra.mxu0 %v2540
    %v3683 = vpop.f32.mrf.mxu0
    %v3684 = vadd.f32 %v3619, %v3683
    %3685 = vmatmul.f32.gmra.mxu0 %v2549
    %v3686 = vpop.f32.mrf.mxu0
    %v3687 = vadd.f32 %v3622, %v3686
    %3688 = vmatmul.f32.gmra.mxu0 %v2558
    %v3689 = vpop.f32.mrf.mxu0
    %v3690 = vadd.f32 %v3625, %v3689
    %3691 = vmatmul.f32.gmra.mxu0 %v2567
    %v3692 = vpop.f32.mrf.mxu0
    %v3693 = vadd.f32 %v3628, %v3692
    %3694 = vmatmul.f32.gmra.mxu0 %v2576
    %v3695 = vpop.f32.mrf.mxu0
    %v3696 = vadd.f32 %v3631, %v3695
    %3697 = vmatmul.f32.gmra.mxu0 %v2585
    %v3698 = vpop.f32.mrf.mxu0
    %v3699 = vadd.f32 %v3634, %v3698
    %3700 = vmatmul.f32.gmra.mxu0 %v2594
    %v3701 = vpop.f32.mrf.mxu0
    %v3702 = vadd.f32 %v3637, %v3701
    %3703 = vmatmul.f32.gmra.mxu0 %v2603
    %v3704 = vpop.f32.mrf.mxu0
    %v3705 = vadd.f32 %v3640, %v3704
    %3706 = vmatmul.f32.gmra.mxu0 %v2612
    %v3707 = vpop.f32.mrf.mxu0
    %v3708 = vadd.f32 %v3643, %v3707
    %3709 = vmatmul.f32.gmra.mxu0 %v2621
    %v3710 = vpop.f32.mrf.mxu0
    %v3711 = vadd.f32 %v3646, %v3710
    %3712 = vmatmul.f32.gmra.mxu0 %v2630
    %v3713 = vpop.f32.mrf.mxu0
    %v3714 = vadd.f32 %v3649, %v3713
    %3715 = vdwg.mxu0
    %3716 = vmatpush.msra.mxu0 %v3390
    %3717 = vmatpush.msra.mxu0 %v3389
    %3718 = vmatpush.msra.mxu0 %v3388
    %3719 = vmatpush.msra.mxu0 %v3387
    %3720 = vmatpush.msra.mxu0 %v3386
    %3721 = vmatpush.msra.mxu0 %v3385
    %3722 = vmatpush.msra.mxu0 %v3384
    %3723 = vmatpush.msra.mxu0 %v3383
    %3724 = vmatpush.msra.mxu0 %v3382
    %3725 = vmatpush.msra.mxu0 %v3381
    %3726 = vmatpush.msra.mxu0 %v3380
    %3727 = vmatpush.msra.mxu0 %v3379
    %3728 = vmatpush.msra.mxu0 %v3378
    %3729 = vmatpush.msra.mxu0 %v3377
    %3730 = vmatpush.msra.mxu0 %v3376
    %3731 = vmatpush.msra.mxu0 %v3375
    %3732 = vmatmul.f32.gmra.mxu0 %v2496
    %v3733 = vpop.f32.mrf.mxu0
    %v3734 = vadd.f32 %v3669, %v3733
    %3735 = vmatmul.f32.gmra.mxu0 %v2505
    %v3736 = vpop.f32.mrf.mxu0
    %v3737 = vadd.f32 %v3672, %v3736
    %3738 = vmatmul.f32.gmra.mxu0 %v2514
    %v3739 = vpop.f32.mrf.mxu0
    %v3740 = vadd.f32 %v3675, %v3739
    %3741 = vmatmul.f32.gmra.mxu0 %v2523
    %v3742 = vpop.f32.mrf.mxu0
    %v3743 = vadd.f32 %v3678, %v3742
    %3744 = vmatmul.f32.gmra.mxu0 %v2532
    %v3745 = vpop.f32.mrf.mxu0
    %v3746 = vadd.f32 %v3681, %v3745
    %3747 = vmatmul.f32.gmra.mxu0 %v2541
    %v3748 = vpop.f32.mrf.mxu0
    %v3749 = vadd.f32 %v3684, %v3748
    %3750 = vmatmul.f32.gmra.mxu0 %v2550
    %v3751 = vpop.f32.mrf.mxu0
    %v3752 = vadd.f32 %v3687, %v3751
    %3753 = vmatmul.f32.gmra.mxu0 %v2559
    %v3754 = vpop.f32.mrf.mxu0
    %v3755 = vadd.f32 %v3690, %v3754
    %3756 = vmatmul.f32.gmra.mxu0 %v2568
    %v3757 = vpop.f32.mrf.mxu0
    %v3758 = vadd.f32 %v3693, %v3757
    %3759 = vmatmul.f32.gmra.mxu0 %v2577
    %v3760 = vpop.f32.mrf.mxu0
    %v3761 = vadd.f32 %v3696, %v3760
    %3762 = vmatmul.f32.gmra.mxu0 %v2586
    %v3763 = vpop.f32.mrf.mxu0
    %v3764 = vadd.f32 %v3699, %v3763
    %3765 = vmatmul.f32.gmra.mxu0 %v2595
    %v3766 = vpop.f32.mrf.mxu0
    %v3767 = vadd.f32 %v3702, %v3766
    %3768 = vmatmul.f32.gmra.mxu0 %v2604
    %v3769 = vpop.f32.mrf.mxu0
    %v3770 = vadd.f32 %v3705, %v3769
    %3771 = vmatmul.f32.gmra.mxu0 %v2613
    %v3772 = vpop.f32.mrf.mxu0
    %v3773 = vadd.f32 %v3708, %v3772
    %3774 = vmatmul.f32.gmra.mxu0 %v2622
    %v3775 = vpop.f32.mrf.mxu0
    %v3776 = vadd.f32 %v3711, %v3775
    %3777 = vmatmul.f32.gmra.mxu0 %v2631
    %v3778 = vpop.f32.mrf.mxu0
    %v3779 = vadd.f32 %v3714, %v3778
    %3780 = vdwg.mxu0
    %3781 = vmatpush.msra.mxu0 %v3406
    %3782 = vmatpush.msra.mxu0 %v3405
    %3783 = vmatpush.msra.mxu0 %v3404
    %3784 = vmatpush.msra.mxu0 %v3403
    %3785 = vmatpush.msra.mxu0 %v3402
    %3786 = vmatpush.msra.mxu0 %v3401
    %3787 = vmatpush.msra.mxu0 %v3400
    %3788 = vmatpush.msra.mxu0 %v3399
    %3789 = vmatpush.msra.mxu0 %v3398
    %3790 = vmatpush.msra.mxu0 %v3397
    %3791 = vmatpush.msra.mxu0 %v3396
    %3792 = vmatpush.msra.mxu0 %v3395
    %3793 = vmatpush.msra.mxu0 %v3394
    %3794 = vmatpush.msra.mxu0 %v3393
    %3795 = vmatpush.msra.mxu0 %v3392
    %3796 = vmatpush.msra.mxu0 %v3391
    %3797 = vmatmul.f32.gmra.mxu0 %v2497
    %v3798 = vpop.f32.mrf.mxu0
    %v3799 = vadd.f32 %v3734, %v3798
    %3800 = vmatmul.f32.gmra.mxu0 %v2506
    %v3801 = vpop.f32.mrf.mxu0
    %v3802 = vadd.f32 %v3737, %v3801
    %3803 = vmatmul.f32.gmra.mxu0 %v2515
    %v3804 = vpop.f32.mrf.mxu0
    %v3805 = vadd.f32 %v3740, %v3804
    %3806 = vmatmul.f32.gmra.mxu0 %v2524
    %v3807 = vpop.f32.mrf.mxu0
    %v3808 = vadd.f32 %v3743, %v3807
    %3809 = vmatmul.f32.gmra.mxu0 %v2533
    %v3810 = vpop.f32.mrf.mxu0
    %v3811 = vadd.f32 %v3746, %v3810
    %3812 = vmatmul.f32.gmra.mxu0 %v2542
    %v3813 = vpop.f32.mrf.mxu0
    %v3814 = vadd.f32 %v3749, %v3813
    %3815 = vmatmul.f32.gmra.mxu0 %v2551
    %v3816 = vpop.f32.mrf.mxu0
    %v3817 = vadd.f32 %v3752, %v3816
    %3818 = vmatmul.f32.gmra.mxu0 %v2560
    %v3819 = vpop.f32.mrf.mxu0
    %v3820 = vadd.f32 %v3755, %v3819
    %3821 = vmatmul.f32.gmra.mxu0 %v2569
    %v3822 = vpop.f32.mrf.mxu0
    %v3823 = vadd.f32 %v3758, %v3822
    %3824 = vmatmul.f32.gmra.mxu0 %v2578
    %v3825 = vpop.f32.mrf.mxu0
    %v3826 = vadd.f32 %v3761, %v3825
    %3827 = vmatmul.f32.gmra.mxu0 %v2587
    %v3828 = vpop.f32.mrf.mxu0
    %v3829 = vadd.f32 %v3764, %v3828
    %3830 = vmatmul.f32.gmra.mxu0 %v2596
    %v3831 = vpop.f32.mrf.mxu0
    %v3832 = vadd.f32 %v3767, %v3831
    %3833 = vmatmul.f32.gmra.mxu0 %v2605
    %v3834 = vpop.f32.mrf.mxu0
    %v3835 = vadd.f32 %v3770, %v3834
    %3836 = vmatmul.f32.gmra.mxu0 %v2614
    %v3837 = vpop.f32.mrf.mxu0
    %v3838 = vadd.f32 %v3773, %v3837
    %3839 = vmatmul.f32.gmra.mxu0 %v2623
    %v3840 = vpop.f32.mrf.mxu0
    %v3841 = vadd.f32 %v3776, %v3840
    %3842 = vmatmul.f32.gmra.mxu0 %v2632
    %v3843 = vpop.f32.mrf.mxu0
    %v3844 = vadd.f32 %v3779, %v3843
    %3845 = vdwg.mxu0
    %3846 = vmatpush.msra.mxu0 %v3422
    %3847 = vmatpush.msra.mxu0 %v3421
    %3848 = vmatpush.msra.mxu0 %v3420
    %3849 = vmatpush.msra.mxu0 %v3419
    %3850 = vmatpush.msra.mxu0 %v3418
    %3851 = vmatpush.msra.mxu0 %v3417
    %3852 = vmatpush.msra.mxu0 %v3416
    %3853 = vmatpush.msra.mxu0 %v3415
    %3854 = vmatpush.msra.mxu0 %v3414
    %3855 = vmatpush.msra.mxu0 %v3413
    %3856 = vmatpush.msra.mxu0 %v3412
    %3857 = vmatpush.msra.mxu0 %v3411
    %3858 = vmatpush.msra.mxu0 %v3410
    %3859 = vmatpush.msra.mxu0 %v3409
    %3860 = vmatpush.msra.mxu0 %v3408
    %3861 = vmatpush.msra.mxu0 %v3407
    %3862 = vmatmul.f32.gmra.mxu0 %v2498
    %v3863 = vpop.f32.mrf.mxu0
    %v3864 = vadd.f32 %v3799, %v3863
    %3865 = vmatmul.f32.gmra.mxu0 %v2507
    %v3866 = vpop.f32.mrf.mxu0
    %v3867 = vadd.f32 %v3802, %v3866
    %3868 = vmatmul.f32.gmra.mxu0 %v2516
    %v3869 = vpop.f32.mrf.mxu0
    %v3870 = vadd.f32 %v3805, %v3869
    %3871 = vmatmul.f32.gmra.mxu0 %v2525
    %v3872 = vpop.f32.mrf.mxu0
    %v3873 = vadd.f32 %v3808, %v3872
    %3874 = vmatmul.f32.gmra.mxu0 %v2534
    %v3875 = vpop.f32.mrf.mxu0
    %v3876 = vadd.f32 %v3811, %v3875
    %3877 = vmatmul.f32.gmra.mxu0 %v2543
    %v3878 = vpop.f32.mrf.mxu0
    %v3879 = vadd.f32 %v3814, %v3878
    %3880 = vmatmul.f32.gmra.mxu0 %v2552
    %v3881 = vpop.f32.mrf.mxu0
    %v3882 = vadd.f32 %v3817, %v3881
    %3883 = vmatmul.f32.gmra.mxu0 %v2561
    %v3884 = vpop.f32.mrf.mxu0
    %v3885 = vadd.f32 %v3820, %v3884
    %3886 = vmatmul.f32.gmra.mxu0 %v2570
    %v3887 = vpop.f32.mrf.mxu0
    %v3888 = vadd.f32 %v3823, %v3887
    %3889 = vmatmul.f32.gmra.mxu0 %v2579
    %v3890 = vpop.f32.mrf.mxu0
    %v3891 = vadd.f32 %v3826, %v3890
    %3892 = vmatmul.f32.gmra.mxu0 %v2588
    %v3893 = vpop.f32.mrf.mxu0
    %v3894 = vadd.f32 %v3829, %v3893
    %3895 = vmatmul.f32.gmra.mxu0 %v2597
    %v3896 = vpop.f32.mrf.mxu0
    %v3897 = vadd.f32 %v3832, %v3896
    %3898 = vmatmul.f32.gmra.mxu0 %v2606
    %v3899 = vpop.f32.mrf.mxu0
    %v3900 = vadd.f32 %v3835, %v3899
    %3901 = vmatmul.f32.gmra.mxu0 %v2615
    %v3902 = vpop.f32.mrf.mxu0
    %v3903 = vadd.f32 %v3838, %v3902
    %3904 = vmatmul.f32.gmra.mxu0 %v2624
    %v3905 = vpop.f32.mrf.mxu0
    %v3906 = vadd.f32 %v3841, %v3905
    %3907 = vmatmul.f32.gmra.mxu0 %v2633
    %v3908 = vpop.f32.mrf.mxu0
    %v3909 = vadd.f32 %v3844, %v3908
    %3910 = vdwg.mxu0
    %3911 = vmatpush.msra.mxu0 %v3438
    %3912 = vmatpush.msra.mxu0 %v3437
    %3913 = vmatpush.msra.mxu0 %v3436
    %3914 = vmatpush.msra.mxu0 %v3435
    %3915 = vmatpush.msra.mxu0 %v3434
    %3916 = vmatpush.msra.mxu0 %v3433
    %3917 = vmatpush.msra.mxu0 %v3432
    %3918 = vmatpush.msra.mxu0 %v3431
    %3919 = vmatpush.msra.mxu0 %v3430
    %3920 = vmatpush.msra.mxu0 %v3429
    %3921 = vmatpush.msra.mxu0 %v3428
    %3922 = vmatpush.msra.mxu0 %v3427
    %3923 = vmatpush.msra.mxu0 %v3426
    %3924 = vmatpush.msra.mxu0 %v3425
    %3925 = vmatpush.msra.mxu0 %v3424
    %3926 = vmatpush.msra.mxu0 %v3423
    %3927 = vmatmul.f32.gmra.mxu0 %v2499
    %v3928 = vpop.f32.mrf.mxu0
    %v3929 = vadd.f32 %v3864, %v3928
    %3930 = vmatmul.f32.gmra.mxu0 %v2508
    %v3931 = vpop.f32.mrf.mxu0
    %v3932 = vadd.f32 %v3867, %v3931
    %3933 = vmatmul.f32.gmra.mxu0 %v2517
    %v3934 = vpop.f32.mrf.mxu0
    %v3935 = vadd.f32 %v3870, %v3934
    %3936 = vmatmul.f32.gmra.mxu0 %v2526
    %v3937 = vpop.f32.mrf.mxu0
    %v3938 = vadd.f32 %v3873, %v3937
    %3939 = vmatmul.f32.gmra.mxu0 %v2535
    %v3940 = vpop.f32.mrf.mxu0
    %v3941 = vadd.f32 %v3876, %v3940
    %3942 = vmatmul.f32.gmra.mxu0 %v2544
    %v3943 = vpop.f32.mrf.mxu0
    %v3944 = vadd.f32 %v3879, %v3943
    %3945 = vmatmul.f32.gmra.mxu0 %v2553
    %v3946 = vpop.f32.mrf.mxu0
    %v3947 = vadd.f32 %v3882, %v3946
    %3948 = vmatmul.f32.gmra.mxu0 %v2562
    %v3949 = vpop.f32.mrf.mxu0
    %v3950 = vadd.f32 %v3885, %v3949
    %3951 = vmatmul.f32.gmra.mxu0 %v2571
    %v3952 = vpop.f32.mrf.mxu0
    %v3953 = vadd.f32 %v3888, %v3952
    %3954 = vmatmul.f32.gmra.mxu0 %v2580
    %v3955 = vpop.f32.mrf.mxu0
    %v3956 = vadd.f32 %v3891, %v3955
    %3957 = vmatmul.f32.gmra.mxu0 %v2589
    %v3958 = vpop.f32.mrf.mxu0
    %v3959 = vadd.f32 %v3894, %v3958
    %3960 = vmatmul.f32.gmra.mxu0 %v2598
    %v3961 = vpop.f32.mrf.mxu0
    %v3962 = vadd.f32 %v3897, %v3961
    %3963 = vmatmul.f32.gmra.mxu0 %v2607
    %v3964 = vpop.f32.mrf.mxu0
    %v3965 = vadd.f32 %v3900, %v3964
    %3966 = vmatmul.f32.gmra.mxu0 %v2616
    %v3967 = vpop.f32.mrf.mxu0
    %v3968 = vadd.f32 %v3903, %v3967
    %3969 = vmatmul.f32.gmra.mxu0 %v2625
    %v3970 = vpop.f32.mrf.mxu0
    %v3971 = vadd.f32 %v3906, %v3970
    %3972 = vmatmul.f32.gmra.mxu0 %v2634
    %v3973 = vpop.f32.mrf.mxu0
    %v3974 = vadd.f32 %v3909, %v3973
    %3975 = vdwg.mxu0
    %3976 = vmatpush.msra.mxu0 %v3454
    %3977 = vmatpush.msra.mxu0 %v3453
    %3978 = vmatpush.msra.mxu0 %v3452
    %3979 = vmatpush.msra.mxu0 %v3451
    %3980 = vmatpush.msra.mxu0 %v3450
    %3981 = vmatpush.msra.mxu0 %v3449
    %3982 = vmatpush.msra.mxu0 %v3448
    %3983 = vmatpush.msra.mxu0 %v3447
    %3984 = vmatpush.msra.mxu0 %v3446
    %3985 = vmatpush.msra.mxu0 %v3445
    %3986 = vmatpush.msra.mxu0 %v3444
    %3987 = vmatpush.msra.mxu0 %v3443
    %3988 = vmatpush.msra.mxu0 %v3442
    %3989 = vmatpush.msra.mxu0 %v3441
    %3990 = vmatpush.msra.mxu0 %v3440
    %3991 = vmatpush.msra.mxu0 %v3439
    %3992 = vmatmul.f32.gmra.mxu0 %v2500
    %v3993 = vpop.f32.mrf.mxu0
    %v3994 = vadd.f32 %v3929, %v3993
    %3995 = vmatmul.f32.gmra.mxu0 %v2509
    %v3996 = vpop.f32.mrf.mxu0
    %v3997 = vadd.f32 %v3932, %v3996
    %3998 = vmatmul.f32.gmra.mxu0 %v2518
    %v3999 = vpop.f32.mrf.mxu0
    %v4000 = vadd.f32 %v3935, %v3999
    %4001 = vmatmul.f32.gmra.mxu0 %v2527
    %v4002 = vpop.f32.mrf.mxu0
    %v4003 = vadd.f32 %v3938, %v4002
    %4004 = vmatmul.f32.gmra.mxu0 %v2536
    %v4005 = vpop.f32.mrf.mxu0
    %v4006 = vadd.f32 %v3941, %v4005
    %4007 = vmatmul.f32.gmra.mxu0 %v2545
    %v4008 = vpop.f32.mrf.mxu0
    %v4009 = vadd.f32 %v3944, %v4008
    %4010 = vmatmul.f32.gmra.mxu0 %v2554
    %v4011 = vpop.f32.mrf.mxu0
    %v4012 = vadd.f32 %v3947, %v4011
    %4013 = vmatmul.f32.gmra.mxu0 %v2563
    %v4014 = vpop.f32.mrf.mxu0
    %v4015 = vadd.f32 %v3950, %v4014
    %4016 = vmatmul.f32.gmra.mxu0 %v2572
    %v4017 = vpop.f32.mrf.mxu0
    %v4018 = vadd.f32 %v3953, %v4017
    %4019 = vmatmul.f32.gmra.mxu0 %v2581
    %v4020 = vpop.f32.mrf.mxu0
    %v4021 = vadd.f32 %v3956, %v4020
    %4022 = vmatmul.f32.gmra.mxu0 %v2590
    %v4023 = vpop.f32.mrf.mxu0
    %v4024 = vadd.f32 %v3959, %v4023
    %4025 = vmatmul.f32.gmra.mxu0 %v2599
    %v4026 = vpop.f32.mrf.mxu0
    %v4027 = vadd.f32 %v3962, %v4026
    %4028 = vmatmul.f32.gmra.mxu0 %v2608
    %v4029 = vpop.f32.mrf.mxu0
    %v4030 = vadd.f32 %v3965, %v4029
    %4031 = vmatmul.f32.gmra.mxu0 %v2617
    %v4032 = vpop.f32.mrf.mxu0
    %v4033 = vadd.f32 %v3968, %v4032
    %4034 = vmatmul.f32.gmra.mxu0 %v2626
    %v4035 = vpop.f32.mrf.mxu0
    %v4036 = vadd.f32 %v3971, %v4035
    %4037 = vmatmul.f32.gmra.mxu0 %v2635
    %v4038 = vpop.f32.mrf.mxu0
    %v4039 = vadd.f32 %v3974, %v4038
    %4040 = vdwg.mxu0
    %v4041 = vsel %vm1899, %v3994, 0.0
    %v4042 = vsel %vm1899, %v3997, 0.0
    %v4043 = vadd.f32 %v4041, %v4042
    %v4044 = vsel %vm1899, %v4000, 0.0
    %v4045 = vadd.f32 %v4043, %v4044
    %v4046 = vsel %vm1899, %v4003, 0.0
    %v4047 = vadd.f32 %v4045, %v4046
    %v4048 = vsel %vm1899, %v4006, 0.0
    %v4049 = vadd.f32 %v4047, %v4048
    %v4050 = vsel %vm1899, %v4009, 0.0
    %v4051 = vadd.f32 %v4049, %v4050
    %v4052 = vsel %vm1899, %v4012, 0.0
    %v4053 = vadd.f32 %v4051, %v4052
    %v4054 = vsel %vm1899, %v4015, 0.0
    %v4055 = vadd.f32 %v4053, %v4054
    %v4056 = vsel %vm1899, %v4018, 0.0
    %v4057 = vadd.f32 %v4055, %v4056
    %v4058 = vsel %vm1899, %v4021, 0.0
    %v4059 = vadd.f32 %v4057, %v4058
    %v4060 = vsel %vm1899, %v4024, 0.0
    %v4061 = vadd.f32 %v4059, %v4060
    %v4062 = vsel %vm1899, %v4027, 0.0
    %v4063 = vadd.f32 %v4061, %v4062
    %v4064 = vsel %vm1899, %v4030, 0.0
    %v4065 = vadd.f32 %v4063, %v4064
    %v4066 = vsel %vm1899, %v4033, 0.0
    %v4067 = vadd.f32 %v4065, %v4066
    %v4068 = vsel %vm1899, %v4036, 0.0
    %v4069 = vadd.f32 %v4067, %v4068
    %v4070 = vsel %vm1899, %v4039, 0.0
    %v4071 = vadd.f32 %v4069, %v4070
    %v4072 = vrot.slane %v4071, 4
    %v4073 = vadd.f32 %v4071, %v4072
    %v4074 = vrot.slane %v4073, 2
    %v4075 = vadd.f32 %v4073, %v4074
    %v4076 = vrot.slane %v4075, 1
    %v4077 = vadd.f32 %v4075, %v4076
    %v4078 = vrcp.pop 128.0
    %v4079 = vmul.f32 128.0, %v4078
    %v4080 = vsub.f32 1.0, %v4079
    %v4081 = vmul.f32 %v4078, %v4080
    %v4082 = vadd.f32 %v4078, %v4081
    %vm4083 = vweird.f32 %v4078
    %v4084 = vsel %vm4083, %v4078, %v4082
    %v4085 = vmul.f32 %v4077, %v4084
    %v4086 = vsub.f32 %v3994, %v4085
    %v4087 = vsub.f32 %v3997, %v4085
    %v4088 = vsub.f32 %v4000, %v4085
    %v4089 = vsub.f32 %v4003, %v4085
    %v4090 = vsub.f32 %v4006, %v4085
    %v4091 = vsub.f32 %v4009, %v4085
    %v4092 = vsub.f32 %v4012, %v4085
    %v4093 = vsub.f32 %v4015, %v4085
    %v4094 = vsub.f32 %v4018, %v4085
    %v4095 = vsub.f32 %v4021, %v4085
    %v4096 = vsub.f32 %v4024, %v4085
    %v4097 = vsub.f32 %v4027, %v4085
    %v4098 = vsub.f32 %v4030, %v4085
    %v4099 = vsub.f32 %v4033, %v4085
    %v4100 = vsub.f32 %v4036, %v4085
    %v4101 = vsub.f32 %v4039, %v4085
    %v4102 = vmul.f32 %v4086, %v4086
    %v4103 = vmul.f32 %v4087, %v4087
    %v4104 = vmul.f32 %v4088, %v4088
    %v4105 = vmul.f32 %v4089, %v4089
    %v4106 = vmul.f32 %v4090, %v4090
    %v4107 = vmul.f32 %v4091, %v4091
    %v4108 = vmul.f32 %v4092, %v4092
    %v4109 = vmul.f32 %v4093, %v4093
    %v4110 = vmul.f32 %v4094, %v4094
    %v4111 = vmul.f32 %v4095, %v4095
    %v4112 = vmul.f32 %v4096, %v4096
    %v4113 = vmul.f32 %v4097, %v4097
    %v4114 = vmul.f32 %v4098, %v4098
    %v4115 = vmul.f32 %v4099, %v4099
    %v4116 = vmul.f32 %v4100, %v4100
    %v4117 = vmul.f32 %v4101, %v4101
    %v4118 = vsel %vm1899, %v4102, 0.0
    %v4119 = vsel %vm1899, %v4103, 0.0
    %v4120 = vadd.f32 %v4118, %v4119
    %v4121 = vsel %vm1899, %v4104, 0.0
    %v4122 = vadd.f32 %v4120, %v4121
    %v4123 = vsel %vm1899, %v4105, 0.0
    %v4124 = vadd.f32 %v4122, %v4123
    %v4125 = vsel %vm1899, %v4106, 0.0
    %v4126 = vadd.f32 %v4124, %v4125
    %v4127 = vsel %vm1899, %v4107, 0.0
    %v4128 = vadd.f32 %v4126, %v4127
    %v4129 = vsel %vm1899, %v4108, 0.0
    %v4130 = vadd.f32 %v4128, %v4129
    %v4131 = vsel %vm1899, %v4109, 0.0
    %v4132 = vadd.f32 %v4130, %v4131
    %v4133 = vsel %vm1899, %v4110, 0.0
    %v4134 = vadd.f32 %v4132, %v4133
    %v4135 = vsel %vm1899, %v4111, 0.0
    %v4136 = vadd.f32 %v4134, %v4135
    %v4137 = vsel %vm1899, %v4112, 0.0
    %v4138 = vadd.f32 %v4136, %v4137
    %v4139 = vsel %vm1899, %v4113, 0.0
    %v4140 = vadd.f32 %v4138, %v4139
    %v4141 = vsel %vm1899, %v4114, 0.0
    %v4142 = vadd.f32 %v4140, %v4141
    %v4143 = vsel %vm1899, %v4115, 0.0
    %v4144 = vadd.f32 %v4142, %v4143
    %v4145 = vsel %vm1899, %v4116, 0.0
    %v4146 = vadd.f32 %v4144, %v4145
    %v4147 = vsel %vm1899, %v4117, 0.0
    %v4148 = vadd.f32 %v4146, %v4147
    %v4149 = vrot.slane %v4148, 4
    %v4150 = vadd.f32 %v4148, %v4149
    %v4151 = vrot.slane %v4150, 2
    %v4152 = vadd.f32 %v4150, %v4151
    %v4153 = vrot.slane %v4152, 1
    %v4154 = vadd.f32 %v4152, %v4153
    %v4155 = vmul.f32 %v4154, %v4084
    %v4156 = vadd.f32 %v4155, 1e-05
    %v4157 = vrsqrt.pop %v4156
    %v4158 = vmul.f32 %v4157, %v4156
    %v4159 = vmul.f32 %v4158, %v4157
    %v4160 = vmul.f32 0.5, %v4159
    %v4161 = vsub.f32 1.5, %v4160
    %v4162 = vmul.f32 %v4157, %v4161
    %vm4163 = vweird.f32 %v4156
    %vm4164 = vweird.f32 %v4157
    %vm4165 = vmor %vm4163, %vm4164
    %v4166 = vsel %vm4165, %v4157, %v4162
    %v4167 = vmul.f32 %v4086, %v4166
    %v4168 = vmul.f32 %v4087, %v4166
    %v4169 = vmul.f32 %v4088, %v4166
    %v4170 = vmul.f32 %v4089, %v4166
    %v4171 = vmul.f32 %v4090, %v4166
    %v4172 = vmul.f32 %v4091, %v4166
    %v4173 = vmul.f32 %v4092, %v4166
    %v4174 = vmul.f32 %v4093, %v4166
    %v4175 = vmul.f32 %v4094, %v4166
    %v4176 = vmul.f32 %v4095, %v4166
    %v4177 = vmul.f32 %v4096, %v4166
    %v4178 = vmul.f32 %v4097, %v4166
    %v4179 = vmul.f32 %v4098, %v4166
    %v4180 = vmul.f32 %v4099, %v4166
    %v4181 = vmul.f32 %v4100, %v4166
    %v4182 = vmul.f32 %v4101, %v4166
    %v4183 = vperm.slane %v2636, 1
    %v4184 = vmul.f32 %v4167, %v4183
    %v4185 = vmul.f32 %v4168, %v4183
    %v4186 = vmul.f32 %v4169, %v4183
    %v4187 = vmul.f32 %v4170, %v4183
    %v4188 = vmul.f32 %v4171, %v4183
    %v4189 = vmul.f32 %v4172, %v4183
    %v4190 = vmul.f32 %v4173, %v4183
    %v4191 = vmul.f32 %v4174, %v4183
    %v4192 = vmul.f32 %v4175, %v4183
    %v4193 = vmul.f32 %v4176, %v4183
    %v4194 = vmul.f32 %v4177, %v4183
    %v4195 = vmul.f32 %v4178, %v4183
    %v4196 = vmul.f32 %v4179, %v4183
    %v4197 = vmul.f32 %v4180, %v4183
    %v4198 = vmul.f32 %v4181, %v4183
    %v4199 = vmul.f32 %v4182, %v4183
    %v4200 = vperm.slane %v2636, 2
    %v4201 = vadd.f32 %v4184, %v4200
    %v4202 = vadd.f32 %v4185, %v4200
    %v4203 = vadd.f32 %v4186, %v4200
    %v4204 = vadd.f32 %v4187, %v4200
    %v4205 = vadd.f32 %v4188, %v4200
    %v4206 = vadd.f32 %v4189, %v4200
    %v4207 = vadd.f32 %v4190, %v4200
    %v4208 = vadd.f32 %v4191, %v4200
    %v4209 = vadd.f32 %v4192, %v4200
    %v4210 = vadd.f32 %v4193, %v4200
    %v4211 = vadd.f32 %v4194, %v4200
    %v4212 = vadd.f32 %v4195, %v4200
    %v4213 = vadd.f32 %v4196, %v4200
    %v4214 = vadd.f32 %v4197, %v4200
    %v4215 = vadd.f32 %v4198, %v4200
    %v4216 = vadd.f32 %v4199, %v4200
    %v4217 = vmax.f32 %v4201, 0.0
    %v4218 = vmax.f32 %v4202, 0.0
    %v4219 = vmax.f32 %v4203, 0.0
    %v4220 = vmax.f32 %v4204, 0.0
    %v4221 = vmax.f32 %v4205, 0.0
    %v4222 = vmax.f32 %v4206, 0.0
    %v4223 = vmax.f32 %v4207, 0.0
    %v4224 = vmax.f32 %v4208, 0.0
    %v4225 = vmax.f32 %v4209, 0.0
    %v4226 = vmax.f32 %v4210, 0.0
    %v4227 = vmax.f32 %v4211, 0.0
    %v4228 = vmax.f32 %v4212, 0.0
    %v4229 = vmax.f32 %v4213, 0.0
    %v4230 = vmax.f32 %v4214, 0.0
    %v4231 = vmax.f32 %v4215, 0.0
    %v4232 = vmax.f32 %v4216, 0.0
    %v4234 = vsel %vm1899, %v4217, 0
    %v4237 = vsel %vm1899, %v4218, 0
    %v4240 = vsel %vm1899, %v4219, 0
    %v4243 = vsel %vm1899, %v4220, 0
    %v4246 = vsel %vm1899, %v4221, 0
    %v4249 = vsel %vm1899, %v4222, 0
    %v4252 = vsel %vm1899, %v4223, 0
    %v4255 = vsel %vm1899, %v4224, 0
    %v4258 = vsel %vm1899, %v4225, 0
    %v4261 = vsel %vm1899, %v4226, 0
    %v4264 = vsel %vm1899, %v4227, 0
    %v4267 = vsel %vm1899, %v4228, 0
    %v4270 = vsel %vm1899, %v4229, 0
    %v4273 = vsel %vm1899, %v4230, 0
    %v4276 = vsel %vm1899, %v4231, 0
    %v4279 = vsel %vm1899, %v4232, 0
    %4281 = vmatpush.msra.mxu0 0.0
    %4282 = vmatpush.msra.mxu0 0.0
    %4283 = vmatpush.msra.mxu0 0.0
    %4284 = vmatpush.msra.mxu0 0.0
    %4285 = vmatpush.msra.mxu0 0.0
    %4286 = vmatpush.msra.mxu0 0.0
    %4287 = vmatpush.msra.mxu0 0.0
    %4288 = vmatpush.msra.mxu0 0.0
    %4289 = vmatpush.msra.mxu0 0.0
    %4290 = vmatpush.msra.mxu0 0.0
    %4291 = vmatpush.msra.mxu0 0.0
    %4292 = vmatpush.msra.mxu0 0.0
    %4293 = vmatpush.msra.mxu0 0.0
    %4294 = vmatpush.msra.mxu0 0.0
    %4295 = vmatpush.msra.mxu0 %v2490
    %4296 = vmatpush.msra.mxu0 %v2488
    %4297 = vmatmul.f32.gmra.mxu0 %v4234
    %v4298 = vpop.f32.mrf.mxu0
    %v4299 = vadd.f32 0.0, %v4298
    %4300 = vmatmul.f32.gmra.mxu0 %v4237
    %v4301 = vpop.f32.mrf.mxu0
    %v4302 = vadd.f32 0.0, %v4301
    %4303 = vmatmul.f32.gmra.mxu0 %v4240
    %v4304 = vpop.f32.mrf.mxu0
    %v4305 = vadd.f32 0.0, %v4304
    %4306 = vmatmul.f32.gmra.mxu0 %v4243
    %v4307 = vpop.f32.mrf.mxu0
    %v4308 = vadd.f32 0.0, %v4307
    %4309 = vmatmul.f32.gmra.mxu0 %v4246
    %v4310 = vpop.f32.mrf.mxu0
    %v4311 = vadd.f32 0.0, %v4310
    %4312 = vmatmul.f32.gmra.mxu0 %v4249
    %v4313 = vpop.f32.mrf.mxu0
    %v4314 = vadd.f32 0.0, %v4313
    %4315 = vmatmul.f32.gmra.mxu0 %v4252
    %v4316 = vpop.f32.mrf.mxu0
    %v4317 = vadd.f32 0.0, %v4316
    %4318 = vmatmul.f32.gmra.mxu0 %v4255
    %v4319 = vpop.f32.mrf.mxu0
    %v4320 = vadd.f32 0.0, %v4319
    %4321 = vmatmul.f32.gmra.mxu0 %v4258
    %v4322 = vpop.f32.mrf.mxu0
    %v4323 = vadd.f32 0.0, %v4322
    %4324 = vmatmul.f32.gmra.mxu0 %v4261
    %v4325 = vpop.f32.mrf.mxu0
    %v4326 = vadd.f32 0.0, %v4325
    %4327 = vmatmul.f32.gmra.mxu0 %v4264
    %v4328 = vpop.f32.mrf.mxu0
    %v4329 = vadd.f32 0.0, %v4328
    %4330 = vmatmul.f32.gmra.mxu0 %v4267
    %v4331 = vpop.f32.mrf.mxu0
    %v4332 = vadd.f32 0.0, %v4331
    %4333 = vmatmul.f32.gmra.mxu0 %v4270
    %v4334 = vpop.f32.mrf.mxu0
    %v4335 = vadd.f32 0.0, %v4334
    %4336 = vmatmul.f32.gmra.mxu0 %v4273
    %v4337 = vpop.f32.mrf.mxu0
    %v4338 = vadd.f32 0.0, %v4337
    %4339 = vmatmul.f32.gmra.mxu0 %v4276
    %v4340 = vpop.f32.mrf.mxu0
    %v4341 = vadd.f32 0.0, %v4340
    %4342 = vmatmul.f32.gmra.mxu0 %v4279
    %v4343 = vpop.f32.mrf.mxu0
    %v4344 = vadd.f32 0.0, %v4343
    %4345 = vdwg.mxu0
    %4346 = vmatpush.msra.mxu0 0.0
    %4347 = vmatpush.msra.mxu0 0.0
    %4348 = vmatpush.msra.mxu0 0.0
    %4349 = vmatpush.msra.mxu0 0.0
    %4350 = vmatpush.msra.mxu0 0.0
    %4351 = vmatpush.msra.mxu0 0.0
    %4352 = vmatpush.msra.mxu0 0.0
    %4353 = vmatpush.msra.mxu0 0.0
    %4354 = vmatpush.msra.mxu0 0.0
    %4355 = vmatpush.msra.mxu0 0.0
    %4356 = vmatpush.msra.mxu0 0.0
    %4357 = vmatpush.msra.mxu0 0.0
    %4358 = vmatpush.msra.mxu0 0.0
    %4359 = vmatpush.msra.mxu0 0.0
    %4360 = vmatpush.msra.mxu0 %v2491
    %4361 = vmatpush.msra.mxu0 %v2489
    %4362 = vmatmul.f32.gmra.mxu0 %v4234
    %v4363 = vpop.f32.mrf.mxu0
    %v4364 = vadd.f32 0.0, %v4363
    %4365 = vmatmul.f32.gmra.mxu0 %v4237
    %v4366 = vpop.f32.mrf.mxu0
    %v4367 = vadd.f32 0.0, %v4366
    %4368 = vmatmul.f32.gmra.mxu0 %v4240
    %v4369 = vpop.f32.mrf.mxu0
    %v4370 = vadd.f32 0.0, %v4369
    %4371 = vmatmul.f32.gmra.mxu0 %v4243
    %v4372 = vpop.f32.mrf.mxu0
    %v4373 = vadd.f32 0.0, %v4372
    %4374 = vmatmul.f32.gmra.mxu0 %v4246
    %v4375 = vpop.f32.mrf.mxu0
    %v4376 = vadd.f32 0.0, %v4375
    %4377 = vmatmul.f32.gmra.mxu0 %v4249
    %v4378 = vpop.f32.mrf.mxu0
    %v4379 = vadd.f32 0.0, %v4378
    %4380 = vmatmul.f32.gmra.mxu0 %v4252
    %v4381 = vpop.f32.mrf.mxu0
    %v4382 = vadd.f32 0.0, %v4381
    %4383 = vmatmul.f32.gmra.mxu0 %v4255
    %v4384 = vpop.f32.mrf.mxu0
    %v4385 = vadd.f32 0.0, %v4384
    %4386 = vmatmul.f32.gmra.mxu0 %v4258
    %v4387 = vpop.f32.mrf.mxu0
    %v4388 = vadd.f32 0.0, %v4387
    %4389 = vmatmul.f32.gmra.mxu0 %v4261
    %v4390 = vpop.f32.mrf.mxu0
    %v4391 = vadd.f32 0.0, %v4390
    %4392 = vmatmul.f32.gmra.mxu0 %v4264
    %v4393 = vpop.f32.mrf.mxu0
    %v4394 = vadd.f32 0.0, %v4393
    %4395 = vmatmul.f32.gmra.mxu0 %v4267
    %v4396 = vpop.f32.mrf.mxu0
    %v4397 = vadd.f32 0.0, %v4396
    %4398 = vmatmul.f32.gmra.mxu0 %v4270
    %v4399 = vpop.f32.mrf.mxu0
    %v4400 = vadd.f32 0.0, %v4399
    %4401 = vmatmul.f32.gmra.mxu0 %v4273
    %v4402 = vpop.f32.mrf.mxu0
    %v4403 = vadd.f32 0.0, %v4402
    %4404 = vmatmul.f32.gmra.mxu0 %v4276
    %v4405 = vpop.f32.mrf.mxu0
    %v4406 = vadd.f32 0.0, %v4405
    %4407 = vmatmul.f32.gmra.mxu0 %v4279
    %v4408 = vpop.f32.mrf.mxu0
    %v4409 = vadd.f32 0.0, %v4408
    %4410 = vdwg.mxu0
    %4411 = vst.msk [vmem:[#allocation5] sm:$0xff] %vm1899, %v4299
    %4412 = vst.msk [vmem:[#allocation5 + $0x8] sm:$0xff] %vm1899, %v4302
    %4413 = vst.msk [vmem:[#allocation5 + $0x10] sm:$0xff] %vm1899, %v4305
    %4414 = vst.msk [vmem:[#allocation5 + $0x18] sm:$0xff] %vm1899, %v4308
    %4415 = vst.msk [vmem:[#allocation5 + $0x20] sm:$0xff] %vm1899, %v4311
    %4416 = vst.msk [vmem:[#allocation5 + $0x28] sm:$0xff] %vm1899, %v4314
    %4417 = vst.msk [vmem:[#allocation5 + $0x30] sm:$0xff] %vm1899, %v4317
    %4418 = vst.msk [vmem:[#allocation5 + $0x38] sm:$0xff] %vm1899, %v4320
    %4419 = vst.msk [vmem:[#allocation5 + $0x40] sm:$0xff] %vm1899, %v4323
    %4420 = vst.msk [vmem:[#allocation5 + $0x48] sm:$0xff] %vm1899, %v4326
    %4421 = vst.msk [vmem:[#allocation5 + $0x50] sm:$0xff] %vm1899, %v4329
    %4422 = vst.msk [vmem:[#allocation5 + $0x58] sm:$0xff] %vm1899, %v4332
    %4423 = vst.msk [vmem:[#allocation5 + $0x60] sm:$0xff] %vm1899, %v4335
    %4424 = vst.msk [vmem:[#allocation5 + $0x68] sm:$0xff] %vm1899, %v4338
    %4425 = vst.msk [vmem:[#allocation5 + $0x70] sm:$0xff] %vm1899, %v4341
    %4426 = vst.msk [vmem:[#allocation5 + $0x78] sm:$0xff] %vm1899, %v4344
    %4443 = vrot.lane.b32.xlu0 %v4299, 112
    %v4444 = vpop.permute.xlu0 %4443
    %4445 = vrot.lane.b32.xlu0 %v4302, 112
    %v4446 = vpop.permute.xlu0 %4445
    %4447 = vrot.lane.b32.xlu0 %v4305, 112
    %v4448 = vpop.permute.xlu0 %4447
    %4449 = vrot.lane.b32.xlu0 %v4308, 112
    %v4450 = vpop.permute.xlu0 %4449
    %4451 = vrot.lane.b32.xlu0 %v4311, 112
    %v4452 = vpop.permute.xlu0 %4451
    %4453 = vrot.lane.b32.xlu0 %v4314, 112
    %v4454 = vpop.permute.xlu0 %4453
    %4455 = vrot.lane.b32.xlu0 %v4317, 112
    %v4456 = vpop.permute.xlu0 %4455
    %4457 = vrot.lane.b32.xlu0 %v4320, 112
    %v4458 = vpop.permute.xlu0 %4457
    %4459 = vrot.lane.b32.xlu0 %v4323, 112
    %v4460 = vpop.permute.xlu0 %4459
    %4461 = vrot.lane.b32.xlu0 %v4326, 112
    %v4462 = vpop.permute.xlu0 %4461
    %4463 = vrot.lane.b32.xlu0 %v4329, 112
    %v4464 = vpop.permute.xlu0 %4463
    %4465 = vrot.lane.b32.xlu0 %v4332, 112
    %v4466 = vpop.permute.xlu0 %4465
    %4467 = vrot.lane.b32.xlu0 %v4335, 112
    %v4468 = vpop.permute.xlu0 %4467
    %4469 = vrot.lane.b32.xlu0 %v4338, 112
    %v4470 = vpop.permute.xlu0 %4469
    %4471 = vrot.lane.b32.xlu0 %v4341, 112
    %v4472 = vpop.permute.xlu0 %4471
    %4473 = vrot.lane.b32.xlu0 %v4344, 112
    %v4474 = vpop.permute.xlu0 %4473
    %4491 = vst.msk [vmem:[#allocation5 + $0x80] sm:$0xff] %vm1899, %v4444
    %4492 = vst.msk [vmem:[#allocation5 + $0x88] sm:$0xff] %vm1899, %v4446
    %4493 = vst.msk [vmem:[#allocation5 + $0x90] sm:$0xff] %vm1899, %v4448
    %4494 = vst.msk [vmem:[#allocation5 + $0x98] sm:$0xff] %vm1899, %v4450
    %4495 = vst.msk [vmem:[#allocation5 + $0xa0] sm:$0xff] %vm1899, %v4452
    %4496 = vst.msk [vmem:[#allocation5 + $0xa8] sm:$0xff] %vm1899, %v4454
    %4497 = vst.msk [vmem:[#allocation5 + $0xb0] sm:$0xff] %vm1899, %v4456
    %4498 = vst.msk [vmem:[#allocation5 + $0xb8] sm:$0xff] %vm1899, %v4458
    %4499 = vst.msk [vmem:[#allocation5 + $0xc0] sm:$0xff] %vm1899, %v4460
    %4500 = vst.msk [vmem:[#allocation5 + $0xc8] sm:$0xff] %vm1899, %v4462
    %4501 = vst.msk [vmem:[#allocation5 + $0xd0] sm:$0xff] %vm1899, %v4464
    %4502 = vst.msk [vmem:[#allocation5 + $0xd8] sm:$0xff] %vm1899, %v4466
    %4503 = vst.msk [vmem:[#allocation5 + $0xe0] sm:$0xff] %vm1899, %v4468
    %4504 = vst.msk [vmem:[#allocation5 + $0xe8] sm:$0xff] %vm1899, %v4470
    %4505 = vst.msk [vmem:[#allocation5 + $0xf0] sm:$0xff] %vm1899, %v4472
    %4506 = vst.msk [vmem:[#allocation5 + $0xf8] sm:$0xff] %vm1899, %v4474
    %4507 = vrot.lane.b32.xlu0 %v4299, 96
    %v4508 = vpop.permute.xlu0 %4507
    %4509 = vrot.lane.b32.xlu0 %v4302, 96
    %v4510 = vpop.permute.xlu0 %4509
    %4511 = vrot.lane.b32.xlu0 %v4305, 96
    %v4512 = vpop.permute.xlu0 %4511
    %4513 = vrot.lane.b32.xlu0 %v4308, 96
    %v4514 = vpop.permute.xlu0 %4513
    %4515 = vrot.lane.b32.xlu0 %v4311, 96
    %v4516 = vpop.permute.xlu0 %4515
    %4517 = vrot.lane.b32.xlu0 %v4314, 96
    %v4518 = vpop.permute.xlu0 %4517
    %4519 = vrot.lane.b32.xlu0 %v4317, 96
    %v4520 = vpop.permute.xlu0 %4519
    %4521 = vrot.lane.b32.xlu0 %v4320, 96
    %v4522 = vpop.permute.xlu0 %4521
    %4523 = vrot.lane.b32.xlu0 %v4323, 96
    %v4524 = vpop.permute.xlu0 %4523
    %4525 = vrot.lane.b32.xlu0 %v4326, 96
    %v4526 = vpop.permute.xlu0 %4525
    %4527 = vrot.lane.b32.xlu0 %v4329, 96
    %v4528 = vpop.permute.xlu0 %4527
    %4529 = vrot.lane.b32.xlu0 %v4332, 96
    %v4530 = vpop.permute.xlu0 %4529
    %4531 = vrot.lane.b32.xlu0 %v4335, 96
    %v4532 = vpop.permute.xlu0 %4531
    %4533 = vrot.lane.b32.xlu0 %v4338, 96
    %v4534 = vpop.permute.xlu0 %4533
    %4535 = vrot.lane.b32.xlu0 %v4341, 96
    %v4536 = vpop.permute.xlu0 %4535
    %4537 = vrot.lane.b32.xlu0 %v4344, 96
    %v4538 = vpop.permute.xlu0 %4537
    %4555 = vst.msk [vmem:[#allocation5 + $0x100] sm:$0xff] %vm1899, %v4508
    %4556 = vst.msk [vmem:[#allocation5 + $0x108] sm:$0xff] %vm1899, %v4510
    %4557 = vst.msk [vmem:[#allocation5 + $0x110] sm:$0xff] %vm1899, %v4512
    %4558 = vst.msk [vmem:[#allocation5 + $0x118] sm:$0xff] %vm1899, %v4514
    %4559 = vst.msk [vmem:[#allocation5 + $0x120] sm:$0xff] %vm1899, %v4516
    %4560 = vst.msk [vmem:[#allocation5 + $0x128] sm:$0xff] %vm1899, %v4518
    %4561 = vst.msk [vmem:[#allocation5 + $0x130] sm:$0xff] %vm1899, %v4520
    %4562 = vst.msk [vmem:[#allocation5 + $0x138] sm:$0xff] %vm1899, %v4522
    %4563 = vst.msk [vmem:[#allocation5 + $0x140] sm:$0xff] %vm1899, %v4524
    %4564 = vst.msk [vmem:[#allocation5 + $0x148] sm:$0xff] %vm1899, %v4526
    %4565 = vst.msk [vmem:[#allocation5 + $0x150] sm:$0xff] %vm1899, %v4528
    %4566 = vst.msk [vmem:[#allocation5 + $0x158] sm:$0xff] %vm1899, %v4530
    %4567 = vst.msk [vmem:[#allocation5 + $0x160] sm:$0xff] %vm1899, %v4532
    %4568 = vst.msk [vmem:[#allocation5 + $0x168] sm:$0xff] %vm1899, %v4534
    %4569 = vst.msk [vmem:[#allocation5 + $0x170] sm:$0xff] %vm1899, %v4536
    %4570 = vst.msk [vmem:[#allocation5 + $0x178] sm:$0xff] %vm1899, %v4538
    %4571 = vrot.lane.b32.xlu0 %v4299, 80
    %v4572 = vpop.permute.xlu0 %4571
    %4573 = vrot.lane.b32.xlu0 %v4302, 80
    %v4574 = vpop.permute.xlu0 %4573
    %4575 = vrot.lane.b32.xlu0 %v4305, 80
    %v4576 = vpop.permute.xlu0 %4575
    %4577 = vrot.lane.b32.xlu0 %v4308, 80
    %v4578 = vpop.permute.xlu0 %4577
    %4579 = vrot.lane.b32.xlu0 %v4311, 80
    %v4580 = vpop.permute.xlu0 %4579
    %4581 = vrot.lane.b32.xlu0 %v4314, 80
    %v4582 = vpop.permute.xlu0 %4581
    %4583 = vrot.lane.b32.xlu0 %v4317, 80
    %v4584 = vpop.permute.xlu0 %4583
    %4585 = vrot.lane.b32.xlu0 %v4320, 80
    %v4586 = vpop.permute.xlu0 %4585
    %4587 = vrot.lane.b32.xlu0 %v4323, 80
    %v4588 = vpop.permute.xlu0 %4587
    %4589 = vrot.lane.b32.xlu0 %v4326, 80
    %v4590 = vpop.permute.xlu0 %4589
    %4591 = vrot.lane.b32.xlu0 %v4329, 80
    %v4592 = vpop.permute.xlu0 %4591
    %4593 = vrot.lane.b32.xlu0 %v4332, 80
    %v4594 = vpop.permute.xlu0 %4593
    %4595 = vrot.lane.b32.xlu0 %v4335, 80
    %v4596 = vpop.permute.xlu0 %4595
    %4597 = vrot.lane.b32.xlu0 %v4338, 80
    %v4598 = vpop.permute.xlu0 %4597
    %4599 = vrot.lane.b32.xlu0 %v4341, 80
    %v4600 = vpop.permute.xlu0 %4599
    %4601 = vrot.lane.b32.xlu0 %v4344, 80
    %v4602 = vpop.permute.xlu0 %4601
    %4619 = vst.msk [vmem:[#allocation5 + $0x180] sm:$0xff] %vm1899, %v4572
    %4620 = vst.msk [vmem:[#allocation5 + $0x188] sm:$0xff] %vm1899, %v4574
    %4621 = vst.msk [vmem:[#allocation5 + $0x190] sm:$0xff] %vm1899, %v4576
    %4622 = vst.msk [vmem:[#allocation5 + $0x198] sm:$0xff] %vm1899, %v4578
    %4623 = vst.msk [vmem:[#allocation5 + $0x1a0] sm:$0xff] %vm1899, %v4580
    %4624 = vst.msk [vmem:[#allocation5 + $0x1a8] sm:$0xff] %vm1899, %v4582
    %4625 = vst.msk [vmem:[#allocation5 + $0x1b0] sm:$0xff] %vm1899, %v4584
    %4626 = vst.msk [vmem:[#allocation5 + $0x1b8] sm:$0xff] %vm1899, %v4586
    %4627 = vst.msk [vmem:[#allocation5 + $0x1c0] sm:$0xff] %vm1899, %v4588
    %4628 = vst.msk [vmem:[#allocation5 + $0x1c8] sm:$0xff] %vm1899, %v4590
    %4629 = vst.msk [vmem:[#allocation5 + $0x1d0] sm:$0xff] %vm1899, %v4592
    %4630 = vst.msk [vmem:[#allocation5 + $0x1d8] sm:$0xff] %vm1899, %v4594
    %4631 = vst.msk [vmem:[#allocation5 + $0x1e0] sm:$0xff] %vm1899, %v4596
    %4632 = vst.msk [vmem:[#allocation5 + $0x1e8] sm:$0xff] %vm1899, %v4598
    %4633 = vst.msk [vmem:[#allocation5 + $0x1f0] sm:$0xff] %vm1899, %v4600
    %4634 = vst.msk [vmem:[#allocation5 + $0x1f8] sm:$0xff] %vm1899, %v4602
    %4635 = vrot.lane.b32.xlu0 %v4299, 64
    %v4636 = vpop.permute.xlu0 %4635
    %4637 = vrot.lane.b32.xlu0 %v4302, 64
    %v4638 = vpop.permute.xlu0 %4637
    %4639 = vrot.lane.b32.xlu0 %v4305, 64
    %v4640 = vpop.permute.xlu0 %4639
    %4641 = vrot.lane.b32.xlu0 %v4308, 64
    %v4642 = vpop.permute.xlu0 %4641
    %4643 = vrot.lane.b32.xlu0 %v4311, 64
    %v4644 = vpop.permute.xlu0 %4643
    %4645 = vrot.lane.b32.xlu0 %v4314, 64
    %v4646 = vpop.permute.xlu0 %4645
    %4647 = vrot.lane.b32.xlu0 %v4317, 64
    %v4648 = vpop.permute.xlu0 %4647
    %4649 = vrot.lane.b32.xlu0 %v4320, 64
    %v4650 = vpop.permute.xlu0 %4649
    %4651 = vrot.lane.b32.xlu0 %v4323, 64
    %v4652 = vpop.permute.xlu0 %4651
    %4653 = vrot.lane.b32.xlu0 %v4326, 64
    %v4654 = vpop.permute.xlu0 %4653
    %4655 = vrot.lane.b32.xlu0 %v4329, 64
    %v4656 = vpop.permute.xlu0 %4655
    %4657 = vrot.lane.b32.xlu0 %v4332, 64
    %v4658 = vpop.permute.xlu0 %4657
    %4659 = vrot.lane.b32.xlu0 %v4335, 64
    %v4660 = vpop.permute.xlu0 %4659
    %4661 = vrot.lane.b32.xlu0 %v4338, 64
    %v4662 = vpop.permute.xlu0 %4661
    %4663 = vrot.lane.b32.xlu0 %v4341, 64
    %v4664 = vpop.permute.xlu0 %4663
    %4665 = vrot.lane.b32.xlu0 %v4344, 64
    %v4666 = vpop.permute.xlu0 %4665
    %4683 = vst.msk [vmem:[#allocation5 + $0x200] sm:$0xff] %vm1899, %v4636
    %4684 = vst.msk [vmem:[#allocation5 + $0x208] sm:$0xff] %vm1899, %v4638
    %4685 = vst.msk [vmem:[#allocation5 + $0x210] sm:$0xff] %vm1899, %v4640
    %4686 = vst.msk [vmem:[#allocation5 + $0x218] sm:$0xff] %vm1899, %v4642
    %4687 = vst.msk [vmem:[#allocation5 + $0x220] sm:$0xff] %vm1899, %v4644
    %4688 = vst.msk [vmem:[#allocation5 + $0x228] sm:$0xff] %vm1899, %v4646
    %4689 = vst.msk [vmem:[#allocation5 + $0x230] sm:$0xff] %vm1899, %v4648
    %4690 = vst.msk [vmem:[#allocation5 + $0x238] sm:$0xff] %vm1899, %v4650
    %4691 = vst.msk [vmem:[#allocation5 + $0x240] sm:$0xff] %vm1899, %v4652
    %4692 = vst.msk [vmem:[#allocation5 + $0x248] sm:$0xff] %vm1899, %v4654
    %4693 = vst.msk [vmem:[#allocation5 + $0x250] sm:$0xff] %vm1899, %v4656
    %4694 = vst.msk [vmem:[#allocation5 + $0x258] sm:$0xff] %vm1899, %v4658
    %4695 = vst.msk [vmem:[#allocation5 + $0x260] sm:$0xff] %vm1899, %v4660
    %4696 = vst.msk [vmem:[#allocation5 + $0x268] sm:$0xff] %vm1899, %v4662
    %4697 = vst.msk [vmem:[#allocation5 + $0x270] sm:$0xff] %vm1899, %v4664
    %4698 = vst.msk [vmem:[#allocation5 + $0x278] sm:$0xff] %vm1899, %v4666
    %4699 = vrot.lane.b32.xlu0 %v4299, 48
    %v4700 = vpop.permute.xlu0 %4699
    %4701 = vrot.lane.b32.xlu0 %v4302, 48
    %v4702 = vpop.permute.xlu0 %4701
    %4703 = vrot.lane.b32.xlu0 %v4305, 48
    %v4704 = vpop.permute.xlu0 %4703
    %4705 = vrot.lane.b32.xlu0 %v4308, 48
    %v4706 = vpop.permute.xlu0 %4705
    %4707 = vrot.lane.b32.xlu0 %v4311, 48
    %v4708 = vpop.permute.xlu0 %4707
    %4709 = vrot.lane.b32.xlu0 %v4314, 48
    %v4710 = vpop.permute.xlu0 %4709
    %4711 = vrot.lane.b32.xlu0 %v4317, 48
    %v4712 = vpop.permute.xlu0 %4711
    %4713 = vrot.lane.b32.xlu0 %v4320, 48
    %v4714 = vpop.permute.xlu0 %4713
    %4715 = vrot.lane.b32.xlu0 %v4323, 48
    %v4716 = vpop.permute.xlu0 %4715
    %4717 = vrot.lane.b32.xlu0 %v4326, 48
    %v4718 = vpop.permute.xlu0 %4717
    %4719 = vrot.lane.b32.xlu0 %v4329, 48
    %v4720 = vpop.permute.xlu0 %4719
    %4721 = vrot.lane.b32.xlu0 %v4332, 48
    %v4722 = vpop.permute.xlu0 %4721
    %4723 = vrot.lane.b32.xlu0 %v4335, 48
    %v4724 = vpop.permute.xlu0 %4723
    %4725 = vrot.lane.b32.xlu0 %v4338, 48
    %v4726 = vpop.permute.xlu0 %4725
    %4727 = vrot.lane.b32.xlu0 %v4341, 48
    %v4728 = vpop.permute.xlu0 %4727
    %4729 = vrot.lane.b32.xlu0 %v4344, 48
    %v4730 = vpop.permute.xlu0 %4729
    %4747 = vst.msk [vmem:[#allocation5 + $0x280] sm:$0xff] %vm1899, %v4700
    %4748 = vst.msk [vmem:[#allocation5 + $0x288] sm:$0xff] %vm1899, %v4702
    %4749 = vst.msk [vmem:[#allocation5 + $0x290] sm:$0xff] %vm1899, %v4704
    %4750 = vst.msk [vmem:[#allocation5 + $0x298] sm:$0xff] %vm1899, %v4706
    %4751 = vst.msk [vmem:[#allocation5 + $0x2a0] sm:$0xff] %vm1899, %v4708
    %4752 = vst.msk [vmem:[#allocation5 + $0x2a8] sm:$0xff] %vm1899, %v4710
    %4753 = vst.msk [vmem:[#allocation5 + $0x2b0] sm:$0xff] %vm1899, %v4712
    %4754 = vst.msk [vmem:[#allocation5 + $0x2b8] sm:$0xff] %vm1899, %v4714
    %4755 = vst.msk [vmem:[#allocation5 + $0x2c0] sm:$0xff] %vm1899, %v4716
    %4756 = vst.msk [vmem:[#allocation5 + $0x2c8] sm:$0xff] %vm1899, %v4718
    %4757 = vst.msk [vmem:[#allocation5 + $0x2d0] sm:$0xff] %vm1899, %v4720
    %4758 = vst.msk [vmem:[#allocation5 + $0x2d8] sm:$0xff] %vm1899, %v4722
    %4759 = vst.msk [vmem:[#allocation5 + $0x2e0] sm:$0xff] %vm1899, %v4724
    %4760 = vst.msk [vmem:[#allocation5 + $0x2e8] sm:$0xff] %vm1899, %v4726
    %4761 = vst.msk [vmem:[#allocation5 + $0x2f0] sm:$0xff] %vm1899, %v4728
    %4762 = vst.msk [vmem:[#allocation5 + $0x2f8] sm:$0xff] %vm1899, %v4730
    %4763 = vrot.lane.b32.xlu0 %v4299, 32
    %v4764 = vpop.permute.xlu0 %4763
    %4765 = vrot.lane.b32.xlu0 %v4302, 32
    %v4766 = vpop.permute.xlu0 %4765
    %4767 = vrot.lane.b32.xlu0 %v4305, 32
    %v4768 = vpop.permute.xlu0 %4767
    %4769 = vrot.lane.b32.xlu0 %v4308, 32
    %v4770 = vpop.permute.xlu0 %4769
    %4771 = vrot.lane.b32.xlu0 %v4311, 32
    %v4772 = vpop.permute.xlu0 %4771
    %4773 = vrot.lane.b32.xlu0 %v4314, 32
    %v4774 = vpop.permute.xlu0 %4773
    %4775 = vrot.lane.b32.xlu0 %v4317, 32
    %v4776 = vpop.permute.xlu0 %4775
    %4777 = vrot.lane.b32.xlu0 %v4320, 32
    %v4778 = vpop.permute.xlu0 %4777
    %4779 = vrot.lane.b32.xlu0 %v4323, 32
    %v4780 = vpop.permute.xlu0 %4779
    %4781 = vrot.lane.b32.xlu0 %v4326, 32
    %v4782 = vpop.permute.xlu0 %4781
    %4783 = vrot.lane.b32.xlu0 %v4329, 32
    %v4784 = vpop.permute.xlu0 %4783
    %4785 = vrot.lane.b32.xlu0 %v4332, 32
    %v4786 = vpop.permute.xlu0 %4785
    %4787 = vrot.lane.b32.xlu0 %v4335, 32
    %v4788 = vpop.permute.xlu0 %4787
    %4789 = vrot.lane.b32.xlu0 %v4338, 32
    %v4790 = vpop.permute.xlu0 %4789
    %4791 = vrot.lane.b32.xlu0 %v4341, 32
    %v4792 = vpop.permute.xlu0 %4791
    %4793 = vrot.lane.b32.xlu0 %v4344, 32
    %v4794 = vpop.permute.xlu0 %4793
    %4811 = vst.msk [vmem:[#allocation5 + $0x300] sm:$0xff] %vm1899, %v4764
    %4812 = vst.msk [vmem:[#allocation5 + $0x308] sm:$0xff] %vm1899, %v4766
    %4813 = vst.msk [vmem:[#allocation5 + $0x310] sm:$0xff] %vm1899, %v4768
    %4814 = vst.msk [vmem:[#allocation5 + $0x318] sm:$0xff] %vm1899, %v4770
    %4815 = vst.msk [vmem:[#allocation5 + $0x320] sm:$0xff] %vm1899, %v4772
    %4816 = vst.msk [vmem:[#allocation5 + $0x328] sm:$0xff] %vm1899, %v4774
    %4817 = vst.msk [vmem:[#allocation5 + $0x330] sm:$0xff] %vm1899, %v4776
    %4818 = vst.msk [vmem:[#allocation5 + $0x338] sm:$0xff] %vm1899, %v4778
    %4819 = vst.msk [vmem:[#allocation5 + $0x340] sm:$0xff] %vm1899, %v4780
    %4820 = vst.msk [vmem:[#allocation5 + $0x348] sm:$0xff] %vm1899, %v4782
    %4821 = vst.msk [vmem:[#allocation5 + $0x350] sm:$0xff] %vm1899, %v4784
    %4822 = vst.msk [vmem:[#allocation5 + $0x358] sm:$0xff] %vm1899, %v4786
    %4823 = vst.msk [vmem:[#allocation5 + $0x360] sm:$0xff] %vm1899, %v4788
    %4824 = vst.msk [vmem:[#allocation5 + $0x368] sm:$0xff] %vm1899, %v4790
    %4825 = vst.msk [vmem:[#allocation5 + $0x370] sm:$0xff] %vm1899, %v4792
    %4826 = vst.msk [vmem:[#allocation5 + $0x378] sm:$0xff] %vm1899, %v4794
    %4827 = vrot.lane.b32.xlu0 %v4299, 16
    %v4828 = vpop.permute.xlu0 %4827
    %4829 = vrot.lane.b32.xlu0 %v4302, 16
    %v4830 = vpop.permute.xlu0 %4829
    %4831 = vrot.lane.b32.xlu0 %v4305, 16
    %v4832 = vpop.permute.xlu0 %4831
    %4833 = vrot.lane.b32.xlu0 %v4308, 16
    %v4834 = vpop.permute.xlu0 %4833
    %4835 = vrot.lane.b32.xlu0 %v4311, 16
    %v4836 = vpop.permute.xlu0 %4835
    %4837 = vrot.lane.b32.xlu0 %v4314, 16
    %v4838 = vpop.permute.xlu0 %4837
    %4839 = vrot.lane.b32.xlu0 %v4317, 16
    %v4840 = vpop.permute.xlu0 %4839
    %4841 = vrot.lane.b32.xlu0 %v4320, 16
    %v4842 = vpop.permute.xlu0 %4841
    %4843 = vrot.lane.b32.xlu0 %v4323, 16
    %v4844 = vpop.permute.xlu0 %4843
    %4845 = vrot.lane.b32.xlu0 %v4326, 16
    %v4846 = vpop.permute.xlu0 %4845
    %4847 = vrot.lane.b32.xlu0 %v4329, 16
    %v4848 = vpop.permute.xlu0 %4847
    %4849 = vrot.lane.b32.xlu0 %v4332, 16
    %v4850 = vpop.permute.xlu0 %4849
    %4851 = vrot.lane.b32.xlu0 %v4335, 16
    %v4852 = vpop.permute.xlu0 %4851
    %4853 = vrot.lane.b32.xlu0 %v4338, 16
    %v4854 = vpop.permute.xlu0 %4853
    %4855 = vrot.lane.b32.xlu0 %v4341, 16
    %v4856 = vpop.permute.xlu0 %4855
    %4857 = vrot.lane.b32.xlu0 %v4344, 16
    %v4858 = vpop.permute.xlu0 %4857
    %4875 = vst.msk [vmem:[#allocation5 + $0x380] sm:$0xff] %vm1899, %v4828
    %4876 = vst.msk [vmem:[#allocation5 + $0x388] sm:$0xff] %vm1899, %v4830
    %4877 = vst.msk [vmem:[#allocation5 + $0x390] sm:$0xff] %vm1899, %v4832
    %4878 = vst.msk [vmem:[#allocation5 + $0x398] sm:$0xff] %vm1899, %v4834
    %4879 = vst.msk [vmem:[#allocation5 + $0x3a0] sm:$0xff] %vm1899, %v4836
    %4880 = vst.msk [vmem:[#allocation5 + $0x3a8] sm:$0xff] %vm1899, %v4838
    %4881 = vst.msk [vmem:[#allocation5 + $0x3b0] sm:$0xff] %vm1899, %v4840
    %4882 = vst.msk [vmem:[#allocation5 + $0x3b8] sm:$0xff] %vm1899, %v4842
    %4883 = vst.msk [vmem:[#allocation5 + $0x3c0] sm:$0xff] %vm1899, %v4844
    %4884 = vst.msk [vmem:[#allocation5 + $0x3c8] sm:$0xff] %vm1899, %v4846
    %4885 = vst.msk [vmem:[#allocation5 + $0x3d0] sm:$0xff] %vm1899, %v4848
    %4886 = vst.msk [vmem:[#allocation5 + $0x3d8] sm:$0xff] %vm1899, %v4850
    %4887 = vst.msk [vmem:[#allocation5 + $0x3e0] sm:$0xff] %vm1899, %v4852
    %4888 = vst.msk [vmem:[#allocation5 + $0x3e8] sm:$0xff] %vm1899, %v4854
    %4889 = vst.msk [vmem:[#allocation5 + $0x3f0] sm:$0xff] %vm1899, %v4856
    %4890 = vst.msk [vmem:[#allocation5 + $0x3f8] sm:$0xff] %vm1899, %v4858
    %4891 = vst.msk [vmem:[#allocation5 + $0x400] sm:$0xff] %vm1899, %v4364
    %4892 = vst.msk [vmem:[#allocation5 + $0x408] sm:$0xff] %vm1899, %v4367
    %4893 = vst.msk [vmem:[#allocation5 + $0x410] sm:$0xff] %vm1899, %v4370
    %4894 = vst.msk [vmem:[#allocation5 + $0x418] sm:$0xff] %vm1899, %v4373
    %4895 = vst.msk [vmem:[#allocation5 + $0x420] sm:$0xff] %vm1899, %v4376
    %4896 = vst.msk [vmem:[#allocation5 + $0x428] sm:$0xff] %vm1899, %v4379
    %4897 = vst.msk [vmem:[#allocation5 + $0x430] sm:$0xff] %vm1899, %v4382
    %4898 = vst.msk [vmem:[#allocation5 + $0x438] sm:$0xff] %vm1899, %v4385
    %4899 = vst.msk [vmem:[#allocation5 + $0x440] sm:$0xff] %vm1899, %v4388
    %4900 = vst.msk [vmem:[#allocation5 + $0x448] sm:$0xff] %vm1899, %v4391
    %4901 = vst.msk [vmem:[#allocation5 + $0x450] sm:$0xff] %vm1899, %v4394
    %4902 = vst.msk [vmem:[#allocation5 + $0x458] sm:$0xff] %vm1899, %v4397
    %4903 = vst.msk [vmem:[#allocation5 + $0x460] sm:$0xff] %vm1899, %v4400
    %4904 = vst.msk [vmem:[#allocation5 + $0x468] sm:$0xff] %vm1899, %v4403
    %4905 = vst.msk [vmem:[#allocation5 + $0x470] sm:$0xff] %vm1899, %v4406
    %4906 = vst.msk [vmem:[#allocation5 + $0x478] sm:$0xff] %vm1899, %v4409
    %v4907 = vld [vmem:[#allocation5] sm:$0xff]
    %v4908 = vld [vmem:[#allocation5 + $0x8] sm:$0xff]
    %v4909 = vld [vmem:[#allocation5 + $0x10] sm:$0xff]
    %v4910 = vld [vmem:[#allocation5 + $0x18] sm:$0xff]
    %v4911 = vld [vmem:[#allocation5 + $0x20] sm:$0xff]
    %v4912 = vld [vmem:[#allocation5 + $0x28] sm:$0xff]
    %v4913 = vld [vmem:[#allocation5 + $0x30] sm:$0xff]
    %v4914 = vld [vmem:[#allocation5 + $0x38] sm:$0xff]
    %v4915 = vld [vmem:[#allocation5 + $0x40] sm:$0xff]
    %v4916 = vld [vmem:[#allocation5 + $0x48] sm:$0xff]
    %v4917 = vld [vmem:[#allocation5 + $0x50] sm:$0xff]
    %v4918 = vld [vmem:[#allocation5 + $0x58] sm:$0xff]
    %v4919 = vld [vmem:[#allocation5 + $0x60] sm:$0xff]
    %v4920 = vld [vmem:[#allocation5 + $0x68] sm:$0xff]
    %v4921 = vld [vmem:[#allocation5 + $0x70] sm:$0xff]
    %v4922 = vld [vmem:[#allocation5 + $0x78] sm:$0xff]
    %v4923 = vld [vmem:[#allocation5 + $0x80] sm:$0xff]
    %v4924 = vld [vmem:[#allocation5 + $0x88] sm:$0xff]
    %v4925 = vld [vmem:[#allocation5 + $0x90] sm:$0xff]
    %v4926 = vld [vmem:[#allocation5 + $0x98] sm:$0xff]
    %v4927 = vld [vmem:[#allocation5 + $0xa0] sm:$0xff]
    %v4928 = vld [vmem:[#allocation5 + $0xa8] sm:$0xff]
    %v4929 = vld [vmem:[#allocation5 + $0xb0] sm:$0xff]
    %v4930 = vld [vmem:[#allocation5 + $0xb8] sm:$0xff]
    %v4931 = vld [vmem:[#allocation5 + $0xc0] sm:$0xff]
    %v4932 = vld [vmem:[#allocation5 + $0xc8] sm:$0xff]
    %v4933 = vld [vmem:[#allocation5 + $0xd0] sm:$0xff]
    %v4934 = vld [vmem:[#allocation5 + $0xd8] sm:$0xff]
    %v4935 = vld [vmem:[#allocation5 + $0xe0] sm:$0xff]
    %v4936 = vld [vmem:[#allocation5 + $0xe8] sm:$0xff]
    %v4937 = vld [vmem:[#allocation5 + $0xf0] sm:$0xff]
    %v4938 = vld [vmem:[#allocation5 + $0xf8] sm:$0xff]
    %v4939 = vld [vmem:[#allocation5 + $0x100] sm:$0xff]
    %v4940 = vld [vmem:[#allocation5 + $0x108] sm:$0xff]
    %v4941 = vld [vmem:[#allocation5 + $0x110] sm:$0xff]
    %v4942 = vld [vmem:[#allocation5 + $0x118] sm:$0xff]
    %v4943 = vld [vmem:[#allocation5 + $0x120] sm:$0xff]
    %v4944 = vld [vmem:[#allocation5 + $0x128] sm:$0xff]
    %v4945 = vld [vmem:[#allocation5 + $0x130] sm:$0xff]
    %v4946 = vld [vmem:[#allocation5 + $0x138] sm:$0xff]
    %v4947 = vld [vmem:[#allocation5 + $0x140] sm:$0xff]
    %v4948 = vld [vmem:[#allocation5 + $0x148] sm:$0xff]
    %v4949 = vld [vmem:[#allocation5 + $0x150] sm:$0xff]
    %v4950 = vld [vmem:[#allocation5 + $0x158] sm:$0xff]
    %v4951 = vld [vmem:[#allocation5 + $0x160] sm:$0xff]
    %v4952 = vld [vmem:[#allocation5 + $0x168] sm:$0xff]
    %v4953 = vld [vmem:[#allocation5 + $0x170] sm:$0xff]
    %v4954 = vld [vmem:[#allocation5 + $0x178] sm:$0xff]
    %v4955 = vld [vmem:[#allocation5 + $0x180] sm:$0xff]
    %v4956 = vld [vmem:[#allocation5 + $0x188] sm:$0xff]
    %v4957 = vld [vmem:[#allocation5 + $0x190] sm:$0xff]
    %v4958 = vld [vmem:[#allocation5 + $0x198] sm:$0xff]
    %v4959 = vld [vmem:[#allocation5 + $0x1a0] sm:$0xff]
    %v4960 = vld [vmem:[#allocation5 + $0x1a8] sm:$0xff]
    %v4961 = vld [vmem:[#allocation5 + $0x1b0] sm:$0xff]
    %v4962 = vld [vmem:[#allocation5 + $0x1b8] sm:$0xff]
    %v4963 = vld [vmem:[#allocation5 + $0x1c0] sm:$0xff]
    %v4964 = vld [vmem:[#allocation5 + $0x1c8] sm:$0xff]
    %v4965 = vld [vmem:[#allocation5 + $0x1d0] sm:$0xff]
    %v4966 = vld [vmem:[#allocation5 + $0x1d8] sm:$0xff]
    %v4967 = vld [vmem:[#allocation5 + $0x1e0] sm:$0xff]
    %v4968 = vld [vmem:[#allocation5 + $0x1e8] sm:$0xff]
    %v4969 = vld [vmem:[#allocation5 + $0x1f0] sm:$0xff]
    %v4970 = vld [vmem:[#allocation5 + $0x1f8] sm:$0xff]
    %v4971 = vld [vmem:[#allocation5 + $0x200] sm:$0xff]
    %v4972 = vld [vmem:[#allocation5 + $0x208] sm:$0xff]
    %v4973 = vld [vmem:[#allocation5 + $0x210] sm:$0xff]
    %v4974 = vld [vmem:[#allocation5 + $0x218] sm:$0xff]
    %v4975 = vld [vmem:[#allocation5 + $0x220] sm:$0xff]
    %v4976 = vld [vmem:[#allocation5 + $0x228] sm:$0xff]
    %v4977 = vld [vmem:[#allocation5 + $0x230] sm:$0xff]
    %v4978 = vld [vmem:[#allocation5 + $0x238] sm:$0xff]
    %v4979 = vld [vmem:[#allocation5 + $0x240] sm:$0xff]
    %v4980 = vld [vmem:[#allocation5 + $0x248] sm:$0xff]
    %v4981 = vld [vmem:[#allocation5 + $0x250] sm:$0xff]
    %v4982 = vld [vmem:[#allocation5 + $0x258] sm:$0xff]
    %v4983 = vld [vmem:[#allocation5 + $0x260] sm:$0xff]
    %v4984 = vld [vmem:[#allocation5 + $0x268] sm:$0xff]
    %v4985 = vld [vmem:[#allocation5 + $0x270] sm:$0xff]
    %v4986 = vld [vmem:[#allocation5 + $0x278] sm:$0xff]
    %v4987 = vld [vmem:[#allocation5 + $0x280] sm:$0xff]
    %v4988 = vld [vmem:[#allocation5 + $0x288] sm:$0xff]
    %v4989 = vld [vmem:[#allocation5 + $0x290] sm:$0xff]
    %v4990 = vld [vmem:[#allocation5 + $0x298] sm:$0xff]
    %v4991 = vld [vmem:[#allocation5 + $0x2a0] sm:$0xff]
    %v4992 = vld [vmem:[#allocation5 + $0x2a8] sm:$0xff]
    %v4993 = vld [vmem:[#allocation5 + $0x2b0] sm:$0xff]
    %v4994 = vld [vmem:[#allocation5 + $0x2b8] sm:$0xff]
    %v4995 = vld [vmem:[#allocation5 + $0x2c0] sm:$0xff]
    %v4996 = vld [vmem:[#allocation5 + $0x2c8] sm:$0xff]
    %v4997 = vld [vmem:[#allocation5 + $0x2d0] sm:$0xff]
    %v4998 = vld [vmem:[#allocation5 + $0x2d8] sm:$0xff]
    %v4999 = vld [vmem:[#allocation5 + $0x2e0] sm:$0xff]
    %v5000 = vld [vmem:[#allocation5 + $0x2e8] sm:$0xff]
    %v5001 = vld [vmem:[#allocation5 + $0x2f0] sm:$0xff]
    %v5002 = vld [vmem:[#allocation5 + $0x2f8] sm:$0xff]
    %v5003 = vld [vmem:[#allocation5 + $0x300] sm:$0xff]
    %v5004 = vld [vmem:[#allocation5 + $0x308] sm:$0xff]
    %v5005 = vld [vmem:[#allocation5 + $0x310] sm:$0xff]
    %v5006 = vld [vmem:[#allocation5 + $0x318] sm:$0xff]
    %v5007 = vld [vmem:[#allocation5 + $0x320] sm:$0xff]
    %v5008 = vld [vmem:[#allocation5 + $0x328] sm:$0xff]
    %v5009 = vld [vmem:[#allocation5 + $0x330] sm:$0xff]
    %v5010 = vld [vmem:[#allocation5 + $0x338] sm:$0xff]
    %v5011 = vld [vmem:[#allocation5 + $0x340] sm:$0xff]
    %v5012 = vld [vmem:[#allocation5 + $0x348] sm:$0xff]
    %v5013 = vld [vmem:[#allocation5 + $0x350] sm:$0xff]
    %v5014 = vld [vmem:[#allocation5 + $0x358] sm:$0xff]
    %v5015 = vld [vmem:[#allocation5 + $0x360] sm:$0xff]
    %v5016 = vld [vmem:[#allocation5 + $0x368] sm:$0xff]
    %v5017 = vld [vmem:[#allocation5 + $0x370] sm:$0xff]
    %v5018 = vld [vmem:[#allocation5 + $0x378] sm:$0xff]
    %v5019 = vld [vmem:[#allocation5 + $0x380] sm:$0xff]
    %v5020 = vld [vmem:[#allocation5 + $0x388] sm:$0xff]
    %v5021 = vld [vmem:[#allocation5 + $0x390] sm:$0xff]
    %v5022 = vld [vmem:[#allocation5 + $0x398] sm:$0xff]
    %v5023 = vld [vmem:[#allocation5 + $0x3a0] sm:$0xff]
    %v5024 = vld [vmem:[#allocation5 + $0x3a8] sm:$0xff]
    %v5025 = vld [vmem:[#allocation5 + $0x3b0] sm:$0xff]
    %v5026 = vld [vmem:[#allocation5 + $0x3b8] sm:$0xff]
    %v5027 = vld [vmem:[#allocation5 + $0x3c0] sm:$0xff]
    %v5028 = vld [vmem:[#allocation5 + $0x3c8] sm:$0xff]
    %v5029 = vld [vmem:[#allocation5 + $0x3d0] sm:$0xff]
    %v5030 = vld [vmem:[#allocation5 + $0x3d8] sm:$0xff]
    %v5031 = vld [vmem:[#allocation5 + $0x3e0] sm:$0xff]
    %v5032 = vld [vmem:[#allocation5 + $0x3e8] sm:$0xff]
    %v5033 = vld [vmem:[#allocation5 + $0x3f0] sm:$0xff]
    %v5034 = vld [vmem:[#allocation5 + $0x3f8] sm:$0xff]
    %v5035 = vld [vmem:[#allocation5 + $0x400] sm:$0xff]
    %v5036 = vld [vmem:[#allocation5 + $0x408] sm:$0xff]
    %v5037 = vld [vmem:[#allocation5 + $0x410] sm:$0xff]
    %v5038 = vld [vmem:[#allocation5 + $0x418] sm:$0xff]
    %v5039 = vld [vmem:[#allocation5 + $0x420] sm:$0xff]
    %v5040 = vld [vmem:[#allocation5 + $0x428] sm:$0xff]
    %v5041 = vld [vmem:[#allocation5 + $0x430] sm:$0xff]
    %v5042 = vld [vmem:[#allocation5 + $0x438] sm:$0xff]
    %v5043 = vld [vmem:[#allocation5 + $0x440] sm:$0xff]
    %v5044 = vld [vmem:[#allocation5 + $0x448] sm:$0xff]
    %v5045 = vld [vmem:[#allocation5 + $0x450] sm:$0xff]
    %v5046 = vld [vmem:[#allocation5 + $0x458] sm:$0xff]
    %v5047 = vld [vmem:[#allocation5 + $0x460] sm:$0xff]
    %v5048 = vld [vmem:[#allocation5 + $0x468] sm:$0xff]
    %v5049 = vld [vmem:[#allocation5 + $0x470] sm:$0xff]
    %v5050 = vld [vmem:[#allocation5 + $0x478] sm:$0xff]
    %v5051 = vperm.slane %v2636, 3
    %5052 = vmatpush.msra.mxu0 %v4922
    %5053 = vmatpush.msra.mxu0 %v4921
    %5054 = vmatpush.msra.mxu0 %v4920
    %5055 = vmatpush.msra.mxu0 %v4919
    %5056 = vmatpush.msra.mxu0 %v4918
    %5057 = vmatpush.msra.mxu0 %v4917
    %5058 = vmatpush.msra.mxu0 %v4916
    %5059 = vmatpush.msra.mxu0 %v4915
    %5060 = vmatpush.msra.mxu0 %v4914
    %5061 = vmatpush.msra.mxu0 %v4913
    %5062 = vmatpush.msra.mxu0 %v4912
    %5063 = vmatpush.msra.mxu0 %v4911
    %5064 = vmatpush.msra.mxu0 %v4910
    %5065 = vmatpush.msra.mxu0 %v4909
    %5066 = vmatpush.msra.mxu0 %v4908
    %5067 = vmatpush.msra.mxu0 %v4907
    %5068 = vmatmul.f32.gmra.mxu0 %v2492
    %v5069 = vpop.f32.mrf.mxu0
    %v5070 = vadd.f32 %v5051, %v5069
    %5071 = vmatmul.f32.gmra.mxu0 %v2501
    %v5072 = vpop.f32.mrf.mxu0
    %v5073 = vadd.f32 %v5051, %v5072
    %5074 = vmatmul.f32.gmra.mxu0 %v2510
    %v5075 = vpop.f32.mrf.mxu0
    %v5076 = vadd.f32 %v5051, %v5075
    %5077 = vmatmul.f32.gmra.mxu0 %v2519
    %v5078 = vpop.f32.mrf.mxu0
    %v5079 = vadd.f32 %v5051, %v5078
    %5080 = vmatmul.f32.gmra.mxu0 %v2528
    %v5081 = vpop.f32.mrf.mxu0
    %v5082 = vadd.f32 %v5051, %v5081
    %5083 = vmatmul.f32.gmra.mxu0 %v2537
    %v5084 = vpop.f32.mrf.mxu0
    %v5085 = vadd.f32 %v5051, %v5084
    %5086 = vmatmul.f32.gmra.mxu0 %v2546
    %v5087 = vpop.f32.mrf.mxu0
    %v5088 = vadd.f32 %v5051, %v5087
    %5089 = vmatmul.f32.gmra.mxu0 %v2555
    %v5090 = vpop.f32.mrf.mxu0
    %v5091 = vadd.f32 %v5051, %v5090
    %5092 = vmatmul.f32.gmra.mxu0 %v2564
    %v5093 = vpop.f32.mrf.mxu0
    %v5094 = vadd.f32 %v5051, %v5093
    %5095 = vmatmul.f32.gmra.mxu0 %v2573
    %v5096 = vpop.f32.mrf.mxu0
    %v5097 = vadd.f32 %v5051, %v5096
    %5098 = vmatmul.f32.gmra.mxu0 %v2582
    %v5099 = vpop.f32.mrf.mxu0
    %v5100 = vadd.f32 %v5051, %v5099
    %5101 = vmatmul.f32.gmra.mxu0 %v2591
    %v5102 = vpop.f32.mrf.mxu0
    %v5103 = vadd.f32 %v5051, %v5102
    %5104 = vmatmul.f32.gmra.mxu0 %v2600
    %v5105 = vpop.f32.mrf.mxu0
    %v5106 = vadd.f32 %v5051, %v5105
    %5107 = vmatmul.f32.gmra.mxu0 %v2609
    %v5108 = vpop.f32.mrf.mxu0
    %v5109 = vadd.f32 %v5051, %v5108
    %5110 = vmatmul.f32.gmra.mxu0 %v2618
    %v5111 = vpop.f32.mrf.mxu0
    %v5112 = vadd.f32 %v5051, %v5111
    %5113 = vmatmul.f32.gmra.mxu0 %v2627
    %v5114 = vpop.f32.mrf.mxu0
    %v5115 = vadd.f32 %v5051, %v5114
    %5116 = vdwg.mxu0
    %5117 = vmatpush.msra.mxu0 %v4938
    %5118 = vmatpush.msra.mxu0 %v4937
    %5119 = vmatpush.msra.mxu0 %v4936
    %5120 = vmatpush.msra.mxu0 %v4935
    %5121 = vmatpush.msra.mxu0 %v4934
    %5122 = vmatpush.msra.mxu0 %v4933
    %5123 = vmatpush.msra.mxu0 %v4932
    %5124 = vmatpush.msra.mxu0 %v4931
    %5125 = vmatpush.msra.mxu0 %v4930
    %5126 = vmatpush.msra.mxu0 %v4929
    %5127 = vmatpush.msra.mxu0 %v4928
    %5128 = vmatpush.msra.mxu0 %v4927
    %5129 = vmatpush.msra.mxu0 %v4926
    %5130 = vmatpush.msra.mxu0 %v4925
    %5131 = vmatpush.msra.mxu0 %v4924
    %5132 = vmatpush.msra.mxu0 %v4923
    %5133 = vmatmul.f32.gmra.mxu0 %v2493
    %v5134 = vpop.f32.mrf.mxu0
    %v5135 = vadd.f32 %v5070, %v5134
    %5136 = vmatmul.f32.gmra.mxu0 %v2502
    %v5137 = vpop.f32.mrf.mxu0
    %v5138 = vadd.f32 %v5073, %v5137
    %5139 = vmatmul.f32.gmra.mxu0 %v2511
    %v5140 = vpop.f32.mrf.mxu0
    %v5141 = vadd.f32 %v5076, %v5140
    %5142 = vmatmul.f32.gmra.mxu0 %v2520
    %v5143 = vpop.f32.mrf.mxu0
    %v5144 = vadd.f32 %v5079, %v5143
    %5145 = vmatmul.f32.gmra.mxu0 %v2529
    %v5146 = vpop.f32.mrf.mxu0
    %v5147 = vadd.f32 %v5082, %v5146
    %5148 = vmatmul.f32.gmra.mxu0 %v2538
    %v5149 = vpop.f32.mrf.mxu0
    %v5150 = vadd.f32 %v5085, %v5149
    %5151 = vmatmul.f32.gmra.mxu0 %v2547
    %v5152 = vpop.f32.mrf.mxu0
    %v5153 = vadd.f32 %v5088, %v5152
    %5154 = vmatmul.f32.gmra.mxu0 %v2556
    %v5155 = vpop.f32.mrf.mxu0
    %v5156 = vadd.f32 %v5091, %v5155
    %5157 = vmatmul.f32.gmra.mxu0 %v2565
    %v5158 = vpop.f32.mrf.mxu0
    %v5159 = vadd.f32 %v5094, %v5158
    %5160 = vmatmul.f32.gmra.mxu0 %v2574
    %v5161 = vpop.f32.mrf.mxu0
    %v5162 = vadd.f32 %v5097, %v5161
    %5163 = vmatmul.f32.gmra.mxu0 %v2583
    %v5164 = vpop.f32.mrf.mxu0
    %v5165 = vadd.f32 %v5100, %v5164
    %5166 = vmatmul.f32.gmra.mxu0 %v2592
    %v5167 = vpop.f32.mrf.mxu0
    %v5168 = vadd.f32 %v5103, %v5167
    %5169 = vmatmul.f32.gmra.mxu0 %v2601
    %v5170 = vpop.f32.mrf.mxu0
    %v5171 = vadd.f32 %v5106, %v5170
    %5172 = vmatmul.f32.gmra.mxu0 %v2610
    %v5173 = vpop.f32.mrf.mxu0
    %v5174 = vadd.f32 %v5109, %v5173
    %5175 = vmatmul.f32.gmra.mxu0 %v2619
    %v5176 = vpop.f32.mrf.mxu0
    %v5177 = vadd.f32 %v5112, %v5176
    %5178 = vmatmul.f32.gmra.mxu0 %v2628
    %v5179 = vpop.f32.mrf.mxu0
    %v5180 = vadd.f32 %v5115, %v5179
    %5181 = vdwg.mxu0
    %5182 = vmatpush.msra.mxu0 %v4954
    %5183 = vmatpush.msra.mxu0 %v4953
    %5184 = vmatpush.msra.mxu0 %v4952
    %5185 = vmatpush.msra.mxu0 %v4951
    %5186 = vmatpush.msra.mxu0 %v4950
    %5187 = vmatpush.msra.mxu0 %v4949
    %5188 = vmatpush.msra.mxu0 %v4948
    %5189 = vmatpush.msra.mxu0 %v4947
    %5190 = vmatpush.msra.mxu0 %v4946
    %5191 = vmatpush.msra.mxu0 %v4945
    %5192 = vmatpush.msra.mxu0 %v4944
    %5193 = vmatpush.msra.mxu0 %v4943
    %5194 = vmatpush.msra.mxu0 %v4942
    %5195 = vmatpush.msra.mxu0 %v4941
    %5196 = vmatpush.msra.mxu0 %v4940
    %5197 = vmatpush.msra.mxu0 %v4939
    %5198 = vmatmul.f32.gmra.mxu0 %v2494
    %v5199 = vpop.f32.mrf.mxu0
    %v5200 = vadd.f32 %v5135, %v5199
    %5201 = vmatmul.f32.gmra.mxu0 %v2503
    %v5202 = vpop.f32.mrf.mxu0
    %v5203 = vadd.f32 %v5138, %v5202
    %5204 = vmatmul.f32.gmra.mxu0 %v2512
    %v5205 = vpop.f32.mrf.mxu0
    %v5206 = vadd.f32 %v5141, %v5205
    %5207 = vmatmul.f32.gmra.mxu0 %v2521
    %v5208 = vpop.f32.mrf.mxu0
    %v5209 = vadd.f32 %v5144, %v5208
    %5210 = vmatmul.f32.gmra.mxu0 %v2530
    %v5211 = vpop.f32.mrf.mxu0
    %v5212 = vadd.f32 %v5147, %v5211
    %5213 = vmatmul.f32.gmra.mxu0 %v2539
    %v5214 = vpop.f32.mrf.mxu0
    %v5215 = vadd.f32 %v5150, %v5214
    %5216 = vmatmul.f32.gmra.mxu0 %v2548
    %v5217 = vpop.f32.mrf.mxu0
    %v5218 = vadd.f32 %v5153, %v5217
    %5219 = vmatmul.f32.gmra.mxu0 %v2557
    %v5220 = vpop.f32.mrf.mxu0
    %v5221 = vadd.f32 %v5156, %v5220
    %5222 = vmatmul.f32.gmra.mxu0 %v2566
    %v5223 = vpop.f32.mrf.mxu0
    %v5224 = vadd.f32 %v5159, %v5223
    %5225 = vmatmul.f32.gmra.mxu0 %v2575
    %v5226 = vpop.f32.mrf.mxu0
    %v5227 = vadd.f32 %v5162, %v5226
    %5228 = vmatmul.f32.gmra.mxu0 %v2584
    %v5229 = vpop.f32.mrf.mxu0
    %v5230 = vadd.f32 %v5165, %v5229
    %5231 = vmatmul.f32.gmra.mxu0 %v2593
    %v5232 = vpop.f32.mrf.mxu0
    %v5233 = vadd.f32 %v5168, %v5232
    %5234 = vmatmul.f32.gmra.mxu0 %v2602
    %v5235 = vpop.f32.mrf.mxu0
    %v5236 = vadd.f32 %v5171, %v5235
    %5237 = vmatmul.f32.gmra.mxu0 %v2611
    %v5238 = vpop.f32.mrf.mxu0
    %v5239 = vadd.f32 %v5174, %v5238
    %5240 = vmatmul.f32.gmra.mxu0 %v2620
    %v5241 = vpop.f32.mrf.mxu0
    %v5242 = vadd.f32 %v5177, %v5241
    %5243 = vmatmul.f32.gmra.mxu0 %v2629
    %v5244 = vpop.f32.mrf.mxu0
    %v5245 = vadd.f32 %v5180, %v5244
    %5246 = vdwg.mxu0
    %5247 = vmatpush.msra.mxu0 %v4970
    %5248 = vmatpush.msra.mxu0 %v4969
    %5249 = vmatpush.msra.mxu0 %v4968
    %5250 = vmatpush.msra.mxu0 %v4967
    %5251 = vmatpush.msra.mxu0 %v4966
    %5252 = vmatpush.msra.mxu0 %v4965
    %5253 = vmatpush.msra.mxu0 %v4964
    %5254 = vmatpush.msra.mxu0 %v4963
    %5255 = vmatpush.msra.mxu0 %v4962
    %5256 = vmatpush.msra.mxu0 %v4961
    %5257 = vmatpush.msra.mxu0 %v4960
    %5258 = vmatpush.msra.mxu0 %v4959
    %5259 = vmatpush.msra.mxu0 %v4958
    %5260 = vmatpush.msra.mxu0 %v4957
    %5261 = vmatpush.msra.mxu0 %v4956
    %5262 = vmatpush.msra.mxu0 %v4955
    %5263 = vmatmul.f32.gmra.mxu0 %v2495
    %v5264 = vpop.f32.mrf.mxu0
    %v5265 = vadd.f32 %v5200, %v5264
    %5266 = vmatmul.f32.gmra.mxu0 %v2504
    %v5267 = vpop.f32.mrf.mxu0
    %v5268 = vadd.f32 %v5203, %v5267
    %5269 = vmatmul.f32.gmra.mxu0 %v2513
    %v5270 = vpop.f32.mrf.mxu0
    %v5271 = vadd.f32 %v5206, %v5270
    %5272 = vmatmul.f32.gmra.mxu0 %v2522
    %v5273 = vpop.f32.mrf.mxu0
    %v5274 = vadd.f32 %v5209, %v5273
    %5275 = vmatmul.f32.gmra.mxu0 %v2531
    %v5276 = vpop.f32.mrf.mxu0
    %v5277 = vadd.f32 %v5212, %v5276
    %5278 = vmatmul.f32.gmra.mxu0 %v2540
    %v5279 = vpop.f32.mrf.mxu0
    %v5280 = vadd.f32 %v5215, %v5279
    %5281 = vmatmul.f32.gmra.mxu0 %v2549
    %v5282 = vpop.f32.mrf.mxu0
    %v5283 = vadd.f32 %v5218, %v5282
    %5284 = vmatmul.f32.gmra.mxu0 %v2558
    %v5285 = vpop.f32.mrf.mxu0
    %v5286 = vadd.f32 %v5221, %v5285
    %5287 = vmatmul.f32.gmra.mxu0 %v2567
    %v5288 = vpop.f32.mrf.mxu0
    %v5289 = vadd.f32 %v5224, %v5288
    %5290 = vmatmul.f32.gmra.mxu0 %v2576
    %v5291 = vpop.f32.mrf.mxu0
    %v5292 = vadd.f32 %v5227, %v5291
    %5293 = vmatmul.f32.gmra.mxu0 %v2585
    %v5294 = vpop.f32.mrf.mxu0
    %v5295 = vadd.f32 %v5230, %v5294
    %5296 = vmatmul.f32.gmra.mxu0 %v2594
    %v5297 = vpop.f32.mrf.mxu0
    %v5298 = vadd.f32 %v5233, %v5297
    %5299 = vmatmul.f32.gmra.mxu0 %v2603
    %v5300 = vpop.f32.mrf.mxu0
    %v5301 = vadd.f32 %v5236, %v5300
    %5302 = vmatmul.f32.gmra.mxu0 %v2612
    %v5303 = vpop.f32.mrf.mxu0
    %v5304 = vadd.f32 %v5239, %v5303
    %5305 = vmatmul.f32.gmra.mxu0 %v2621
    %v5306 = vpop.f32.mrf.mxu0
    %v5307 = vadd.f32 %v5242, %v5306
    %5308 = vmatmul.f32.gmra.mxu0 %v2630
    %v5309 = vpop.f32.mrf.mxu0
    %v5310 = vadd.f32 %v5245, %v5309
    %5311 = vdwg.mxu0
    %5312 = vmatpush.msra.mxu0 %v4986
    %5313 = vmatpush.msra.mxu0 %v4985
    %5314 = vmatpush.msra.mxu0 %v4984
    %5315 = vmatpush.msra.mxu0 %v4983
    %5316 = vmatpush.msra.mxu0 %v4982
    %5317 = vmatpush.msra.mxu0 %v4981
    %5318 = vmatpush.msra.mxu0 %v4980
    %5319 = vmatpush.msra.mxu0 %v4979
    %5320 = vmatpush.msra.mxu0 %v4978
    %5321 = vmatpush.msra.mxu0 %v4977
    %5322 = vmatpush.msra.mxu0 %v4976
    %5323 = vmatpush.msra.mxu0 %v4975
    %5324 = vmatpush.msra.mxu0 %v4974
    %5325 = vmatpush.msra.mxu0 %v4973
    %5326 = vmatpush.msra.mxu0 %v4972
    %5327 = vmatpush.msra.mxu0 %v4971
    %5328 = vmatmul.f32.gmra.mxu0 %v2496
    %v5329 = vpop.f32.mrf.mxu0
    %v5330 = vadd.f32 %v5265, %v5329
    %5331 = vmatmul.f32.gmra.mxu0 %v2505
    %v5332 = vpop.f32.mrf.mxu0
    %v5333 = vadd.f32 %v5268, %v5332
    %5334 = vmatmul.f32.gmra.mxu0 %v2514
    %v5335 = vpop.f32.mrf.mxu0
    %v5336 = vadd.f32 %v5271, %v5335
    %5337 = vmatmul.f32.gmra.mxu0 %v2523
    %v5338 = vpop.f32.mrf.mxu0
    %v5339 = vadd.f32 %v5274, %v5338
    %5340 = vmatmul.f32.gmra.mxu0 %v2532
    %v5341 = vpop.f32.mrf.mxu0
    %v5342 = vadd.f32 %v5277, %v5341
    %5343 = vmatmul.f32.gmra.mxu0 %v2541
    %v5344 = vpop.f32.mrf.mxu0
    %v5345 = vadd.f32 %v5280, %v5344
    %5346 = vmatmul.f32.gmra.mxu0 %v2550
    %v5347 = vpop.f32.mrf.mxu0
    %v5348 = vadd.f32 %v5283, %v5347
    %5349 = vmatmul.f32.gmra.mxu0 %v2559
    %v5350 = vpop.f32.mrf.mxu0
    %v5351 = vadd.f32 %v5286, %v5350
    %5352 = vmatmul.f32.gmra.mxu0 %v2568
    %v5353 = vpop.f32.mrf.mxu0
    %v5354 = vadd.f32 %v5289, %v5353
    %5355 = vmatmul.f32.gmra.mxu0 %v2577
    %v5356 = vpop.f32.mrf.mxu0
    %v5357 = vadd.f32 %v5292, %v5356
    %5358 = vmatmul.f32.gmra.mxu0 %v2586
    %v5359 = vpop.f32.mrf.mxu0
    %v5360 = vadd.f32 %v5295, %v5359
    %5361 = vmatmul.f32.gmra.mxu0 %v2595
    %v5362 = vpop.f32.mrf.mxu0
    %v5363 = vadd.f32 %v5298, %v5362
    %5364 = vmatmul.f32.gmra.mxu0 %v2604
    %v5365 = vpop.f32.mrf.mxu0
    %v5366 = vadd.f32 %v5301, %v5365
    %5367 = vmatmul.f32.gmra.mxu0 %v2613
    %v5368 = vpop.f32.mrf.mxu0
    %v5369 = vadd.f32 %v5304, %v5368
    %5370 = vmatmul.f32.gmra.mxu0 %v2622
    %v5371 = vpop.f32.mrf.mxu0
    %v5372 = vadd.f32 %v5307, %v5371
    %5373 = vmatmul.f32.gmra.mxu0 %v2631
    %v5374 = vpop.f32.mrf.mxu0
    %v5375 = vadd.f32 %v5310, %v5374
    %5376 = vdwg.mxu0
    %5377 = vmatpush.msra.mxu0 %v5002
    %5378 = vmatpush.msra.mxu0 %v5001
    %5379 = vmatpush.msra.mxu0 %v5000
    %5380 = vmatpush.msra.mxu0 %v4999
    %5381 = vmatpush.msra.mxu0 %v4998
    %5382 = vmatpush.msra.mxu0 %v4997
    %5383 = vmatpush.msra.mxu0 %v4996
    %5384 = vmatpush.msra.mxu0 %v4995
    %5385 = vmatpush.msra.mxu0 %v4994
    %5386 = vmatpush.msra.mxu0 %v4993
    %5387 = vmatpush.msra.mxu0 %v4992
    %5388 = vmatpush.msra.mxu0 %v4991
    %5389 = vmatpush.msra.mxu0 %v4990
    %5390 = vmatpush.msra.mxu0 %v4989
    %5391 = vmatpush.msra.mxu0 %v4988
    %5392 = vmatpush.msra.mxu0 %v4987
    %5393 = vmatmul.f32.gmra.mxu0 %v2497
    %v5394 = vpop.f32.mrf.mxu0
    %v5395 = vadd.f32 %v5330, %v5394
    %5396 = vmatmul.f32.gmra.mxu0 %v2506
    %v5397 = vpop.f32.mrf.mxu0
    %v5398 = vadd.f32 %v5333, %v5397
    %5399 = vmatmul.f32.gmra.mxu0 %v2515
    %v5400 = vpop.f32.mrf.mxu0
    %v5401 = vadd.f32 %v5336, %v5400
    %5402 = vmatmul.f32.gmra.mxu0 %v2524
    %v5403 = vpop.f32.mrf.mxu0
    %v5404 = vadd.f32 %v5339, %v5403
    %5405 = vmatmul.f32.gmra.mxu0 %v2533
    %v5406 = vpop.f32.mrf.mxu0
    %v5407 = vadd.f32 %v5342, %v5406
    %5408 = vmatmul.f32.gmra.mxu0 %v2542
    %v5409 = vpop.f32.mrf.mxu0
    %v5410 = vadd.f32 %v5345, %v5409
    %5411 = vmatmul.f32.gmra.mxu0 %v2551
    %v5412 = vpop.f32.mrf.mxu0
    %v5413 = vadd.f32 %v5348, %v5412
    %5414 = vmatmul.f32.gmra.mxu0 %v2560
    %v5415 = vpop.f32.mrf.mxu0
    %v5416 = vadd.f32 %v5351, %v5415
    %5417 = vmatmul.f32.gmra.mxu0 %v2569
    %v5418 = vpop.f32.mrf.mxu0
    %v5419 = vadd.f32 %v5354, %v5418
    %5420 = vmatmul.f32.gmra.mxu0 %v2578
    %v5421 = vpop.f32.mrf.mxu0
    %v5422 = vadd.f32 %v5357, %v5421
    %5423 = vmatmul.f32.gmra.mxu0 %v2587
    %v5424 = vpop.f32.mrf.mxu0
    %v5425 = vadd.f32 %v5360, %v5424
    %5426 = vmatmul.f32.gmra.mxu0 %v2596
    %v5427 = vpop.f32.mrf.mxu0
    %v5428 = vadd.f32 %v5363, %v5427
    %5429 = vmatmul.f32.gmra.mxu0 %v2605
    %v5430 = vpop.f32.mrf.mxu0
    %v5431 = vadd.f32 %v5366, %v5430
    %5432 = vmatmul.f32.gmra.mxu0 %v2614
    %v5433 = vpop.f32.mrf.mxu0
    %v5434 = vadd.f32 %v5369, %v5433
    %5435 = vmatmul.f32.gmra.mxu0 %v2623
    %v5436 = vpop.f32.mrf.mxu0
    %v5437 = vadd.f32 %v5372, %v5436
    %5438 = vmatmul.f32.gmra.mxu0 %v2632
    %v5439 = vpop.f32.mrf.mxu0
    %v5440 = vadd.f32 %v5375, %v5439
    %5441 = vdwg.mxu0
    %5442 = vmatpush.msra.mxu0 %v5018
    %5443 = vmatpush.msra.mxu0 %v5017
    %5444 = vmatpush.msra.mxu0 %v5016
    %5445 = vmatpush.msra.mxu0 %v5015
    %5446 = vmatpush.msra.mxu0 %v5014
    %5447 = vmatpush.msra.mxu0 %v5013
    %5448 = vmatpush.msra.mxu0 %v5012
    %5449 = vmatpush.msra.mxu0 %v5011
    %5450 = vmatpush.msra.mxu0 %v5010
    %5451 = vmatpush.msra.mxu0 %v5009
    %5452 = vmatpush.msra.mxu0 %v5008
    %5453 = vmatpush.msra.mxu0 %v5007
    %5454 = vmatpush.msra.mxu0 %v5006
    %5455 = vmatpush.msra.mxu0 %v5005
    %5456 = vmatpush.msra.mxu0 %v5004
    %5457 = vmatpush.msra.mxu0 %v5003
    %5458 = vmatmul.f32.gmra.mxu0 %v2498
    %v5459 = vpop.f32.mrf.mxu0
    %v5460 = vadd.f32 %v5395, %v5459
    %5461 = vmatmul.f32.gmra.mxu0 %v2507
    %v5462 = vpop.f32.mrf.mxu0
    %v5463 = vadd.f32 %v5398, %v5462
    %5464 = vmatmul.f32.gmra.mxu0 %v2516
    %v5465 = vpop.f32.mrf.mxu0
    %v5466 = vadd.f32 %v5401, %v5465
    %5467 = vmatmul.f32.gmra.mxu0 %v2525
    %v5468 = vpop.f32.mrf.mxu0
    %v5469 = vadd.f32 %v5404, %v5468
    %5470 = vmatmul.f32.gmra.mxu0 %v2534
    %v5471 = vpop.f32.mrf.mxu0
    %v5472 = vadd.f32 %v5407, %v5471
    %5473 = vmatmul.f32.gmra.mxu0 %v2543
    %v5474 = vpop.f32.mrf.mxu0
    %v5475 = vadd.f32 %v5410, %v5474
    %5476 = vmatmul.f32.gmra.mxu0 %v2552
    %v5477 = vpop.f32.mrf.mxu0
    %v5478 = vadd.f32 %v5413, %v5477
    %5479 = vmatmul.f32.gmra.mxu0 %v2561
    %v5480 = vpop.f32.mrf.mxu0
    %v5481 = vadd.f32 %v5416, %v5480
    %5482 = vmatmul.f32.gmra.mxu0 %v2570
    %v5483 = vpop.f32.mrf.mxu0
    %v5484 = vadd.f32 %v5419, %v5483
    %5485 = vmatmul.f32.gmra.mxu0 %v2579
    %v5486 = vpop.f32.mrf.mxu0
    %v5487 = vadd.f32 %v5422, %v5486
    %5488 = vmatmul.f32.gmra.mxu0 %v2588
    %v5489 = vpop.f32.mrf.mxu0
    %v5490 = vadd.f32 %v5425, %v5489
    %5491 = vmatmul.f32.gmra.mxu0 %v2597
    %v5492 = vpop.f32.mrf.mxu0
    %v5493 = vadd.f32 %v5428, %v5492
    %5494 = vmatmul.f32.gmra.mxu0 %v2606
    %v5495 = vpop.f32.mrf.mxu0
    %v5496 = vadd.f32 %v5431, %v5495
    %5497 = vmatmul.f32.gmra.mxu0 %v2615
    %v5498 = vpop.f32.mrf.mxu0
    %v5499 = vadd.f32 %v5434, %v5498
    %5500 = vmatmul.f32.gmra.mxu0 %v2624
    %v5501 = vpop.f32.mrf.mxu0
    %v5502 = vadd.f32 %v5437, %v5501
    %5503 = vmatmul.f32.gmra.mxu0 %v2633
    %v5504 = vpop.f32.mrf.mxu0
    %v5505 = vadd.f32 %v5440, %v5504
    %5506 = vdwg.mxu0
    %5507 = vmatpush.msra.mxu0 %v5034
    %5508 = vmatpush.msra.mxu0 %v5033
    %5509 = vmatpush.msra.mxu0 %v5032
    %5510 = vmatpush.msra.mxu0 %v5031
    %5511 = vmatpush.msra.mxu0 %v5030
    %5512 = vmatpush.msra.mxu0 %v5029
    %5513 = vmatpush.msra.mxu0 %v5028
    %5514 = vmatpush.msra.mxu0 %v5027
    %5515 = vmatpush.msra.mxu0 %v5026
    %5516 = vmatpush.msra.mxu0 %v5025
    %5517 = vmatpush.msra.mxu0 %v5024
    %5518 = vmatpush.msra.mxu0 %v5023
    %5519 = vmatpush.msra.mxu0 %v5022
    %5520 = vmatpush.msra.mxu0 %v5021
    %5521 = vmatpush.msra.mxu0 %v5020
    %5522 = vmatpush.msra.mxu0 %v5019
    %5523 = vmatmul.f32.gmra.mxu0 %v2499
    %v5524 = vpop.f32.mrf.mxu0
    %v5525 = vadd.f32 %v5460, %v5524
    %5526 = vmatmul.f32.gmra.mxu0 %v2508
    %v5527 = vpop.f32.mrf.mxu0
    %v5528 = vadd.f32 %v5463, %v5527
    %5529 = vmatmul.f32.gmra.mxu0 %v2517
    %v5530 = vpop.f32.mrf.mxu0
    %v5531 = vadd.f32 %v5466, %v5530
    %5532 = vmatmul.f32.gmra.mxu0 %v2526
    %v5533 = vpop.f32.mrf.mxu0
    %v5534 = vadd.f32 %v5469, %v5533
    %5535 = vmatmul.f32.gmra.mxu0 %v2535
    %v5536 = vpop.f32.mrf.mxu0
    %v5537 = vadd.f32 %v5472, %v5536
    %5538 = vmatmul.f32.gmra.mxu0 %v2544
    %v5539 = vpop.f32.mrf.mxu0
    %v5540 = vadd.f32 %v5475, %v5539
    %5541 = vmatmul.f32.gmra.mxu0 %v2553
    %v5542 = vpop.f32.mrf.mxu0
    %v5543 = vadd.f32 %v5478, %v5542
    %5544 = vmatmul.f32.gmra.mxu0 %v2562
    %v5545 = vpop.f32.mrf.mxu0
    %v5546 = vadd.f32 %v5481, %v5545
    %5547 = vmatmul.f32.gmra.mxu0 %v2571
    %v5548 = vpop.f32.mrf.mxu0
    %v5549 = vadd.f32 %v5484, %v5548
    %5550 = vmatmul.f32.gmra.mxu0 %v2580
    %v5551 = vpop.f32.mrf.mxu0
    %v5552 = vadd.f32 %v5487, %v5551
    %5553 = vmatmul.f32.gmra.mxu0 %v2589
    %v5554 = vpop.f32.mrf.mxu0
    %v5555 = vadd.f32 %v5490, %v5554
    %5556 = vmatmul.f32.gmra.mxu0 %v2598
    %v5557 = vpop.f32.mrf.mxu0
    %v5558 = vadd.f32 %v5493, %v5557
    %5559 = vmatmul.f32.gmra.mxu0 %v2607
    %v5560 = vpop.f32.mrf.mxu0
    %v5561 = vadd.f32 %v5496, %v5560
    %5562 = vmatmul.f32.gmra.mxu0 %v2616
    %v5563 = vpop.f32.mrf.mxu0
    %v5564 = vadd.f32 %v5499, %v5563
    %5565 = vmatmul.f32.gmra.mxu0 %v2625
    %v5566 = vpop.f32.mrf.mxu0
    %v5567 = vadd.f32 %v5502, %v5566
    %5568 = vmatmul.f32.gmra.mxu0 %v2634
    %v5569 = vpop.f32.mrf.mxu0
    %v5570 = vadd.f32 %v5505, %v5569
    %5571 = vdwg.mxu0
    %5572 = vmatpush.msra.mxu0 %v5050
    %5573 = vmatpush.msra.mxu0 %v5049
    %5574 = vmatpush.msra.mxu0 %v5048
    %5575 = vmatpush.msra.mxu0 %v5047
    %5576 = vmatpush.msra.mxu0 %v5046
    %5577 = vmatpush.msra.mxu0 %v5045
    %5578 = vmatpush.msra.mxu0 %v5044
    %5579 = vmatpush.msra.mxu0 %v5043
    %5580 = vmatpush.msra.mxu0 %v5042
    %5581 = vmatpush.msra.mxu0 %v5041
    %5582 = vmatpush.msra.mxu0 %v5040
    %5583 = vmatpush.msra.mxu0 %v5039
    %5584 = vmatpush.msra.mxu0 %v5038
    %5585 = vmatpush.msra.mxu0 %v5037
    %5586 = vmatpush.msra.mxu0 %v5036
    %5587 = vmatpush.msra.mxu0 %v5035
    %5588 = vmatmul.f32.gmra.mxu0 %v2500
    %v5589 = vpop.f32.mrf.mxu0
    %v5590 = vadd.f32 %v5525, %v5589
    %5591 = vmatmul.f32.gmra.mxu0 %v2509
    %v5592 = vpop.f32.mrf.mxu0
    %v5593 = vadd.f32 %v5528, %v5592
    %5594 = vmatmul.f32.gmra.mxu0 %v2518
    %v5595 = vpop.f32.mrf.mxu0
    %v5596 = vadd.f32 %v5531, %v5595
    %5597 = vmatmul.f32.gmra.mxu0 %v2527
    %v5598 = vpop.f32.mrf.mxu0
    %v5599 = vadd.f32 %v5534, %v5598
    %5600 = vmatmul.f32.gmra.mxu0 %v2536
    %v5601 = vpop.f32.mrf.mxu0
    %v5602 = vadd.f32 %v5537, %v5601
    %5603 = vmatmul.f32.gmra.mxu0 %v2545
    %v5604 = vpop.f32.mrf.mxu0
    %v5605 = vadd.f32 %v5540, %v5604
    %5606 = vmatmul.f32.gmra.mxu0 %v2554
    %v5607 = vpop.f32.mrf.mxu0
    %v5608 = vadd.f32 %v5543, %v5607
    %5609 = vmatmul.f32.gmra.mxu0 %v2563
    %v5610 = vpop.f32.mrf.mxu0
    %v5611 = vadd.f32 %v5546, %v5610
    %5612 = vmatmul.f32.gmra.mxu0 %v2572
    %v5613 = vpop.f32.mrf.mxu0
    %v5614 = vadd.f32 %v5549, %v5613
    %5615 = vmatmul.f32.gmra.mxu0 %v2581
    %v5616 = vpop.f32.mrf.mxu0
    %v5617 = vadd.f32 %v5552, %v5616
    %5618 = vmatmul.f32.gmra.mxu0 %v2590
    %v5619 = vpop.f32.mrf.mxu0
    %v5620 = vadd.f32 %v5555, %v5619
    %5621 = vmatmul.f32.gmra.mxu0 %v2599
    %v5622 = vpop.f32.mrf.mxu0
    %v5623 = vadd.f32 %v5558, %v5622
    %5624 = vmatmul.f32.gmra.mxu0 %v2608
    %v5625 = vpop.f32.mrf.mxu0
    %v5626 = vadd.f32 %v5561, %v5625
    %5627 = vmatmul.f32.gmra.mxu0 %v2617
    %v5628 = vpop.f32.mrf.mxu0
    %v5629 = vadd.f32 %v5564, %v5628
    %5630 = vmatmul.f32.gmra.mxu0 %v2626
    %v5631 = vpop.f32.mrf.mxu0
    %v5632 = vadd.f32 %v5567, %v5631
    %5633 = vmatmul.f32.gmra.mxu0 %v2635
    %v5634 = vpop.f32.mrf.mxu0
    %v5635 = vadd.f32 %v5570, %v5634
    %5636 = vdwg.mxu0
    %v5637 = vsel %vm1899, %v5590, 0.0
    %v5638 = vsel %vm1899, %v5593, 0.0
    %v5639 = vadd.f32 %v5637, %v5638
    %v5640 = vsel %vm1899, %v5596, 0.0
    %v5641 = vadd.f32 %v5639, %v5640
    %v5642 = vsel %vm1899, %v5599, 0.0
    %v5643 = vadd.f32 %v5641, %v5642
    %v5644 = vsel %vm1899, %v5602, 0.0
    %v5645 = vadd.f32 %v5643, %v5644
    %v5646 = vsel %vm1899, %v5605, 0.0
    %v5647 = vadd.f32 %v5645, %v5646
    %v5648 = vsel %vm1899, %v5608, 0.0
    %v5649 = vadd.f32 %v5647, %v5648
    %v5650 = vsel %vm1899, %v5611, 0.0
    %v5651 = vadd.f32 %v5649, %v5650
    %v5652 = vsel %vm1899, %v5614, 0.0
    %v5653 = vadd.f32 %v5651, %v5652
    %v5654 = vsel %vm1899, %v5617, 0.0
    %v5655 = vadd.f32 %v5653, %v5654
    %v5656 = vsel %vm1899, %v5620, 0.0
    %v5657 = vadd.f32 %v5655, %v5656
    %v5658 = vsel %vm1899, %v5623, 0.0
    %v5659 = vadd.f32 %v5657, %v5658
    %v5660 = vsel %vm1899, %v5626, 0.0
    %v5661 = vadd.f32 %v5659, %v5660
    %v5662 = vsel %vm1899, %v5629, 0.0
    %v5663 = vadd.f32 %v5661, %v5662
    %v5664 = vsel %vm1899, %v5632, 0.0
    %v5665 = vadd.f32 %v5663, %v5664
    %v5666 = vsel %vm1899, %v5635, 0.0
    %v5667 = vadd.f32 %v5665, %v5666
    %v5668 = vrot.slane %v5667, 4
    %v5669 = vadd.f32 %v5667, %v5668
    %v5670 = vrot.slane %v5669, 2
    %v5671 = vadd.f32 %v5669, %v5670
    %v5672 = vrot.slane %v5671, 1
    %v5673 = vadd.f32 %v5671, %v5672
    %v5674 = vmul.f32 %v5673, %v4084
    %v5675 = vsub.f32 %v5590, %v5674
    %v5676 = vsub.f32 %v5593, %v5674
    %v5677 = vsub.f32 %v5596, %v5674
    %v5678 = vsub.f32 %v5599, %v5674
    %v5679 = vsub.f32 %v5602, %v5674
    %v5680 = vsub.f32 %v5605, %v5674
    %v5681 = vsub.f32 %v5608, %v5674
    %v5682 = vsub.f32 %v5611, %v5674
    %v5683 = vsub.f32 %v5614, %v5674
    %v5684 = vsub.f32 %v5617, %v5674
    %v5685 = vsub.f32 %v5620, %v5674
    %v5686 = vsub.f32 %v5623, %v5674
    %v5687 = vsub.f32 %v5626, %v5674
    %v5688 = vsub.f32 %v5629, %v5674
    %v5689 = vsub.f32 %v5632, %v5674
    %v5690 = vsub.f32 %v5635, %v5674
    %v5691 = vmul.f32 %v5675, %v5675
    %v5692 = vmul.f32 %v5676, %v5676
    %v5693 = vmul.f32 %v5677, %v5677
    %v5694 = vmul.f32 %v5678, %v5678
    %v5695 = vmul.f32 %v5679, %v5679
    %v5696 = vmul.f32 %v5680, %v5680
    %v5697 = vmul.f32 %v5681, %v5681
    %v5698 = vmul.f32 %v5682, %v5682
    %v5699 = vmul.f32 %v5683, %v5683
    %v5700 = vmul.f32 %v5684, %v5684
    %v5701 = vmul.f32 %v5685, %v5685
    %v5702 = vmul.f32 %v5686, %v5686
    %v5703 = vmul.f32 %v5687, %v5687
    %v5704 = vmul.f32 %v5688, %v5688
    %v5705 = vmul.f32 %v5689, %v5689
    %v5706 = vmul.f32 %v5690, %v5690
    %v5707 = vsel %vm1899, %v5691, 0.0
    %v5708 = vsel %vm1899, %v5692, 0.0
    %v5709 = vadd.f32 %v5707, %v5708
    %v5710 = vsel %vm1899, %v5693, 0.0
    %v5711 = vadd.f32 %v5709, %v5710
    %v5712 = vsel %vm1899, %v5694, 0.0
    %v5713 = vadd.f32 %v5711, %v5712
    %v5714 = vsel %vm1899, %v5695, 0.0
    %v5715 = vadd.f32 %v5713, %v5714
    %v5716 = vsel %vm1899, %v5696, 0.0
    %v5717 = vadd.f32 %v5715, %v5716
    %v5718 = vsel %vm1899, %v5697, 0.0
    %v5719 = vadd.f32 %v5717, %v5718
    %v5720 = vsel %vm1899, %v5698, 0.0
    %v5721 = vadd.f32 %v5719, %v5720
    %v5722 = vsel %vm1899, %v5699, 0.0
    %v5723 = vadd.f32 %v5721, %v5722
    %v5724 = vsel %vm1899, %v5700, 0.0
    %v5725 = vadd.f32 %v5723, %v5724
    %v5726 = vsel %vm1899, %v5701, 0.0
    %v5727 = vadd.f32 %v5725, %v5726
    %v5728 = vsel %vm1899, %v5702, 0.0
    %v5729 = vadd.f32 %v5727, %v5728
    %v5730 = vsel %vm1899, %v5703, 0.0
    %v5731 = vadd.f32 %v5729, %v5730
    %v5732 = vsel %vm1899, %v5704, 0.0
    %v5733 = vadd.f32 %v5731, %v5732
    %v5734 = vsel %vm1899, %v5705, 0.0
    %v5735 = vadd.f32 %v5733, %v5734
    %v5736 = vsel %vm1899, %v5706, 0.0
    %v5737 = vadd.f32 %v5735, %v5736
    %v5738 = vrot.slane %v5737, 4
    %v5739 = vadd.f32 %v5737, %v5738
    %v5740 = vrot.slane %v5739, 2
    %v5741 = vadd.f32 %v5739, %v5740
    %v5742 = vrot.slane %v5741, 1
    %v5743 = vadd.f32 %v5741, %v5742
    %v5744 = vmul.f32 %v5743, %v4084
    %v5745 = vadd.f32 %v5744, 1e-05
    %v5746 = vrsqrt.pop %v5745
    %v5747 = vmul.f32 %v5746, %v5745
    %v5748 = vmul.f32 %v5747, %v5746
    %v5749 = vmul.f32 0.5, %v5748
    %v5750 = vsub.f32 1.5, %v5749
    %v5751 = vmul.f32 %v5746, %v5750
    %vm5752 = vweird.f32 %v5745
    %vm5753 = vweird.f32 %v5746
    %vm5754 = vmor %vm5752, %vm5753
    %v5755 = vsel %vm5754, %v5746, %v5751
    %v5756 = vmul.f32 %v5675, %v5755
    %v5757 = vmul.f32 %v5676, %v5755
    %v5758 = vmul.f32 %v5677, %v5755
    %v5759 = vmul.f32 %v5678, %v5755
    %v5760 = vmul.f32 %v5679, %v5755
    %v5761 = vmul.f32 %v5680, %v5755
    %v5762 = vmul.f32 %v5681, %v5755
    %v5763 = vmul.f32 %v5682, %v5755
    %v5764 = vmul.f32 %v5683, %v5755
    %v5765 = vmul.f32 %v5684, %v5755
    %v5766 = vmul.f32 %v5685, %v5755
    %v5767 = vmul.f32 %v5686, %v5755
    %v5768 = vmul.f32 %v5687, %v5755
    %v5769 = vmul.f32 %v5688, %v5755
    %v5770 = vmul.f32 %v5689, %v5755
    %v5771 = vmul.f32 %v5690, %v5755
    %v5772 = vperm.slane %v2636, 4
    %v5773 = vmul.f32 %v5756, %v5772
    %v5774 = vmul.f32 %v5757, %v5772
    %v5775 = vmul.f32 %v5758, %v5772
    %v5776 = vmul.f32 %v5759, %v5772
    %v5777 = vmul.f32 %v5760, %v5772
    %v5778 = vmul.f32 %v5761, %v5772
    %v5779 = vmul.f32 %v5762, %v5772
    %v5780 = vmul.f32 %v5763, %v5772
    %v5781 = vmul.f32 %v5764, %v5772
    %v5782 = vmul.f32 %v5765, %v5772
    %v5783 = vmul.f32 %v5766, %v5772
    %v5784 = vmul.f32 %v5767, %v5772
    %v5785 = vmul.f32 %v5768, %v5772
    %v5786 = vmul.f32 %v5769, %v5772
    %v5787 = vmul.f32 %v5770, %v5772
    %v5788 = vmul.f32 %v5771, %v5772
    %v5789 = vperm.slane %v2636, 5
    %v5790 = vadd.f32 %v5773, %v5789
    %v5791 = vadd.f32 %v5774, %v5789
    %v5792 = vadd.f32 %v5775, %v5789
    %v5793 = vadd.f32 %v5776, %v5789
    %v5794 = vadd.f32 %v5777, %v5789
    %v5795 = vadd.f32 %v5778, %v5789
    %v5796 = vadd.f32 %v5779, %v5789
    %v5797 = vadd.f32 %v5780, %v5789
    %v5798 = vadd.f32 %v5781, %v5789
    %v5799 = vadd.f32 %v5782, %v5789
    %v5800 = vadd.f32 %v5783, %v5789
    %v5801 = vadd.f32 %v5784, %v5789
    %v5802 = vadd.f32 %v5785, %v5789
    %v5803 = vadd.f32 %v5786, %v5789
    %v5804 = vadd.f32 %v5787, %v5789
    %v5805 = vadd.f32 %v5788, %v5789
    %v5806 = vadd.f32 %v5790, %v2468
    %v5807 = vadd.f32 %v5791, %v2469
    %v5808 = vadd.f32 %v5792, %v2470
    %v5809 = vadd.f32 %v5793, %v2471
    %v5810 = vadd.f32 %v5794, %v2472
    %v5811 = vadd.f32 %v5795, %v2473
    %v5812 = vadd.f32 %v5796, %v2474
    %v5813 = vadd.f32 %v5797, %v2475
    %v5814 = vadd.f32 %v5798, %v2476
    %v5815 = vadd.f32 %v5799, %v2477
    %v5816 = vadd.f32 %v5800, %v2478
    %v5817 = vadd.f32 %v5801, %v2479
    %v5818 = vadd.f32 %v5802, %v2480
    %v5819 = vadd.f32 %v5803, %v2481
    %v5820 = vadd.f32 %v5804, %v2482
    %v5821 = vadd.f32 %v5805, %v2483
    %v5822 = vmax.f32 %v5806, 0.0
    %v5823 = vmax.f32 %v5807, 0.0
    %v5824 = vmax.f32 %v5808, 0.0
    %v5825 = vmax.f32 %v5809, 0.0
    %v5826 = vmax.f32 %v5810, 0.0
    %v5827 = vmax.f32 %v5811, 0.0
    %v5828 = vmax.f32 %v5812, 0.0
    %v5829 = vmax.f32 %v5813, 0.0
    %v5830 = vmax.f32 %v5814, 0.0
    %v5831 = vmax.f32 %v5815, 0.0
    %v5832 = vmax.f32 %v5816, 0.0
    %v5833 = vmax.f32 %v5817, 0.0
    %v5834 = vmax.f32 %v5818, 0.0
    %v5835 = vmax.f32 %v5819, 0.0
    %v5836 = vmax.f32 %v5820, 0.0
    %v5837 = vmax.f32 %v5821, 0.0
    %v5838 = vld [vmem:[#allocation28] sm:$0xff]
    %v5839 = vld [vmem:[#allocation28 + $0x8] sm:$0xff]
    %v5840 = vld [vmem:[#allocation29] sm:$0x1]
    %v5842 = vperm.slane %v5840, 0
    %v5845 = vsel %vm1899, %v5822, 0
    %v5848 = vsel %vm1899, %v5823, 0
    %v5851 = vsel %vm1899, %v5824, 0
    %v5854 = vsel %vm1899, %v5825, 0
    %v5857 = vsel %vm1899, %v5826, 0
    %v5860 = vsel %vm1899, %v5827, 0
    %v5863 = vsel %vm1899, %v5828, 0
    %v5866 = vsel %vm1899, %v5829, 0
    %v5869 = vsel %vm1899, %v5830, 0
    %v5872 = vsel %vm1899, %v5831, 0
    %v5875 = vsel %vm1899, %v5832, 0
    %v5878 = vsel %vm1899, %v5833, 0
    %v5881 = vsel %vm1899, %v5834, 0
    %v5884 = vsel %vm1899, %v5835, 0
    %v5887 = vsel %vm1899, %v5836, 0
    %v5890 = vsel %vm1899, %v5837, 0
    %5892 = vmatpush.msra.mxu0 0.0
    %5893 = vmatpush.msra.mxu0 0.0
    %5894 = vmatpush.msra.mxu0 0.0
    %5895 = vmatpush.msra.mxu0 0.0
    %5896 = vmatpush.msra.mxu0 0.0
    %5897 = vmatpush.msra.mxu0 0.0
    %5898 = vmatpush.msra.mxu0 0.0
    %5899 = vmatpush.msra.mxu0 0.0
    %5900 = vmatpush.msra.mxu0 0.0
    %5901 = vmatpush.msra.mxu0 0.0
    %5902 = vmatpush.msra.mxu0 0.0
    %5903 = vmatpush.msra.mxu0 0.0
    %5904 = vmatpush.msra.mxu0 0.0
    %5905 = vmatpush.msra.mxu0 0.0
    %5906 = vmatpush.msra.mxu0 %v5839
    %5907 = vmatpush.msra.mxu0 %v5838
    %5908 = vmatmul.f32.gmra.mxu0 %v5845
    %v5909 = vpop.f32.mrf.mxu0
    %v5910 = vadd.f32 %v5842, %v5909
    %5911 = vmatmul.f32.gmra.mxu0 %v5848
    %v5912 = vpop.f32.mrf.mxu0
    %v5913 = vadd.f32 %v5842, %v5912
    %5914 = vmatmul.f32.gmra.mxu0 %v5851
    %v5915 = vpop.f32.mrf.mxu0
    %v5916 = vadd.f32 %v5842, %v5915
    %5917 = vmatmul.f32.gmra.mxu0 %v5854
    %v5918 = vpop.f32.mrf.mxu0
    %v5919 = vadd.f32 %v5842, %v5918
    %5920 = vmatmul.f32.gmra.mxu0 %v5857
    %v5921 = vpop.f32.mrf.mxu0
    %v5922 = vadd.f32 %v5842, %v5921
    %5923 = vmatmul.f32.gmra.mxu0 %v5860
    %v5924 = vpop.f32.mrf.mxu0
    %v5925 = vadd.f32 %v5842, %v5924
    %5926 = vmatmul.f32.gmra.mxu0 %v5863
    %v5927 = vpop.f32.mrf.mxu0
    %v5928 = vadd.f32 %v5842, %v5927
    %5929 = vmatmul.f32.gmra.mxu0 %v5866
    %v5930 = vpop.f32.mrf.mxu0
    %v5931 = vadd.f32 %v5842, %v5930
    %5932 = vmatmul.f32.gmra.mxu0 %v5869
    %v5933 = vpop.f32.mrf.mxu0
    %v5934 = vadd.f32 %v5842, %v5933
    %5935 = vmatmul.f32.gmra.mxu0 %v5872
    %v5936 = vpop.f32.mrf.mxu0
    %v5937 = vadd.f32 %v5842, %v5936
    %5938 = vmatmul.f32.gmra.mxu0 %v5875
    %v5939 = vpop.f32.mrf.mxu0
    %v5940 = vadd.f32 %v5842, %v5939
    %5941 = vmatmul.f32.gmra.mxu0 %v5878
    %v5942 = vpop.f32.mrf.mxu0
    %v5943 = vadd.f32 %v5842, %v5942
    %5944 = vmatmul.f32.gmra.mxu0 %v5881
    %v5945 = vpop.f32.mrf.mxu0
    %v5946 = vadd.f32 %v5842, %v5945
    %5947 = vmatmul.f32.gmra.mxu0 %v5884
    %v5948 = vpop.f32.mrf.mxu0
    %v5949 = vadd.f32 %v5842, %v5948
    %5950 = vmatmul.f32.gmra.mxu0 %v5887
    %v5951 = vpop.f32.mrf.mxu0
    %v5952 = vadd.f32 %v5842, %v5951
    %5953 = vmatmul.f32.gmra.mxu0 %v5890
    %v5954 = vpop.f32.mrf.mxu0
    %v5955 = vadd.f32 %v5842, %v5954
    %5956 = vdwg.mxu0
    %v5957 = vxor.u32 %v5910, 2147483648
    %v5958 = vxor.u32 %v5913, 2147483648
    %v5959 = vxor.u32 %v5916, 2147483648
    %v5960 = vxor.u32 %v5919, 2147483648
    %v5961 = vxor.u32 %v5922, 2147483648
    %v5962 = vxor.u32 %v5925, 2147483648
    %v5963 = vxor.u32 %v5928, 2147483648
    %v5964 = vxor.u32 %v5931, 2147483648
    %v5965 = vxor.u32 %v5934, 2147483648
    %v5966 = vxor.u32 %v5937, 2147483648
    %v5967 = vxor.u32 %v5940, 2147483648
    %v5968 = vxor.u32 %v5943, 2147483648
    %v5969 = vxor.u32 %v5946, 2147483648
    %v5970 = vxor.u32 %v5949, 2147483648
    %v5971 = vxor.u32 %v5952, 2147483648
    %v5972 = vxor.u32 %v5955, 2147483648
    %v5973 = vmul.f32 %v5957, 1.442695
    %v5974 = vpow.pop %v5973
    %v5975 = vmul.f32 %v5958, 1.442695
    %v5976 = vpow.pop %v5975
    %v5977 = vmul.f32 %v5959, 1.442695
    %v5978 = vpow.pop %v5977
    %v5979 = vmul.f32 %v5960, 1.442695
    %v5980 = vpow.pop %v5979
    %v5981 = vmul.f32 %v5961, 1.442695
    %v5982 = vpow.pop %v5981
    %v5983 = vmul.f32 %v5962, 1.442695
    %v5984 = vpow.pop %v5983
    %v5985 = vmul.f32 %v5963, 1.442695
    %v5986 = vpow.pop %v5985
    %v5987 = vmul.f32 %v5964, 1.442695
    %v5988 = vpow.pop %v5987
    %v5989 = vmul.f32 %v5965, 1.442695
    %v5990 = vpow.pop %v5989
    %v5991 = vmul.f32 %v5966, 1.442695
    %v5992 = vpow.pop %v5991
    %v5993 = vmul.f32 %v5967, 1.442695
    %v5994 = vpow.pop %v5993
    %v5995 = vmul.f32 %v5968, 1.442695
    %v5996 = vpow.pop %v5995
    %v5997 = vmul.f32 %v5969, 1.442695
    %v5998 = vpow.pop %v5997
    %v5999 = vmul.f32 %v5970, 1.442695
    %v6000 = vpow.pop %v5999
    %v6001 = vmul.f32 %v5971, 1.442695
    %v6002 = vpow.pop %v6001
    %v6003 = vmul.f32 %v5972, 1.442695
    %v6004 = vpow.pop %v6003
    %v6005 = vadd.f32 %v5974, 1.0
    %v6006 = vadd.f32 %v5976, 1.0
    %v6007 = vadd.f32 %v5978, 1.0
    %v6008 = vadd.f32 %v5980, 1.0
    %v6009 = vadd.f32 %v5982, 1.0
    %v6010 = vadd.f32 %v5984, 1.0
    %v6011 = vadd.f32 %v5986, 1.0
    %v6012 = vadd.f32 %v5988, 1.0
    %v6013 = vadd.f32 %v5990, 1.0
    %v6014 = vadd.f32 %v5992, 1.0
    %v6015 = vadd.f32 %v5994, 1.0
    %v6016 = vadd.f32 %v5996, 1.0
    %v6017 = vadd.f32 %v5998, 1.0
    %v6018 = vadd.f32 %v6000, 1.0
    %v6019 = vadd.f32 %v6002, 1.0
    %v6020 = vadd.f32 %v6004, 1.0
    %v6021 = vrcp.pop %v6005
    %v6022 = vmul.f32 %v6005, %v6021
    %v6023 = vsub.f32 1.0, %v6022
    %v6024 = vmul.f32 %v6021, %v6023
    %v6025 = vadd.f32 %v6021, %v6024
    %vm6026 = vweird.f32 %v6005
    %vm6027 = vweird.f32 %v6021
    %vm6028 = vmor %vm6026, %vm6027
    %v6029 = vsel %vm6028, %v6021, %v6025
    %v6030 = vand.u32 2147483647, %v6005
    %vm6031 = vcmp.eq.f32.partialorder %v6030, 8.507059e+37
    %v6032 = vand.u32 %v6005, 2147483648
    %v6033 = vor.u32 1.1754944e-38, %v6032
    %v6034 = vsel %vm6031, %v6033, %v6029
    %v6035 = vmul.f32 1.0, %v6034
    %v6036 = vrcp.pop %v6006
    %v6037 = vmul.f32 %v6006, %v6036
    %v6038 = vsub.f32 1.0, %v6037
    %v6039 = vmul.f32 %v6036, %v6038
    %v6040 = vadd.f32 %v6036, %v6039
    %vm6041 = vweird.f32 %v6006
    %vm6042 = vweird.f32 %v6036
    %vm6043 = vmor %vm6041, %vm6042
    %v6044 = vsel %vm6043, %v6036, %v6040
    %v6045 = vand.u32 2147483647, %v6006
    %vm6046 = vcmp.eq.f32.partialorder %v6045, 8.507059e+37
    %v6047 = vand.u32 %v6006, 2147483648
    %v6048 = vor.u32 1.1754944e-38, %v6047
    %v6049 = vsel %vm6046, %v6048, %v6044
    %v6050 = vmul.f32 1.0, %v6049
    %v6051 = vrcp.pop %v6007
    %v6052 = vmul.f32 %v6007, %v6051
    %v6053 = vsub.f32 1.0, %v6052
    %v6054 = vmul.f32 %v6051, %v6053
    %v6055 = vadd.f32 %v6051, %v6054
    %vm6056 = vweird.f32 %v6007
    %vm6057 = vweird.f32 %v6051
    %vm6058 = vmor %vm6056, %vm6057
    %v6059 = vsel %vm6058, %v6051, %v6055
    %v6060 = vand.u32 2147483647, %v6007
    %vm6061 = vcmp.eq.f32.partialorder %v6060, 8.507059e+37
    %v6062 = vand.u32 %v6007, 2147483648
    %v6063 = vor.u32 1.1754944e-38, %v6062
    %v6064 = vsel %vm6061, %v6063, %v6059
    %v6065 = vmul.f32 1.0, %v6064
    %v6066 = vrcp.pop %v6008
    %v6067 = vmul.f32 %v6008, %v6066
    %v6068 = vsub.f32 1.0, %v6067
    %v6069 = vmul.f32 %v6066, %v6068
    %v6070 = vadd.f32 %v6066, %v6069
    %vm6071 = vweird.f32 %v6008
    %vm6072 = vweird.f32 %v6066
    %vm6073 = vmor %vm6071, %vm6072
    %v6074 = vsel %vm6073, %v6066, %v6070
    %v6075 = vand.u32 2147483647, %v6008
    %vm6076 = vcmp.eq.f32.partialorder %v6075, 8.507059e+37
    %v6077 = vand.u32 %v6008, 2147483648
    %v6078 = vor.u32 1.1754944e-38, %v6077
    %v6079 = vsel %vm6076, %v6078, %v6074
    %v6080 = vmul.f32 1.0, %v6079
    %v6081 = vrcp.pop %v6009
    %v6082 = vmul.f32 %v6009, %v6081
    %v6083 = vsub.f32 1.0, %v6082
    %v6084 = vmul.f32 %v6081, %v6083
    %v6085 = vadd.f32 %v6081, %v6084
    %vm6086 = vweird.f32 %v6009
    %vm6087 = vweird.f32 %v6081
    %vm6088 = vmor %vm6086, %vm6087
    %v6089 = vsel %vm6088, %v6081, %v6085
    %v6090 = vand.u32 2147483647, %v6009
    %vm6091 = vcmp.eq.f32.partialorder %v6090, 8.507059e+37
    %v6092 = vand.u32 %v6009, 2147483648
    %v6093 = vor.u32 1.1754944e-38, %v6092
    %v6094 = vsel %vm6091, %v6093, %v6089
    %v6095 = vmul.f32 1.0, %v6094
    %v6096 = vrcp.pop %v6010
    %v6097 = vmul.f32 %v6010, %v6096
    %v6098 = vsub.f32 1.0, %v6097
    %v6099 = vmul.f32 %v6096, %v6098
    %v6100 = vadd.f32 %v6096, %v6099
    %vm6101 = vweird.f32 %v6010
    %vm6102 = vweird.f32 %v6096
    %vm6103 = vmor %vm6101, %vm6102
    %v6104 = vsel %vm6103, %v6096, %v6100
    %v6105 = vand.u32 2147483647, %v6010
    %vm6106 = vcmp.eq.f32.partialorder %v6105, 8.507059e+37
    %v6107 = vand.u32 %v6010, 2147483648
    %v6108 = vor.u32 1.1754944e-38, %v6107
    %v6109 = vsel %vm6106, %v6108, %v6104
    %v6110 = vmul.f32 1.0, %v6109
    %v6111 = vrcp.pop %v6011
    %v6112 = vmul.f32 %v6011, %v6111
    %v6113 = vsub.f32 1.0, %v6112
    %v6114 = vmul.f32 %v6111, %v6113
    %v6115 = vadd.f32 %v6111, %v6114
    %vm6116 = vweird.f32 %v6011
    %vm6117 = vweird.f32 %v6111
    %vm6118 = vmor %vm6116, %vm6117
    %v6119 = vsel %vm6118, %v6111, %v6115
    %v6120 = vand.u32 2147483647, %v6011
    %vm6121 = vcmp.eq.f32.partialorder %v6120, 8.507059e+37
    %v6122 = vand.u32 %v6011, 2147483648
    %v6123 = vor.u32 1.1754944e-38, %v6122
    %v6124 = vsel %vm6121, %v6123, %v6119
    %v6125 = vmul.f32 1.0, %v6124
    %v6126 = vrcp.pop %v6012
    %v6127 = vmul.f32 %v6012, %v6126
    %v6128 = vsub.f32 1.0, %v6127
    %v6129 = vmul.f32 %v6126, %v6128
    %v6130 = vadd.f32 %v6126, %v6129
    %vm6131 = vweird.f32 %v6012
    %vm6132 = vweird.f32 %v6126
    %vm6133 = vmor %vm6131, %vm6132
    %v6134 = vsel %vm6133, %v6126, %v6130
    %v6135 = vand.u32 2147483647, %v6012
    %vm6136 = vcmp.eq.f32.partialorder %v6135, 8.507059e+37
    %v6137 = vand.u32 %v6012, 2147483648
    %v6138 = vor.u32 1.1754944e-38, %v6137
    %v6139 = vsel %vm6136, %v6138, %v6134
    %v6140 = vmul.f32 1.0, %v6139
    %v6141 = vrcp.pop %v6013
    %v6142 = vmul.f32 %v6013, %v6141
    %v6143 = vsub.f32 1.0, %v6142
    %v6144 = vmul.f32 %v6141, %v6143
    %v6145 = vadd.f32 %v6141, %v6144
    %vm6146 = vweird.f32 %v6013
    %vm6147 = vweird.f32 %v6141
    %vm6148 = vmor %vm6146, %vm6147
    %v6149 = vsel %vm6148, %v6141, %v6145
    %v6150 = vand.u32 2147483647, %v6013
    %vm6151 = vcmp.eq.f32.partialorder %v6150, 8.507059e+37
    %v6152 = vand.u32 %v6013, 2147483648
    %v6153 = vor.u32 1.1754944e-38, %v6152
    %v6154 = vsel %vm6151, %v6153, %v6149
    %v6155 = vmul.f32 1.0, %v6154
    %v6156 = vrcp.pop %v6014
    %v6157 = vmul.f32 %v6014, %v6156
    %v6158 = vsub.f32 1.0, %v6157
    %v6159 = vmul.f32 %v6156, %v6158
    %v6160 = vadd.f32 %v6156, %v6159
    %vm6161 = vweird.f32 %v6014
    %vm6162 = vweird.f32 %v6156
    %vm6163 = vmor %vm6161, %vm6162
    %v6164 = vsel %vm6163, %v6156, %v6160
    %v6165 = vand.u32 2147483647, %v6014
    %vm6166 = vcmp.eq.f32.partialorder %v6165, 8.507059e+37
    %v6167 = vand.u32 %v6014, 2147483648
    %v6168 = vor.u32 1.1754944e-38, %v6167
    %v6169 = vsel %vm6166, %v6168, %v6164
    %v6170 = vmul.f32 1.0, %v6169
    %v6171 = vrcp.pop %v6015
    %v6172 = vmul.f32 %v6015, %v6171
    %v6173 = vsub.f32 1.0, %v6172
    %v6174 = vmul.f32 %v6171, %v6173
    %v6175 = vadd.f32 %v6171, %v6174
    %vm6176 = vweird.f32 %v6015
    %vm6177 = vweird.f32 %v6171
    %vm6178 = vmor %vm6176, %vm6177
    %v6179 = vsel %vm6178, %v6171, %v6175
    %v6180 = vand.u32 2147483647, %v6015
    %vm6181 = vcmp.eq.f32.partialorder %v6180, 8.507059e+37
    %v6182 = vand.u32 %v6015, 2147483648
    %v6183 = vor.u32 1.1754944e-38, %v6182
    %v6184 = vsel %vm6181, %v6183, %v6179
    %v6185 = vmul.f32 1.0, %v6184
    %v6186 = vrcp.pop %v6016
    %v6187 = vmul.f32 %v6016, %v6186
    %v6188 = vsub.f32 1.0, %v6187
    %v6189 = vmul.f32 %v6186, %v6188
    %v6190 = vadd.f32 %v6186, %v6189
    %vm6191 = vweird.f32 %v6016
    %vm6192 = vweird.f32 %v6186
    %vm6193 = vmor %vm6191, %vm6192
    %v6194 = vsel %vm6193, %v6186, %v6190
    %v6195 = vand.u32 2147483647, %v6016
    %vm6196 = vcmp.eq.f32.partialorder %v6195, 8.507059e+37
    %v6197 = vand.u32 %v6016, 2147483648
    %v6198 = vor.u32 1.1754944e-38, %v6197
    %v6199 = vsel %vm6196, %v6198, %v6194
    %v6200 = vmul.f32 1.0, %v6199
    %v6201 = vrcp.pop %v6017
    %v6202 = vmul.f32 %v6017, %v6201
    %v6203 = vsub.f32 1.0, %v6202
    %v6204 = vmul.f32 %v6201, %v6203
    %v6205 = vadd.f32 %v6201, %v6204
    %vm6206 = vweird.f32 %v6017
    %vm6207 = vweird.f32 %v6201
    %vm6208 = vmor %vm6206, %vm6207
    %v6209 = vsel %vm6208, %v6201, %v6205
    %v6210 = vand.u32 2147483647, %v6017
    %vm6211 = vcmp.eq.f32.partialorder %v6210, 8.507059e+37
    %v6212 = vand.u32 %v6017, 2147483648
    %v6213 = vor.u32 1.1754944e-38, %v6212
    %v6214 = vsel %vm6211, %v6213, %v6209
    %v6215 = vmul.f32 1.0, %v6214
    %v6216 = vrcp.pop %v6018
    %v6217 = vmul.f32 %v6018, %v6216
    %v6218 = vsub.f32 1.0, %v6217
    %v6219 = vmul.f32 %v6216, %v6218
    %v6220 = vadd.f32 %v6216, %v6219
    %vm6221 = vweird.f32 %v6018
    %vm6222 = vweird.f32 %v6216
    %vm6223 = vmor %vm6221, %vm6222
    %v6224 = vsel %vm6223, %v6216, %v6220
    %v6225 = vand.u32 2147483647, %v6018
    %vm6226 = vcmp.eq.f32.partialorder %v6225, 8.507059e+37
    %v6227 = vand.u32 %v6018, 2147483648
    %v6228 = vor.u32 1.1754944e-38, %v6227
    %v6229 = vsel %vm6226, %v6228, %v6224
    %v6230 = vmul.f32 1.0, %v6229
    %v6231 = vrcp.pop %v6019
    %v6232 = vmul.f32 %v6019, %v6231
    %v6233 = vsub.f32 1.0, %v6232
    %v6234 = vmul.f32 %v6231, %v6233
    %v6235 = vadd.f32 %v6231, %v6234
    %vm6236 = vweird.f32 %v6019
    %vm6237 = vweird.f32 %v6231
    %vm6238 = vmor %vm6236, %vm6237
    %v6239 = vsel %vm6238, %v6231, %v6235
    %v6240 = vand.u32 2147483647, %v6019
    %vm6241 = vcmp.eq.f32.partialorder %v6240, 8.507059e+37
    %v6242 = vand.u32 %v6019, 2147483648
    %v6243 = vor.u32 1.1754944e-38, %v6242
    %v6244 = vsel %vm6241, %v6243, %v6239
    %v6245 = vmul.f32 1.0, %v6244
    %v6246 = vrcp.pop %v6020
    %v6247 = vmul.f32 %v6020, %v6246
    %v6248 = vsub.f32 1.0, %v6247
    %v6249 = vmul.f32 %v6246, %v6248
    %v6250 = vadd.f32 %v6246, %v6249
    %vm6251 = vweird.f32 %v6020
    %vm6252 = vweird.f32 %v6246
    %vm6253 = vmor %vm6251, %vm6252
    %v6254 = vsel %vm6253, %v6246, %v6250
    %v6255 = vand.u32 2147483647, %v6020
    %vm6256 = vcmp.eq.f32.partialorder %v6255, 8.507059e+37
    %v6257 = vand.u32 %v6020, 2147483648
    %v6258 = vor.u32 1.1754944e-38, %v6257
    %v6259 = vsel %vm6256, %v6258, %v6254
    %v6260 = vmul.f32 1.0, %v6259
    %6261 = vst.msk [vmem:[%s19] sm:$0xff] %vm1899, %v6035
    %6262 = vst.msk [vmem:[%s19 + $0x8] sm:$0xff] %vm1899, %v6050
    %6263 = vst.msk [vmem:[%s19 + $0x10] sm:$0xff] %vm1899, %v6065
    %6264 = vst.msk [vmem:[%s19 + $0x18] sm:$0xff] %vm1899, %v6080
    %6265 = vst.msk [vmem:[%s19 + $0x20] sm:$0xff] %vm1899, %v6095
    %6266 = vst.msk [vmem:[%s19 + $0x28] sm:$0xff] %vm1899, %v6110
    %6267 = vst.msk [vmem:[%s19 + $0x30] sm:$0xff] %vm1899, %v6125
    %6268 = vst.msk [vmem:[%s19 + $0x38] sm:$0xff] %vm1899, %v6140
    %6269 = vst.msk [vmem:[%s19 + $0x40] sm:$0xff] %vm1899, %v6155
    %6270 = vst.msk [vmem:[%s19 + $0x48] sm:$0xff] %vm1899, %v6170
    %6271 = vst.msk [vmem:[%s19 + $0x50] sm:$0xff] %vm1899, %v6185
    %6272 = vst.msk [vmem:[%s19 + $0x58] sm:$0xff] %vm1899, %v6200
    %6273 = vst.msk [vmem:[%s19 + $0x60] sm:$0xff] %vm1899, %v6215
    %6274 = vst.msk [vmem:[%s19 + $0x68] sm:$0xff] %vm1899, %v6230
    %6275 = vst.msk [vmem:[%s19 + $0x70] sm:$0xff] %vm1899, %v6245
    %6276 = vst.msk [vmem:[%s19 + $0x78] sm:$0xff] %vm1899, %v6260
    // Predicated region
    $region142: #{res_conv_decoder.1} parent=1 // pred_check
      _
    $region143: #{res_conv_decoder.1} parent=1 // pred_check_branch
      %6278 = sbr.rel (0) target = $region145
    $region144: #{res_conv_decoder.1} parent=1 // pred_region
      _
    $region145: #{res_conv_decoder.1} parent=1 // pred_fallthru
      _
    // Predicated region
    $region146: #{res_conv_decoder.1} parent=1 // pred_check
      _
    $region147: #{res_conv_decoder.1} parent=1 // pred_check_branch
      %6280 = sbr.rel (0) target = $region149
    $region148: #{res_conv_decoder.1} parent=1 // pred_region
      _
    $region149: #{res_conv_decoder.1} parent=1 // pred_fallthru
      _
    %6281 = vsyncpa [#allocation7], 1
    %6282 = vsyncpa [#allocation9], 1
    %6283 = vsyncpa [#allocation12], 1
    %6284 = vsyncpa [#allocation15], 1
    %6285 = vsyncpa [#allocation18], 1
    %6286 = vsyncpa [#allocation21], 1
    %6287 = vsyncpa [#allocation24], 1
    %6288 = vsyncpa [#allocation27], 1
    %6289 = vsyncpa [#allocation30], 1

</llo_original>
